<compile_context>
chip_gen: v7x
topology: tpu7x:2x2x1
jax: 0.10.0
libtpu: 0.0.40
codegen_flags: <defaults>
</compile_context>

<pallas_src>
import functools

import jax
import jax.numpy as jnp
from jax import lax
from jax.experimental import pallas as pl
from jax.experimental.pallas import tpu as pltpu


def _round_up(v, m):
    return (v + m - 1) // m * m


# ----------------------------------------------------------------------------
# Fused kernel: one batch element per grid step.
# ----------------------------------------------------------------------------
def _fused_block_kernel(x_ref, w1_ref, s1_ref, b1_ref, w2_ref, s2_ref, b2_ref,
                        out_ref, xpad_ref, mid_ref, *,
                        H, W, dilation, row_chunk, Hp, wp, col_pad):
    """Refs:
      x_ref    : (1, H, W, Cin)     bf16   input tile (also the residual)
      w1/w2    : (3, 3*Cp, Cp)      bf16   conv weights, (kw, kh*Cp+ci, co)
      s*/b*    : (1, Cp)            f32    folded BatchNorm scale / shift
      out_ref  : (1, H, W, Cout)    f32 (or bf16)
      xpad_ref : VMEM (Hp+2,  wp, Cp) bf16  zero-padded conv1 input
      mid_ref  : VMEM (Hp+2d, wp, Cp) bf16  zero-padded conv1 activation
    """
    d = dilation
    f32 = jnp.float32
    bf16 = jnp.bfloat16
    cp = xpad_ref.shape[-1]        # lane-padded channel count (multiple of 128)
    c_in = x_ref.shape[-1]
    c_out = out_ref.shape[-1]
    Lp = row_chunk * wp

    # ---- stage 0: zero pads/halos ONCE.  Invariant: the interiors
    # (xpad rows [1,1+H) x cols [col_pad,col_pad+W) x chans [0,c_in); mid rows
    # [d, d+Hp) x cols [col_pad, wp) x all chans) are fully rewritten on every
    # grid step; every other element is only ever zero.  Requires sequential
    # grid traversal -> dimension_semantics=("arbitrary",).
    @pl.when(pl.program_id(0) == 0)
    def _():
        xpad_ref[...] = jnp.zeros_like(xpad_ref)
        mid_ref[...] = jnp.zeros_like(mid_ref)

    # interior store of this batch element (16-aligned start column)
    xpad_ref[1:H + 1, col_pad:col_pad + W, :c_in] = x_ref[0]

    def conv3x3_rows(src_ref, w_ref, r0, dil):
        """f32 (Lp, Cp) conv output for output rows [r0, r0+row_chunk).

        kh is folded into the contraction dim: the operand is three ALIGNED
        row slices of the flattened window concatenated on lanes (K = 3*Cp),
        so the conv is 3 matmuls (one per kw).  The kw / left-pad column shift
        is applied to the f32 MXU result with pltpu.roll (XLU); wrap-around
        only lands in padded columns >= W, which are masked / discarded.
        """
        nrows = row_chunk + 2 * dil
        win = src_ref[r0:r0 + nrows, :, :]               # (nrows, wp, Cp) bf16
        flat = win.reshape(nrows * wp, cp)               # wp % 16 == 0 -> clean
        operand = jnp.concatenate(
            [flat[kh * dil * wp:kh * dil * wp + Lp, :] for kh in range(3)],
            axis=-1)                                      # (Lp, 3*Cp) bf16
        acc = None
        for kw in range(3):
            p = jnp.dot(operand, w_ref[kw], preferred_element_type=f32)
            s = col_pad + (kw - 1) * dil                  # column tap shift
            if s != 0:
                p = pltpu.roll(p, Lp - s, axis=0)         # f32, XLU slot
            acc = p if acc is None else acc + p
        return acc

    s1 = s1_ref[...]
    b1 = b1_ref[...]
    s2 = s2_ref[...]
    b2 = b2_ref[...]

    # hoisted column-validity mask (JAX does not CSE broadcast_in_dim)
    col_ids = lax.broadcasted_iota(jnp.int32, (row_chunk, wp, 1), 1)
    col_valid = col_ids < W

    # ---- stage 1: conv1 + bn1 + relu -> padded bf16 VMEM scratch (never HBM) -
    for r0 in range(0, Hp, row_chunk):
        acc = conv3x3_rows(xpad_ref, w1_ref, r0, 1)
        y = jnp.maximum(acc * s1 + b1, 0.0)               # f32 epilogue
        valid = col_valid
        if r0 + row_chunk > H:                            # ragged final chunk
            row_ids = lax.broadcasted_iota(jnp.int32, (row_chunk, wp, 1), 0)
            valid = jnp.logical_and(valid, row_ids < (H - r0))
        y = jnp.where(valid.reshape(Lp, 1), y, 0.0)       # keep right pad zero
        y = y.astype(bf16).reshape(row_chunk, wp, cp)
        # 16-aligned start, 16-multiple width, 128-dense lanes -> unmasked vst
        mid_ref[d + r0:d + r0 + row_chunk, col_pad:wp, :] = y[:, :wp - col_pad, :]

    # ---- stage 2: conv2 (dilated) + bn2 + residual + relu -> output ---------
    for r0 in range(0, Hp, row_chunk):
        rows = min(row_chunk, H - r0)
        acc = conv3x3_rows(mid_ref, w2_ref, r0, d)
        z = acc * s2 + b2                                  # f32 epilogue
        z = z.reshape(row_chunk, wp, cp)[:rows, :W, :c_out]
        z = z + x_ref[0, r0:r0 + rows, :, :].astype(f32)   # identity add
        out_ref[0, r0:r0 + rows, :, :] = (
            jnp.maximum(z, 0.0).astype(out_ref.dtype))     # single store


# ----------------------------------------------------------------------------
# Module forward (stride=1, downsample=None configuration)
# ----------------------------------------------------------------------------
def basic_block_with_dilation(x_nchw, params, *, stride=1, dilation=1,
                              out_dtype=jnp.float32):
    if stride != 1:
        raise NotImplementedError(
            "stride != 1 requires a downsample path (not implemented)")
    x = jnp.transpose(x_nchw, (0, 2, 3, 1))                      # NCHW -> NHWC
    n, H, W, cin = x.shape
    cmid = params["w1"].shape[-1]
    assert params["w2"].shape[-1] == cmid and cin == cmid, (
        "downsample=None identity path requires inplanes == planes")
    d = int(dilation)

    bf16, f32 = jnp.bfloat16, jnp.float32
    cp = _round_up(cin, 128)            # lane-dense channels (weights/BN only)
    col_pad = _round_up(max(d, 1), 16)  # 16-aligned left pad (bf16 packed tiles)
    wp = _round_up(col_pad + W + max(d, 1), 16)
    row_chunk = 16 if cp <= 128 else 8  # bounds the live f32 accumulator
    Hp = _round_up(H, row_chunk)

    x_bf16 = x.astype(bf16)             # big tensors stay un-padded in HBM

    def fold_w(w):                      # (3,3,Ci,Co) -> (kw, kh*Cp+ci, co)
        w = jnp.pad(w.astype(bf16),
                    ((0, 0), (0, 0), (0, cp - w.shape[2]), (0, cp - w.shape[3])))
        return jnp.transpose(w, (1, 0, 2, 3)).reshape(3, 3 * cp, cp)

    def pad_bn(v):                      # (1,C) -> (1,Cp), zeros in pad channels
        return jnp.pad(v.astype(f32), ((0, 0), (0, cp - v.shape[1])))

    w1 = fold_w(params["w1"])
    w2 = fold_w(params["w2"])
    s1, b1 = pad_bn(params["scale1"]), pad_bn(params["shift1"])
    s2, b2 = pad_bn(params["scale2"]), pad_bn(params["shift2"])

    # VMEM budget from the actual shapes (scratch + double-buffered I/O + temps)
    out_itemsize = jnp.dtype(out_dtype).itemsize
    scratch_bytes = ((Hp + 2) + (Hp + 2 * d)) * wp * cp * 2
    io_bytes = (2 * H * W * cin * 2 +               # x, double-buffered
                2 * H * W * cmid * out_itemsize +   # out
                2 * 2 * 3 * 3 * cp * cp * 2 +       # w1, w2
                2 * 4 * cp * 4)                     # bn params
    tmp_bytes = ((row_chunk + 2 * max(d, 1)) * wp * 3 * cp * 2 +  # folded operand
                 4 * row_chunk * wp * cp * 4)                     # acc / epilogue
    vmem_limit = int(1.4 * (scratch_bytes + io_bytes + tmp_bytes)) + (8 << 20)
    vmem_limit = max(32 << 20, min(vmem_limit, 96 << 20))

    kernel = functools.partial(
        _fused_block_kernel, H=H, W=W, dilation=d,
        row_chunk=row_chunk, Hp=Hp, wp=wp, col_pad=col_pad)

    out_nhwc = pl.pallas_call(
        kernel,
        out_shape=jax.ShapeDtypeStruct((n, H, W, cmid), out_dtype),
        grid=(n,),
        in_specs=[
            pl.BlockSpec((1, H, W, cin), lambda b: (b, 0, 0, 0)),     # x (bf16)
            pl.BlockSpec((3, 3 * cp, cp), lambda b: (0, 0, 0)),       # w1 folded
            pl.BlockSpec((1, cp), lambda b: (0, 0)),                  # bn1 scale
            pl.BlockSpec((1, cp), lambda b: (0, 0)),                  # bn1 shift
            pl.BlockSpec((3, 3 * cp, cp), lambda b: (0, 0, 0)),       # w2 folded
            pl.BlockSpec((1, cp), lambda b: (0, 0)),                  # bn2 scale
            pl.BlockSpec((1, cp), lambda b: (0, 0)),                  # bn2 shift
        ],
        out_specs=pl.BlockSpec((1, H, W, cmid), lambda b: (b, 0, 0, 0)),
        scratch_shapes=[
            pltpu.VMEM((Hp + 2, wp, cp), jnp.bfloat16),       # padded conv1 input
            pltpu.VMEM((Hp + 2 * d, wp, cp), jnp.bfloat16),   # padded conv1 act.
        ],
        compiler_params=pltpu.CompilerParams(
            # "arbitrary": the zero-init-once scratch scheme needs sequential
            # grid traversal on one core (see TODO on the H-tile parallel axis).
            dimension_semantics=("arbitrary",),
            vmem_limit_bytes=vmem_limit),
    )(x_bf16, w1, s1, b1, w2, s2, b2)

    return jnp.transpose(out_nhwc, (0, 3, 1, 2))                 # NHWC -> NCHW


# ----------------------------------------------------------------------------
# Pure-JAX reference (mirrors the kernel's bf16-operand / f32-accum numerics)
# ----------------------------------------------------------------------------
def reference_block(x_nchw, params, *, dilation=1):
    f32, bf16 = jnp.float32, jnp.bfloat16

    def conv(x, w, dil, pad):
        return lax.conv_general_dilated(
            x, w, window_strides=(1, 1),
            padding=((pad, pad), (pad, pad)),
            rhs_dilation=(dil, dil),
            dimension_numbers=("NCHW", "HWIO", "NCHW"))

    def bn(x, scale, shift):
        return x * scale[0][None, :, None, None] + shift[0][None, :, None, None]

    xq = x_nchw.astype(bf16).astype(f32)          # bf16-rounded conv1/residual input
    w1 = params["w1"].astype(bf16).astype(f32)
    w2 = params["w2"].astype(bf16).astype(f32)

    out = jnp.maximum(bn(conv(xq, w1, 1, 1),
                         params["scale1"], params["shift1"]), 0.0)
    out = out.astype(bf16).astype(f32)            # bf16-rounded conv2 input
    out = bn(conv(out, w2, dilation, dilation),
             params["scale2"], params["shift2"])
    return jnp.maximum(out + xq, 0.0)


# ----------------------------------------------------------------------------
def make_params(key, inplanes, planes, eps=1e-5):
    ks = jax.random.split(key, 10)

    def bn_fold(kg, kb, km, kv, c):
        gamma = 1.0 + 0.1 * jax.random.normal(kg, (c,), jnp.float32)
        beta = 0.1 * jax.random.normal(kb, (c,), jnp.float32)
        mean = 0.1 * jax.random.normal(km, (c,), jnp.float32)
        var = jnp.abs(jax.random.normal(kv, (c,), jnp.float32)) + 1.0
        scale = gamma / jnp.sqrt(var + eps)
        shift = beta - mean * scale
        return scale[None, :], shift[None, :]

    w1 = 0.1 * jax.random.normal(ks[0], (3, 3, inplanes, planes), jnp.float32)
    w2 = 0.1 * jax.random.normal(ks[1], (3, 3, planes, planes), jnp.float32)
    scale1, shift1 = bn_fold(ks[2], ks[3], ks[4], ks[5], planes)
    scale2, shift2 = bn_fold(ks[6], ks[7], ks[8], ks[9], planes)
    return dict(w1=w1, w2=w2, scale1=scale1, shift1=shift1,
                scale2=scale2, shift2=shift2)


if __name__ == "__main__":
    N, C, H, W = 2, 4, 16, 16          # inplanes = planes = 4
    stride, dilation = 1, 2            # downsample=None config requires stride=1

    key = jax.random.PRNGKey(0)
    kx, kp = jax.random.split(key)
    x = jax.random.normal(kx, (N, C, H, W), jnp.float32)
    params = make_params(kp, C, C)

    out = basic_block_with_dilation(x, params, stride=stride, dilation=dilation)
    out = jax.block_until_ready(out)

    ref = reference_block(x, params, dilation=dilation)
    assert out.shape == ref.shape == (N, C, H, W)
    err = float(jnp.max(jnp.abs(out - ref)))
    # Tolerance covers occasional bf16 rounding-boundary disagreement on the
    # conv2 input activation; kernel and reference otherwise match to ~1e-5.
    assert jnp.allclose(out, ref, rtol=1e-2, atol=1e-2), f"max abs err {err}"

    print("KERNEL_OK")
</pallas_src>

<mosaic_0001>
module attributes {stable_mosaic.version = 11 : i64} {
  func.func @_fused_block_kernel(%arg0: i32, %arg1: memref<1x16x16x4xbf16, #tpu.memory_space<vmem>>, %arg2: memref<3x384x128xbf16, #tpu.memory_space<vmem>>, %arg3: memref<1x128xf32, #tpu.memory_space<vmem>>, %arg4: memref<1x128xf32, #tpu.memory_space<vmem>>, %arg5: memref<3x384x128xbf16, #tpu.memory_space<vmem>>, %arg6: memref<1x128xf32, #tpu.memory_space<vmem>>, %arg7: memref<1x128xf32, #tpu.memory_space<vmem>>, %arg8: memref<1x16x16x4xf32, #tpu.memory_space<vmem>>, %arg9: memref<18x48x128xbf16, #tpu.memory_space<vmem>>, %arg10: memref<20x48x128xbf16, #tpu.memory_space<vmem>>) attributes {dimension_semantics = [#tpu.dimension_semantics<arbitrary>], iteration_bounds = array<i64: 2>, scalar_prefetch = 0 : i64, scratch_operands = 2 : i64, tpu.core_type = #tpu.core_type<tc>, window_params = [{transform_indices = @transform_0, window_bounds = array<i64: 1, 16, 16, 4>}, {pipeline_mode = #tpu.pipeline_mode<synchronous>, transform_indices = @transform_1, window_bounds = array<i64: 3, 384, 128>}, {pipeline_mode = #tpu.pipeline_mode<synchronous>, transform_indices = @transform_2, window_bounds = array<i64: 1, 128>}, {pipeline_mode = #tpu.pipeline_mode<synchronous>, transform_indices = @transform_3, window_bounds = array<i64: 1, 128>}, {pipeline_mode = #tpu.pipeline_mode<synchronous>, transform_indices = @transform_4, window_bounds = array<i64: 3, 384, 128>}, {pipeline_mode = #tpu.pipeline_mode<synchronous>, transform_indices = @transform_5, window_bounds = array<i64: 1, 128>}, {pipeline_mode = #tpu.pipeline_mode<synchronous>, transform_indices = @transform_6, window_bounds = array<i64: 1, 128>}, {transform_indices = @transform_7, window_bounds = array<i64: 1, 16, 16, 4>}]} {
    %c0_i32 = arith.constant 0 : i32
    %0 = arith.cmpi eq, %arg0, %c0_i32 : i32
    %1 = arith.extui %0 : i1 to i32
    %c0_i32_0 = arith.constant 0 : i32
    %2 = arith.cmpi ne, %1, %c0_i32_0 : i32
    scf.if %2 {
      %cst_56 = arith.constant 0.000000e+00 : bf16
      %83 = vector.broadcast %cst_56 : bf16 to vector<18x48x128xbf16>
      %c0_57 = arith.constant 0 : index
      %c0_58 = arith.constant 0 : index
      %c0_59 = arith.constant 0 : index
      %84 = vector.load %arg9[%c0_57, %c0_58, %c0_59] : memref<18x48x128xbf16, #tpu.memory_space<vmem>>, vector<18x48x128xbf16>
      tpu.vector_store %arg9[%c0_57, %c0_58, %c0_59], %83 {strides = array<i32>} : memref<18x48x128xbf16, #tpu.memory_space<vmem>>, vector<18x48x128xbf16>,
      %cst_60 = arith.constant 0.000000e+00 : bf16
      %85 = vector.broadcast %cst_60 : bf16 to vector<20x48x128xbf16>
      %c0_61 = arith.constant 0 : index
      %c0_62 = arith.constant 0 : index
      %c0_63 = arith.constant 0 : index
      %86 = vector.load %arg10[%c0_61, %c0_62, %c0_63] : memref<20x48x128xbf16, #tpu.memory_space<vmem>>, vector<20x48x128xbf16>
      tpu.vector_store %arg10[%c0_61, %c0_62, %c0_63], %85 {strides = array<i32>} : memref<20x48x128xbf16, #tpu.memory_space<vmem>>, vector<20x48x128xbf16>,
    } else {
    }
    %c0 = arith.constant 0 : index
    %c0_1 = arith.constant 0 : index
    %c0_2 = arith.constant 0 : index
    %c0_3 = arith.constant 0 : index
    %3 = vector.load %arg1[%c0, %c0_1, %c0_2, %c0_3] : memref<1x16x16x4xbf16, #tpu.memory_space<vmem>>, vector<1x16x16x4xbf16>
    %4 = vector.shape_cast %3 : vector<1x16x16x4xbf16> to vector<16x16x4xbf16>
    %c1 = arith.constant 1 : index
    %c16 = arith.constant 16 : index
    %c0_4 = arith.constant 0 : index
    %5 = vector.load %arg9[%c1, %c16, %c0_4] : memref<18x48x128xbf16, #tpu.memory_space<vmem>>, vector<16x16x4xbf16>
    tpu.vector_store %arg9[%c1, %c16, %c0_4], %4 {strides = array<i32>} : memref<18x48x128xbf16, #tpu.memory_space<vmem>>, vector<16x16x4xbf16>,
    %c0_5 = arith.constant 0 : index
    %c0_6 = arith.constant 0 : index
    %6 = vector.load %arg3[%c0_5, %c0_6] : memref<1x128xf32, #tpu.memory_space<vmem>>, vector<1x128xf32>
    %c0_7 = arith.constant 0 : index
    %c0_8 = arith.constant 0 : index
    %7 = vector.load %arg4[%c0_7, %c0_8] : memref<1x128xf32, #tpu.memory_space<vmem>>, vector<1x128xf32>
    %c0_9 = arith.constant 0 : index
    %c0_10 = arith.constant 0 : index
    %8 = vector.load %arg6[%c0_9, %c0_10] : memref<1x128xf32, #tpu.memory_space<vmem>>, vector<1x128xf32>
    %c0_11 = arith.constant 0 : index
    %c0_12 = arith.constant 0 : index
    %9 = vector.load %arg7[%c0_11, %c0_12] : memref<1x128xf32, #tpu.memory_space<vmem>>, vector<1x128xf32>
    %10 = tpu.iota {dimensions = array<i32: 1>} : vector<16x48x1xi32>
    %c16_i32 = arith.constant 16 : i32
    %11 = vector.broadcast %c16_i32 : i32 to vector<16x48x1xi32>
    %12 = arith.cmpi slt, %10, %11 : vector<16x48x1xi32>
    %c0_13 = arith.constant 0 : index
    %c0_14 = arith.constant 0 : index
    %c0_15 = arith.constant 0 : index
    %13 = vector.load %arg9[%c0_13, %c0_14, %c0_15] : memref<18x48x128xbf16, #tpu.memory_space<vmem>>, vector<18x48x128xbf16>
    %14 = vector.shape_cast %13 : vector<18x48x128xbf16> to vector<864x128xbf16>
    %15 = vector.extract_strided_slice %14 {offsets = [0, 0], sizes = [768, 128], strides = [1, 1]} : vector<864x128xbf16> to vector<768x128xbf16>
    %16 = vector.extract_strided_slice %14 {offsets = [48, 0], sizes = [768, 128], strides = [1, 1]} : vector<864x128xbf16> to vector<768x128xbf16>
    %17 = vector.extract_strided_slice %14 {offsets = [96, 0], sizes = [768, 128], strides = [1, 1]} : vector<864x128xbf16> to vector<768x128xbf16>
    %18 = tpu.concatenate %15, %16, %17 in 1 : vector<768x128xbf16>, vector<768x128xbf16>, vector<768x128xbf16> -> vector<768x384xbf16>
    %c0_16 = arith.constant 0 : index
    %c0_17 = arith.constant 0 : index
    %c0_18 = arith.constant 0 : index
    %19 = vector.load %arg2[%c0_16, %c0_17, %c0_18] : memref<3x384x128xbf16, #tpu.memory_space<vmem>>, vector<1x384x128xbf16>
    %20 = vector.shape_cast %19 : vector<1x384x128xbf16> to vector<384x128xbf16>
    %cst = arith.constant dense<0.000000e+00> : vector<768x128xf32>
    %21 = tpu.matmul %18, %20, %cst {dimension_numbers = #tpu.dot_dimension_numbers<[1], [0], [0], [1], [0, 0, 1, 1], [], []>} : vector<768x384xbf16>, vector<384x128xbf16>, vector<768x128xf32> -> vector<768x128xf32>
    %c753_i32 = arith.constant 753 : i32
    %22 = tpu.dynamic_rotate %21 by %c753_i32 dim 0 : vector<768x128xf32>, i32 -> vector<768x128xf32>
    %c1_19 = arith.constant 1 : index
    %c0_20 = arith.constant 0 : index
    %c0_21 = arith.constant 0 : index
    %23 = vector.load %arg2[%c1_19, %c0_20, %c0_21] : memref<3x384x128xbf16, #tpu.memory_space<vmem>>, vector<1x384x128xbf16>
    %24 = vector.shape_cast %23 : vector<1x384x128xbf16> to vector<384x128xbf16>
    %cst_22 = arith.constant dense<0.000000e+00> : vector<768x128xf32>
    %25 = tpu.matmul %18, %24, %cst_22 {dimension_numbers = #tpu.dot_dimension_numbers<[1], [0], [0], [1], [0, 0, 1, 1], [], []>} : vector<768x384xbf16>, vector<384x128xbf16>, vector<768x128xf32> -> vector<768x128xf32>
    %c752_i32 = arith.constant 752 : i32
    %26 = tpu.dynamic_rotate %25 by %c752_i32 dim 0 : vector<768x128xf32>, i32 -> vector<768x128xf32>
    %27 = arith.addf %22, %26 : vector<768x128xf32>
    %c2 = arith.constant 2 : index
    %c0_23 = arith.constant 0 : index
    %c0_24 = arith.constant 0 : index
    %28 = vector.load %arg2[%c2, %c0_23, %c0_24] : memref<3x384x128xbf16, #tpu.memory_space<vmem>>, vector<1x384x128xbf16>
    %29 = vector.shape_cast %28 : vector<1x384x128xbf16> to vector<384x128xbf16>
    %cst_25 = arith.constant dense<0.000000e+00> : vector<768x128xf32>
    %30 = tpu.matmul %18, %29, %cst_25 {dimension_numbers = #tpu.dot_dimension_numbers<[1], [0], [0], [1], [0, 0, 1, 1], [], []>} : vector<768x384xbf16>, vector<384x128xbf16>, vector<768x128xf32> -> vector<768x128xf32>
    %c751_i32 = arith.constant 751 : i32
    %31 = tpu.dynamic_rotate %30 by %c751_i32 dim 0 : vector<768x128xf32>, i32 -> vector<768x128xf32>
    %32 = arith.addf %27, %31 : vector<768x128xf32>
    %33 = vector.broadcast %6 : vector<1x128xf32> to vector<768x128xf32>
    %34 = arith.mulf %32, %33 : vector<768x128xf32>
    %35 = vector.broadcast %7 : vector<1x128xf32> to vector<768x128xf32>
    %36 = arith.addf %34, %35 : vector<768x128xf32>
    %cst_26 = arith.constant 0.000000e+00 : f32
    %37 = vector.broadcast %cst_26 : f32 to vector<768x128xf32>
    %38 = arith.maximumf %36, %37 : vector<768x128xf32>
    %39 = vector.shape_cast %12 : vector<16x48x1xi1> to vector<768x1xi1>
    %cst_27 = arith.constant 0.000000e+00 : f32
    %40 = vector.shape_cast %39 : vector<768x1xi1> to vector<768x1xi1>
    %41 = vector.broadcast %40 : vector<768x1xi1> to vector<768x128xi1>
    %42 = vector.broadcast %cst_27 : f32 to vector<768x128xf32>
    %43 = arith.select %41, %38, %42 : vector<768x128xi1>, vector<768x128xf32>
    %44 = arith.truncf %43 : vector<768x128xf32> to vector<768x128xbf16>
    %45 = vector.shape_cast %44 : vector<768x128xbf16> to vector<16x48x128xbf16>
    %46 = vector.extract_strided_slice %45 {offsets = [0, 0, 0], sizes = [16, 32, 128], strides = [1, 1, 1]} : vector<16x48x128xbf16> to vector<16x32x128xbf16>
    %c2_28 = arith.constant 2 : index
    %c16_29 = arith.constant 16 : index
    %c0_30 = arith.constant 0 : index
    %47 = vector.load %arg10[%c2_28, %c16_29, %c0_30] : memref<20x48x128xbf16, #tpu.memory_space<vmem>>, vector<16x32x128xbf16>
    tpu.vector_store %arg10[%c2_28, %c16_29, %c0_30], %46 {strides = array<i32>} : memref<20x48x128xbf16, #tpu.memory_space<vmem>>, vector<16x32x128xbf16>,
    %c0_31 = arith.constant 0 : index
    %c0_32 = arith.constant 0 : index
    %c0_33 = arith.constant 0 : index
    %48 = vector.load %arg10[%c0_31, %c0_32, %c0_33] : memref<20x48x128xbf16, #tpu.memory_space<vmem>>, vector<20x48x128xbf16>
    %49 = vector.shape_cast %48 : vector<20x48x128xbf16> to vector<960x128xbf16>
    %50 = vector.extract_strided_slice %49 {offsets = [0, 0], sizes = [768, 128], strides = [1, 1]} : vector<960x128xbf16> to vector<768x128xbf16>
    %51 = vector.extract_strided_slice %49 {offsets = [96, 0], sizes = [768, 128], strides = [1, 1]} : vector<960x128xbf16> to vector<768x128xbf16>
    %52 = vector.extract_strided_slice %49 {offsets = [192, 0], sizes = [768, 128], strides = [1, 1]} : vector<960x128xbf16> to vector<768x128xbf16>
    %53 = tpu.concatenate %50, %51, %52 in 1 : vector<768x128xbf16>, vector<768x128xbf16>, vector<768x128xbf16> -> vector<768x384xbf16>
    %c0_34 = arith.constant 0 : index
    %c0_35 = arith.constant 0 : index
    %c0_36 = arith.constant 0 : index
    %54 = vector.load %arg5[%c0_34, %c0_35, %c0_36] : memref<3x384x128xbf16, #tpu.memory_space<vmem>>, vector<1x384x128xbf16>
    %55 = vector.shape_cast %54 : vector<1x384x128xbf16> to vector<384x128xbf16>
    %cst_37 = arith.constant dense<0.000000e+00> : vector<768x128xf32>
    %56 = tpu.matmul %53, %55, %cst_37 {dimension_numbers = #tpu.dot_dimension_numbers<[1], [0], [0], [1], [0, 0, 1, 1], [], []>} : vector<768x384xbf16>, vector<384x128xbf16>, vector<768x128xf32> -> vector<768x128xf32>
    %c754_i32 = arith.constant 754 : i32
    %57 = tpu.dynamic_rotate %56 by %c754_i32 dim 0 : vector<768x128xf32>, i32 -> vector<768x128xf32>
    %c1_38 = arith.constant 1 : index
    %c0_39 = arith.constant 0 : index
    %c0_40 = arith.constant 0 : index
    %58 = vector.load %arg5[%c1_38, %c0_39, %c0_40] : memref<3x384x128xbf16, #tpu.memory_space<vmem>>, vector<1x384x128xbf16>
    %59 = vector.shape_cast %58 : vector<1x384x128xbf16> to vector<384x128xbf16>
    %cst_41 = arith.constant dense<0.000000e+00> : vector<768x128xf32>
    %60 = tpu.matmul %53, %59, %cst_41 {dimension_numbers = #tpu.dot_dimension_numbers<[1], [0], [0], [1], [0, 0, 1, 1], [], []>} : vector<768x384xbf16>, vector<384x128xbf16>, vector<768x128xf32> -> vector<768x128xf32>
    %c752_i32_42 = arith.constant 752 : i32
    %61 = tpu.dynamic_rotate %60 by %c752_i32_42 dim 0 : vector<768x128xf32>, i32 -> vector<768x128xf32>
    %62 = arith.addf %57, %61 : vector<768x128xf32>
    %c2_43 = arith.constant 2 : index
    %c0_44 = arith.constant 0 : index
    %c0_45 = arith.constant 0 : index
    %63 = vector.load %arg5[%c2_43, %c0_44, %c0_45] : memref<3x384x128xbf16, #tpu.memory_space<vmem>>, vector<1x384x128xbf16>
    %64 = vector.shape_cast %63 : vector<1x384x128xbf16> to vector<384x128xbf16>
    %cst_46 = arith.constant dense<0.000000e+00> : vector<768x128xf32>
    %65 = tpu.matmul %53, %64, %cst_46 {dimension_numbers = #tpu.dot_dimension_numbers<[1], [0], [0], [1], [0, 0, 1, 1], [], []>} : vector<768x384xbf16>, vector<384x128xbf16>, vector<768x128xf32> -> vector<768x128xf32>
    %c750_i32 = arith.constant 750 : i32
    %66 = tpu.dynamic_rotate %65 by %c750_i32 dim 0 : vector<768x128xf32>, i32 -> vector<768x128xf32>
    %67 = arith.addf %62, %66 : vector<768x128xf32>
    %68 = vector.broadcast %8 : vector<1x128xf32> to vector<768x128xf32>
    %69 = arith.mulf %67, %68 : vector<768x128xf32>
    %70 = vector.broadcast %9 : vector<1x128xf32> to vector<768x128xf32>
    %71 = arith.addf %69, %70 : vector<768x128xf32>
    %72 = vector.shape_cast %71 : vector<768x128xf32> to vector<16x48x128xf32>
    %73 = vector.extract_strided_slice %72 {offsets = [0, 0, 0], sizes = [16, 16, 4], strides = [1, 1, 1]} : vector<16x48x128xf32> to vector<16x16x4xf32>
    %c0_47 = arith.constant 0 : index
    %c0_48 = arith.constant 0 : index
    %c0_49 = arith.constant 0 : index
    %c0_50 = arith.constant 0 : index
    %74 = vector.load %arg1[%c0_47, %c0_48, %c0_49, %c0_50] : memref<1x16x16x4xbf16, #tpu.memory_space<vmem>>, vector<1x16x16x4xbf16>
    %75 = vector.shape_cast %74 : vector<1x16x16x4xbf16> to vector<16x16x4xbf16>
    %76 = arith.extf %75 : vector<16x16x4xbf16> to vector<16x16x4xf32>
    %77 = arith.addf %73, %76 : vector<16x16x4xf32>
    %cst_51 = arith.constant 0.000000e+00 : f32
    %78 = vector.broadcast %cst_51 : f32 to vector<16x16x4xf32>
    %79 = arith.maximumf %77, %78 : vector<16x16x4xf32>
    %c0_52 = arith.constant 0 : index
    %c0_53 = arith.constant 0 : index
    %c0_54 = arith.constant 0 : index
    %c0_55 = arith.constant 0 : index
    %80 = vector.load %arg8[%c0_52, %c0_53, %c0_54, %c0_55] : memref<1x16x16x4xf32, #tpu.memory_space<vmem>>, vector<1x16x16x4xf32>
    %81 = vector.shape_cast %80 : vector<1x16x16x4xf32> to vector<16x16x4xf32>
    %82 = vector.shape_cast %79 : vector<16x16x4xf32> to vector<1x16x16x4xf32>
    tpu.vector_store %arg8[%c0_52, %c0_53, %c0_54, %c0_55], %82 {strides = array<i32>} : memref<1x16x16x4xf32, #tpu.memory_space<vmem>>, vector<1x16x16x4xf32>,
    return
  }
  func.func @transform_0(%arg0: i32) -> (i32, i32, i32, i32) {
    %c0_i32 = arith.constant 0 : i32
    %c0_i32_0 = arith.constant 0 : i32
    %c0_i32_1 = arith.constant 0 : i32
    %c0_i32_2 = arith.constant 0 : i32
    return %arg0, %c0_i32, %c0_i32_0, %c0_i32_1 : i32, i32, i32, i32
  }
  func.func @transform_1(%arg0: i32) -> (i32, i32, i32) {
    %c0_i32 = arith.constant 0 : i32
    %c0_i32_0 = arith.constant 0 : i32
    %c0_i32_1 = arith.constant 0 : i32
    %c0_i32_2 = arith.constant 0 : i32
    return %c0_i32, %c0_i32_0, %c0_i32_1 : i32, i32, i32
  }
  func.func @transform_2(%arg0: i32) -> (i32, i32) {
    %c0_i32 = arith.constant 0 : i32
    %c0_i32_0 = arith.constant 0 : i32
    %c0_i32_1 = arith.constant 0 : i32
    return %c0_i32, %c0_i32_0 : i32, i32
  }
  func.func @transform_3(%arg0: i32) -> (i32, i32) {
    %c0_i32 = arith.constant 0 : i32
    %c0_i32_0 = arith.constant 0 : i32
    %c0_i32_1 = arith.constant 0 : i32
    return %c0_i32, %c0_i32_0 : i32, i32
  }
  func.func @transform_4(%arg0: i32) -> (i32, i32, i32) {
    %c0_i32 = arith.constant 0 : i32
    %c0_i32_0 = arith.constant 0 : i32
    %c0_i32_1 = arith.constant 0 : i32
    %c0_i32_2 = arith.constant 0 : i32
    return %c0_i32, %c0_i32_0, %c0_i32_1 : i32, i32, i32
  }
  func.func @transform_5(%arg0: i32) -> (i32, i32) {
    %c0_i32 = arith.constant 0 : i32
    %c0_i32_0 = arith.constant 0 : i32
    %c0_i32_1 = arith.constant 0 : i32
    return %c0_i32, %c0_i32_0 : i32, i32
  }
  func.func @transform_6(%arg0: i32) -> (i32, i32) {
    %c0_i32 = arith.constant 0 : i32
    %c0_i32_0 = arith.constant 0 : i32
    %c0_i32_1 = arith.constant 0 : i32
    return %c0_i32, %c0_i32_0 : i32, i32
  }
  func.func @transform_7(%arg0: i32) -> (i32, i32, i32, i32) {
    %c0_i32 = arith.constant 0 : i32
    %c0_i32_0 = arith.constant 0 : i32
    %c0_i32_1 = arith.constant 0 : i32
    %c0_i32_2 = arith.constant 0 : i32
    return %arg0, %c0_i32, %c0_i32_0, %c0_i32_1 : i32, i32, i32, i32
  }
}

</mosaic_0001>

<llo_original>
// kernel: tpu_custom_call.1
$region0: #{tpu_custom_call.1}
  #allocation0 [shape = 'u32[]', space=smem, size = 0x4, offset = 0x4, fixed_abs, tag = 'smem constant byte address 0x4 - core index']
  #allocation1 [shape = 'u32[144,128]{1,0:T(1,128)}', space=vmem, size = 0x12000, scoped, tag = 'internal scratch']
  #allocation2 [shape = 'bf16[18,48,128]{2,1,0:T(16,128)(2,1)}', space=vmem, size = 0x36000, scoped, tag = 'scratch operand']
  #allocation3 [shape = 'bf16[20,48,128]{2,1,0:T(16,128)(2,1)}', space=vmem, size = 0x3c000, scoped, tag = 'scratch operand']
  %s0 = inlined_call_operand.vmem [shape: bf16[2,16,16,4], index: 0, kind: input, shape index: {}]
  %s1 = inlined_call_operand.hbm [shape: bf16[3,384,128], index: 1, kind: input, shape index: {}]
  %s2 = inlined_call_operand.vmem [shape: f32[1,128], index: 2, kind: input, shape index: {}]
  %s3 = inlined_call_operand.vmem [shape: f32[1,128], index: 3, kind: input, shape index: {}]
  %s4 = inlined_call_operand.hbm [shape: bf16[3,384,128], index: 4, kind: input, shape index: {}]
  %s5 = inlined_call_operand.vmem [shape: f32[1,128], index: 5, kind: input, shape index: {}]
  %s6 = inlined_call_operand.vmem [shape: f32[1,128], index: 6, kind: input, shape index: {}]
  %s7 = inlined_call_operand.vmem [shape: f32[2,16,16,4], index: 7, kind: output, shape index: {}]
  %s8 = sld [smem:[#allocation0]]
  $region73: #{tpu_custom_call.1} parent=0
    _
  %s10 = ssub.s32 1, %s8
  %s11 = scalar_select 0, %s10, %s8
  $region1: #{tpu_custom_call.1} parent=0
    #allocation4 [shape = 'u8[294912]{0}', space=vmem, size = 0x48000, scoped, tag = 'input window, operand 1, single buffered']
    #allocation5 [shape = 's32[2]{0}', space=sflag, size = 0x8, scoped, tag = 'scoped memory for tpu_custom_call.1']
    #allocation6 [shape = 'u8[294912]{0}', space=vmem, size = 0x48000, scoped, tag = 'input window, operand 4, single buffered']
    #allocation7 [shape = 's32[1]{0}', space=sflag, size = 0x4, scoped, tag = 'scoped memory for tpu_custom_call.1']
    %12 = vsyncpa [#allocation5], 0
    %13 = vsyncpa [#allocation7], 0
    loop: start=0, step=1, limit=4
    $region2: #{tpu_custom_call.1} parent=1 // loop_pre_header
      _
    $region3: #{tpu_custom_call.1} parent=1 // loop_header
      %s15 = sphi 0, %s19
      %p16 = scmp.ge.s32.totalorder %s15, 4
      %s25 = sphi 0, %s27
      %s28 = sphi 0, %s25
      %s29 = sphi 0, %s28
      %s45 = sphi 0, %s29
      %s49 = sphi 0, %s49
      %s51 = sphi 0, %s49
      %s52 = sphi 0, %s51
      %s66 = sphi 0, %s52
      %s70 = sphi 0, %s70
      %s72 = sphi 0, %s70
      %s73 = sphi 0, %s72
      %s87 = sphi 0, %s73
      %s91 = sphi 0, %s91
      %s93 = sphi 0, %s91
      %s94 = sphi 0, %s93
      %s108 = sphi 0, %s94
      %s112 = sphi 0, %s112
      %s114 = sphi 0, %s112
      %s115 = sphi 0, %s114
      %s129 = sphi 0, %s115
      %s133 = sphi 0, %s133
      %s135 = sphi 0, %s133
      %s136 = sphi 0, %s135
      %s150 = sphi 0, %s136
      %s154 = sphi 0, %s154
      %s156 = sphi 0, %s154
      %s157 = sphi 0, %s156
      %s171 = sphi 0, %s157
      %s177 = sphi 0, %s179
      %s180 = sphi 0, %s177
      %s181 = sphi 0, %s180
      %s197 = sphi 0, %s181
    $region4: #{tpu_custom_call.1} parent=1 // loop_header_branch
      %18 = sbr.rel (%p16) target = $region8
    $region5: #{tpu_custom_call.1} parent=1 // loop_body
      %s20 = ssub.s32 %s15, 1
      %s21 = ssub.s32 %s15, 2
      %s22 = sadd.s32 %s15, 1
      %s23 = ssub.s32 %s15, %s22
      %p24 = scmp.eq.s32.totalorder %s23, 0
      %s26 = sadd.s32 %s25, 1
      %s27 = scalar_select %p24, %s25, %s26
      %p30 = pneg %p24
      %p31 = scmp.eq.s32.totalorder %s15, 1
      %p32 = por %p30, %p31
      %p33 = scmp.ne.s32.totalorder %s25, %s28
      %p34 = scmp.eq.s32.totalorder %s15, 0
      %p35 = por %p33, %p34
      %p36 = scmp.ne.s32.totalorder %s25, %s28
      %p37 = scmp.eq.s32.totalorder %s20, 1
      %p38 = por %p36, %p37
      %p39 = scmp.ne.s32.totalorder %s28, %s29
      %p40 = scmp.eq.s32.totalorder %s20, 0
      %p41 = por %p39, %p40
      %p42 = scmp.ne.s32.totalorder %s28, %s29
      %p43 = scmp.eq.s32.totalorder %s21, 1
      %p44 = por %p42, %p43
      %p46 = scmp.ne.s32.totalorder %s29, %s45
      %p47 = scmp.eq.s32.totalorder %s21, 0
      %p48 = por %p46, %p47
      %s50 = sadd.s32 %s49, 1
      %p53 = scmp.eq.s32.totalorder %s15, 1
      %p54 = scmp.ne.s32.totalorder %s49, %s51
      %p55 = scmp.eq.s32.totalorder %s15, 0
      %p56 = por %p54, %p55
      %p57 = scmp.ne.s32.totalorder %s49, %s51
      %p58 = scmp.eq.s32.totalorder %s20, 1
      %p59 = por %p57, %p58
      %p60 = scmp.ne.s32.totalorder %s51, %s52
      %p61 = scmp.eq.s32.totalorder %s20, 0
      %p62 = por %p60, %p61
      %p63 = scmp.ne.s32.totalorder %s51, %s52
      %p64 = scmp.eq.s32.totalorder %s21, 1
      %p65 = por %p63, %p64
      %p67 = scmp.ne.s32.totalorder %s52, %s66
      %p68 = scmp.eq.s32.totalorder %s21, 0
      %p69 = por %p67, %p68
      %s71 = sadd.s32 %s70, 1
      %p74 = scmp.eq.s32.totalorder %s15, 1
      %p75 = scmp.ne.s32.totalorder %s70, %s72
      %p76 = scmp.eq.s32.totalorder %s15, 0
      %p77 = por %p75, %p76
      %p78 = scmp.ne.s32.totalorder %s70, %s72
      %p79 = scmp.eq.s32.totalorder %s20, 1
      %p80 = por %p78, %p79
      %p81 = scmp.ne.s32.totalorder %s72, %s73
      %p82 = scmp.eq.s32.totalorder %s20, 0
      %p83 = por %p81, %p82
      %p84 = scmp.ne.s32.totalorder %s72, %s73
      %p85 = scmp.eq.s32.totalorder %s21, 1
      %p86 = por %p84, %p85
      %p88 = scmp.ne.s32.totalorder %s73, %s87
      %p89 = scmp.eq.s32.totalorder %s21, 0
      %p90 = por %p88, %p89
      %s92 = sadd.s32 %s91, 1
      %p95 = scmp.eq.s32.totalorder %s15, 1
      %p96 = scmp.ne.s32.totalorder %s91, %s93
      %p97 = scmp.eq.s32.totalorder %s15, 0
      %p98 = por %p96, %p97
      %p99 = scmp.ne.s32.totalorder %s91, %s93
      %p100 = scmp.eq.s32.totalorder %s20, 1
      %p101 = por %p99, %p100
      %p102 = scmp.ne.s32.totalorder %s93, %s94
      %p103 = scmp.eq.s32.totalorder %s20, 0
      %p104 = por %p102, %p103
      %p105 = scmp.ne.s32.totalorder %s93, %s94
      %p106 = scmp.eq.s32.totalorder %s21, 1
      %p107 = por %p105, %p106
      %p109 = scmp.ne.s32.totalorder %s94, %s108
      %p110 = scmp.eq.s32.totalorder %s21, 0
      %p111 = por %p109, %p110
      %s113 = sadd.s32 %s112, 1
      %p116 = scmp.eq.s32.totalorder %s15, 1
      %p117 = scmp.ne.s32.totalorder %s112, %s114
      %p118 = scmp.eq.s32.totalorder %s15, 0
      %p119 = por %p117, %p118
      %p120 = scmp.ne.s32.totalorder %s112, %s114
      %p121 = scmp.eq.s32.totalorder %s20, 1
      %p122 = por %p120, %p121
      %p123 = scmp.ne.s32.totalorder %s114, %s115
      %p124 = scmp.eq.s32.totalorder %s20, 0
      %p125 = por %p123, %p124
      %p126 = scmp.ne.s32.totalorder %s114, %s115
      %p127 = scmp.eq.s32.totalorder %s21, 1
      %p128 = por %p126, %p127
      %p130 = scmp.ne.s32.totalorder %s115, %s129
      %p131 = scmp.eq.s32.totalorder %s21, 0
      %p132 = por %p130, %p131
      %s134 = sadd.s32 %s133, 1
      %p137 = scmp.eq.s32.totalorder %s15, 1
      %p138 = scmp.ne.s32.totalorder %s133, %s135
      %p139 = scmp.eq.s32.totalorder %s15, 0
      %p140 = por %p138, %p139
      %p141 = scmp.ne.s32.totalorder %s133, %s135
      %p142 = scmp.eq.s32.totalorder %s20, 1
      %p143 = por %p141, %p142
      %p144 = scmp.ne.s32.totalorder %s135, %s136
      %p145 = scmp.eq.s32.totalorder %s20, 0
      %p146 = por %p144, %p145
      %p147 = scmp.ne.s32.totalorder %s135, %s136
      %p148 = scmp.eq.s32.totalorder %s21, 1
      %p149 = por %p147, %p148
      %p151 = scmp.ne.s32.totalorder %s136, %s150
      %p152 = scmp.eq.s32.totalorder %s21, 0
      %p153 = por %p151, %p152
      %s155 = sadd.s32 %s154, 1
      %p158 = scmp.eq.s32.totalorder %s15, 1
      %p159 = scmp.ne.s32.totalorder %s154, %s156
      %p160 = scmp.eq.s32.totalorder %s15, 0
      %p161 = por %p159, %p160
      %p162 = scmp.ne.s32.totalorder %s154, %s156
      %p163 = scmp.eq.s32.totalorder %s20, 1
      %p164 = por %p162, %p163
      %p165 = scmp.ne.s32.totalorder %s156, %s157
      %p166 = scmp.eq.s32.totalorder %s20, 0
      %p167 = por %p165, %p166
      %p168 = scmp.ne.s32.totalorder %s156, %s157
      %p169 = scmp.eq.s32.totalorder %s21, 1
      %p170 = por %p168, %p169
      %p172 = scmp.ne.s32.totalorder %s157, %s171
      %p173 = scmp.eq.s32.totalorder %s21, 0
      %p174 = por %p172, %p173
      %s175 = ssub.s32 %s15, %s22
      %p176 = scmp.eq.s32.totalorder %s175, 0
      %s178 = sadd.s32 %s177, 1
      %s179 = scalar_select %p176, %s177, %s178
      %p182 = pneg %p176
      %p183 = scmp.eq.s32.totalorder %s15, 1
      %p184 = por %p182, %p183
      %p185 = scmp.ne.s32.totalorder %s177, %s180
      %p186 = scmp.eq.s32.totalorder %s15, 0
      %p187 = por %p185, %p186
      %p188 = scmp.ne.s32.totalorder %s177, %s180
      %p189 = scmp.eq.s32.totalorder %s20, 1
      %p190 = por %p188, %p189
      %p191 = scmp.ne.s32.totalorder %s180, %s181
      %p192 = scmp.eq.s32.totalorder %s20, 0
      %p193 = por %p191, %p192
      %p194 = scmp.ne.s32.totalorder %s180, %s181
      %p195 = scmp.eq.s32.totalorder %s21, 1
      %p196 = por %p194, %p195
      %p198 = scmp.ne.s32.totalorder %s181, %s197
      %p199 = scmp.eq.s32.totalorder %s21, 0
      %p200 = por %p198, %p199
      %p201 = scmp.le.s32.totalorder 1, %s15
      %p202 = scmp.lt.s32.totalorder %s15, 3
      %p203 = pnand %p201, %p202
      %p204 = pneg %p203
      // Predicated region
      $region9: #{tpu_custom_call.1} parent=5 // pred_check
        _
      $region10: #{tpu_custom_call.1} parent=5 // pred_check_branch
        %206 = sbr.rel (%p203) target = $region12
      $region11: #{tpu_custom_call.1} parent=5 // pred_region
        %s207 = ssub.s32 %s15, 1
        // Predicated region
        $region13: #{tpu_custom_call.1} parent=11 // pred_check
          %p208 = pneg %p62
        $region14: #{tpu_custom_call.1} parent=11 // pred_check_branch
          %210 = sbr.rel (%p208) target = $region16
        $region15: #{tpu_custom_call.1} parent=11 // pred_region
          %s212 = ssub.s32 9216, 9216
          %213 = vsyncadd [#allocation5], %s212
          %s214 = sshll.u32 [#allocation4], 4
          %s215 = int_to_ptr.vmem [resolvable:$true] %s214
          %220 = dma.hbm_to_vmem [thread:$0]  %s1, 9216, %s215, [#allocation5], 64, 64, 4
        $region16: #{tpu_custom_call.1} parent=11 // pred_fallthru
          _
        // Predicated region
        $region17: #{tpu_custom_call.1} parent=11 // pred_check
          %p221 = pneg %p83
        $region18: #{tpu_custom_call.1} parent=11 // pred_check_branch
          %223 = sbr.rel (%p221) target = $region20
        $region19: #{tpu_custom_call.1} parent=11 // pred_region
          _
        $region20: #{tpu_custom_call.1} parent=11 // pred_fallthru
          _
        // Predicated region
        $region21: #{tpu_custom_call.1} parent=11 // pred_check
          %p224 = pneg %p104
        $region22: #{tpu_custom_call.1} parent=11 // pred_check_branch
          %226 = sbr.rel (%p224) target = $region24
        $region23: #{tpu_custom_call.1} parent=11 // pred_region
          _
        $region24: #{tpu_custom_call.1} parent=11 // pred_fallthru
          _
        // Predicated region
        $region25: #{tpu_custom_call.1} parent=11 // pred_check
          %p227 = pneg %p125
        $region26: #{tpu_custom_call.1} parent=11 // pred_check_branch
          %229 = sbr.rel (%p227) target = $region28
        $region27: #{tpu_custom_call.1} parent=11 // pred_region
          %s231 = ssub.s32 9216, 9216
          %232 = vsyncadd [#allocation7], %s231
          %s233 = sshll.u32 [#allocation6], 4
          %s234 = int_to_ptr.vmem [resolvable:$true] %s233
          %239 = dma.hbm_to_vmem [thread:$0]  %s4, 9216, %s234, [#allocation7], 64, 64, 4
        $region28: #{tpu_custom_call.1} parent=11 // pred_fallthru
          _
        // Predicated region
        $region29: #{tpu_custom_call.1} parent=11 // pred_check
          %p240 = pneg %p146
        $region30: #{tpu_custom_call.1} parent=11 // pred_check_branch
          %242 = sbr.rel (%p240) target = $region32
        $region31: #{tpu_custom_call.1} parent=11 // pred_region
          _
        $region32: #{tpu_custom_call.1} parent=11 // pred_fallthru
          _
        // Predicated region
        $region33: #{tpu_custom_call.1} parent=11 // pred_check
          %p243 = pneg %p167
        $region34: #{tpu_custom_call.1} parent=11 // pred_check_branch
          %245 = sbr.rel (%p243) target = $region36
        $region35: #{tpu_custom_call.1} parent=11 // pred_region
          _
        $region36: #{tpu_custom_call.1} parent=11 // pred_fallthru
          _
      $region12: #{tpu_custom_call.1} parent=5 // pred_fallthru
        _
      %p246 = scmp.lt.s32.totalorder %s15, 2
      // Predicated region
      $region37: #{tpu_custom_call.1} parent=5 // pred_check
        %p247 = pneg %p246
      $region38: #{tpu_custom_call.1} parent=5 // pred_check_branch
        %249 = sbr.rel (%p247) target = $region40
      $region39: #{tpu_custom_call.1} parent=5 // pred_region
        // Predicated region
        $region41: #{tpu_custom_call.1} parent=39 // pred_check
          %p250 = pneg %p35
        $region42: #{tpu_custom_call.1} parent=39 // pred_check_branch
          %252 = sbr.rel (%p250) target = $region44
        $region43: #{tpu_custom_call.1} parent=39 // pred_region
          %p253 = scmp.lt.s32.totalorder %s15, 1
          %s254 = scalar_select %p253, %s15, 1
          %s255 = smul.addr %s254, 32
          %s256 = smul.addr %s255, 4
          %s257 = scalar_lea.vmem %s0, %s256
        $region44: #{tpu_custom_call.1} parent=39 // pred_fallthru
          _
      $region40: #{tpu_custom_call.1} parent=5 // pred_fallthru
        _
      %p258 = scmp.le.s32.totalorder 1, %s15
      %p259 = scmp.lt.s32.totalorder %s15, 3
      %p260 = pnand %p258, %p259
      %p261 = pneg %p260
      // Predicated region
      $region45: #{tpu_custom_call.1} parent=5 // pred_check
        _
      $region46: #{tpu_custom_call.1} parent=5 // pred_check_branch
        %263 = sbr.rel (%p260) target = $region48
      $region47: #{tpu_custom_call.1} parent=5 // pred_region
        %s264 = ssub.s32 %s15, 1
        // Predicated region
        $region49: #{tpu_custom_call.1} parent=47 // pred_check
          %p265 = pneg %p62
        $region50: #{tpu_custom_call.1} parent=47 // pred_check_branch
          %267 = sbr.rel (%p265) target = $region52
        $region51: #{tpu_custom_call.1} parent=47 // pred_region
          %268 = dma.done [#allocation5], 9216
        $region52: #{tpu_custom_call.1} parent=47 // pred_fallthru
          _
        // Predicated region
        $region53: #{tpu_custom_call.1} parent=47 // pred_check
          %p269 = pneg %p125
        $region54: #{tpu_custom_call.1} parent=47 // pred_check_branch
          %271 = sbr.rel (%p269) target = $region56
        $region55: #{tpu_custom_call.1} parent=47 // pred_region
          %272 = dma.done [#allocation7], 9216
        $region56: #{tpu_custom_call.1} parent=47 // pred_fallthru
          _
        %p273 = scmp.lt.s32.totalorder %s20, 1
        %s274 = scalar_select %p273, %s20, 1
        %s275 = smul.addr %s274, 32
        %s276 = smul.addr %s275, 4
        %s277 = scalar_lea.vmem %s0, %s276
        %p278 = pneg %p41
        %p279 = pneg %p38
        %p280 = pneg %p62
        %p281 = pneg %p59
        %p282 = pneg %p83
        %p283 = pneg %p80
        %p284 = pneg %p104
        %p285 = pneg %p101
        %p286 = pneg %p125
        %p287 = pneg %p122
        %p288 = pneg %p146
        %p289 = pneg %p143
        %p290 = pneg %p167
        %p291 = pneg %p164
        %p292 = pneg %p193
        %p293 = pneg %p190
        %p294 = scmp.lt.s32.totalorder %s20, 1
        %s295 = scalar_select %p294, %s20, 1
        %s296 = smul.addr %s295, 32
        %s297 = smul.addr %s296, 8
        %s298 = scalar_lea.vmem %s7, %s297
        %p299 = scmp.lt.s32.totalorder %s20, 1
        %s300 = scalar_select %p299, %s20, 1
        %s301 = smul.addr %s300, 32
        %s302 = smul.addr %s301, 4
        %s303 = scalar_lea.vmem %s0, %s302
        %p304 = scmp.lt.s32.totalorder %s20, 1
        %s305 = scalar_select %p304, %s20, 1
        %s306 = smul.addr %s305, 32
        %s307 = smul.addr %s306, 8
        %s308 = scalar_lea.vmem %s7, %s307
        %p310 = scmp.eq.s32.totalorder %s20, 0
        // Predicated region
        $region57: #{tpu_custom_call.1} parent=47 // pred_check
          %p311 = pneg %p310
        $region58: #{tpu_custom_call.1} parent=47 // pred_check_branch
          %313 = sbr.rel (%p311) target = $region60
        $region59: #{tpu_custom_call.1} parent=47 // pred_region
          %314 = vst [vmem:[#allocation2] sm:$0xff] 0
          %315 = vst [vmem:[#allocation2 + $0x8] sm:$0xff] 0
          %316 = vst [vmem:[#allocation2 + $0x10] sm:$0xff] 0
          %317 = vst [vmem:[#allocation2 + $0x18] sm:$0xff] 0
          %318 = vst [vmem:[#allocation2 + $0x20] sm:$0xff] 0
          %319 = vst [vmem:[#allocation2 + $0x28] sm:$0xff] 0
          %320 = vst [vmem:[#allocation2 + $0x30] sm:$0xff] 0
          %321 = vst [vmem:[#allocation2 + $0x38] sm:$0xff] 0
          %322 = vst [vmem:[#allocation2 + $0x40] sm:$0xff] 0
          %323 = vst [vmem:[#allocation2 + $0x48] sm:$0xff] 0
          %324 = vst [vmem:[#allocation2 + $0x50] sm:$0xff] 0
          %325 = vst [vmem:[#allocation2 + $0x58] sm:$0xff] 0
          %326 = vst [vmem:[#allocation2 + $0x60] sm:$0xff] 0
          %327 = vst [vmem:[#allocation2 + $0x68] sm:$0xff] 0
          %328 = vst [vmem:[#allocation2 + $0x70] sm:$0xff] 0
          %329 = vst [vmem:[#allocation2 + $0x78] sm:$0xff] 0
          %330 = vst [vmem:[#allocation2 + $0x80] sm:$0xff] 0
          %331 = vst [vmem:[#allocation2 + $0x88] sm:$0xff] 0
          %332 = vst [vmem:[#allocation2 + $0x90] sm:$0xff] 0
          %333 = vst [vmem:[#allocation2 + $0x98] sm:$0xff] 0
          %334 = vst [vmem:[#allocation2 + $0xa0] sm:$0xff] 0
          %335 = vst [vmem:[#allocation2 + $0xa8] sm:$0xff] 0
          %336 = vst [vmem:[#allocation2 + $0xb0] sm:$0xff] 0
          %337 = vst [vmem:[#allocation2 + $0xb8] sm:$0xff] 0
          %338 = vst [vmem:[#allocation2 + $0xc0] sm:$0xff] 0
          %339 = vst [vmem:[#allocation2 + $0xc8] sm:$0xff] 0
          %340 = vst [vmem:[#allocation2 + $0xd0] sm:$0xff] 0
          %341 = vst [vmem:[#allocation2 + $0xd8] sm:$0xff] 0
          %342 = vst [vmem:[#allocation2 + $0xe0] sm:$0xff] 0
          %343 = vst [vmem:[#allocation2 + $0xe8] sm:$0xff] 0
          %344 = vst [vmem:[#allocation2 + $0xf0] sm:$0xff] 0
          %345 = vst [vmem:[#allocation2 + $0xf8] sm:$0xff] 0
          %346 = vst [vmem:[#allocation2 + $0x100] sm:$0xff] 0
          %347 = vst [vmem:[#allocation2 + $0x108] sm:$0xff] 0
          %348 = vst [vmem:[#allocation2 + $0x110] sm:$0xff] 0
          %349 = vst [vmem:[#allocation2 + $0x118] sm:$0xff] 0
          %350 = vst [vmem:[#allocation2 + $0x120] sm:$0xff] 0
          %351 = vst [vmem:[#allocation2 + $0x128] sm:$0xff] 0
          %352 = vst [vmem:[#allocation2 + $0x130] sm:$0xff] 0
          %353 = vst [vmem:[#allocation2 + $0x138] sm:$0xff] 0
          %354 = vst [vmem:[#allocation2 + $0x140] sm:$0xff] 0
          %355 = vst [vmem:[#allocation2 + $0x148] sm:$0xff] 0
          %356 = vst [vmem:[#allocation2 + $0x150] sm:$0xff] 0
          %357 = vst [vmem:[#allocation2 + $0x158] sm:$0xff] 0
          %358 = vst [vmem:[#allocation2 + $0x160] sm:$0xff] 0
          %359 = vst [vmem:[#allocation2 + $0x168] sm:$0xff] 0
          %360 = vst [vmem:[#allocation2 + $0x170] sm:$0xff] 0
          %361 = vst [vmem:[#allocation2 + $0x178] sm:$0xff] 0
          %362 = vst [vmem:[#allocation2 + $0x180] sm:$0xff] 0
          %363 = vst [vmem:[#allocation2 + $0x188] sm:$0xff] 0
          %364 = vst [vmem:[#allocation2 + $0x190] sm:$0xff] 0
          %365 = vst [vmem:[#allocation2 + $0x198] sm:$0xff] 0
          %366 = vst [vmem:[#allocation2 + $0x1a0] sm:$0xff] 0
          %367 = vst [vmem:[#allocation2 + $0x1a8] sm:$0xff] 0
          %368 = vst [vmem:[#allocation3] sm:$0xff] 0
          %369 = vst [vmem:[#allocation3 + $0x8] sm:$0xff] 0
          %370 = vst [vmem:[#allocation3 + $0x10] sm:$0xff] 0
          %371 = vst [vmem:[#allocation3 + $0x18] sm:$0xff] 0
          %372 = vst [vmem:[#allocation3 + $0x20] sm:$0xff] 0
          %373 = vst [vmem:[#allocation3 + $0x28] sm:$0xff] 0
          %374 = vst [vmem:[#allocation3 + $0x30] sm:$0xff] 0
          %375 = vst [vmem:[#allocation3 + $0x38] sm:$0xff] 0
          %376 = vst [vmem:[#allocation3 + $0x40] sm:$0xff] 0
          %377 = vst [vmem:[#allocation3 + $0x48] sm:$0xff] 0
          %378 = vst [vmem:[#allocation3 + $0x50] sm:$0xff] 0
          %379 = vst [vmem:[#allocation3 + $0x58] sm:$0xff] 0
          %380 = vst [vmem:[#allocation3 + $0x60] sm:$0xff] 0
          %381 = vst [vmem:[#allocation3 + $0x68] sm:$0xff] 0
          %382 = vst [vmem:[#allocation3 + $0x70] sm:$0xff] 0
          %383 = vst [vmem:[#allocation3 + $0x78] sm:$0xff] 0
          %384 = vst [vmem:[#allocation3 + $0x80] sm:$0xff] 0
          %385 = vst [vmem:[#allocation3 + $0x88] sm:$0xff] 0
          %386 = vst [vmem:[#allocation3 + $0x90] sm:$0xff] 0
          %387 = vst [vmem:[#allocation3 + $0x98] sm:$0xff] 0
          %388 = vst [vmem:[#allocation3 + $0xa0] sm:$0xff] 0
          %389 = vst [vmem:[#allocation3 + $0xa8] sm:$0xff] 0
          %390 = vst [vmem:[#allocation3 + $0xb0] sm:$0xff] 0
          %391 = vst [vmem:[#allocation3 + $0xb8] sm:$0xff] 0
          %392 = vst [vmem:[#allocation3 + $0xc0] sm:$0xff] 0
          %393 = vst [vmem:[#allocation3 + $0xc8] sm:$0xff] 0
          %394 = vst [vmem:[#allocation3 + $0xd0] sm:$0xff] 0
          %395 = vst [vmem:[#allocation3 + $0xd8] sm:$0xff] 0
          %396 = vst [vmem:[#allocation3 + $0xe0] sm:$0xff] 0
          %397 = vst [vmem:[#allocation3 + $0xe8] sm:$0xff] 0
          %398 = vst [vmem:[#allocation3 + $0xf0] sm:$0xff] 0
          %399 = vst [vmem:[#allocation3 + $0xf8] sm:$0xff] 0
          %400 = vst [vmem:[#allocation3 + $0x100] sm:$0xff] 0
          %401 = vst [vmem:[#allocation3 + $0x108] sm:$0xff] 0
          %402 = vst [vmem:[#allocation3 + $0x110] sm:$0xff] 0
          %403 = vst [vmem:[#allocation3 + $0x118] sm:$0xff] 0
          %404 = vst [vmem:[#allocation3 + $0x120] sm:$0xff] 0
          %405 = vst [vmem:[#allocation3 + $0x128] sm:$0xff] 0
          %406 = vst [vmem:[#allocation3 + $0x130] sm:$0xff] 0
          %407 = vst [vmem:[#allocation3 + $0x138] sm:$0xff] 0
          %408 = vst [vmem:[#allocation3 + $0x140] sm:$0xff] 0
          %409 = vst [vmem:[#allocation3 + $0x148] sm:$0xff] 0
          %410 = vst [vmem:[#allocation3 + $0x150] sm:$0xff] 0
          %411 = vst [vmem:[#allocation3 + $0x158] sm:$0xff] 0
          %412 = vst [vmem:[#allocation3 + $0x160] sm:$0xff] 0
          %413 = vst [vmem:[#allocation3 + $0x168] sm:$0xff] 0
          %414 = vst [vmem:[#allocation3 + $0x170] sm:$0xff] 0
          %415 = vst [vmem:[#allocation3 + $0x178] sm:$0xff] 0
          %416 = vst [vmem:[#allocation3 + $0x180] sm:$0xff] 0
          %417 = vst [vmem:[#allocation3 + $0x188] sm:$0xff] 0
          %418 = vst [vmem:[#allocation3 + $0x190] sm:$0xff] 0
          %419 = vst [vmem:[#allocation3 + $0x198] sm:$0xff] 0
          %420 = vst [vmem:[#allocation3 + $0x1a0] sm:$0xff] 0
          %421 = vst [vmem:[#allocation3 + $0x1a8] sm:$0xff] 0
          %422 = vst [vmem:[#allocation3 + $0x1b0] sm:$0xff] 0
          %423 = vst [vmem:[#allocation3 + $0x1b8] sm:$0xff] 0
          %424 = vst [vmem:[#allocation3 + $0x1c0] sm:$0xff] 0
          %425 = vst [vmem:[#allocation3 + $0x1c8] sm:$0xff] 0
          %426 = vst [vmem:[#allocation3 + $0x1d0] sm:$0xff] 0
          %427 = vst [vmem:[#allocation3 + $0x1d8] sm:$0xff] 0
        $region60: #{tpu_custom_call.1} parent=47 // pred_fallthru
          _
        %v428 = vld [vmem:[%s303] sm:$0xf]
        %v429 = vld [vmem:[%s303 + $0x4] sm:$0xf]
        %v430 = vld [vmem:[%s303 + $0x8] sm:$0xf]
        %v431 = vld [vmem:[%s303 + $0xc] sm:$0xf]
        %v432 = vld [vmem:[%s303 + $0x10] sm:$0xf]
        %v433 = vld [vmem:[%s303 + $0x14] sm:$0xf]
        %v434 = vld [vmem:[%s303 + $0x18] sm:$0xf]
        %v435 = vld [vmem:[%s303 + $0x1c] sm:$0xf]
        %v436 = vld [vmem:[%s303 + $0x20] sm:$0xf]
        %v437 = vld [vmem:[%s303 + $0x24] sm:$0xf]
        %v438 = vld [vmem:[%s303 + $0x28] sm:$0xf]
        %v439 = vld [vmem:[%s303 + $0x2c] sm:$0xf]
        %v440 = vld [vmem:[%s303 + $0x30] sm:$0xf]
        %v441 = vld [vmem:[%s303 + $0x34] sm:$0xf]
        %v442 = vld [vmem:[%s303 + $0x38] sm:$0xf]
        %v443 = vld [vmem:[%s303 + $0x3c] sm:$0xf]
        %v444 = vld [vmem:[%s303 + $0x40] sm:$0xf]
        %v445 = vld [vmem:[%s303 + $0x44] sm:$0xf]
        %v446 = vld [vmem:[%s303 + $0x48] sm:$0xf]
        %v447 = vld [vmem:[%s303 + $0x4c] sm:$0xf]
        %v448 = vld [vmem:[%s303 + $0x50] sm:$0xf]
        %v449 = vld [vmem:[%s303 + $0x54] sm:$0xf]
        %v450 = vld [vmem:[%s303 + $0x58] sm:$0xf]
        %v451 = vld [vmem:[%s303 + $0x5c] sm:$0xf]
        %v452 = vld [vmem:[%s303 + $0x60] sm:$0xf]
        %v453 = vld [vmem:[%s303 + $0x64] sm:$0xf]
        %v454 = vld [vmem:[%s303 + $0x68] sm:$0xf]
        %v455 = vld [vmem:[%s303 + $0x6c] sm:$0xf]
        %v456 = vld [vmem:[%s303 + $0x70] sm:$0xf]
        %v457 = vld [vmem:[%s303 + $0x74] sm:$0xf]
        %v458 = vld [vmem:[%s303 + $0x78] sm:$0xf]
        %v459 = vld [vmem:[%s303 + $0x7c] sm:$0xf]
        %v492 = vunpack.c.l.b16 %v428
        %v493 = vunpack.c.l.b16 %v429
        %v494 = vunpack.c.l.b16 %v430
        %v495 = vunpack.c.l.b16 %v431
        %v496 = vunpack.c.l.b16 %v432
        %v497 = vunpack.c.l.b16 %v433
        %v498 = vunpack.c.l.b16 %v434
        %v499 = vunpack.c.l.b16 %v435
        %v500 = vunpack.c.l.b16 %v436
        %v501 = vunpack.c.l.b16 %v437
        %v502 = vunpack.c.l.b16 %v438
        %v503 = vunpack.c.l.b16 %v439
        %v504 = vunpack.c.l.b16 %v440
        %v505 = vunpack.c.l.b16 %v441
        %v506 = vunpack.c.l.b16 %v442
        %v507 = vunpack.c.l.b16 %v443
        %v508 = vunpack.c.l.b16 %v444
        %v509 = vunpack.c.l.b16 %v445
        %v510 = vunpack.c.l.b16 %v446
        %v511 = vunpack.c.l.b16 %v447
        %v512 = vunpack.c.l.b16 %v448
        %v513 = vunpack.c.l.b16 %v449
        %v514 = vunpack.c.l.b16 %v450
        %v515 = vunpack.c.l.b16 %v451
        %v516 = vunpack.c.l.b16 %v452
        %v517 = vunpack.c.l.b16 %v453
        %v518 = vunpack.c.l.b16 %v454
        %v519 = vunpack.c.l.b16 %v455
        %v520 = vunpack.c.l.b16 %v456
        %v521 = vunpack.c.l.b16 %v457
        %v522 = vunpack.c.l.b16 %v458
        %v523 = vunpack.c.l.b16 %v459
        %v524 = vpack.c.b16 %v493, %v492
        %v525 = vpack.c.b16 %v495, %v494
        %v526 = vpack.c.b16 %v497, %v496
        %v527 = vpack.c.b16 %v499, %v498
        %v528 = vpack.c.b16 %v501, %v500
        %v529 = vpack.c.b16 %v503, %v502
        %v530 = vpack.c.b16 %v505, %v504
        %v531 = vpack.c.b16 %v507, %v506
        %v532 = vpack.c.b16 %v509, %v508
        %v533 = vpack.c.b16 %v511, %v510
        %v534 = vpack.c.b16 %v513, %v512
        %v535 = vpack.c.b16 %v515, %v514
        %v536 = vpack.c.b16 %v517, %v516
        %v537 = vpack.c.b16 %v519, %v518
        %v538 = vpack.c.b16 %v521, %v520
        %v539 = vpack.c.b16 %v523, %v522
        %s556 = scalar_lea.vmem [#allocation2], 24
        %vm557 = vcmask 31744
        %558 = vst.msk [vmem:[%s556 + $0x8] sm:$0xff] %vm557, %v524
        %559 = vst.msk [vmem:[%s556 + $0x20] sm:$0xff] %vm557, %v525
        %560 = vst.msk [vmem:[%s556 + $0x38] sm:$0xff] %vm557, %v526
        %561 = vst.msk [vmem:[%s556 + $0x50] sm:$0xff] %vm557, %v527
        %562 = vst.msk [vmem:[%s556 + $0x68] sm:$0xff] %vm557, %v528
        %563 = vst.msk [vmem:[%s556 + $0x80] sm:$0xff] %vm557, %v529
        %564 = vst.msk [vmem:[%s556 + $0x98] sm:$0xff] %vm557, %v530
        %565 = vst.msk [vmem:[%s556 + $0xb0] sm:$0xff] %vm557, %v531
        %566 = vst.msk [vmem:[%s556 + $0xc8] sm:$0xff] %vm557, %v532
        %567 = vst.msk [vmem:[%s556 + $0xe0] sm:$0xff] %vm557, %v533
        %568 = vst.msk [vmem:[%s556 + $0xf8] sm:$0xff] %vm557, %v534
        %569 = vst.msk [vmem:[%s556 + $0x110] sm:$0xff] %vm557, %v535
        %570 = vst.msk [vmem:[%s556 + $0x128] sm:$0xff] %vm557, %v536
        %571 = vst.msk [vmem:[%s556 + $0x140] sm:$0xff] %vm557, %v537
        %572 = vst.msk [vmem:[%s556 + $0x158] sm:$0xff] %vm557, %v538
        %573 = vst.msk [vmem:[%s556 + $0x170] sm:$0xff] %vm557, %v539
        %v574 = vld [vmem:[%s2] sm:$0x1]
        %v575 = vld [vmem:[%s3] sm:$0x1]
        %v576 = vld [vmem:[%s5] sm:$0x1]
        %v577 = vld [vmem:[%s6] sm:$0x1]
        %v578 = vlaneseq
        %v579 = vshrl.u32 %v578, 7
        %v580 = vadd.s32 %v579, 8
        %v581 = vadd.s32 %v579, 16
        %v582 = vadd.s32 %v579, 24
        %vm583 = vcmp.lt.s32.totalorder %v579, 16
        %vm584 = vcmp.lt.s32.totalorder %v580, 16
        %vm585 = vcmp.lt.s32.totalorder %v581, 16
        %vm586 = vcmp.lt.s32.totalorder %v582, 16
        %v587 = vld [vmem:[#allocation2] sm:$0xff]
        %v588 = vld [vmem:[#allocation2 + $0x8] sm:$0xff]
        %v589 = vld [vmem:[#allocation2 + $0x10] sm:$0xff]
        %v590 = vld [vmem:[#allocation2 + $0x18] sm:$0xff]
        %v591 = vld [vmem:[#allocation2 + $0x20] sm:$0xff]
        %v592 = vld [vmem:[#allocation2 + $0x28] sm:$0xff]
        %v593 = vld [vmem:[#allocation2 + $0x30] sm:$0xff]
        %v594 = vld [vmem:[#allocation2 + $0x38] sm:$0xff]
        %v595 = vld [vmem:[#allocation2 + $0x40] sm:$0xff]
        %v596 = vld [vmem:[#allocation2 + $0x48] sm:$0xff]
        %v597 = vld [vmem:[#allocation2 + $0x50] sm:$0xff]
        %v598 = vld [vmem:[#allocation2 + $0x58] sm:$0xff]
        %v599 = vld [vmem:[#allocation2 + $0x60] sm:$0xff]
        %v600 = vld [vmem:[#allocation2 + $0x68] sm:$0xff]
        %v601 = vld [vmem:[#allocation2 + $0x70] sm:$0xff]
        %v602 = vld [vmem:[#allocation2 + $0x78] sm:$0xff]
        %v603 = vld [vmem:[#allocation2 + $0x80] sm:$0xff]
        %v604 = vld [vmem:[#allocation2 + $0x88] sm:$0xff]
        %v605 = vld [vmem:[#allocation2 + $0x90] sm:$0xff]
        %v606 = vld [vmem:[#allocation2 + $0x98] sm:$0xff]
        %v607 = vld [vmem:[#allocation2 + $0xa0] sm:$0xff]
        %v608 = vld [vmem:[#allocation2 + $0xa8] sm:$0xff]
        %v609 = vld [vmem:[#allocation2 + $0xb0] sm:$0xff]
        %v610 = vld [vmem:[#allocation2 + $0xb8] sm:$0xff]
        %v611 = vld [vmem:[#allocation2 + $0xc0] sm:$0xff]
        %v612 = vld [vmem:[#allocation2 + $0xc8] sm:$0xff]
        %v613 = vld [vmem:[#allocation2 + $0xd0] sm:$0xff]
        %v614 = vld [vmem:[#allocation2 + $0xd8] sm:$0xff]
        %v615 = vld [vmem:[#allocation2 + $0xe0] sm:$0xff]
        %v616 = vld [vmem:[#allocation2 + $0xe8] sm:$0xff]
        %v617 = vld [vmem:[#allocation2 + $0xf0] sm:$0xff]
        %v618 = vld [vmem:[#allocation2 + $0xf8] sm:$0xff]
        %v619 = vld [vmem:[#allocation2 + $0x100] sm:$0xff]
        %v620 = vld [vmem:[#allocation2 + $0x108] sm:$0xff]
        %v621 = vld [vmem:[#allocation2 + $0x110] sm:$0xff]
        %v622 = vld [vmem:[#allocation2 + $0x118] sm:$0xff]
        %v623 = vld [vmem:[#allocation2 + $0x120] sm:$0xff]
        %v624 = vld [vmem:[#allocation2 + $0x128] sm:$0xff]
        %v625 = vld [vmem:[#allocation2 + $0x130] sm:$0xff]
        %v626 = vld [vmem:[#allocation2 + $0x138] sm:$0xff]
        %v627 = vld [vmem:[#allocation2 + $0x140] sm:$0xff]
        %v628 = vld [vmem:[#allocation2 + $0x148] sm:$0xff]
        %v629 = vld [vmem:[#allocation2 + $0x150] sm:$0xff]
        %v630 = vld [vmem:[#allocation2 + $0x158] sm:$0xff]
        %v631 = vld [vmem:[#allocation2 + $0x160] sm:$0xff]
        %v632 = vld [vmem:[#allocation2 + $0x168] sm:$0xff]
        %v633 = vld [vmem:[#allocation2 + $0x170] sm:$0xff]
        %v634 = vld [vmem:[#allocation2 + $0x178] sm:$0xff]
        %v635 = vld [vmem:[#allocation2 + $0x180] sm:$0xff]
        %v636 = vld [vmem:[#allocation2 + $0x188] sm:$0xff]
        %v637 = vld [vmem:[#allocation2 + $0x190] sm:$0xff]
        %v638 = vld [vmem:[#allocation2 + $0x198] sm:$0xff]
        %v639 = vld [vmem:[#allocation2 + $0x1a0] sm:$0xff]
        %v640 = vld [vmem:[#allocation2 + $0x1a8] sm:$0xff]
        %v641 = vld [vmem:[#allocation4] sm:$0xf]
        %v642 = vld [vmem:[#allocation4 + $0x4] sm:$0xf]
        %v643 = vld [vmem:[#allocation4 + $0x8] sm:$0xf]
        %v644 = vld [vmem:[#allocation4 + $0xc] sm:$0xf]
        %v645 = vld [vmem:[#allocation4 + $0x10] sm:$0xf]
        %v646 = vld [vmem:[#allocation4 + $0x14] sm:$0xf]
        %v647 = vld [vmem:[#allocation4 + $0x18] sm:$0xf]
        %v648 = vld [vmem:[#allocation4 + $0x1c] sm:$0xf]
        %v649 = vld [vmem:[#allocation4 + $0x20] sm:$0xf]
        %v650 = vld [vmem:[#allocation4 + $0x24] sm:$0xf]
        %v651 = vld [vmem:[#allocation4 + $0x28] sm:$0xf]
        %v652 = vld [vmem:[#allocation4 + $0x2c] sm:$0xf]
        %v653 = vld [vmem:[#allocation4 + $0x30] sm:$0xf]
        %v654 = vld [vmem:[#allocation4 + $0x34] sm:$0xf]
        %v655 = vld [vmem:[#allocation4 + $0x38] sm:$0xf]
        %v656 = vld [vmem:[#allocation4 + $0x3c] sm:$0xf]
        %v657 = vld [vmem:[#allocation4 + $0x40] sm:$0xf]
        %v658 = vld [vmem:[#allocation4 + $0x44] sm:$0xf]
        %v659 = vld [vmem:[#allocation4 + $0x48] sm:$0xf]
        %v660 = vld [vmem:[#allocation4 + $0x4c] sm:$0xf]
        %v661 = vld [vmem:[#allocation4 + $0x50] sm:$0xf]
        %v662 = vld [vmem:[#allocation4 + $0x54] sm:$0xf]
        %v663 = vld [vmem:[#allocation4 + $0x58] sm:$0xf]
        %v664 = vld [vmem:[#allocation4 + $0x5c] sm:$0xf]
        %v665 = vld [vmem:[#allocation4 + $0x60] sm:$0xf]
        %v666 = vld [vmem:[#allocation4 + $0x64] sm:$0xf]
        %v667 = vld [vmem:[#allocation4 + $0x68] sm:$0xf]
        %v668 = vld [vmem:[#allocation4 + $0x6c] sm:$0xf]
        %v669 = vld [vmem:[#allocation4 + $0x70] sm:$0xf]
        %v670 = vld [vmem:[#allocation4 + $0x74] sm:$0xf]
        %v671 = vld [vmem:[#allocation4 + $0x78] sm:$0xf]
        %v672 = vld [vmem:[#allocation4 + $0x7c] sm:$0xf]
        %v673 = vld [vmem:[#allocation4 + $0x80] sm:$0xf]
        %v674 = vld [vmem:[#allocation4 + $0x84] sm:$0xf]
        %v675 = vld [vmem:[#allocation4 + $0x88] sm:$0xf]
        %v676 = vld [vmem:[#allocation4 + $0x8c] sm:$0xf]
        %v677 = vld [vmem:[#allocation4 + $0x90] sm:$0xf]
        %v678 = vld [vmem:[#allocation4 + $0x94] sm:$0xf]
        %v679 = vld [vmem:[#allocation4 + $0x98] sm:$0xf]
        %v680 = vld [vmem:[#allocation4 + $0x9c] sm:$0xf]
        %v681 = vld [vmem:[#allocation4 + $0xa0] sm:$0xf]
        %v682 = vld [vmem:[#allocation4 + $0xa4] sm:$0xf]
        %v683 = vld [vmem:[#allocation4 + $0xa8] sm:$0xf]
        %v684 = vld [vmem:[#allocation4 + $0xac] sm:$0xf]
        %v685 = vld [vmem:[#allocation4 + $0xb0] sm:$0xf]
        %v686 = vld [vmem:[#allocation4 + $0xb4] sm:$0xf]
        %v687 = vld [vmem:[#allocation4 + $0xb8] sm:$0xf]
        %v688 = vld [vmem:[#allocation4 + $0xbc] sm:$0xf]
        %v737 = vunpack.c.l.b16 %v641
        %v738 = vunpack.c.l.b16 %v642
        %v739 = vunpack.c.l.b16 %v643
        %v740 = vunpack.c.l.b16 %v644
        %v741 = vunpack.c.l.b16 %v645
        %v742 = vunpack.c.l.b16 %v646
        %v743 = vunpack.c.l.b16 %v647
        %v744 = vunpack.c.l.b16 %v648
        %v745 = vunpack.c.l.b16 %v649
        %v746 = vunpack.c.l.b16 %v650
        %v747 = vunpack.c.l.b16 %v651
        %v748 = vunpack.c.l.b16 %v652
        %v749 = vunpack.c.l.b16 %v653
        %v750 = vunpack.c.l.b16 %v654
        %v751 = vunpack.c.l.b16 %v655
        %v752 = vunpack.c.l.b16 %v656
        %v753 = vunpack.c.l.b16 %v657
        %v754 = vunpack.c.l.b16 %v658
        %v755 = vunpack.c.l.b16 %v659
        %v756 = vunpack.c.l.b16 %v660
        %v757 = vunpack.c.l.b16 %v661
        %v758 = vunpack.c.l.b16 %v662
        %v759 = vunpack.c.l.b16 %v663
        %v760 = vunpack.c.l.b16 %v664
        %v761 = vunpack.c.l.b16 %v665
        %v762 = vunpack.c.l.b16 %v666
        %v763 = vunpack.c.l.b16 %v667
        %v764 = vunpack.c.l.b16 %v668
        %v765 = vunpack.c.l.b16 %v669
        %v766 = vunpack.c.l.b16 %v670
        %v767 = vunpack.c.l.b16 %v671
        %v768 = vunpack.c.l.b16 %v672
        %v769 = vunpack.c.l.b16 %v673
        %v770 = vunpack.c.l.b16 %v674
        %v771 = vunpack.c.l.b16 %v675
        %v772 = vunpack.c.l.b16 %v676
        %v773 = vunpack.c.l.b16 %v677
        %v774 = vunpack.c.l.b16 %v678
        %v775 = vunpack.c.l.b16 %v679
        %v776 = vunpack.c.l.b16 %v680
        %v777 = vunpack.c.l.b16 %v681
        %v778 = vunpack.c.l.b16 %v682
        %v779 = vunpack.c.l.b16 %v683
        %v780 = vunpack.c.l.b16 %v684
        %v781 = vunpack.c.l.b16 %v685
        %v782 = vunpack.c.l.b16 %v686
        %v783 = vunpack.c.l.b16 %v687
        %v784 = vunpack.c.l.b16 %v688
        %v785 = vpack.c.b16 %v738, %v737
        %v786 = vpack.c.b16 %v740, %v739
        %v787 = vpack.c.b16 %v742, %v741
        %v788 = vpack.c.b16 %v744, %v743
        %v789 = vpack.c.b16 %v746, %v745
        %v790 = vpack.c.b16 %v748, %v747
        %v791 = vpack.c.b16 %v750, %v749
        %v792 = vpack.c.b16 %v752, %v751
        %v793 = vpack.c.b16 %v754, %v753
        %v794 = vpack.c.b16 %v756, %v755
        %v795 = vpack.c.b16 %v758, %v757
        %v796 = vpack.c.b16 %v760, %v759
        %v797 = vpack.c.b16 %v762, %v761
        %v798 = vpack.c.b16 %v764, %v763
        %v799 = vpack.c.b16 %v766, %v765
        %v800 = vpack.c.b16 %v768, %v767
        %v801 = vpack.c.b16 %v770, %v769
        %v802 = vpack.c.b16 %v772, %v771
        %v803 = vpack.c.b16 %v774, %v773
        %v804 = vpack.c.b16 %v776, %v775
        %v805 = vpack.c.b16 %v778, %v777
        %v806 = vpack.c.b16 %v780, %v779
        %v807 = vpack.c.b16 %v782, %v781
        %v808 = vpack.c.b16 %v784, %v783
        %833 = vmatprep.subr.bf16.mxu0 0
        %834 = vmatpush1.bf16.msra.mxu0 %v785
        %835 = vmatprep.subr.bf16.mxu0 0
        %836 = vmatpush1.bf16.msra.mxu0 %v786
        %837 = vmatprep.subr.bf16.mxu0 0
        %838 = vmatpush1.bf16.msra.mxu0 %v787
        %839 = vmatprep.subr.bf16.mxu0 0
        %840 = vmatpush1.bf16.msra.mxu0 %v788
        %841 = vmatprep.subr.bf16.mxu0 0
        %842 = vmatpush1.bf16.msra.mxu0 %v789
        %843 = vmatprep.subr.bf16.mxu0 0
        %844 = vmatpush1.bf16.msra.mxu0 %v790
        %845 = vmatprep.subr.bf16.mxu0 0
        %846 = vmatpush1.bf16.msra.mxu0 %v791
        %847 = vmatprep.subr.bf16.mxu0 0
        %848 = vmatpush1.bf16.msra.mxu0 %v792
        %849 = vmatprep.subr.bf16.mxu0 0
        %850 = vmatpush1.bf16.msra.mxu0 %v793
        %851 = vmatprep.subr.bf16.mxu0 0
        %852 = vmatpush1.bf16.msra.mxu0 %v794
        %853 = vmatprep.subr.bf16.mxu0 0
        %854 = vmatpush1.bf16.msra.mxu0 %v795
        %855 = vmatprep.subr.bf16.mxu0 0
        %856 = vmatpush1.bf16.msra.mxu0 %v796
        %857 = vmatprep.subr.bf16.mxu0 0
        %858 = vmatpush1.bf16.msra.mxu0 %v797
        %859 = vmatprep.subr.bf16.mxu0 0
        %860 = vmatpush1.bf16.msra.mxu0 %v798
        %861 = vmatprep.subr.bf16.mxu0 0
        %862 = vmatpush1.bf16.msra.mxu0 %v799
        %863 = vmatprep.subr.bf16.mxu0 0
        %864 = vmatpush1.bf16.msra.mxu0 %v800
        %865 = vmatprep.mubr.bf16.mxu0 %v590
        %866 = vmatmul.mubr.bf16.gmra.mrb[0].mxu0 %v587
        %v867 = vpop.f32.mrb[0].mxu0
        %v868 = vpop.f32.mrb[0].mxu0
        %v869 = vpop.f32.mrb[0].mxu0
        %v870 = vadd.f32 0.0, %v869
        %v871 = vpop.f32.mrb[0].mxu0
        %872 = vmatprep.mubr.bf16.mxu0 %v591
        %873 = vmatmul.mubr.bf16.gmra.mrb[0].mxu0 %v588
        %v874 = vpop.f32.mrb[0].mxu0
        %v875 = vadd.f32 0.0, %v874
        %v876 = vpop.f32.mrb[0].mxu0
        %v877 = vpop.f32.mrb[0].mxu0
        %v878 = vadd.f32 0.0, %v877
        %v879 = vpop.f32.mrb[0].mxu0
        %880 = vmatprep.mubr.bf16.mxu0 %v592
        %881 = vmatmul.mubr.bf16.gmra.mrb[0].mxu0 %v589
        %v882 = vpop.f32.mrb[0].mxu0
        %v883 = vadd.f32 0.0, %v882
        %v884 = vpop.f32.mrb[0].mxu0
        %v885 = vpop.f32.mrb[0].mxu0
        %v886 = vadd.f32 0.0, %v885
        %v887 = vpop.f32.mrb[0].mxu0
        %888 = vmatprep.mubr.bf16.mxu0 %v593
        %889 = vmatmul.mubr.bf16.gmra.mrb[0].mxu0 %v590
        %v890 = vpop.f32.mrb[0].mxu0
        %v891 = vpop.f32.mrb[0].mxu0
        %v892 = vpop.f32.mrb[0].mxu0
        %v893 = vadd.f32 0.0, %v892
        %v894 = vpop.f32.mrb[0].mxu0
        %895 = vmatprep.mubr.bf16.mxu0 %v594
        %896 = vmatmul.mubr.bf16.gmra.mrb[0].mxu0 %v591
        %v897 = vpop.f32.mrb[0].mxu0
        %v898 = vadd.f32 0.0, %v897
        %v899 = vpop.f32.mrb[0].mxu0
        %v900 = vpop.f32.mrb[0].mxu0
        %v901 = vadd.f32 0.0, %v900
        %v902 = vpop.f32.mrb[0].mxu0
        %903 = vmatprep.mubr.bf16.mxu0 %v595
        %904 = vmatmul.mubr.bf16.gmra.mrb[0].mxu0 %v592
        %v905 = vpop.f32.mrb[0].mxu0
        %v906 = vadd.f32 0.0, %v905
        %v907 = vpop.f32.mrb[0].mxu0
        %v908 = vpop.f32.mrb[0].mxu0
        %v909 = vadd.f32 0.0, %v908
        %v910 = vpop.f32.mrb[0].mxu0
        %911 = vmatprep.mubr.bf16.mxu0 %v596
        %912 = vmatmul.mubr.bf16.gmra.mrb[0].mxu0 %v593
        %v913 = vpop.f32.mrb[0].mxu0
        %v914 = vpop.f32.mrb[0].mxu0
        %v915 = vpop.f32.mrb[0].mxu0
        %v916 = vadd.f32 0.0, %v915
        %v917 = vpop.f32.mrb[0].mxu0
        %918 = vmatprep.mubr.bf16.mxu0 %v597
        %919 = vmatmul.mubr.bf16.gmra.mrb[0].mxu0 %v594
        %v920 = vpop.f32.mrb[0].mxu0
        %v921 = vadd.f32 0.0, %v920
        %v922 = vpop.f32.mrb[0].mxu0
        %v923 = vpop.f32.mrb[0].mxu0
        %v924 = vadd.f32 0.0, %v923
        %v925 = vpop.f32.mrb[0].mxu0
        %926 = vmatprep.mubr.bf16.mxu0 %v598
        %927 = vmatmul.mubr.bf16.gmra.mrb[0].mxu0 %v595
        %v928 = vpop.f32.mrb[0].mxu0
        %v929 = vadd.f32 0.0, %v928
        %v930 = vpop.f32.mrb[0].mxu0
        %v931 = vpop.f32.mrb[0].mxu0
        %v932 = vadd.f32 0.0, %v931
        %v933 = vpop.f32.mrb[0].mxu0
        %934 = vmatprep.mubr.bf16.mxu0 %v599
        %935 = vmatmul.mubr.bf16.gmra.mrb[0].mxu0 %v596
        %v936 = vpop.f32.mrb[0].mxu0
        %v937 = vpop.f32.mrb[0].mxu0
        %v938 = vpop.f32.mrb[0].mxu0
        %v939 = vadd.f32 0.0, %v938
        %v940 = vpop.f32.mrb[0].mxu0
        %941 = vmatprep.mubr.bf16.mxu0 %v600
        %942 = vmatmul.mubr.bf16.gmra.mrb[0].mxu0 %v597
        %v943 = vpop.f32.mrb[0].mxu0
        %v944 = vadd.f32 0.0, %v943
        %v945 = vpop.f32.mrb[0].mxu0
        %v946 = vpop.f32.mrb[0].mxu0
        %v947 = vadd.f32 0.0, %v946
        %v948 = vpop.f32.mrb[0].mxu0
        %949 = vmatprep.mubr.bf16.mxu0 %v601
        %950 = vmatmul.mubr.bf16.gmra.mrb[0].mxu0 %v598
        %v951 = vpop.f32.mrb[0].mxu0
        %v952 = vadd.f32 0.0, %v951
        %v953 = vpop.f32.mrb[0].mxu0
        %v954 = vpop.f32.mrb[0].mxu0
        %v955 = vadd.f32 0.0, %v954
        %v956 = vpop.f32.mrb[0].mxu0
        %957 = vmatprep.mubr.bf16.mxu0 %v602
        %958 = vmatmul.mubr.bf16.gmra.mrb[0].mxu0 %v599
        %v959 = vpop.f32.mrb[0].mxu0
        %v960 = vpop.f32.mrb[0].mxu0
        %v961 = vpop.f32.mrb[0].mxu0
        %v962 = vadd.f32 0.0, %v961
        %v963 = vpop.f32.mrb[0].mxu0
        %964 = vmatprep.mubr.bf16.mxu0 %v603
        %965 = vmatmul.mubr.bf16.gmra.mrb[0].mxu0 %v600
        %v966 = vpop.f32.mrb[0].mxu0
        %v967 = vadd.f32 0.0, %v966
        %v968 = vpop.f32.mrb[0].mxu0
        %v969 = vpop.f32.mrb[0].mxu0
        %v970 = vadd.f32 0.0, %v969
        %v971 = vpop.f32.mrb[0].mxu0
        %972 = vmatprep.mubr.bf16.mxu0 %v604
        %973 = vmatmul.mubr.bf16.gmra.mrb[0].mxu0 %v601
        %v974 = vpop.f32.mrb[0].mxu0
        %v975 = vadd.f32 0.0, %v974
        %v976 = vpop.f32.mrb[0].mxu0
        %v977 = vpop.f32.mrb[0].mxu0
        %v978 = vadd.f32 0.0, %v977
        %v979 = vpop.f32.mrb[0].mxu0
        %980 = vmatprep.mubr.bf16.mxu0 %v605
        %981 = vmatmul.mubr.bf16.gmra.mrb[0].mxu0 %v602
        %v982 = vpop.f32.mrb[0].mxu0
        %v983 = vpop.f32.mrb[0].mxu0
        %v984 = vpop.f32.mrb[0].mxu0
        %v985 = vadd.f32 0.0, %v984
        %v986 = vpop.f32.mrb[0].mxu0
        %987 = vmatprep.mubr.bf16.mxu0 %v606
        %988 = vmatmul.mubr.bf16.gmra.mrb[0].mxu0 %v603
        %v989 = vpop.f32.mrb[0].mxu0
        %v990 = vadd.f32 0.0, %v989
        %v991 = vpop.f32.mrb[0].mxu0
        %v992 = vpop.f32.mrb[0].mxu0
        %v993 = vadd.f32 0.0, %v992
        %v994 = vpop.f32.mrb[0].mxu0
        %995 = vmatprep.mubr.bf16.mxu0 %v607
        %996 = vmatmul.mubr.bf16.gmra.mrb[0].mxu0 %v604
        %v997 = vpop.f32.mrb[0].mxu0
        %v998 = vadd.f32 0.0, %v997
        %v999 = vpop.f32.mrb[0].mxu0
        %v1000 = vpop.f32.mrb[0].mxu0
        %v1001 = vadd.f32 0.0, %v1000
        %v1002 = vpop.f32.mrb[0].mxu0
        %1003 = vmatprep.mubr.bf16.mxu0 %v608
        %1004 = vmatmul.mubr.bf16.gmra.mrb[0].mxu0 %v605
        %v1005 = vpop.f32.mrb[0].mxu0
        %v1006 = vpop.f32.mrb[0].mxu0
        %v1007 = vpop.f32.mrb[0].mxu0
        %v1008 = vadd.f32 0.0, %v1007
        %v1009 = vpop.f32.mrb[0].mxu0
        %1010 = vmatprep.mubr.bf16.mxu0 %v609
        %1011 = vmatmul.mubr.bf16.gmra.mrb[0].mxu0 %v606
        %v1012 = vpop.f32.mrb[0].mxu0
        %v1013 = vadd.f32 0.0, %v1012
        %v1014 = vpop.f32.mrb[0].mxu0
        %v1015 = vpop.f32.mrb[0].mxu0
        %v1016 = vadd.f32 0.0, %v1015
        %v1017 = vpop.f32.mrb[0].mxu0
        %1018 = vmatprep.mubr.bf16.mxu0 %v610
        %1019 = vmatmul.mubr.bf16.gmra.mrb[0].mxu0 %v607
        %v1020 = vpop.f32.mrb[0].mxu0
        %v1021 = vadd.f32 0.0, %v1020
        %v1022 = vpop.f32.mrb[0].mxu0
        %v1023 = vpop.f32.mrb[0].mxu0
        %v1024 = vadd.f32 0.0, %v1023
        %v1025 = vpop.f32.mrb[0].mxu0
        %1026 = vmatprep.mubr.bf16.mxu0 %v611
        %1027 = vmatmul.mubr.bf16.gmra.mrb[0].mxu0 %v608
        %v1028 = vpop.f32.mrb[0].mxu0
        %v1029 = vpop.f32.mrb[0].mxu0
        %v1030 = vpop.f32.mrb[0].mxu0
        %v1031 = vadd.f32 0.0, %v1030
        %v1032 = vpop.f32.mrb[0].mxu0
        %1033 = vmatprep.mubr.bf16.mxu0 %v612
        %1034 = vmatmul.mubr.bf16.gmra.mrb[0].mxu0 %v609
        %v1035 = vpop.f32.mrb[0].mxu0
        %v1036 = vadd.f32 0.0, %v1035
        %v1037 = vpop.f32.mrb[0].mxu0
        %v1038 = vpop.f32.mrb[0].mxu0
        %v1039 = vadd.f32 0.0, %v1038
        %v1040 = vpop.f32.mrb[0].mxu0
        %1041 = vmatprep.mubr.bf16.mxu0 %v613
        %1042 = vmatmul.mubr.bf16.gmra.mrb[0].mxu0 %v610
        %v1043 = vpop.f32.mrb[0].mxu0
        %v1044 = vadd.f32 0.0, %v1043
        %v1045 = vpop.f32.mrb[0].mxu0
        %v1046 = vpop.f32.mrb[0].mxu0
        %v1047 = vadd.f32 0.0, %v1046
        %v1048 = vpop.f32.mrb[0].mxu0
        %1049 = vmatprep.mubr.bf16.mxu0 %v614
        %1050 = vmatmul.mubr.bf16.gmra.mrb[0].mxu0 %v611
        %v1051 = vpop.f32.mrb[0].mxu0
        %v1052 = vpop.f32.mrb[0].mxu0
        %v1053 = vpop.f32.mrb[0].mxu0
        %v1054 = vadd.f32 0.0, %v1053
        %v1055 = vpop.f32.mrb[0].mxu0
        %1056 = vmatprep.mubr.bf16.mxu0 %v615
        %1057 = vmatmul.mubr.bf16.gmra.mrb[0].mxu0 %v612
        %v1058 = vpop.f32.mrb[0].mxu0
        %v1059 = vadd.f32 0.0, %v1058
        %v1060 = vpop.f32.mrb[0].mxu0
        %v1061 = vpop.f32.mrb[0].mxu0
        %v1062 = vadd.f32 0.0, %v1061
        %v1063 = vpop.f32.mrb[0].mxu0
        %1064 = vmatprep.mubr.bf16.mxu0 %v616
        %1065 = vmatmul.mubr.bf16.gmra.mrb[0].mxu0 %v613
        %v1066 = vpop.f32.mrb[0].mxu0
        %v1067 = vadd.f32 0.0, %v1066
        %v1068 = vpop.f32.mrb[0].mxu0
        %v1069 = vpop.f32.mrb[0].mxu0
        %v1070 = vadd.f32 0.0, %v1069
        %v1071 = vpop.f32.mrb[0].mxu0
        %1072 = vmatprep.mubr.bf16.mxu0 %v617
        %1073 = vmatmul.mubr.bf16.gmra.mrb[0].mxu0 %v614
        %v1074 = vpop.f32.mrb[0].mxu0
        %v1075 = vpop.f32.mrb[0].mxu0
        %v1076 = vpop.f32.mrb[0].mxu0
        %v1077 = vadd.f32 0.0, %v1076
        %v1078 = vpop.f32.mrb[0].mxu0
        %1079 = vmatprep.mubr.bf16.mxu0 %v618
        %1080 = vmatmul.mubr.bf16.gmra.mrb[0].mxu0 %v615
        %v1081 = vpop.f32.mrb[0].mxu0
        %v1082 = vadd.f32 0.0, %v1081
        %v1083 = vpop.f32.mrb[0].mxu0
        %v1084 = vpop.f32.mrb[0].mxu0
        %v1085 = vadd.f32 0.0, %v1084
        %v1086 = vpop.f32.mrb[0].mxu0
        %1087 = vmatprep.mubr.bf16.mxu0 %v619
        %1088 = vmatmul.mubr.bf16.gmra.mrb[0].mxu0 %v616
        %v1089 = vpop.f32.mrb[0].mxu0
        %v1090 = vadd.f32 0.0, %v1089
        %v1091 = vpop.f32.mrb[0].mxu0
        %v1092 = vpop.f32.mrb[0].mxu0
        %v1093 = vadd.f32 0.0, %v1092
        %v1094 = vpop.f32.mrb[0].mxu0
        %1095 = vmatprep.mubr.bf16.mxu0 %v620
        %1096 = vmatmul.mubr.bf16.gmra.mrb[0].mxu0 %v617
        %v1097 = vpop.f32.mrb[0].mxu0
        %v1098 = vpop.f32.mrb[0].mxu0
        %v1099 = vpop.f32.mrb[0].mxu0
        %v1100 = vadd.f32 0.0, %v1099
        %v1101 = vpop.f32.mrb[0].mxu0
        %1102 = vmatprep.mubr.bf16.mxu0 %v621
        %1103 = vmatmul.mubr.bf16.gmra.mrb[0].mxu0 %v618
        %v1104 = vpop.f32.mrb[0].mxu0
        %v1105 = vadd.f32 0.0, %v1104
        %v1106 = vpop.f32.mrb[0].mxu0
        %v1107 = vpop.f32.mrb[0].mxu0
        %v1108 = vadd.f32 0.0, %v1107
        %v1109 = vpop.f32.mrb[0].mxu0
        %1110 = vmatprep.mubr.bf16.mxu0 %v622
        %1111 = vmatmul.mubr.bf16.gmra.mrb[0].mxu0 %v619
        %v1112 = vpop.f32.mrb[0].mxu0
        %v1113 = vadd.f32 0.0, %v1112
        %v1114 = vpop.f32.mrb[0].mxu0
        %v1115 = vpop.f32.mrb[0].mxu0
        %v1116 = vadd.f32 0.0, %v1115
        %v1117 = vpop.f32.mrb[0].mxu0
        %1118 = vmatprep.mubr.bf16.mxu0 %v623
        %1119 = vmatmul.mubr.bf16.gmra.mrb[0].mxu0 %v620
        %v1120 = vpop.f32.mrb[0].mxu0
        %v1121 = vpop.f32.mrb[0].mxu0
        %v1122 = vpop.f32.mrb[0].mxu0
        %v1123 = vadd.f32 0.0, %v1122
        %v1124 = vpop.f32.mrb[0].mxu0
        %1125 = vmatprep.mubr.bf16.mxu0 %v624
        %1126 = vmatmul.mubr.bf16.gmra.mrb[0].mxu0 %v621
        %v1127 = vpop.f32.mrb[0].mxu0
        %v1128 = vadd.f32 0.0, %v1127
        %v1129 = vpop.f32.mrb[0].mxu0
        %v1130 = vpop.f32.mrb[0].mxu0
        %v1131 = vadd.f32 0.0, %v1130
        %v1132 = vpop.f32.mrb[0].mxu0
        %1133 = vmatprep.mubr.bf16.mxu0 %v625
        %1134 = vmatmul.mubr.bf16.gmra.mrb[0].mxu0 %v622
        %v1135 = vpop.f32.mrb[0].mxu0
        %v1136 = vadd.f32 0.0, %v1135
        %v1137 = vpop.f32.mrb[0].mxu0
        %v1138 = vpop.f32.mrb[0].mxu0
        %v1139 = vadd.f32 0.0, %v1138
        %v1140 = vpop.f32.mrb[0].mxu0
        %1141 = vmatprep.mubr.bf16.mxu0 %v626
        %1142 = vmatmul.mubr.bf16.gmra.mrb[0].mxu0 %v623
        %v1143 = vpop.f32.mrb[0].mxu0
        %v1144 = vpop.f32.mrb[0].mxu0
        %v1145 = vpop.f32.mrb[0].mxu0
        %v1146 = vadd.f32 0.0, %v1145
        %v1147 = vpop.f32.mrb[0].mxu0
        %1148 = vmatprep.mubr.bf16.mxu0 %v627
        %1149 = vmatmul.mubr.bf16.gmra.mrb[0].mxu0 %v624
        %v1150 = vpop.f32.mrb[0].mxu0
        %v1151 = vadd.f32 0.0, %v1150
        %v1152 = vpop.f32.mrb[0].mxu0
        %v1153 = vpop.f32.mrb[0].mxu0
        %v1154 = vadd.f32 0.0, %v1153
        %v1155 = vpop.f32.mrb[0].mxu0
        %1156 = vmatprep.mubr.bf16.mxu0 %v628
        %1157 = vmatmul.mubr.bf16.gmra.mrb[0].mxu0 %v625
        %v1158 = vpop.f32.mrb[0].mxu0
        %v1159 = vadd.f32 0.0, %v1158
        %v1160 = vpop.f32.mrb[0].mxu0
        %v1161 = vpop.f32.mrb[0].mxu0
        %v1162 = vadd.f32 0.0, %v1161
        %v1163 = vpop.f32.mrb[0].mxu0
        %1164 = vmatprep.mubr.bf16.mxu0 %v629
        %1165 = vmatmul.mubr.bf16.gmra.mrb[0].mxu0 %v626
        %v1166 = vpop.f32.mrb[0].mxu0
        %v1167 = vpop.f32.mrb[0].mxu0
        %v1168 = vpop.f32.mrb[0].mxu0
        %v1169 = vadd.f32 0.0, %v1168
        %v1170 = vpop.f32.mrb[0].mxu0
        %1171 = vmatprep.mubr.bf16.mxu0 %v630
        %1172 = vmatmul.mubr.bf16.gmra.mrb[0].mxu0 %v627
        %v1173 = vpop.f32.mrb[0].mxu0
        %v1174 = vadd.f32 0.0, %v1173
        %v1175 = vpop.f32.mrb[0].mxu0
        %v1176 = vpop.f32.mrb[0].mxu0
        %v1177 = vadd.f32 0.0, %v1176
        %v1178 = vpop.f32.mrb[0].mxu0
        %1179 = vmatprep.mubr.bf16.mxu0 %v631
        %1180 = vmatmul.mubr.bf16.gmra.mrb[0].mxu0 %v628
        %v1181 = vpop.f32.mrb[0].mxu0
        %v1182 = vadd.f32 0.0, %v1181
        %v1183 = vpop.f32.mrb[0].mxu0
        %v1184 = vpop.f32.mrb[0].mxu0
        %v1185 = vadd.f32 0.0, %v1184
        %v1186 = vpop.f32.mrb[0].mxu0
        %1187 = vmatprep.mubr.bf16.mxu0 %v632
        %1188 = vmatmul.mubr.bf16.gmra.mrb[0].mxu0 %v629
        %v1189 = vpop.f32.mrb[0].mxu0
        %v1190 = vpop.f32.mrb[0].mxu0
        %v1191 = vpop.f32.mrb[0].mxu0
        %v1192 = vadd.f32 0.0, %v1191
        %v1193 = vpop.f32.mrb[0].mxu0
        %1194 = vmatprep.mubr.bf16.mxu0 %v633
        %1195 = vmatmul.mubr.bf16.gmra.mrb[0].mxu0 %v630
        %v1196 = vpop.f32.mrb[0].mxu0
        %v1197 = vadd.f32 0.0, %v1196
        %v1198 = vpop.f32.mrb[0].mxu0
        %v1199 = vpop.f32.mrb[0].mxu0
        %v1200 = vadd.f32 0.0, %v1199
        %v1201 = vpop.f32.mrb[0].mxu0
        %1202 = vmatprep.mubr.bf16.mxu0 %v634
        %1203 = vmatmul.mubr.bf16.gmra.mrb[0].mxu0 %v631
        %v1204 = vpop.f32.mrb[0].mxu0
        %v1205 = vadd.f32 0.0, %v1204
        %v1206 = vpop.f32.mrb[0].mxu0
        %v1207 = vpop.f32.mrb[0].mxu0
        %v1208 = vadd.f32 0.0, %v1207
        %v1209 = vpop.f32.mrb[0].mxu0
        %1210 = vmatprep.mubr.bf16.mxu0 %v635
        %1211 = vmatmul.mubr.bf16.gmra.mrb[0].mxu0 %v632
        %v1212 = vpop.f32.mrb[0].mxu0
        %v1213 = vpop.f32.mrb[0].mxu0
        %v1214 = vpop.f32.mrb[0].mxu0
        %v1215 = vadd.f32 0.0, %v1214
        %v1216 = vpop.f32.mrb[0].mxu0
        %1217 = vmatprep.mubr.bf16.mxu0 %v636
        %1218 = vmatmul.mubr.bf16.gmra.mrb[0].mxu0 %v633
        %v1219 = vpop.f32.mrb[0].mxu0
        %v1220 = vadd.f32 0.0, %v1219
        %v1221 = vpop.f32.mrb[0].mxu0
        %v1222 = vpop.f32.mrb[0].mxu0
        %v1223 = vadd.f32 0.0, %v1222
        %v1224 = vpop.f32.mrb[0].mxu0
        %1225 = vmatprep.mubr.bf16.mxu0 %v637
        %1226 = vmatmul.mubr.bf16.gmra.mrb[0].mxu0 %v634
        %v1227 = vpop.f32.mrb[0].mxu0
        %v1228 = vadd.f32 0.0, %v1227
        %v1229 = vpop.f32.mrb[0].mxu0
        %v1230 = vpop.f32.mrb[0].mxu0
        %v1231 = vadd.f32 0.0, %v1230
        %v1232 = vpop.f32.mrb[0].mxu0
        %1233 = vdwg.mxu0
        %1234 = vmatprep.subr.bf16.mxu0 0
        %1235 = vmatpush1.bf16.msra.mxu0 %v801
        %1236 = vmatprep.subr.bf16.mxu0 0
        %1237 = vmatpush1.bf16.msra.mxu0 %v802
        %1238 = vmatprep.subr.bf16.mxu0 0
        %1239 = vmatpush1.bf16.msra.mxu0 %v803
        %1240 = vmatprep.subr.bf16.mxu0 0
        %1241 = vmatpush1.bf16.msra.mxu0 %v804
        %1242 = vmatprep.subr.bf16.mxu0 0
        %1243 = vmatpush1.bf16.msra.mxu0 %v805
        %1244 = vmatprep.subr.bf16.mxu0 0
        %1245 = vmatpush1.bf16.msra.mxu0 %v806
        %1246 = vmatprep.subr.bf16.mxu0 0
        %1247 = vmatpush1.bf16.msra.mxu0 %v807
        %1248 = vmatprep.subr.bf16.mxu0 0
        %1249 = vmatpush1.bf16.msra.mxu0 %v808
        %1250 = vmatprep.subr.bf16.mxu0 0
        %1251 = vmatpush1.bf16.msra.mxu0 0
        %1252 = vmatprep.subr.bf16.mxu0 0
        %1253 = vmatpush1.bf16.msra.mxu0 0
        %1254 = vmatprep.subr.bf16.mxu0 0
        %1255 = vmatpush1.bf16.msra.mxu0 0
        %1256 = vmatprep.subr.bf16.mxu0 0
        %1257 = vmatpush1.bf16.msra.mxu0 0
        %1258 = vmatprep.subr.bf16.mxu0 0
        %1259 = vmatpush1.bf16.msra.mxu0 0
        %1260 = vmatprep.subr.bf16.mxu0 0
        %1261 = vmatpush1.bf16.msra.mxu0 0
        %1262 = vmatprep.subr.bf16.mxu0 0
        %1263 = vmatpush1.bf16.msra.mxu0 0
        %1264 = vmatprep.subr.bf16.mxu0 0
        %1265 = vmatpush1.bf16.msra.mxu0 0
        %1266 = vmatprep.mubr.bf16.mxu0 0
        %1267 = vmatmul.mubr.bf16.gmra.mrb[0].mxu0 %v593
        %v1268 = vpop.f32.mrb[0].mxu0
        %v1269 = vpop.f32.mrb[0].mxu0
        %v1270 = vpop.f32.mrb[0].mxu0
        %v1271 = vadd.f32 %v870, %v1270
        %v1272 = vpop.f32.mrb[0].mxu0
        %1273 = vmatprep.mubr.bf16.mxu0 0
        %1274 = vmatmul.mubr.bf16.gmra.mrb[0].mxu0 %v594
        %v1275 = vpop.f32.mrb[0].mxu0
        %v1276 = vadd.f32 %v875, %v1275
        %v1277 = vpop.f32.mrb[0].mxu0
        %v1278 = vpop.f32.mrb[0].mxu0
        %v1279 = vadd.f32 %v878, %v1278
        %v1280 = vpop.f32.mrb[0].mxu0
        %1281 = vmatprep.mubr.bf16.mxu0 0
        %1282 = vmatmul.mubr.bf16.gmra.mrb[0].mxu0 %v595
        %v1283 = vpop.f32.mrb[0].mxu0
        %v1284 = vadd.f32 %v883, %v1283
        %v1285 = vpop.f32.mrb[0].mxu0
        %v1286 = vpop.f32.mrb[0].mxu0
        %v1287 = vadd.f32 %v886, %v1286
        %v1288 = vpop.f32.mrb[0].mxu0
        %1289 = vmatprep.mubr.bf16.mxu0 0
        %1290 = vmatmul.mubr.bf16.gmra.mrb[0].mxu0 %v596
        %v1291 = vpop.f32.mrb[0].mxu0
        %v1292 = vpop.f32.mrb[0].mxu0
        %v1293 = vpop.f32.mrb[0].mxu0
        %v1294 = vadd.f32 %v893, %v1293
        %v1295 = vpop.f32.mrb[0].mxu0
        %1296 = vmatprep.mubr.bf16.mxu0 0
        %1297 = vmatmul.mubr.bf16.gmra.mrb[0].mxu0 %v597
        %v1298 = vpop.f32.mrb[0].mxu0
        %v1299 = vadd.f32 %v898, %v1298
        %v1300 = vpop.f32.mrb[0].mxu0
        %v1301 = vpop.f32.mrb[0].mxu0
        %v1302 = vadd.f32 %v901, %v1301
        %v1303 = vpop.f32.mrb[0].mxu0
        %1304 = vmatprep.mubr.bf16.mxu0 0
        %1305 = vmatmul.mubr.bf16.gmra.mrb[0].mxu0 %v598
        %v1306 = vpop.f32.mrb[0].mxu0
        %v1307 = vadd.f32 %v906, %v1306
        %v1308 = vpop.f32.mrb[0].mxu0
        %v1309 = vpop.f32.mrb[0].mxu0
        %v1310 = vadd.f32 %v909, %v1309
        %v1311 = vpop.f32.mrb[0].mxu0
        %1312 = vmatprep.mubr.bf16.mxu0 0
        %1313 = vmatmul.mubr.bf16.gmra.mrb[0].mxu0 %v599
        %v1314 = vpop.f32.mrb[0].mxu0
        %v1315 = vpop.f32.mrb[0].mxu0
        %v1316 = vpop.f32.mrb[0].mxu0
        %v1317 = vadd.f32 %v916, %v1316
        %v1318 = vpop.f32.mrb[0].mxu0
        %1319 = vmatprep.mubr.bf16.mxu0 0
        %1320 = vmatmul.mubr.bf16.gmra.mrb[0].mxu0 %v600
        %v1321 = vpop.f32.mrb[0].mxu0
        %v1322 = vadd.f32 %v921, %v1321
        %v1323 = vpop.f32.mrb[0].mxu0
        %v1324 = vpop.f32.mrb[0].mxu0
        %v1325 = vadd.f32 %v924, %v1324
        %v1326 = vpop.f32.mrb[0].mxu0
        %1327 = vmatprep.mubr.bf16.mxu0 0
        %1328 = vmatmul.mubr.bf16.gmra.mrb[0].mxu0 %v601
        %v1329 = vpop.f32.mrb[0].mxu0
        %v1330 = vadd.f32 %v929, %v1329
        %v1331 = vpop.f32.mrb[0].mxu0
        %v1332 = vpop.f32.mrb[0].mxu0
        %v1333 = vadd.f32 %v932, %v1332
        %v1334 = vpop.f32.mrb[0].mxu0
        %1335 = vmatprep.mubr.bf16.mxu0 0
        %1336 = vmatmul.mubr.bf16.gmra.mrb[0].mxu0 %v602
        %v1337 = vpop.f32.mrb[0].mxu0
        %v1338 = vpop.f32.mrb[0].mxu0
        %v1339 = vpop.f32.mrb[0].mxu0
        %v1340 = vadd.f32 %v939, %v1339
        %v1341 = vpop.f32.mrb[0].mxu0
        %1342 = vmatprep.mubr.bf16.mxu0 0
        %1343 = vmatmul.mubr.bf16.gmra.mrb[0].mxu0 %v603
        %v1344 = vpop.f32.mrb[0].mxu0
        %v1345 = vadd.f32 %v944, %v1344
        %v1346 = vpop.f32.mrb[0].mxu0
        %v1347 = vpop.f32.mrb[0].mxu0
        %v1348 = vadd.f32 %v947, %v1347
        %v1349 = vpop.f32.mrb[0].mxu0
        %1350 = vmatprep.mubr.bf16.mxu0 0
        %1351 = vmatmul.mubr.bf16.gmra.mrb[0].mxu0 %v604
        %v1352 = vpop.f32.mrb[0].mxu0
        %v1353 = vadd.f32 %v952, %v1352
        %v1354 = vpop.f32.mrb[0].mxu0
        %v1355 = vpop.f32.mrb[0].mxu0
        %v1356 = vadd.f32 %v955, %v1355
        %v1357 = vpop.f32.mrb[0].mxu0
        %1358 = vmatprep.mubr.bf16.mxu0 0
        %1359 = vmatmul.mubr.bf16.gmra.mrb[0].mxu0 %v605
        %v1360 = vpop.f32.mrb[0].mxu0
        %v1361 = vpop.f32.mrb[0].mxu0
        %v1362 = vpop.f32.mrb[0].mxu0
        %v1363 = vadd.f32 %v962, %v1362
        %v1364 = vpop.f32.mrb[0].mxu0
        %1365 = vmatprep.mubr.bf16.mxu0 0
        %1366 = vmatmul.mubr.bf16.gmra.mrb[0].mxu0 %v606
        %v1367 = vpop.f32.mrb[0].mxu0
        %v1368 = vadd.f32 %v967, %v1367
        %v1369 = vpop.f32.mrb[0].mxu0
        %v1370 = vpop.f32.mrb[0].mxu0
        %v1371 = vadd.f32 %v970, %v1370
        %v1372 = vpop.f32.mrb[0].mxu0
        %1373 = vmatprep.mubr.bf16.mxu0 0
        %1374 = vmatmul.mubr.bf16.gmra.mrb[0].mxu0 %v607
        %v1375 = vpop.f32.mrb[0].mxu0
        %v1376 = vadd.f32 %v975, %v1375
        %v1377 = vpop.f32.mrb[0].mxu0
        %v1378 = vpop.f32.mrb[0].mxu0
        %v1379 = vadd.f32 %v978, %v1378
        %v1380 = vpop.f32.mrb[0].mxu0
        %1381 = vmatprep.mubr.bf16.mxu0 0
        %1382 = vmatmul.mubr.bf16.gmra.mrb[0].mxu0 %v608
        %v1383 = vpop.f32.mrb[0].mxu0
        %v1384 = vpop.f32.mrb[0].mxu0
        %v1385 = vpop.f32.mrb[0].mxu0
        %v1386 = vadd.f32 %v985, %v1385
        %v1387 = vpop.f32.mrb[0].mxu0
        %1388 = vmatprep.mubr.bf16.mxu0 0
        %1389 = vmatmul.mubr.bf16.gmra.mrb[0].mxu0 %v609
        %v1390 = vpop.f32.mrb[0].mxu0
        %v1391 = vadd.f32 %v990, %v1390
        %v1392 = vpop.f32.mrb[0].mxu0
        %v1393 = vpop.f32.mrb[0].mxu0
        %v1394 = vadd.f32 %v993, %v1393
        %v1395 = vpop.f32.mrb[0].mxu0
        %1396 = vmatprep.mubr.bf16.mxu0 0
        %1397 = vmatmul.mubr.bf16.gmra.mrb[0].mxu0 %v610
        %v1398 = vpop.f32.mrb[0].mxu0
        %v1399 = vadd.f32 %v998, %v1398
        %v1400 = vpop.f32.mrb[0].mxu0
        %v1401 = vpop.f32.mrb[0].mxu0
        %v1402 = vadd.f32 %v1001, %v1401
        %v1403 = vpop.f32.mrb[0].mxu0
        %1404 = vmatprep.mubr.bf16.mxu0 0
        %1405 = vmatmul.mubr.bf16.gmra.mrb[0].mxu0 %v611
        %v1406 = vpop.f32.mrb[0].mxu0
        %v1407 = vpop.f32.mrb[0].mxu0
        %v1408 = vpop.f32.mrb[0].mxu0
        %v1409 = vadd.f32 %v1008, %v1408
        %v1410 = vpop.f32.mrb[0].mxu0
        %1411 = vmatprep.mubr.bf16.mxu0 0
        %1412 = vmatmul.mubr.bf16.gmra.mrb[0].mxu0 %v612
        %v1413 = vpop.f32.mrb[0].mxu0
        %v1414 = vadd.f32 %v1013, %v1413
        %v1415 = vpop.f32.mrb[0].mxu0
        %v1416 = vpop.f32.mrb[0].mxu0
        %v1417 = vadd.f32 %v1016, %v1416
        %v1418 = vpop.f32.mrb[0].mxu0
        %1419 = vmatprep.mubr.bf16.mxu0 0
        %1420 = vmatmul.mubr.bf16.gmra.mrb[0].mxu0 %v613
        %v1421 = vpop.f32.mrb[0].mxu0
        %v1422 = vadd.f32 %v1021, %v1421
        %v1423 = vpop.f32.mrb[0].mxu0
        %v1424 = vpop.f32.mrb[0].mxu0
        %v1425 = vadd.f32 %v1024, %v1424
        %v1426 = vpop.f32.mrb[0].mxu0
        %1427 = vmatprep.mubr.bf16.mxu0 0
        %1428 = vmatmul.mubr.bf16.gmra.mrb[0].mxu0 %v614
        %v1429 = vpop.f32.mrb[0].mxu0
        %v1430 = vpop.f32.mrb[0].mxu0
        %v1431 = vpop.f32.mrb[0].mxu0
        %v1432 = vadd.f32 %v1031, %v1431
        %v1433 = vpop.f32.mrb[0].mxu0
        %1434 = vmatprep.mubr.bf16.mxu0 0
        %1435 = vmatmul.mubr.bf16.gmra.mrb[0].mxu0 %v615
        %v1436 = vpop.f32.mrb[0].mxu0
        %v1437 = vadd.f32 %v1036, %v1436
        %v1438 = vpop.f32.mrb[0].mxu0
        %v1439 = vpop.f32.mrb[0].mxu0
        %v1440 = vadd.f32 %v1039, %v1439
        %v1441 = vpop.f32.mrb[0].mxu0
        %1442 = vmatprep.mubr.bf16.mxu0 0
        %1443 = vmatmul.mubr.bf16.gmra.mrb[0].mxu0 %v616
        %v1444 = vpop.f32.mrb[0].mxu0
        %v1445 = vadd.f32 %v1044, %v1444
        %v1446 = vpop.f32.mrb[0].mxu0
        %v1447 = vpop.f32.mrb[0].mxu0
        %v1448 = vadd.f32 %v1047, %v1447
        %v1449 = vpop.f32.mrb[0].mxu0
        %1450 = vmatprep.mubr.bf16.mxu0 0
        %1451 = vmatmul.mubr.bf16.gmra.mrb[0].mxu0 %v617
        %v1452 = vpop.f32.mrb[0].mxu0
        %v1453 = vpop.f32.mrb[0].mxu0
        %v1454 = vpop.f32.mrb[0].mxu0
        %v1455 = vadd.f32 %v1054, %v1454
        %v1456 = vpop.f32.mrb[0].mxu0
        %1457 = vmatprep.mubr.bf16.mxu0 0
        %1458 = vmatmul.mubr.bf16.gmra.mrb[0].mxu0 %v618
        %v1459 = vpop.f32.mrb[0].mxu0
        %v1460 = vadd.f32 %v1059, %v1459
        %v1461 = vpop.f32.mrb[0].mxu0
        %v1462 = vpop.f32.mrb[0].mxu0
        %v1463 = vadd.f32 %v1062, %v1462
        %v1464 = vpop.f32.mrb[0].mxu0
        %1465 = vmatprep.mubr.bf16.mxu0 0
        %1466 = vmatmul.mubr.bf16.gmra.mrb[0].mxu0 %v619
        %v1467 = vpop.f32.mrb[0].mxu0
        %v1468 = vadd.f32 %v1067, %v1467
        %v1469 = vpop.f32.mrb[0].mxu0
        %v1470 = vpop.f32.mrb[0].mxu0
        %v1471 = vadd.f32 %v1070, %v1470
        %v1472 = vpop.f32.mrb[0].mxu0
        %1473 = vmatprep.mubr.bf16.mxu0 0
        %1474 = vmatmul.mubr.bf16.gmra.mrb[0].mxu0 %v620
        %v1475 = vpop.f32.mrb[0].mxu0
        %v1476 = vpop.f32.mrb[0].mxu0
        %v1477 = vpop.f32.mrb[0].mxu0
        %v1478 = vadd.f32 %v1077, %v1477
        %v1479 = vpop.f32.mrb[0].mxu0
        %1480 = vmatprep.mubr.bf16.mxu0 0
        %1481 = vmatmul.mubr.bf16.gmra.mrb[0].mxu0 %v621
        %v1482 = vpop.f32.mrb[0].mxu0
        %v1483 = vadd.f32 %v1082, %v1482
        %v1484 = vpop.f32.mrb[0].mxu0
        %v1485 = vpop.f32.mrb[0].mxu0
        %v1486 = vadd.f32 %v1085, %v1485
        %v1487 = vpop.f32.mrb[0].mxu0
        %1488 = vmatprep.mubr.bf16.mxu0 0
        %1489 = vmatmul.mubr.bf16.gmra.mrb[0].mxu0 %v622
        %v1490 = vpop.f32.mrb[0].mxu0
        %v1491 = vadd.f32 %v1090, %v1490
        %v1492 = vpop.f32.mrb[0].mxu0
        %v1493 = vpop.f32.mrb[0].mxu0
        %v1494 = vadd.f32 %v1093, %v1493
        %v1495 = vpop.f32.mrb[0].mxu0
        %1496 = vmatprep.mubr.bf16.mxu0 0
        %1497 = vmatmul.mubr.bf16.gmra.mrb[0].mxu0 %v623
        %v1498 = vpop.f32.mrb[0].mxu0
        %v1499 = vpop.f32.mrb[0].mxu0
        %v1500 = vpop.f32.mrb[0].mxu0
        %v1501 = vadd.f32 %v1100, %v1500
        %v1502 = vpop.f32.mrb[0].mxu0
        %1503 = vmatprep.mubr.bf16.mxu0 0
        %1504 = vmatmul.mubr.bf16.gmra.mrb[0].mxu0 %v624
        %v1505 = vpop.f32.mrb[0].mxu0
        %v1506 = vadd.f32 %v1105, %v1505
        %v1507 = vpop.f32.mrb[0].mxu0
        %v1508 = vpop.f32.mrb[0].mxu0
        %v1509 = vadd.f32 %v1108, %v1508
        %v1510 = vpop.f32.mrb[0].mxu0
        %1511 = vmatprep.mubr.bf16.mxu0 0
        %1512 = vmatmul.mubr.bf16.gmra.mrb[0].mxu0 %v625
        %v1513 = vpop.f32.mrb[0].mxu0
        %v1514 = vadd.f32 %v1113, %v1513
        %v1515 = vpop.f32.mrb[0].mxu0
        %v1516 = vpop.f32.mrb[0].mxu0
        %v1517 = vadd.f32 %v1116, %v1516
        %v1518 = vpop.f32.mrb[0].mxu0
        %1519 = vmatprep.mubr.bf16.mxu0 0
        %1520 = vmatmul.mubr.bf16.gmra.mrb[0].mxu0 %v626
        %v1521 = vpop.f32.mrb[0].mxu0
        %v1522 = vpop.f32.mrb[0].mxu0
        %v1523 = vpop.f32.mrb[0].mxu0
        %v1524 = vadd.f32 %v1123, %v1523
        %v1525 = vpop.f32.mrb[0].mxu0
        %1526 = vmatprep.mubr.bf16.mxu0 0
        %1527 = vmatmul.mubr.bf16.gmra.mrb[0].mxu0 %v627
        %v1528 = vpop.f32.mrb[0].mxu0
        %v1529 = vadd.f32 %v1128, %v1528
        %v1530 = vpop.f32.mrb[0].mxu0
        %v1531 = vpop.f32.mrb[0].mxu0
        %v1532 = vadd.f32 %v1131, %v1531
        %v1533 = vpop.f32.mrb[0].mxu0
        %1534 = vmatprep.mubr.bf16.mxu0 0
        %1535 = vmatmul.mubr.bf16.gmra.mrb[0].mxu0 %v628
        %v1536 = vpop.f32.mrb[0].mxu0
        %v1537 = vadd.f32 %v1136, %v1536
        %v1538 = vpop.f32.mrb[0].mxu0
        %v1539 = vpop.f32.mrb[0].mxu0
        %v1540 = vadd.f32 %v1139, %v1539
        %v1541 = vpop.f32.mrb[0].mxu0
        %1542 = vmatprep.mubr.bf16.mxu0 0
        %1543 = vmatmul.mubr.bf16.gmra.mrb[0].mxu0 %v629
        %v1544 = vpop.f32.mrb[0].mxu0
        %v1545 = vpop.f32.mrb[0].mxu0
        %v1546 = vpop.f32.mrb[0].mxu0
        %v1547 = vadd.f32 %v1146, %v1546
        %v1548 = vpop.f32.mrb[0].mxu0
        %1549 = vmatprep.mubr.bf16.mxu0 0
        %1550 = vmatmul.mubr.bf16.gmra.mrb[0].mxu0 %v630
        %v1551 = vpop.f32.mrb[0].mxu0
        %v1552 = vadd.f32 %v1151, %v1551
        %v1553 = vpop.f32.mrb[0].mxu0
        %v1554 = vpop.f32.mrb[0].mxu0
        %v1555 = vadd.f32 %v1154, %v1554
        %v1556 = vpop.f32.mrb[0].mxu0
        %1557 = vmatprep.mubr.bf16.mxu0 0
        %1558 = vmatmul.mubr.bf16.gmra.mrb[0].mxu0 %v631
        %v1559 = vpop.f32.mrb[0].mxu0
        %v1560 = vadd.f32 %v1159, %v1559
        %v1561 = vpop.f32.mrb[0].mxu0
        %v1562 = vpop.f32.mrb[0].mxu0
        %v1563 = vadd.f32 %v1162, %v1562
        %v1564 = vpop.f32.mrb[0].mxu0
        %1565 = vmatprep.mubr.bf16.mxu0 0
        %1566 = vmatmul.mubr.bf16.gmra.mrb[0].mxu0 %v632
        %v1567 = vpop.f32.mrb[0].mxu0
        %v1568 = vpop.f32.mrb[0].mxu0
        %v1569 = vpop.f32.mrb[0].mxu0
        %v1570 = vadd.f32 %v1169, %v1569
        %v1571 = vpop.f32.mrb[0].mxu0
        %1572 = vmatprep.mubr.bf16.mxu0 0
        %1573 = vmatmul.mubr.bf16.gmra.mrb[0].mxu0 %v633
        %v1574 = vpop.f32.mrb[0].mxu0
        %v1575 = vadd.f32 %v1174, %v1574
        %v1576 = vpop.f32.mrb[0].mxu0
        %v1577 = vpop.f32.mrb[0].mxu0
        %v1578 = vadd.f32 %v1177, %v1577
        %v1579 = vpop.f32.mrb[0].mxu0
        %1580 = vmatprep.mubr.bf16.mxu0 0
        %1581 = vmatmul.mubr.bf16.gmra.mrb[0].mxu0 %v634
        %v1582 = vpop.f32.mrb[0].mxu0
        %v1583 = vadd.f32 %v1182, %v1582
        %v1584 = vpop.f32.mrb[0].mxu0
        %v1585 = vpop.f32.mrb[0].mxu0
        %v1586 = vadd.f32 %v1185, %v1585
        %v1587 = vpop.f32.mrb[0].mxu0
        %1588 = vmatprep.mubr.bf16.mxu0 0
        %1589 = vmatmul.mubr.bf16.gmra.mrb[0].mxu0 %v635
        %v1590 = vpop.f32.mrb[0].mxu0
        %v1591 = vpop.f32.mrb[0].mxu0
        %v1592 = vpop.f32.mrb[0].mxu0
        %v1593 = vadd.f32 %v1192, %v1592
        %v1594 = vpop.f32.mrb[0].mxu0
        %1595 = vmatprep.mubr.bf16.mxu0 0
        %1596 = vmatmul.mubr.bf16.gmra.mrb[0].mxu0 %v636
        %v1597 = vpop.f32.mrb[0].mxu0
        %v1598 = vadd.f32 %v1197, %v1597
        %v1599 = vpop.f32.mrb[0].mxu0
        %v1600 = vpop.f32.mrb[0].mxu0
        %v1601 = vadd.f32 %v1200, %v1600
        %v1602 = vpop.f32.mrb[0].mxu0
        %1603 = vmatprep.mubr.bf16.mxu0 0
        %1604 = vmatmul.mubr.bf16.gmra.mrb[0].mxu0 %v637
        %v1605 = vpop.f32.mrb[0].mxu0
        %v1606 = vadd.f32 %v1205, %v1605
        %v1607 = vpop.f32.mrb[0].mxu0
        %v1608 = vpop.f32.mrb[0].mxu0
        %v1609 = vadd.f32 %v1208, %v1608
        %v1610 = vpop.f32.mrb[0].mxu0
        %1611 = vmatprep.mubr.bf16.mxu0 0
        %1612 = vmatmul.mubr.bf16.gmra.mrb[0].mxu0 %v638
        %v1613 = vpop.f32.mrb[0].mxu0
        %v1614 = vpop.f32.mrb[0].mxu0
        %v1615 = vpop.f32.mrb[0].mxu0
        %v1616 = vadd.f32 %v1215, %v1615
        %v1617 = vpop.f32.mrb[0].mxu0
        %1618 = vmatprep.mubr.bf16.mxu0 0
        %1619 = vmatmul.mubr.bf16.gmra.mrb[0].mxu0 %v639
        %v1620 = vpop.f32.mrb[0].mxu0
        %v1621 = vadd.f32 %v1220, %v1620
        %v1622 = vpop.f32.mrb[0].mxu0
        %v1623 = vpop.f32.mrb[0].mxu0
        %v1624 = vadd.f32 %v1223, %v1623
        %v1625 = vpop.f32.mrb[0].mxu0
        %1626 = vmatprep.mubr.bf16.mxu0 0
        %1627 = vmatmul.mubr.bf16.gmra.mrb[0].mxu0 %v640
        %v1628 = vpop.f32.mrb[0].mxu0
        %v1629 = vadd.f32 %v1228, %v1628
        %v1630 = vpop.f32.mrb[0].mxu0
        %v1631 = vpop.f32.mrb[0].mxu0
        %v1632 = vadd.f32 %v1231, %v1631
        %v1633 = vpop.f32.mrb[0].mxu0
        %1634 = vdwg.mxu0
        %v1635 = vrot.slane %v1271, 7
        %v1636 = vrot.slane %v1276, 7
        %v1637 = vrot.slane %v1279, 7
        %v1638 = vrot.slane %v1284, 7
        %v1639 = vrot.slane %v1287, 7
        %v1640 = vrot.slane %v1294, 7
        %v1641 = vrot.slane %v1299, 7
        %v1642 = vrot.slane %v1302, 7
        %v1643 = vrot.slane %v1307, 7
        %v1644 = vrot.slane %v1310, 7
        %v1645 = vrot.slane %v1317, 7
        %v1646 = vrot.slane %v1322, 7
        %v1647 = vrot.slane %v1325, 7
        %v1648 = vrot.slane %v1330, 7
        %v1649 = vrot.slane %v1333, 7
        %v1650 = vrot.slane %v1340, 7
        %v1651 = vrot.slane %v1345, 7
        %v1652 = vrot.slane %v1348, 7
        %v1653 = vrot.slane %v1353, 7
        %v1654 = vrot.slane %v1356, 7
        %v1655 = vrot.slane %v1363, 7
        %v1656 = vrot.slane %v1368, 7
        %v1657 = vrot.slane %v1371, 7
        %v1658 = vrot.slane %v1376, 7
        %v1659 = vrot.slane %v1379, 7
        %v1660 = vrot.slane %v1386, 7
        %v1661 = vrot.slane %v1391, 7
        %v1662 = vrot.slane %v1394, 7
        %v1663 = vrot.slane %v1399, 7
        %v1664 = vrot.slane %v1402, 7
        %v1665 = vrot.slane %v1409, 7
        %v1666 = vrot.slane %v1414, 7
        %v1667 = vrot.slane %v1417, 7
        %v1668 = vrot.slane %v1422, 7
        %v1669 = vrot.slane %v1425, 7
        %v1670 = vrot.slane %v1432, 7
        %v1671 = vrot.slane %v1437, 7
        %v1672 = vrot.slane %v1440, 7
        %v1673 = vrot.slane %v1445, 7
        %v1674 = vrot.slane %v1448, 7
        %v1675 = vrot.slane %v1455, 7
        %v1676 = vrot.slane %v1460, 7
        %v1677 = vrot.slane %v1463, 7
        %v1678 = vrot.slane %v1468, 7
        %v1679 = vrot.slane %v1471, 7
        %v1680 = vrot.slane %v1478, 7
        %v1681 = vrot.slane %v1483, 7
        %v1682 = vrot.slane %v1486, 7
        %v1683 = vrot.slane %v1491, 7
        %v1684 = vrot.slane %v1494, 7
        %v1685 = vrot.slane %v1501, 7
        %v1686 = vrot.slane %v1506, 7
        %v1687 = vrot.slane %v1509, 7
        %v1688 = vrot.slane %v1514, 7
        %v1689 = vrot.slane %v1517, 7
        %v1690 = vrot.slane %v1524, 7
        %v1691 = vrot.slane %v1529, 7
        %v1692 = vrot.slane %v1532, 7
        %v1693 = vrot.slane %v1537, 7
        %v1694 = vrot.slane %v1540, 7
        %v1695 = vrot.slane %v1547, 7
        %v1696 = vrot.slane %v1552, 7
        %v1697 = vrot.slane %v1555, 7
        %v1698 = vrot.slane %v1560, 7
        %v1699 = vrot.slane %v1563, 7
        %v1700 = vrot.slane %v1570, 7
        %v1701 = vrot.slane %v1575, 7
        %v1702 = vrot.slane %v1578, 7
        %v1703 = vrot.slane %v1583, 7
        %v1704 = vrot.slane %v1586, 7
        %v1705 = vrot.slane %v1593, 7
        %v1706 = vrot.slane %v1598, 7
        %v1707 = vrot.slane %v1601, 7
        %v1708 = vrot.slane %v1606, 7
        %v1709 = vrot.slane %v1609, 7
        %v1710 = vrot.slane %v1616, 7
        %v1711 = vrot.slane %v1621, 7
        %v1712 = vrot.slane %v1624, 7
        %v1713 = vrot.slane %v1629, 7
        %v1714 = vrot.slane %v1632, 7
        %vm1715 = vcmp.lt.s32.totalorder %v579, 1
        %v1716 = vsel %vm1715, %v1713, %v1714
        %v1717 = vsel %vm1715, %v1712, %v1713
        %v1718 = vsel %vm1715, %v1711, %v1712
        %v1719 = vsel %vm1715, %v1710, %v1711
        %v1720 = vsel %vm1715, %v1708, %v1709
        %v1721 = vsel %vm1715, %v1707, %v1708
        %v1722 = vsel %vm1715, %v1706, %v1707
        %v1723 = vsel %vm1715, %v1705, %v1706
        %v1724 = vsel %vm1715, %v1703, %v1704
        %v1725 = vsel %vm1715, %v1702, %v1703
        %v1726 = vsel %vm1715, %v1701, %v1702
        %v1727 = vsel %vm1715, %v1700, %v1701
        %v1728 = vsel %vm1715, %v1698, %v1699
        %v1729 = vsel %vm1715, %v1697, %v1698
        %v1730 = vsel %vm1715, %v1696, %v1697
        %v1731 = vsel %vm1715, %v1695, %v1696
        %v1732 = vsel %vm1715, %v1693, %v1694
        %v1733 = vsel %vm1715, %v1692, %v1693
        %v1734 = vsel %vm1715, %v1691, %v1692
        %v1735 = vsel %vm1715, %v1690, %v1691
        %v1736 = vsel %vm1715, %v1688, %v1689
        %v1737 = vsel %vm1715, %v1687, %v1688
        %v1738 = vsel %vm1715, %v1686, %v1687
        %v1739 = vsel %vm1715, %v1685, %v1686
        %v1740 = vsel %vm1715, %v1683, %v1684
        %v1741 = vsel %vm1715, %v1682, %v1683
        %v1742 = vsel %vm1715, %v1681, %v1682
        %v1743 = vsel %vm1715, %v1680, %v1681
        %v1744 = vsel %vm1715, %v1678, %v1679
        %v1745 = vsel %vm1715, %v1677, %v1678
        %v1746 = vsel %vm1715, %v1676, %v1677
        %v1747 = vsel %vm1715, %v1675, %v1676
        %v1748 = vsel %vm1715, %v1673, %v1674
        %v1749 = vsel %vm1715, %v1672, %v1673
        %v1750 = vsel %vm1715, %v1671, %v1672
        %v1751 = vsel %vm1715, %v1670, %v1671
        %v1752 = vsel %vm1715, %v1668, %v1669
        %v1753 = vsel %vm1715, %v1667, %v1668
        %v1754 = vsel %vm1715, %v1666, %v1667
        %v1755 = vsel %vm1715, %v1665, %v1666
        %v1756 = vsel %vm1715, %v1663, %v1664
        %v1757 = vsel %vm1715, %v1662, %v1663
        %v1758 = vsel %vm1715, %v1661, %v1662
        %v1759 = vsel %vm1715, %v1660, %v1661
        %v1760 = vsel %vm1715, %v1658, %v1659
        %v1761 = vsel %vm1715, %v1657, %v1658
        %v1762 = vsel %vm1715, %v1656, %v1657
        %v1763 = vsel %vm1715, %v1655, %v1656
        %v1764 = vsel %vm1715, %v1653, %v1654
        %v1765 = vsel %vm1715, %v1652, %v1653
        %v1766 = vsel %vm1715, %v1651, %v1652
        %v1767 = vsel %vm1715, %v1650, %v1651
        %v1768 = vsel %vm1715, %v1648, %v1649
        %v1769 = vsel %vm1715, %v1647, %v1648
        %v1770 = vsel %vm1715, %v1646, %v1647
        %v1771 = vsel %vm1715, %v1645, %v1646
        %v1772 = vsel %vm1715, %v1643, %v1644
        %v1773 = vsel %vm1715, %v1642, %v1643
        %v1774 = vsel %vm1715, %v1641, %v1642
        %v1775 = vsel %vm1715, %v1640, %v1641
        %v1776 = vsel %vm1715, %v1638, %v1639
        %v1777 = vsel %vm1715, %v1637, %v1638
        %v1778 = vsel %vm1715, %v1636, %v1637
        %v1779 = vsel %vm1715, %v1635, %v1636
        %s1780 = scalar_lea.vmem [#allocation4], 192
        %v1781 = vld [vmem:[%s1780] sm:$0xf]
        %v1782 = vld [vmem:[%s1780 + $0x4] sm:$0xf]
        %v1783 = vld [vmem:[%s1780 + $0x8] sm:$0xf]
        %v1784 = vld [vmem:[%s1780 + $0xc] sm:$0xf]
        %v1785 = vld [vmem:[%s1780 + $0x10] sm:$0xf]
        %v1786 = vld [vmem:[%s1780 + $0x14] sm:$0xf]
        %v1787 = vld [vmem:[%s1780 + $0x18] sm:$0xf]
        %v1788 = vld [vmem:[%s1780 + $0x1c] sm:$0xf]
        %v1789 = vld [vmem:[%s1780 + $0x20] sm:$0xf]
        %v1790 = vld [vmem:[%s1780 + $0x24] sm:$0xf]
        %v1791 = vld [vmem:[%s1780 + $0x28] sm:$0xf]
        %v1792 = vld [vmem:[%s1780 + $0x2c] sm:$0xf]
        %v1793 = vld [vmem:[%s1780 + $0x30] sm:$0xf]
        %v1794 = vld [vmem:[%s1780 + $0x34] sm:$0xf]
        %v1795 = vld [vmem:[%s1780 + $0x38] sm:$0xf]
        %v1796 = vld [vmem:[%s1780 + $0x3c] sm:$0xf]
        %v1797 = vld [vmem:[%s1780 + $0x40] sm:$0xf]
        %v1798 = vld [vmem:[%s1780 + $0x44] sm:$0xf]
        %v1799 = vld [vmem:[%s1780 + $0x48] sm:$0xf]
        %v1800 = vld [vmem:[%s1780 + $0x4c] sm:$0xf]
        %v1801 = vld [vmem:[%s1780 + $0x50] sm:$0xf]
        %v1802 = vld [vmem:[%s1780 + $0x54] sm:$0xf]
        %v1803 = vld [vmem:[%s1780 + $0x58] sm:$0xf]
        %v1804 = vld [vmem:[%s1780 + $0x5c] sm:$0xf]
        %v1805 = vld [vmem:[%s1780 + $0x60] sm:$0xf]
        %v1806 = vld [vmem:[%s1780 + $0x64] sm:$0xf]
        %v1807 = vld [vmem:[%s1780 + $0x68] sm:$0xf]
        %v1808 = vld [vmem:[%s1780 + $0x6c] sm:$0xf]
        %v1809 = vld [vmem:[%s1780 + $0x70] sm:$0xf]
        %v1810 = vld [vmem:[%s1780 + $0x74] sm:$0xf]
        %v1811 = vld [vmem:[%s1780 + $0x78] sm:$0xf]
        %v1812 = vld [vmem:[%s1780 + $0x7c] sm:$0xf]
        %v1813 = vld [vmem:[%s1780 + $0x80] sm:$0xf]
        %v1814 = vld [vmem:[%s1780 + $0x84] sm:$0xf]
        %v1815 = vld [vmem:[%s1780 + $0x88] sm:$0xf]
        %v1816 = vld [vmem:[%s1780 + $0x8c] sm:$0xf]
        %v1817 = vld [vmem:[%s1780 + $0x90] sm:$0xf]
        %v1818 = vld [vmem:[%s1780 + $0x94] sm:$0xf]
        %v1819 = vld [vmem:[%s1780 + $0x98] sm:$0xf]
        %v1820 = vld [vmem:[%s1780 + $0x9c] sm:$0xf]
        %v1821 = vld [vmem:[%s1780 + $0xa0] sm:$0xf]
        %v1822 = vld [vmem:[%s1780 + $0xa4] sm:$0xf]
        %v1823 = vld [vmem:[%s1780 + $0xa8] sm:$0xf]
        %v1824 = vld [vmem:[%s1780 + $0xac] sm:$0xf]
        %v1825 = vld [vmem:[%s1780 + $0xb0] sm:$0xf]
        %v1826 = vld [vmem:[%s1780 + $0xb4] sm:$0xf]
        %v1827 = vld [vmem:[%s1780 + $0xb8] sm:$0xf]
        %v1828 = vld [vmem:[%s1780 + $0xbc] sm:$0xf]
        %v1877 = vunpack.c.l.b16 %v1781
        %v1878 = vunpack.c.l.b16 %v1782
        %v1879 = vunpack.c.l.b16 %v1783
        %v1880 = vunpack.c.l.b16 %v1784
        %v1881 = vunpack.c.l.b16 %v1785
        %v1882 = vunpack.c.l.b16 %v1786
        %v1883 = vunpack.c.l.b16 %v1787
        %v1884 = vunpack.c.l.b16 %v1788
        %v1885 = vunpack.c.l.b16 %v1789
        %v1886 = vunpack.c.l.b16 %v1790
        %v1887 = vunpack.c.l.b16 %v1791
        %v1888 = vunpack.c.l.b16 %v1792
        %v1889 = vunpack.c.l.b16 %v1793
        %v1890 = vunpack.c.l.b16 %v1794
        %v1891 = vunpack.c.l.b16 %v1795
        %v1892 = vunpack.c.l.b16 %v1796
        %v1893 = vunpack.c.l.b16 %v1797
        %v1894 = vunpack.c.l.b16 %v1798
        %v1895 = vunpack.c.l.b16 %v1799
        %v1896 = vunpack.c.l.b16 %v1800
        %v1897 = vunpack.c.l.b16 %v1801
        %v1898 = vunpack.c.l.b16 %v1802
        %v1899 = vunpack.c.l.b16 %v1803
        %v1900 = vunpack.c.l.b16 %v1804
        %v1901 = vunpack.c.l.b16 %v1805
        %v1902 = vunpack.c.l.b16 %v1806
        %v1903 = vunpack.c.l.b16 %v1807
        %v1904 = vunpack.c.l.b16 %v1808
        %v1905 = vunpack.c.l.b16 %v1809
        %v1906 = vunpack.c.l.b16 %v1810
        %v1907 = vunpack.c.l.b16 %v1811
        %v1908 = vunpack.c.l.b16 %v1812
        %v1909 = vunpack.c.l.b16 %v1813
        %v1910 = vunpack.c.l.b16 %v1814
        %v1911 = vunpack.c.l.b16 %v1815
        %v1912 = vunpack.c.l.b16 %v1816
        %v1913 = vunpack.c.l.b16 %v1817
        %v1914 = vunpack.c.l.b16 %v1818
        %v1915 = vunpack.c.l.b16 %v1819
        %v1916 = vunpack.c.l.b16 %v1820
        %v1917 = vunpack.c.l.b16 %v1821
        %v1918 = vunpack.c.l.b16 %v1822
        %v1919 = vunpack.c.l.b16 %v1823
        %v1920 = vunpack.c.l.b16 %v1824
        %v1921 = vunpack.c.l.b16 %v1825
        %v1922 = vunpack.c.l.b16 %v1826
        %v1923 = vunpack.c.l.b16 %v1827
        %v1924 = vunpack.c.l.b16 %v1828
        %v1925 = vpack.c.b16 %v1878, %v1877
        %v1926 = vpack.c.b16 %v1880, %v1879
        %v1927 = vpack.c.b16 %v1882, %v1881
        %v1928 = vpack.c.b16 %v1884, %v1883
        %v1929 = vpack.c.b16 %v1886, %v1885
        %v1930 = vpack.c.b16 %v1888, %v1887
        %v1931 = vpack.c.b16 %v1890, %v1889
        %v1932 = vpack.c.b16 %v1892, %v1891
        %v1933 = vpack.c.b16 %v1894, %v1893
        %v1934 = vpack.c.b16 %v1896, %v1895
        %v1935 = vpack.c.b16 %v1898, %v1897
        %v1936 = vpack.c.b16 %v1900, %v1899
        %v1937 = vpack.c.b16 %v1902, %v1901
        %v1938 = vpack.c.b16 %v1904, %v1903
        %v1939 = vpack.c.b16 %v1906, %v1905
        %v1940 = vpack.c.b16 %v1908, %v1907
        %v1941 = vpack.c.b16 %v1910, %v1909
        %v1942 = vpack.c.b16 %v1912, %v1911
        %v1943 = vpack.c.b16 %v1914, %v1913
        %v1944 = vpack.c.b16 %v1916, %v1915
        %v1945 = vpack.c.b16 %v1918, %v1917
        %v1946 = vpack.c.b16 %v1920, %v1919
        %v1947 = vpack.c.b16 %v1922, %v1921
        %v1948 = vpack.c.b16 %v1924, %v1923
        %1973 = vmatprep.subr.bf16.mxu0 0
        %1974 = vmatpush1.bf16.msra.mxu0 %v1925
        %1975 = vmatprep.subr.bf16.mxu0 0
        %1976 = vmatpush1.bf16.msra.mxu0 %v1926
        %1977 = vmatprep.subr.bf16.mxu0 0
        %1978 = vmatpush1.bf16.msra.mxu0 %v1927
        %1979 = vmatprep.subr.bf16.mxu0 0
        %1980 = vmatpush1.bf16.msra.mxu0 %v1928
        %1981 = vmatprep.subr.bf16.mxu0 0
        %1982 = vmatpush1.bf16.msra.mxu0 %v1929
        %1983 = vmatprep.subr.bf16.mxu0 0
        %1984 = vmatpush1.bf16.msra.mxu0 %v1930
        %1985 = vmatprep.subr.bf16.mxu0 0
        %1986 = vmatpush1.bf16.msra.mxu0 %v1931
        %1987 = vmatprep.subr.bf16.mxu0 0
        %1988 = vmatpush1.bf16.msra.mxu0 %v1932
        %1989 = vmatprep.subr.bf16.mxu0 0
        %1990 = vmatpush1.bf16.msra.mxu0 %v1933
        %1991 = vmatprep.subr.bf16.mxu0 0
        %1992 = vmatpush1.bf16.msra.mxu0 %v1934
        %1993 = vmatprep.subr.bf16.mxu0 0
        %1994 = vmatpush1.bf16.msra.mxu0 %v1935
        %1995 = vmatprep.subr.bf16.mxu0 0
        %1996 = vmatpush1.bf16.msra.mxu0 %v1936
        %1997 = vmatprep.subr.bf16.mxu0 0
        %1998 = vmatpush1.bf16.msra.mxu0 %v1937
        %1999 = vmatprep.subr.bf16.mxu0 0
        %2000 = vmatpush1.bf16.msra.mxu0 %v1938
        %2001 = vmatprep.subr.bf16.mxu0 0
        %2002 = vmatpush1.bf16.msra.mxu0 %v1939
        %2003 = vmatprep.subr.bf16.mxu0 0
        %2004 = vmatpush1.bf16.msra.mxu0 %v1940
        %2005 = vmatprep.mubr.bf16.mxu0 %v590
        %2006 = vmatmul.mubr.bf16.gmra.mrb[0].mxu0 %v587
        %v2007 = vpop.f32.mrb[0].mxu0
        %v2008 = vpop.f32.mrb[0].mxu0
        %v2009 = vpop.f32.mrb[0].mxu0
        %v2010 = vpop.f32.mrb[0].mxu0
        %2011 = vmatprep.mubr.bf16.mxu0 %v591
        %2012 = vmatmul.mubr.bf16.gmra.mrb[0].mxu0 %v588
        %v2013 = vpop.f32.mrb[0].mxu0
        %v2014 = vadd.f32 0.0, %v2013
        %v2015 = vpop.f32.mrb[0].mxu0
        %v2016 = vpop.f32.mrb[0].mxu0
        %v2017 = vadd.f32 0.0, %v2016
        %v2018 = vpop.f32.mrb[0].mxu0
        %2019 = vmatprep.mubr.bf16.mxu0 %v592
        %2020 = vmatmul.mubr.bf16.gmra.mrb[0].mxu0 %v589
        %v2021 = vpop.f32.mrb[0].mxu0
        %v2022 = vadd.f32 0.0, %v2021
        %v2023 = vpop.f32.mrb[0].mxu0
        %v2024 = vpop.f32.mrb[0].mxu0
        %v2025 = vadd.f32 0.0, %v2024
        %v2026 = vpop.f32.mrb[0].mxu0
        %2027 = vmatprep.mubr.bf16.mxu0 %v593
        %2028 = vmatmul.mubr.bf16.gmra.mrb[0].mxu0 %v590
        %v2029 = vpop.f32.mrb[0].mxu0
        %v2030 = vpop.f32.mrb[0].mxu0
        %v2031 = vpop.f32.mrb[0].mxu0
        %v2032 = vpop.f32.mrb[0].mxu0
        %2033 = vmatprep.mubr.bf16.mxu0 %v594
        %2034 = vmatmul.mubr.bf16.gmra.mrb[0].mxu0 %v591
        %v2035 = vpop.f32.mrb[0].mxu0
        %v2036 = vadd.f32 0.0, %v2035
        %v2037 = vpop.f32.mrb[0].mxu0
        %v2038 = vpop.f32.mrb[0].mxu0
        %v2039 = vadd.f32 0.0, %v2038
        %v2040 = vpop.f32.mrb[0].mxu0
        %2041 = vmatprep.mubr.bf16.mxu0 %v595
        %2042 = vmatmul.mubr.bf16.gmra.mrb[0].mxu0 %v592
        %v2043 = vpop.f32.mrb[0].mxu0
        %v2044 = vadd.f32 0.0, %v2043
        %v2045 = vpop.f32.mrb[0].mxu0
        %v2046 = vpop.f32.mrb[0].mxu0
        %v2047 = vadd.f32 0.0, %v2046
        %v2048 = vpop.f32.mrb[0].mxu0
        %2049 = vmatprep.mubr.bf16.mxu0 %v596
        %2050 = vmatmul.mubr.bf16.gmra.mrb[0].mxu0 %v593
        %v2051 = vpop.f32.mrb[0].mxu0
        %v2052 = vpop.f32.mrb[0].mxu0
        %v2053 = vpop.f32.mrb[0].mxu0
        %v2054 = vpop.f32.mrb[0].mxu0
        %2055 = vmatprep.mubr.bf16.mxu0 %v597
        %2056 = vmatmul.mubr.bf16.gmra.mrb[0].mxu0 %v594
        %v2057 = vpop.f32.mrb[0].mxu0
        %v2058 = vadd.f32 0.0, %v2057
        %v2059 = vpop.f32.mrb[0].mxu0
        %v2060 = vpop.f32.mrb[0].mxu0
        %v2061 = vadd.f32 0.0, %v2060
        %v2062 = vpop.f32.mrb[0].mxu0
        %2063 = vmatprep.mubr.bf16.mxu0 %v598
        %2064 = vmatmul.mubr.bf16.gmra.mrb[0].mxu0 %v595
        %v2065 = vpop.f32.mrb[0].mxu0
        %v2066 = vadd.f32 0.0, %v2065
        %v2067 = vpop.f32.mrb[0].mxu0
        %v2068 = vpop.f32.mrb[0].mxu0
        %v2069 = vadd.f32 0.0, %v2068
        %v2070 = vpop.f32.mrb[0].mxu0
        %2071 = vmatprep.mubr.bf16.mxu0 %v599
        %2072 = vmatmul.mubr.bf16.gmra.mrb[0].mxu0 %v596
        %v2073 = vpop.f32.mrb[0].mxu0
        %v2074 = vpop.f32.mrb[0].mxu0
        %v2075 = vpop.f32.mrb[0].mxu0
        %v2076 = vpop.f32.mrb[0].mxu0
        %2077 = vmatprep.mubr.bf16.mxu0 %v600
        %2078 = vmatmul.mubr.bf16.gmra.mrb[0].mxu0 %v597
        %v2079 = vpop.f32.mrb[0].mxu0
        %v2080 = vadd.f32 0.0, %v2079
        %v2081 = vpop.f32.mrb[0].mxu0
        %v2082 = vpop.f32.mrb[0].mxu0
        %v2083 = vadd.f32 0.0, %v2082
        %v2084 = vpop.f32.mrb[0].mxu0
        %2085 = vmatprep.mubr.bf16.mxu0 %v601
        %2086 = vmatmul.mubr.bf16.gmra.mrb[0].mxu0 %v598
        %v2087 = vpop.f32.mrb[0].mxu0
        %v2088 = vadd.f32 0.0, %v2087
        %v2089 = vpop.f32.mrb[0].mxu0
        %v2090 = vpop.f32.mrb[0].mxu0
        %v2091 = vadd.f32 0.0, %v2090
        %v2092 = vpop.f32.mrb[0].mxu0
        %2093 = vmatprep.mubr.bf16.mxu0 %v602
        %2094 = vmatmul.mubr.bf16.gmra.mrb[0].mxu0 %v599
        %v2095 = vpop.f32.mrb[0].mxu0
        %v2096 = vpop.f32.mrb[0].mxu0
        %v2097 = vpop.f32.mrb[0].mxu0
        %v2098 = vpop.f32.mrb[0].mxu0
        %2099 = vmatprep.mubr.bf16.mxu0 %v603
        %2100 = vmatmul.mubr.bf16.gmra.mrb[0].mxu0 %v600
        %v2101 = vpop.f32.mrb[0].mxu0
        %v2102 = vadd.f32 0.0, %v2101
        %v2103 = vpop.f32.mrb[0].mxu0
        %v2104 = vpop.f32.mrb[0].mxu0
        %v2105 = vadd.f32 0.0, %v2104
        %v2106 = vpop.f32.mrb[0].mxu0
        %2107 = vmatprep.mubr.bf16.mxu0 %v604
        %2108 = vmatmul.mubr.bf16.gmra.mrb[0].mxu0 %v601
        %v2109 = vpop.f32.mrb[0].mxu0
        %v2110 = vadd.f32 0.0, %v2109
        %v2111 = vpop.f32.mrb[0].mxu0
        %v2112 = vpop.f32.mrb[0].mxu0
        %v2113 = vadd.f32 0.0, %v2112
        %v2114 = vpop.f32.mrb[0].mxu0
        %2115 = vmatprep.mubr.bf16.mxu0 %v605
        %2116 = vmatmul.mubr.bf16.gmra.mrb[0].mxu0 %v602
        %v2117 = vpop.f32.mrb[0].mxu0
        %v2118 = vpop.f32.mrb[0].mxu0
        %v2119 = vpop.f32.mrb[0].mxu0
        %v2120 = vpop.f32.mrb[0].mxu0
        %2121 = vmatprep.mubr.bf16.mxu0 %v606
        %2122 = vmatmul.mubr.bf16.gmra.mrb[0].mxu0 %v603
        %v2123 = vpop.f32.mrb[0].mxu0
        %v2124 = vadd.f32 0.0, %v2123
        %v2125 = vpop.f32.mrb[0].mxu0
        %v2126 = vpop.f32.mrb[0].mxu0
        %v2127 = vadd.f32 0.0, %v2126
        %v2128 = vpop.f32.mrb[0].mxu0
        %2129 = vmatprep.mubr.bf16.mxu0 %v607
        %2130 = vmatmul.mubr.bf16.gmra.mrb[0].mxu0 %v604
        %v2131 = vpop.f32.mrb[0].mxu0
        %v2132 = vadd.f32 0.0, %v2131
        %v2133 = vpop.f32.mrb[0].mxu0
        %v2134 = vpop.f32.mrb[0].mxu0
        %v2135 = vadd.f32 0.0, %v2134
        %v2136 = vpop.f32.mrb[0].mxu0
        %2137 = vmatprep.mubr.bf16.mxu0 %v608
        %2138 = vmatmul.mubr.bf16.gmra.mrb[0].mxu0 %v605
        %v2139 = vpop.f32.mrb[0].mxu0
        %v2140 = vpop.f32.mrb[0].mxu0
        %v2141 = vpop.f32.mrb[0].mxu0
        %v2142 = vpop.f32.mrb[0].mxu0
        %2143 = vmatprep.mubr.bf16.mxu0 %v609
        %2144 = vmatmul.mubr.bf16.gmra.mrb[0].mxu0 %v606
        %v2145 = vpop.f32.mrb[0].mxu0
        %v2146 = vadd.f32 0.0, %v2145
        %v2147 = vpop.f32.mrb[0].mxu0
        %v2148 = vpop.f32.mrb[0].mxu0
        %v2149 = vadd.f32 0.0, %v2148
        %v2150 = vpop.f32.mrb[0].mxu0
        %2151 = vmatprep.mubr.bf16.mxu0 %v610
        %2152 = vmatmul.mubr.bf16.gmra.mrb[0].mxu0 %v607
        %v2153 = vpop.f32.mrb[0].mxu0
        %v2154 = vadd.f32 0.0, %v2153
        %v2155 = vpop.f32.mrb[0].mxu0
        %v2156 = vpop.f32.mrb[0].mxu0
        %v2157 = vadd.f32 0.0, %v2156
        %v2158 = vpop.f32.mrb[0].mxu0
        %2159 = vmatprep.mubr.bf16.mxu0 %v611
        %2160 = vmatmul.mubr.bf16.gmra.mrb[0].mxu0 %v608
        %v2161 = vpop.f32.mrb[0].mxu0
        %v2162 = vpop.f32.mrb[0].mxu0
        %v2163 = vpop.f32.mrb[0].mxu0
        %v2164 = vpop.f32.mrb[0].mxu0
        %2165 = vmatprep.mubr.bf16.mxu0 %v612
        %2166 = vmatmul.mubr.bf16.gmra.mrb[0].mxu0 %v609
        %v2167 = vpop.f32.mrb[0].mxu0
        %v2168 = vadd.f32 0.0, %v2167
        %v2169 = vpop.f32.mrb[0].mxu0
        %v2170 = vpop.f32.mrb[0].mxu0
        %v2171 = vadd.f32 0.0, %v2170
        %v2172 = vpop.f32.mrb[0].mxu0
        %2173 = vmatprep.mubr.bf16.mxu0 %v613
        %2174 = vmatmul.mubr.bf16.gmra.mrb[0].mxu0 %v610
        %v2175 = vpop.f32.mrb[0].mxu0
        %v2176 = vadd.f32 0.0, %v2175
        %v2177 = vpop.f32.mrb[0].mxu0
        %v2178 = vpop.f32.mrb[0].mxu0
        %v2179 = vadd.f32 0.0, %v2178
        %v2180 = vpop.f32.mrb[0].mxu0
        %2181 = vmatprep.mubr.bf16.mxu0 %v614
        %2182 = vmatmul.mubr.bf16.gmra.mrb[0].mxu0 %v611
        %v2183 = vpop.f32.mrb[0].mxu0
        %v2184 = vpop.f32.mrb[0].mxu0
        %v2185 = vpop.f32.mrb[0].mxu0
        %v2186 = vpop.f32.mrb[0].mxu0
        %2187 = vmatprep.mubr.bf16.mxu0 %v615
        %2188 = vmatmul.mubr.bf16.gmra.mrb[0].mxu0 %v612
        %v2189 = vpop.f32.mrb[0].mxu0
        %v2190 = vadd.f32 0.0, %v2189
        %v2191 = vpop.f32.mrb[0].mxu0
        %v2192 = vpop.f32.mrb[0].mxu0
        %v2193 = vadd.f32 0.0, %v2192
        %v2194 = vpop.f32.mrb[0].mxu0
        %2195 = vmatprep.mubr.bf16.mxu0 %v616
        %2196 = vmatmul.mubr.bf16.gmra.mrb[0].mxu0 %v613
        %v2197 = vpop.f32.mrb[0].mxu0
        %v2198 = vadd.f32 0.0, %v2197
        %v2199 = vpop.f32.mrb[0].mxu0
        %v2200 = vpop.f32.mrb[0].mxu0
        %v2201 = vadd.f32 0.0, %v2200
        %v2202 = vpop.f32.mrb[0].mxu0
        %2203 = vmatprep.mubr.bf16.mxu0 %v617
        %2204 = vmatmul.mubr.bf16.gmra.mrb[0].mxu0 %v614
        %v2205 = vpop.f32.mrb[0].mxu0
        %v2206 = vpop.f32.mrb[0].mxu0
        %v2207 = vpop.f32.mrb[0].mxu0
        %v2208 = vpop.f32.mrb[0].mxu0
        %2209 = vmatprep.mubr.bf16.mxu0 %v618
        %2210 = vmatmul.mubr.bf16.gmra.mrb[0].mxu0 %v615
        %v2211 = vpop.f32.mrb[0].mxu0
        %v2212 = vadd.f32 0.0, %v2211
        %v2213 = vpop.f32.mrb[0].mxu0
        %v2214 = vpop.f32.mrb[0].mxu0
        %v2215 = vadd.f32 0.0, %v2214
        %v2216 = vpop.f32.mrb[0].mxu0
        %2217 = vmatprep.mubr.bf16.mxu0 %v619
        %2218 = vmatmul.mubr.bf16.gmra.mrb[0].mxu0 %v616
        %v2219 = vpop.f32.mrb[0].mxu0
        %v2220 = vadd.f32 0.0, %v2219
        %v2221 = vpop.f32.mrb[0].mxu0
        %v2222 = vpop.f32.mrb[0].mxu0
        %v2223 = vadd.f32 0.0, %v2222
        %v2224 = vpop.f32.mrb[0].mxu0
        %2225 = vmatprep.mubr.bf16.mxu0 %v620
        %2226 = vmatmul.mubr.bf16.gmra.mrb[0].mxu0 %v617
        %v2227 = vpop.f32.mrb[0].mxu0
        %v2228 = vpop.f32.mrb[0].mxu0
        %v2229 = vpop.f32.mrb[0].mxu0
        %v2230 = vpop.f32.mrb[0].mxu0
        %2231 = vmatprep.mubr.bf16.mxu0 %v621
        %2232 = vmatmul.mubr.bf16.gmra.mrb[0].mxu0 %v618
        %v2233 = vpop.f32.mrb[0].mxu0
        %v2234 = vadd.f32 0.0, %v2233
        %v2235 = vpop.f32.mrb[0].mxu0
        %v2236 = vpop.f32.mrb[0].mxu0
        %v2237 = vadd.f32 0.0, %v2236
        %v2238 = vpop.f32.mrb[0].mxu0
        %2239 = vmatprep.mubr.bf16.mxu0 %v622
        %2240 = vmatmul.mubr.bf16.gmra.mrb[0].mxu0 %v619
        %v2241 = vpop.f32.mrb[0].mxu0
        %v2242 = vadd.f32 0.0, %v2241
        %v2243 = vpop.f32.mrb[0].mxu0
        %v2244 = vpop.f32.mrb[0].mxu0
        %v2245 = vadd.f32 0.0, %v2244
        %v2246 = vpop.f32.mrb[0].mxu0
        %2247 = vmatprep.mubr.bf16.mxu0 %v623
        %2248 = vmatmul.mubr.bf16.gmra.mrb[0].mxu0 %v620
        %v2249 = vpop.f32.mrb[0].mxu0
        %v2250 = vpop.f32.mrb[0].mxu0
        %v2251 = vpop.f32.mrb[0].mxu0
        %v2252 = vpop.f32.mrb[0].mxu0
        %2253 = vmatprep.mubr.bf16.mxu0 %v624
        %2254 = vmatmul.mubr.bf16.gmra.mrb[0].mxu0 %v621
        %v2255 = vpop.f32.mrb[0].mxu0
        %v2256 = vadd.f32 0.0, %v2255
        %v2257 = vpop.f32.mrb[0].mxu0
        %v2258 = vpop.f32.mrb[0].mxu0
        %v2259 = vadd.f32 0.0, %v2258
        %v2260 = vpop.f32.mrb[0].mxu0
        %2261 = vmatprep.mubr.bf16.mxu0 %v625
        %2262 = vmatmul.mubr.bf16.gmra.mrb[0].mxu0 %v622
        %v2263 = vpop.f32.mrb[0].mxu0
        %v2264 = vadd.f32 0.0, %v2263
        %v2265 = vpop.f32.mrb[0].mxu0
        %v2266 = vpop.f32.mrb[0].mxu0
        %v2267 = vadd.f32 0.0, %v2266
        %v2268 = vpop.f32.mrb[0].mxu0
        %2269 = vmatprep.mubr.bf16.mxu0 %v626
        %2270 = vmatmul.mubr.bf16.gmra.mrb[0].mxu0 %v623
        %v2271 = vpop.f32.mrb[0].mxu0
        %v2272 = vpop.f32.mrb[0].mxu0
        %v2273 = vpop.f32.mrb[0].mxu0
        %v2274 = vpop.f32.mrb[0].mxu0
        %2275 = vmatprep.mubr.bf16.mxu0 %v627
        %2276 = vmatmul.mubr.bf16.gmra.mrb[0].mxu0 %v624
        %v2277 = vpop.f32.mrb[0].mxu0
        %v2278 = vadd.f32 0.0, %v2277
        %v2279 = vpop.f32.mrb[0].mxu0
        %v2280 = vpop.f32.mrb[0].mxu0
        %v2281 = vadd.f32 0.0, %v2280
        %v2282 = vpop.f32.mrb[0].mxu0
        %2283 = vmatprep.mubr.bf16.mxu0 %v628
        %2284 = vmatmul.mubr.bf16.gmra.mrb[0].mxu0 %v625
        %v2285 = vpop.f32.mrb[0].mxu0
        %v2286 = vadd.f32 0.0, %v2285
        %v2287 = vpop.f32.mrb[0].mxu0
        %v2288 = vpop.f32.mrb[0].mxu0
        %v2289 = vadd.f32 0.0, %v2288
        %v2290 = vpop.f32.mrb[0].mxu0
        %2291 = vmatprep.mubr.bf16.mxu0 %v629
        %2292 = vmatmul.mubr.bf16.gmra.mrb[0].mxu0 %v626
        %v2293 = vpop.f32.mrb[0].mxu0
        %v2294 = vpop.f32.mrb[0].mxu0
        %v2295 = vpop.f32.mrb[0].mxu0
        %v2296 = vpop.f32.mrb[0].mxu0
        %2297 = vmatprep.mubr.bf16.mxu0 %v630
        %2298 = vmatmul.mubr.bf16.gmra.mrb[0].mxu0 %v627
        %v2299 = vpop.f32.mrb[0].mxu0
        %v2300 = vadd.f32 0.0, %v2299
        %v2301 = vpop.f32.mrb[0].mxu0
        %v2302 = vpop.f32.mrb[0].mxu0
        %v2303 = vadd.f32 0.0, %v2302
        %v2304 = vpop.f32.mrb[0].mxu0
        %2305 = vmatprep.mubr.bf16.mxu0 %v631
        %2306 = vmatmul.mubr.bf16.gmra.mrb[0].mxu0 %v628
        %v2307 = vpop.f32.mrb[0].mxu0
        %v2308 = vadd.f32 0.0, %v2307
        %v2309 = vpop.f32.mrb[0].mxu0
        %v2310 = vpop.f32.mrb[0].mxu0
        %v2311 = vadd.f32 0.0, %v2310
        %v2312 = vpop.f32.mrb[0].mxu0
        %2313 = vmatprep.mubr.bf16.mxu0 %v632
        %2314 = vmatmul.mubr.bf16.gmra.mrb[0].mxu0 %v629
        %v2315 = vpop.f32.mrb[0].mxu0
        %v2316 = vpop.f32.mrb[0].mxu0
        %v2317 = vpop.f32.mrb[0].mxu0
        %v2318 = vpop.f32.mrb[0].mxu0
        %2319 = vmatprep.mubr.bf16.mxu0 %v633
        %2320 = vmatmul.mubr.bf16.gmra.mrb[0].mxu0 %v630
        %v2321 = vpop.f32.mrb[0].mxu0
        %v2322 = vadd.f32 0.0, %v2321
        %v2323 = vpop.f32.mrb[0].mxu0
        %v2324 = vpop.f32.mrb[0].mxu0
        %v2325 = vadd.f32 0.0, %v2324
        %v2326 = vpop.f32.mrb[0].mxu0
        %2327 = vmatprep.mubr.bf16.mxu0 %v634
        %2328 = vmatmul.mubr.bf16.gmra.mrb[0].mxu0 %v631
        %v2329 = vpop.f32.mrb[0].mxu0
        %v2330 = vadd.f32 0.0, %v2329
        %v2331 = vpop.f32.mrb[0].mxu0
        %v2332 = vpop.f32.mrb[0].mxu0
        %v2333 = vadd.f32 0.0, %v2332
        %v2334 = vpop.f32.mrb[0].mxu0
        %2335 = vmatprep.mubr.bf16.mxu0 %v635
        %2336 = vmatmul.mubr.bf16.gmra.mrb[0].mxu0 %v632
        %v2337 = vpop.f32.mrb[0].mxu0
        %v2338 = vpop.f32.mrb[0].mxu0
        %v2339 = vpop.f32.mrb[0].mxu0
        %v2340 = vpop.f32.mrb[0].mxu0
        %2341 = vmatprep.mubr.bf16.mxu0 %v636
        %2342 = vmatmul.mubr.bf16.gmra.mrb[0].mxu0 %v633
        %v2343 = vpop.f32.mrb[0].mxu0
        %v2344 = vadd.f32 0.0, %v2343
        %v2345 = vpop.f32.mrb[0].mxu0
        %v2346 = vpop.f32.mrb[0].mxu0
        %v2347 = vadd.f32 0.0, %v2346
        %v2348 = vpop.f32.mrb[0].mxu0
        %2349 = vmatprep.mubr.bf16.mxu0 %v637
        %2350 = vmatmul.mubr.bf16.gmra.mrb[0].mxu0 %v634
        %v2351 = vpop.f32.mrb[0].mxu0
        %v2352 = vadd.f32 0.0, %v2351
        %v2353 = vpop.f32.mrb[0].mxu0
        %v2354 = vpop.f32.mrb[0].mxu0
        %v2355 = vadd.f32 0.0, %v2354
        %v2356 = vpop.f32.mrb[0].mxu0
        %2357 = vdwg.mxu0
        %2358 = vmatprep.subr.bf16.mxu0 0
        %2359 = vmatpush1.bf16.msra.mxu0 %v1941
        %2360 = vmatprep.subr.bf16.mxu0 0
        %2361 = vmatpush1.bf16.msra.mxu0 %v1942
        %2362 = vmatprep.subr.bf16.mxu0 0
        %2363 = vmatpush1.bf16.msra.mxu0 %v1943
        %2364 = vmatprep.subr.bf16.mxu0 0
        %2365 = vmatpush1.bf16.msra.mxu0 %v1944
        %2366 = vmatprep.subr.bf16.mxu0 0
        %2367 = vmatpush1.bf16.msra.mxu0 %v1945
        %2368 = vmatprep.subr.bf16.mxu0 0
        %2369 = vmatpush1.bf16.msra.mxu0 %v1946
        %2370 = vmatprep.subr.bf16.mxu0 0
        %2371 = vmatpush1.bf16.msra.mxu0 %v1947
        %2372 = vmatprep.subr.bf16.mxu0 0
        %2373 = vmatpush1.bf16.msra.mxu0 %v1948
        %2374 = vmatprep.subr.bf16.mxu0 0
        %2375 = vmatpush1.bf16.msra.mxu0 0
        %2376 = vmatprep.subr.bf16.mxu0 0
        %2377 = vmatpush1.bf16.msra.mxu0 0
        %2378 = vmatprep.subr.bf16.mxu0 0
        %2379 = vmatpush1.bf16.msra.mxu0 0
        %2380 = vmatprep.subr.bf16.mxu0 0
        %2381 = vmatpush1.bf16.msra.mxu0 0
        %2382 = vmatprep.subr.bf16.mxu0 0
        %2383 = vmatpush1.bf16.msra.mxu0 0
        %2384 = vmatprep.subr.bf16.mxu0 0
        %2385 = vmatpush1.bf16.msra.mxu0 0
        %2386 = vmatprep.subr.bf16.mxu0 0
        %2387 = vmatpush1.bf16.msra.mxu0 0
        %2388 = vmatprep.subr.bf16.mxu0 0
        %2389 = vmatpush1.bf16.msra.mxu0 0
        %2390 = vmatprep.mubr.bf16.mxu0 0
        %2391 = vmatmul.mubr.bf16.gmra.mrb[0].mxu0 %v593
        %v2392 = vpop.f32.mrb[0].mxu0
        %v2393 = vpop.f32.mrb[0].mxu0
        %v2394 = vpop.f32.mrb[0].mxu0
        %v2395 = vpop.f32.mrb[0].mxu0
        %2396 = vmatprep.mubr.bf16.mxu0 0
        %2397 = vmatmul.mubr.bf16.gmra.mrb[0].mxu0 %v594
        %v2398 = vpop.f32.mrb[0].mxu0
        %v2399 = vadd.f32 %v2014, %v2398
        %v2400 = vpop.f32.mrb[0].mxu0
        %v2401 = vpop.f32.mrb[0].mxu0
        %v2402 = vadd.f32 %v2017, %v2401
        %v2403 = vpop.f32.mrb[0].mxu0
        %2404 = vmatprep.mubr.bf16.mxu0 0
        %2405 = vmatmul.mubr.bf16.gmra.mrb[0].mxu0 %v595
        %v2406 = vpop.f32.mrb[0].mxu0
        %v2407 = vadd.f32 %v2022, %v2406
        %v2408 = vpop.f32.mrb[0].mxu0
        %v2409 = vpop.f32.mrb[0].mxu0
        %v2410 = vadd.f32 %v2025, %v2409
        %v2411 = vpop.f32.mrb[0].mxu0
        %2412 = vmatprep.mubr.bf16.mxu0 0
        %2413 = vmatmul.mubr.bf16.gmra.mrb[0].mxu0 %v596
        %v2414 = vpop.f32.mrb[0].mxu0
        %v2415 = vpop.f32.mrb[0].mxu0
        %v2416 = vpop.f32.mrb[0].mxu0
        %v2417 = vpop.f32.mrb[0].mxu0
        %2418 = vmatprep.mubr.bf16.mxu0 0
        %2419 = vmatmul.mubr.bf16.gmra.mrb[0].mxu0 %v597
        %v2420 = vpop.f32.mrb[0].mxu0
        %v2421 = vadd.f32 %v2036, %v2420
        %v2422 = vpop.f32.mrb[0].mxu0
        %v2423 = vpop.f32.mrb[0].mxu0
        %v2424 = vadd.f32 %v2039, %v2423
        %v2425 = vpop.f32.mrb[0].mxu0
        %2426 = vmatprep.mubr.bf16.mxu0 0
        %2427 = vmatmul.mubr.bf16.gmra.mrb[0].mxu0 %v598
        %v2428 = vpop.f32.mrb[0].mxu0
        %v2429 = vadd.f32 %v2044, %v2428
        %v2430 = vpop.f32.mrb[0].mxu0
        %v2431 = vpop.f32.mrb[0].mxu0
        %v2432 = vadd.f32 %v2047, %v2431
        %v2433 = vpop.f32.mrb[0].mxu0
        %2434 = vmatprep.mubr.bf16.mxu0 0
        %2435 = vmatmul.mubr.bf16.gmra.mrb[0].mxu0 %v599
        %v2436 = vpop.f32.mrb[0].mxu0
        %v2437 = vpop.f32.mrb[0].mxu0
        %v2438 = vpop.f32.mrb[0].mxu0
        %v2439 = vpop.f32.mrb[0].mxu0
        %2440 = vmatprep.mubr.bf16.mxu0 0
        %2441 = vmatmul.mubr.bf16.gmra.mrb[0].mxu0 %v600
        %v2442 = vpop.f32.mrb[0].mxu0
        %v2443 = vadd.f32 %v2058, %v2442
        %v2444 = vpop.f32.mrb[0].mxu0
        %v2445 = vpop.f32.mrb[0].mxu0
        %v2446 = vadd.f32 %v2061, %v2445
        %v2447 = vpop.f32.mrb[0].mxu0
        %2448 = vmatprep.mubr.bf16.mxu0 0
        %2449 = vmatmul.mubr.bf16.gmra.mrb[0].mxu0 %v601
        %v2450 = vpop.f32.mrb[0].mxu0
        %v2451 = vadd.f32 %v2066, %v2450
        %v2452 = vpop.f32.mrb[0].mxu0
        %v2453 = vpop.f32.mrb[0].mxu0
        %v2454 = vadd.f32 %v2069, %v2453
        %v2455 = vpop.f32.mrb[0].mxu0
        %2456 = vmatprep.mubr.bf16.mxu0 0
        %2457 = vmatmul.mubr.bf16.gmra.mrb[0].mxu0 %v602
        %v2458 = vpop.f32.mrb[0].mxu0
        %v2459 = vpop.f32.mrb[0].mxu0
        %v2460 = vpop.f32.mrb[0].mxu0
        %v2461 = vpop.f32.mrb[0].mxu0
        %2462 = vmatprep.mubr.bf16.mxu0 0
        %2463 = vmatmul.mubr.bf16.gmra.mrb[0].mxu0 %v603
        %v2464 = vpop.f32.mrb[0].mxu0
        %v2465 = vadd.f32 %v2080, %v2464
        %v2466 = vpop.f32.mrb[0].mxu0
        %v2467 = vpop.f32.mrb[0].mxu0
        %v2468 = vadd.f32 %v2083, %v2467
        %v2469 = vpop.f32.mrb[0].mxu0
        %2470 = vmatprep.mubr.bf16.mxu0 0
        %2471 = vmatmul.mubr.bf16.gmra.mrb[0].mxu0 %v604
        %v2472 = vpop.f32.mrb[0].mxu0
        %v2473 = vadd.f32 %v2088, %v2472
        %v2474 = vpop.f32.mrb[0].mxu0
        %v2475 = vpop.f32.mrb[0].mxu0
        %v2476 = vadd.f32 %v2091, %v2475
        %v2477 = vpop.f32.mrb[0].mxu0
        %2478 = vmatprep.mubr.bf16.mxu0 0
        %2479 = vmatmul.mubr.bf16.gmra.mrb[0].mxu0 %v605
        %v2480 = vpop.f32.mrb[0].mxu0
        %v2481 = vpop.f32.mrb[0].mxu0
        %v2482 = vpop.f32.mrb[0].mxu0
        %v2483 = vpop.f32.mrb[0].mxu0
        %2484 = vmatprep.mubr.bf16.mxu0 0
        %2485 = vmatmul.mubr.bf16.gmra.mrb[0].mxu0 %v606
        %v2486 = vpop.f32.mrb[0].mxu0
        %v2487 = vadd.f32 %v2102, %v2486
        %v2488 = vpop.f32.mrb[0].mxu0
        %v2489 = vpop.f32.mrb[0].mxu0
        %v2490 = vadd.f32 %v2105, %v2489
        %v2491 = vpop.f32.mrb[0].mxu0
        %2492 = vmatprep.mubr.bf16.mxu0 0
        %2493 = vmatmul.mubr.bf16.gmra.mrb[0].mxu0 %v607
        %v2494 = vpop.f32.mrb[0].mxu0
        %v2495 = vadd.f32 %v2110, %v2494
        %v2496 = vpop.f32.mrb[0].mxu0
        %v2497 = vpop.f32.mrb[0].mxu0
        %v2498 = vadd.f32 %v2113, %v2497
        %v2499 = vpop.f32.mrb[0].mxu0
        %2500 = vmatprep.mubr.bf16.mxu0 0
        %2501 = vmatmul.mubr.bf16.gmra.mrb[0].mxu0 %v608
        %v2502 = vpop.f32.mrb[0].mxu0
        %v2503 = vpop.f32.mrb[0].mxu0
        %v2504 = vpop.f32.mrb[0].mxu0
        %v2505 = vpop.f32.mrb[0].mxu0
        %2506 = vmatprep.mubr.bf16.mxu0 0
        %2507 = vmatmul.mubr.bf16.gmra.mrb[0].mxu0 %v609
        %v2508 = vpop.f32.mrb[0].mxu0
        %v2509 = vadd.f32 %v2124, %v2508
        %v2510 = vpop.f32.mrb[0].mxu0
        %v2511 = vpop.f32.mrb[0].mxu0
        %v2512 = vadd.f32 %v2127, %v2511
        %v2513 = vpop.f32.mrb[0].mxu0
        %2514 = vmatprep.mubr.bf16.mxu0 0
        %2515 = vmatmul.mubr.bf16.gmra.mrb[0].mxu0 %v610
        %v2516 = vpop.f32.mrb[0].mxu0
        %v2517 = vadd.f32 %v2132, %v2516
        %v2518 = vpop.f32.mrb[0].mxu0
        %v2519 = vpop.f32.mrb[0].mxu0
        %v2520 = vadd.f32 %v2135, %v2519
        %v2521 = vpop.f32.mrb[0].mxu0
        %2522 = vmatprep.mubr.bf16.mxu0 0
        %2523 = vmatmul.mubr.bf16.gmra.mrb[0].mxu0 %v611
        %v2524 = vpop.f32.mrb[0].mxu0
        %v2525 = vpop.f32.mrb[0].mxu0
        %v2526 = vpop.f32.mrb[0].mxu0
        %v2527 = vpop.f32.mrb[0].mxu0
        %2528 = vmatprep.mubr.bf16.mxu0 0
        %2529 = vmatmul.mubr.bf16.gmra.mrb[0].mxu0 %v612
        %v2530 = vpop.f32.mrb[0].mxu0
        %v2531 = vadd.f32 %v2146, %v2530
        %v2532 = vpop.f32.mrb[0].mxu0
        %v2533 = vpop.f32.mrb[0].mxu0
        %v2534 = vadd.f32 %v2149, %v2533
        %v2535 = vpop.f32.mrb[0].mxu0
        %2536 = vmatprep.mubr.bf16.mxu0 0
        %2537 = vmatmul.mubr.bf16.gmra.mrb[0].mxu0 %v613
        %v2538 = vpop.f32.mrb[0].mxu0
        %v2539 = vadd.f32 %v2154, %v2538
        %v2540 = vpop.f32.mrb[0].mxu0
        %v2541 = vpop.f32.mrb[0].mxu0
        %v2542 = vadd.f32 %v2157, %v2541
        %v2543 = vpop.f32.mrb[0].mxu0
        %2544 = vmatprep.mubr.bf16.mxu0 0
        %2545 = vmatmul.mubr.bf16.gmra.mrb[0].mxu0 %v614
        %v2546 = vpop.f32.mrb[0].mxu0
        %v2547 = vpop.f32.mrb[0].mxu0
        %v2548 = vpop.f32.mrb[0].mxu0
        %v2549 = vpop.f32.mrb[0].mxu0
        %2550 = vmatprep.mubr.bf16.mxu0 0
        %2551 = vmatmul.mubr.bf16.gmra.mrb[0].mxu0 %v615
        %v2552 = vpop.f32.mrb[0].mxu0
        %v2553 = vadd.f32 %v2168, %v2552
        %v2554 = vpop.f32.mrb[0].mxu0
        %v2555 = vpop.f32.mrb[0].mxu0
        %v2556 = vadd.f32 %v2171, %v2555
        %v2557 = vpop.f32.mrb[0].mxu0
        %2558 = vmatprep.mubr.bf16.mxu0 0
        %2559 = vmatmul.mubr.bf16.gmra.mrb[0].mxu0 %v616
        %v2560 = vpop.f32.mrb[0].mxu0
        %v2561 = vadd.f32 %v2176, %v2560
        %v2562 = vpop.f32.mrb[0].mxu0
        %v2563 = vpop.f32.mrb[0].mxu0
        %v2564 = vadd.f32 %v2179, %v2563
        %v2565 = vpop.f32.mrb[0].mxu0
        %2566 = vmatprep.mubr.bf16.mxu0 0
        %2567 = vmatmul.mubr.bf16.gmra.mrb[0].mxu0 %v617
        %v2568 = vpop.f32.mrb[0].mxu0
        %v2569 = vpop.f32.mrb[0].mxu0
        %v2570 = vpop.f32.mrb[0].mxu0
        %v2571 = vpop.f32.mrb[0].mxu0
        %2572 = vmatprep.mubr.bf16.mxu0 0
        %2573 = vmatmul.mubr.bf16.gmra.mrb[0].mxu0 %v618
        %v2574 = vpop.f32.mrb[0].mxu0
        %v2575 = vadd.f32 %v2190, %v2574
        %v2576 = vpop.f32.mrb[0].mxu0
        %v2577 = vpop.f32.mrb[0].mxu0
        %v2578 = vadd.f32 %v2193, %v2577
        %v2579 = vpop.f32.mrb[0].mxu0
        %2580 = vmatprep.mubr.bf16.mxu0 0
        %2581 = vmatmul.mubr.bf16.gmra.mrb[0].mxu0 %v619
        %v2582 = vpop.f32.mrb[0].mxu0
        %v2583 = vadd.f32 %v2198, %v2582
        %v2584 = vpop.f32.mrb[0].mxu0
        %v2585 = vpop.f32.mrb[0].mxu0
        %v2586 = vadd.f32 %v2201, %v2585
        %v2587 = vpop.f32.mrb[0].mxu0
        %2588 = vmatprep.mubr.bf16.mxu0 0
        %2589 = vmatmul.mubr.bf16.gmra.mrb[0].mxu0 %v620
        %v2590 = vpop.f32.mrb[0].mxu0
        %v2591 = vpop.f32.mrb[0].mxu0
        %v2592 = vpop.f32.mrb[0].mxu0
        %v2593 = vpop.f32.mrb[0].mxu0
        %2594 = vmatprep.mubr.bf16.mxu0 0
        %2595 = vmatmul.mubr.bf16.gmra.mrb[0].mxu0 %v621
        %v2596 = vpop.f32.mrb[0].mxu0
        %v2597 = vadd.f32 %v2212, %v2596
        %v2598 = vpop.f32.mrb[0].mxu0
        %v2599 = vpop.f32.mrb[0].mxu0
        %v2600 = vadd.f32 %v2215, %v2599
        %v2601 = vpop.f32.mrb[0].mxu0
        %2602 = vmatprep.mubr.bf16.mxu0 0
        %2603 = vmatmul.mubr.bf16.gmra.mrb[0].mxu0 %v622
        %v2604 = vpop.f32.mrb[0].mxu0
        %v2605 = vadd.f32 %v2220, %v2604
        %v2606 = vpop.f32.mrb[0].mxu0
        %v2607 = vpop.f32.mrb[0].mxu0
        %v2608 = vadd.f32 %v2223, %v2607
        %v2609 = vpop.f32.mrb[0].mxu0
        %2610 = vmatprep.mubr.bf16.mxu0 0
        %2611 = vmatmul.mubr.bf16.gmra.mrb[0].mxu0 %v623
        %v2612 = vpop.f32.mrb[0].mxu0
        %v2613 = vpop.f32.mrb[0].mxu0
        %v2614 = vpop.f32.mrb[0].mxu0
        %v2615 = vpop.f32.mrb[0].mxu0
        %2616 = vmatprep.mubr.bf16.mxu0 0
        %2617 = vmatmul.mubr.bf16.gmra.mrb[0].mxu0 %v624
        %v2618 = vpop.f32.mrb[0].mxu0
        %v2619 = vadd.f32 %v2234, %v2618
        %v2620 = vpop.f32.mrb[0].mxu0
        %v2621 = vpop.f32.mrb[0].mxu0
        %v2622 = vadd.f32 %v2237, %v2621
        %v2623 = vpop.f32.mrb[0].mxu0
        %2624 = vmatprep.mubr.bf16.mxu0 0
        %2625 = vmatmul.mubr.bf16.gmra.mrb[0].mxu0 %v625
        %v2626 = vpop.f32.mrb[0].mxu0
        %v2627 = vadd.f32 %v2242, %v2626
        %v2628 = vpop.f32.mrb[0].mxu0
        %v2629 = vpop.f32.mrb[0].mxu0
        %v2630 = vadd.f32 %v2245, %v2629
        %v2631 = vpop.f32.mrb[0].mxu0
        %2632 = vmatprep.mubr.bf16.mxu0 0
        %2633 = vmatmul.mubr.bf16.gmra.mrb[0].mxu0 %v626
        %v2634 = vpop.f32.mrb[0].mxu0
        %v2635 = vpop.f32.mrb[0].mxu0
        %v2636 = vpop.f32.mrb[0].mxu0
        %v2637 = vpop.f32.mrb[0].mxu0
        %2638 = vmatprep.mubr.bf16.mxu0 0
        %2639 = vmatmul.mubr.bf16.gmra.mrb[0].mxu0 %v627
        %v2640 = vpop.f32.mrb[0].mxu0
        %v2641 = vadd.f32 %v2256, %v2640
        %v2642 = vpop.f32.mrb[0].mxu0
        %v2643 = vpop.f32.mrb[0].mxu0
        %v2644 = vadd.f32 %v2259, %v2643
        %v2645 = vpop.f32.mrb[0].mxu0
        %2646 = vmatprep.mubr.bf16.mxu0 0
        %2647 = vmatmul.mubr.bf16.gmra.mrb[0].mxu0 %v628
        %v2648 = vpop.f32.mrb[0].mxu0
        %v2649 = vadd.f32 %v2264, %v2648
        %v2650 = vpop.f32.mrb[0].mxu0
        %v2651 = vpop.f32.mrb[0].mxu0
        %v2652 = vadd.f32 %v2267, %v2651
        %v2653 = vpop.f32.mrb[0].mxu0
        %2654 = vmatprep.mubr.bf16.mxu0 0
        %2655 = vmatmul.mubr.bf16.gmra.mrb[0].mxu0 %v629
        %v2656 = vpop.f32.mrb[0].mxu0
        %v2657 = vpop.f32.mrb[0].mxu0
        %v2658 = vpop.f32.mrb[0].mxu0
        %v2659 = vpop.f32.mrb[0].mxu0
        %2660 = vmatprep.mubr.bf16.mxu0 0
        %2661 = vmatmul.mubr.bf16.gmra.mrb[0].mxu0 %v630
        %v2662 = vpop.f32.mrb[0].mxu0
        %v2663 = vadd.f32 %v2278, %v2662
        %v2664 = vpop.f32.mrb[0].mxu0
        %v2665 = vpop.f32.mrb[0].mxu0
        %v2666 = vadd.f32 %v2281, %v2665
        %v2667 = vpop.f32.mrb[0].mxu0
        %2668 = vmatprep.mubr.bf16.mxu0 0
        %2669 = vmatmul.mubr.bf16.gmra.mrb[0].mxu0 %v631
        %v2670 = vpop.f32.mrb[0].mxu0
        %v2671 = vadd.f32 %v2286, %v2670
        %v2672 = vpop.f32.mrb[0].mxu0
        %v2673 = vpop.f32.mrb[0].mxu0
        %v2674 = vadd.f32 %v2289, %v2673
        %v2675 = vpop.f32.mrb[0].mxu0
        %2676 = vmatprep.mubr.bf16.mxu0 0
        %2677 = vmatmul.mubr.bf16.gmra.mrb[0].mxu0 %v632
        %v2678 = vpop.f32.mrb[0].mxu0
        %v2679 = vpop.f32.mrb[0].mxu0
        %v2680 = vpop.f32.mrb[0].mxu0
        %v2681 = vpop.f32.mrb[0].mxu0
        %2682 = vmatprep.mubr.bf16.mxu0 0
        %2683 = vmatmul.mubr.bf16.gmra.mrb[0].mxu0 %v633
        %v2684 = vpop.f32.mrb[0].mxu0
        %v2685 = vadd.f32 %v2300, %v2684
        %v2686 = vpop.f32.mrb[0].mxu0
        %v2687 = vpop.f32.mrb[0].mxu0
        %v2688 = vadd.f32 %v2303, %v2687
        %v2689 = vpop.f32.mrb[0].mxu0
        %2690 = vmatprep.mubr.bf16.mxu0 0
        %2691 = vmatmul.mubr.bf16.gmra.mrb[0].mxu0 %v634
        %v2692 = vpop.f32.mrb[0].mxu0
        %v2693 = vadd.f32 %v2308, %v2692
        %v2694 = vpop.f32.mrb[0].mxu0
        %v2695 = vpop.f32.mrb[0].mxu0
        %v2696 = vadd.f32 %v2311, %v2695
        %v2697 = vpop.f32.mrb[0].mxu0
        %2698 = vmatprep.mubr.bf16.mxu0 0
        %2699 = vmatmul.mubr.bf16.gmra.mrb[0].mxu0 %v635
        %v2700 = vpop.f32.mrb[0].mxu0
        %v2701 = vpop.f32.mrb[0].mxu0
        %v2702 = vpop.f32.mrb[0].mxu0
        %v2703 = vpop.f32.mrb[0].mxu0
        %2704 = vmatprep.mubr.bf16.mxu0 0
        %2705 = vmatmul.mubr.bf16.gmra.mrb[0].mxu0 %v636
        %v2706 = vpop.f32.mrb[0].mxu0
        %v2707 = vadd.f32 %v2322, %v2706
        %v2708 = vpop.f32.mrb[0].mxu0
        %v2709 = vpop.f32.mrb[0].mxu0
        %v2710 = vadd.f32 %v2325, %v2709
        %v2711 = vpop.f32.mrb[0].mxu0
        %2712 = vmatprep.mubr.bf16.mxu0 0
        %2713 = vmatmul.mubr.bf16.gmra.mrb[0].mxu0 %v637
        %v2714 = vpop.f32.mrb[0].mxu0
        %v2715 = vadd.f32 %v2330, %v2714
        %v2716 = vpop.f32.mrb[0].mxu0
        %v2717 = vpop.f32.mrb[0].mxu0
        %v2718 = vadd.f32 %v2333, %v2717
        %v2719 = vpop.f32.mrb[0].mxu0
        %2720 = vmatprep.mubr.bf16.mxu0 0
        %2721 = vmatmul.mubr.bf16.gmra.mrb[0].mxu0 %v638
        %v2722 = vpop.f32.mrb[0].mxu0
        %v2723 = vpop.f32.mrb[0].mxu0
        %v2724 = vpop.f32.mrb[0].mxu0
        %v2725 = vpop.f32.mrb[0].mxu0
        %2726 = vmatprep.mubr.bf16.mxu0 0
        %2727 = vmatmul.mubr.bf16.gmra.mrb[0].mxu0 %v639
        %v2728 = vpop.f32.mrb[0].mxu0
        %v2729 = vadd.f32 %v2344, %v2728
        %v2730 = vpop.f32.mrb[0].mxu0
        %v2731 = vpop.f32.mrb[0].mxu0
        %v2732 = vadd.f32 %v2347, %v2731
        %v2733 = vpop.f32.mrb[0].mxu0
        %2734 = vmatprep.mubr.bf16.mxu0 0
        %2735 = vmatmul.mubr.bf16.gmra.mrb[0].mxu0 %v640
        %v2736 = vpop.f32.mrb[0].mxu0
        %v2737 = vadd.f32 %v2352, %v2736
        %v2738 = vpop.f32.mrb[0].mxu0
        %v2739 = vpop.f32.mrb[0].mxu0
        %v2740 = vadd.f32 %v2355, %v2739
        %v2741 = vpop.f32.mrb[0].mxu0
        %2742 = vdwg.mxu0
        %v2743 = vadd.f32 %v1779, %v2399
        %v2744 = vadd.f32 %v1778, %v2402
        %v2745 = vadd.f32 %v1777, %v2407
        %v2746 = vadd.f32 %v1776, %v2410
        %v2747 = vadd.f32 %v1775, %v2421
        %v2748 = vadd.f32 %v1774, %v2424
        %v2749 = vadd.f32 %v1773, %v2429
        %v2750 = vadd.f32 %v1772, %v2432
        %v2751 = vadd.f32 %v1771, %v2443
        %v2752 = vadd.f32 %v1770, %v2446
        %v2753 = vadd.f32 %v1769, %v2451
        %v2754 = vadd.f32 %v1768, %v2454
        %v2755 = vadd.f32 %v1767, %v2465
        %v2756 = vadd.f32 %v1766, %v2468
        %v2757 = vadd.f32 %v1765, %v2473
        %v2758 = vadd.f32 %v1764, %v2476
        %v2759 = vadd.f32 %v1763, %v2487
        %v2760 = vadd.f32 %v1762, %v2490
        %v2761 = vadd.f32 %v1761, %v2495
        %v2762 = vadd.f32 %v1760, %v2498
        %v2763 = vadd.f32 %v1759, %v2509
        %v2764 = vadd.f32 %v1758, %v2512
        %v2765 = vadd.f32 %v1757, %v2517
        %v2766 = vadd.f32 %v1756, %v2520
        %v2767 = vadd.f32 %v1755, %v2531
        %v2768 = vadd.f32 %v1754, %v2534
        %v2769 = vadd.f32 %v1753, %v2539
        %v2770 = vadd.f32 %v1752, %v2542
        %v2771 = vadd.f32 %v1751, %v2553
        %v2772 = vadd.f32 %v1750, %v2556
        %v2773 = vadd.f32 %v1749, %v2561
        %v2774 = vadd.f32 %v1748, %v2564
        %v2775 = vadd.f32 %v1747, %v2575
        %v2776 = vadd.f32 %v1746, %v2578
        %v2777 = vadd.f32 %v1745, %v2583
        %v2778 = vadd.f32 %v1744, %v2586
        %v2779 = vadd.f32 %v1743, %v2597
        %v2780 = vadd.f32 %v1742, %v2600
        %v2781 = vadd.f32 %v1741, %v2605
        %v2782 = vadd.f32 %v1740, %v2608
        %v2783 = vadd.f32 %v1739, %v2619
        %v2784 = vadd.f32 %v1738, %v2622
        %v2785 = vadd.f32 %v1737, %v2627
        %v2786 = vadd.f32 %v1736, %v2630
        %v2787 = vadd.f32 %v1735, %v2641
        %v2788 = vadd.f32 %v1734, %v2644
        %v2789 = vadd.f32 %v1733, %v2649
        %v2790 = vadd.f32 %v1732, %v2652
        %v2791 = vadd.f32 %v1731, %v2663
        %v2792 = vadd.f32 %v1730, %v2666
        %v2793 = vadd.f32 %v1729, %v2671
        %v2794 = vadd.f32 %v1728, %v2674
        %v2795 = vadd.f32 %v1727, %v2685
        %v2796 = vadd.f32 %v1726, %v2688
        %v2797 = vadd.f32 %v1725, %v2693
        %v2798 = vadd.f32 %v1724, %v2696
        %v2799 = vadd.f32 %v1723, %v2707
        %v2800 = vadd.f32 %v1722, %v2710
        %v2801 = vadd.f32 %v1721, %v2715
        %v2802 = vadd.f32 %v1720, %v2718
        %v2803 = vadd.f32 %v1719, %v2729
        %v2804 = vadd.f32 %v1718, %v2732
        %v2805 = vadd.f32 %v1717, %v2737
        %v2806 = vadd.f32 %v1716, %v2740
        %s2807 = scalar_lea.vmem [#allocation4], 384
        %v2808 = vld [vmem:[%s2807] sm:$0xf]
        %v2809 = vld [vmem:[%s2807 + $0x4] sm:$0xf]
        %v2810 = vld [vmem:[%s2807 + $0x8] sm:$0xf]
        %v2811 = vld [vmem:[%s2807 + $0xc] sm:$0xf]
        %v2812 = vld [vmem:[%s2807 + $0x10] sm:$0xf]
        %v2813 = vld [vmem:[%s2807 + $0x14] sm:$0xf]
        %v2814 = vld [vmem:[%s2807 + $0x18] sm:$0xf]
        %v2815 = vld [vmem:[%s2807 + $0x1c] sm:$0xf]
        %v2816 = vld [vmem:[%s2807 + $0x20] sm:$0xf]
        %v2817 = vld [vmem:[%s2807 + $0x24] sm:$0xf]
        %v2818 = vld [vmem:[%s2807 + $0x28] sm:$0xf]
        %v2819 = vld [vmem:[%s2807 + $0x2c] sm:$0xf]
        %v2820 = vld [vmem:[%s2807 + $0x30] sm:$0xf]
        %v2821 = vld [vmem:[%s2807 + $0x34] sm:$0xf]
        %v2822 = vld [vmem:[%s2807 + $0x38] sm:$0xf]
        %v2823 = vld [vmem:[%s2807 + $0x3c] sm:$0xf]
        %v2824 = vld [vmem:[%s2807 + $0x40] sm:$0xf]
        %v2825 = vld [vmem:[%s2807 + $0x44] sm:$0xf]
        %v2826 = vld [vmem:[%s2807 + $0x48] sm:$0xf]
        %v2827 = vld [vmem:[%s2807 + $0x4c] sm:$0xf]
        %v2828 = vld [vmem:[%s2807 + $0x50] sm:$0xf]
        %v2829 = vld [vmem:[%s2807 + $0x54] sm:$0xf]
        %v2830 = vld [vmem:[%s2807 + $0x58] sm:$0xf]
        %v2831 = vld [vmem:[%s2807 + $0x5c] sm:$0xf]
        %v2832 = vld [vmem:[%s2807 + $0x60] sm:$0xf]
        %v2833 = vld [vmem:[%s2807 + $0x64] sm:$0xf]
        %v2834 = vld [vmem:[%s2807 + $0x68] sm:$0xf]
        %v2835 = vld [vmem:[%s2807 + $0x6c] sm:$0xf]
        %v2836 = vld [vmem:[%s2807 + $0x70] sm:$0xf]
        %v2837 = vld [vmem:[%s2807 + $0x74] sm:$0xf]
        %v2838 = vld [vmem:[%s2807 + $0x78] sm:$0xf]
        %v2839 = vld [vmem:[%s2807 + $0x7c] sm:$0xf]
        %v2840 = vld [vmem:[%s2807 + $0x80] sm:$0xf]
        %v2841 = vld [vmem:[%s2807 + $0x84] sm:$0xf]
        %v2842 = vld [vmem:[%s2807 + $0x88] sm:$0xf]
        %v2843 = vld [vmem:[%s2807 + $0x8c] sm:$0xf]
        %v2844 = vld [vmem:[%s2807 + $0x90] sm:$0xf]
        %v2845 = vld [vmem:[%s2807 + $0x94] sm:$0xf]
        %v2846 = vld [vmem:[%s2807 + $0x98] sm:$0xf]
        %v2847 = vld [vmem:[%s2807 + $0x9c] sm:$0xf]
        %v2848 = vld [vmem:[%s2807 + $0xa0] sm:$0xf]
        %v2849 = vld [vmem:[%s2807 + $0xa4] sm:$0xf]
        %v2850 = vld [vmem:[%s2807 + $0xa8] sm:$0xf]
        %v2851 = vld [vmem:[%s2807 + $0xac] sm:$0xf]
        %v2852 = vld [vmem:[%s2807 + $0xb0] sm:$0xf]
        %v2853 = vld [vmem:[%s2807 + $0xb4] sm:$0xf]
        %v2854 = vld [vmem:[%s2807 + $0xb8] sm:$0xf]
        %v2855 = vld [vmem:[%s2807 + $0xbc] sm:$0xf]
        %v2904 = vunpack.c.l.b16 %v2808
        %v2905 = vunpack.c.l.b16 %v2809
        %v2906 = vunpack.c.l.b16 %v2810
        %v2907 = vunpack.c.l.b16 %v2811
        %v2908 = vunpack.c.l.b16 %v2812
        %v2909 = vunpack.c.l.b16 %v2813
        %v2910 = vunpack.c.l.b16 %v2814
        %v2911 = vunpack.c.l.b16 %v2815
        %v2912 = vunpack.c.l.b16 %v2816
        %v2913 = vunpack.c.l.b16 %v2817
        %v2914 = vunpack.c.l.b16 %v2818
        %v2915 = vunpack.c.l.b16 %v2819
        %v2916 = vunpack.c.l.b16 %v2820
        %v2917 = vunpack.c.l.b16 %v2821
        %v2918 = vunpack.c.l.b16 %v2822
        %v2919 = vunpack.c.l.b16 %v2823
        %v2920 = vunpack.c.l.b16 %v2824
        %v2921 = vunpack.c.l.b16 %v2825
        %v2922 = vunpack.c.l.b16 %v2826
        %v2923 = vunpack.c.l.b16 %v2827
        %v2924 = vunpack.c.l.b16 %v2828
        %v2925 = vunpack.c.l.b16 %v2829
        %v2926 = vunpack.c.l.b16 %v2830
        %v2927 = vunpack.c.l.b16 %v2831
        %v2928 = vunpack.c.l.b16 %v2832
        %v2929 = vunpack.c.l.b16 %v2833
        %v2930 = vunpack.c.l.b16 %v2834
        %v2931 = vunpack.c.l.b16 %v2835
        %v2932 = vunpack.c.l.b16 %v2836
        %v2933 = vunpack.c.l.b16 %v2837
        %v2934 = vunpack.c.l.b16 %v2838
        %v2935 = vunpack.c.l.b16 %v2839
        %v2936 = vunpack.c.l.b16 %v2840
        %v2937 = vunpack.c.l.b16 %v2841
        %v2938 = vunpack.c.l.b16 %v2842
        %v2939 = vunpack.c.l.b16 %v2843
        %v2940 = vunpack.c.l.b16 %v2844
        %v2941 = vunpack.c.l.b16 %v2845
        %v2942 = vunpack.c.l.b16 %v2846
        %v2943 = vunpack.c.l.b16 %v2847
        %v2944 = vunpack.c.l.b16 %v2848
        %v2945 = vunpack.c.l.b16 %v2849
        %v2946 = vunpack.c.l.b16 %v2850
        %v2947 = vunpack.c.l.b16 %v2851
        %v2948 = vunpack.c.l.b16 %v2852
        %v2949 = vunpack.c.l.b16 %v2853
        %v2950 = vunpack.c.l.b16 %v2854
        %v2951 = vunpack.c.l.b16 %v2855
        %v2952 = vpack.c.b16 %v2905, %v2904
        %v2953 = vpack.c.b16 %v2907, %v2906
        %v2954 = vpack.c.b16 %v2909, %v2908
        %v2955 = vpack.c.b16 %v2911, %v2910
        %v2956 = vpack.c.b16 %v2913, %v2912
        %v2957 = vpack.c.b16 %v2915, %v2914
        %v2958 = vpack.c.b16 %v2917, %v2916
        %v2959 = vpack.c.b16 %v2919, %v2918
        %v2960 = vpack.c.b16 %v2921, %v2920
        %v2961 = vpack.c.b16 %v2923, %v2922
        %v2962 = vpack.c.b16 %v2925, %v2924
        %v2963 = vpack.c.b16 %v2927, %v2926
        %v2964 = vpack.c.b16 %v2929, %v2928
        %v2965 = vpack.c.b16 %v2931, %v2930
        %v2966 = vpack.c.b16 %v2933, %v2932
        %v2967 = vpack.c.b16 %v2935, %v2934
        %v2968 = vpack.c.b16 %v2937, %v2936
        %v2969 = vpack.c.b16 %v2939, %v2938
        %v2970 = vpack.c.b16 %v2941, %v2940
        %v2971 = vpack.c.b16 %v2943, %v2942
        %v2972 = vpack.c.b16 %v2945, %v2944
        %v2973 = vpack.c.b16 %v2947, %v2946
        %v2974 = vpack.c.b16 %v2949, %v2948
        %v2975 = vpack.c.b16 %v2951, %v2950
        %3000 = vmatprep.subr.bf16.mxu0 0
        %3001 = vmatpush1.bf16.msra.mxu0 %v2952
        %3002 = vmatprep.subr.bf16.mxu0 0
        %3003 = vmatpush1.bf16.msra.mxu0 %v2953
        %3004 = vmatprep.subr.bf16.mxu0 0
        %3005 = vmatpush1.bf16.msra.mxu0 %v2954
        %3006 = vmatprep.subr.bf16.mxu0 0
        %3007 = vmatpush1.bf16.msra.mxu0 %v2955
        %3008 = vmatprep.subr.bf16.mxu0 0
        %3009 = vmatpush1.bf16.msra.mxu0 %v2956
        %3010 = vmatprep.subr.bf16.mxu0 0
        %3011 = vmatpush1.bf16.msra.mxu0 %v2957
        %3012 = vmatprep.subr.bf16.mxu0 0
        %3013 = vmatpush1.bf16.msra.mxu0 %v2958
        %3014 = vmatprep.subr.bf16.mxu0 0
        %3015 = vmatpush1.bf16.msra.mxu0 %v2959
        %3016 = vmatprep.subr.bf16.mxu0 0
        %3017 = vmatpush1.bf16.msra.mxu0 %v2960
        %3018 = vmatprep.subr.bf16.mxu0 0
        %3019 = vmatpush1.bf16.msra.mxu0 %v2961
        %3020 = vmatprep.subr.bf16.mxu0 0
        %3021 = vmatpush1.bf16.msra.mxu0 %v2962
        %3022 = vmatprep.subr.bf16.mxu0 0
        %3023 = vmatpush1.bf16.msra.mxu0 %v2963
        %3024 = vmatprep.subr.bf16.mxu0 0
        %3025 = vmatpush1.bf16.msra.mxu0 %v2964
        %3026 = vmatprep.subr.bf16.mxu0 0
        %3027 = vmatpush1.bf16.msra.mxu0 %v2965
        %3028 = vmatprep.subr.bf16.mxu0 0
        %3029 = vmatpush1.bf16.msra.mxu0 %v2966
        %3030 = vmatprep.subr.bf16.mxu0 0
        %3031 = vmatpush1.bf16.msra.mxu0 %v2967
        %3032 = vmatprep.mubr.bf16.mxu0 %v590
        %3033 = vmatmul.mubr.bf16.gmra.mrb[0].mxu0 %v587
        %v3034 = vpop.f32.mrb[0].mxu0
        %v3035 = vadd.f32 0.0, %v3034
        %v3036 = vpop.f32.mrb[0].mxu0
        %v3037 = vpop.f32.mrb[0].mxu0
        %v3038 = vpop.f32.mrb[0].mxu0
        %3039 = vmatprep.mubr.bf16.mxu0 %v591
        %3040 = vmatmul.mubr.bf16.gmra.mrb[0].mxu0 %v588
        %v3041 = vpop.f32.mrb[0].mxu0
        %v3042 = vadd.f32 0.0, %v3041
        %v3043 = vpop.f32.mrb[0].mxu0
        %v3044 = vpop.f32.mrb[0].mxu0
        %v3045 = vadd.f32 0.0, %v3044
        %v3046 = vpop.f32.mrb[0].mxu0
        %3047 = vmatprep.mubr.bf16.mxu0 %v592
        %3048 = vmatmul.mubr.bf16.gmra.mrb[0].mxu0 %v589
        %v3049 = vpop.f32.mrb[0].mxu0
        %v3050 = vadd.f32 0.0, %v3049
        %v3051 = vpop.f32.mrb[0].mxu0
        %v3052 = vpop.f32.mrb[0].mxu0
        %v3053 = vadd.f32 0.0, %v3052
        %v3054 = vpop.f32.mrb[0].mxu0
        %3055 = vmatprep.mubr.bf16.mxu0 %v593
        %3056 = vmatmul.mubr.bf16.gmra.mrb[0].mxu0 %v590
        %v3057 = vpop.f32.mrb[0].mxu0
        %v3058 = vadd.f32 0.0, %v3057
        %v3059 = vpop.f32.mrb[0].mxu0
        %v3060 = vpop.f32.mrb[0].mxu0
        %v3061 = vpop.f32.mrb[0].mxu0
        %3062 = vmatprep.mubr.bf16.mxu0 %v594
        %3063 = vmatmul.mubr.bf16.gmra.mrb[0].mxu0 %v591
        %v3064 = vpop.f32.mrb[0].mxu0
        %v3065 = vadd.f32 0.0, %v3064
        %v3066 = vpop.f32.mrb[0].mxu0
        %v3067 = vpop.f32.mrb[0].mxu0
        %v3068 = vadd.f32 0.0, %v3067
        %v3069 = vpop.f32.mrb[0].mxu0
        %3070 = vmatprep.mubr.bf16.mxu0 %v595
        %3071 = vmatmul.mubr.bf16.gmra.mrb[0].mxu0 %v592
        %v3072 = vpop.f32.mrb[0].mxu0
        %v3073 = vadd.f32 0.0, %v3072
        %v3074 = vpop.f32.mrb[0].mxu0
        %v3075 = vpop.f32.mrb[0].mxu0
        %v3076 = vadd.f32 0.0, %v3075
        %v3077 = vpop.f32.mrb[0].mxu0
        %3078 = vmatprep.mubr.bf16.mxu0 %v596
        %3079 = vmatmul.mubr.bf16.gmra.mrb[0].mxu0 %v593
        %v3080 = vpop.f32.mrb[0].mxu0
        %v3081 = vadd.f32 0.0, %v3080
        %v3082 = vpop.f32.mrb[0].mxu0
        %v3083 = vpop.f32.mrb[0].mxu0
        %v3084 = vpop.f32.mrb[0].mxu0
        %3085 = vmatprep.mubr.bf16.mxu0 %v597
        %3086 = vmatmul.mubr.bf16.gmra.mrb[0].mxu0 %v594
        %v3087 = vpop.f32.mrb[0].mxu0
        %v3088 = vadd.f32 0.0, %v3087
        %v3089 = vpop.f32.mrb[0].mxu0
        %v3090 = vpop.f32.mrb[0].mxu0
        %v3091 = vadd.f32 0.0, %v3090
        %v3092 = vpop.f32.mrb[0].mxu0
        %3093 = vmatprep.mubr.bf16.mxu0 %v598
        %3094 = vmatmul.mubr.bf16.gmra.mrb[0].mxu0 %v595
        %v3095 = vpop.f32.mrb[0].mxu0
        %v3096 = vadd.f32 0.0, %v3095
        %v3097 = vpop.f32.mrb[0].mxu0
        %v3098 = vpop.f32.mrb[0].mxu0
        %v3099 = vadd.f32 0.0, %v3098
        %v3100 = vpop.f32.mrb[0].mxu0
        %3101 = vmatprep.mubr.bf16.mxu0 %v599
        %3102 = vmatmul.mubr.bf16.gmra.mrb[0].mxu0 %v596
        %v3103 = vpop.f32.mrb[0].mxu0
        %v3104 = vadd.f32 0.0, %v3103
        %v3105 = vpop.f32.mrb[0].mxu0
        %v3106 = vpop.f32.mrb[0].mxu0
        %v3107 = vpop.f32.mrb[0].mxu0
        %3108 = vmatprep.mubr.bf16.mxu0 %v600
        %3109 = vmatmul.mubr.bf16.gmra.mrb[0].mxu0 %v597
        %v3110 = vpop.f32.mrb[0].mxu0
        %v3111 = vadd.f32 0.0, %v3110
        %v3112 = vpop.f32.mrb[0].mxu0
        %v3113 = vpop.f32.mrb[0].mxu0
        %v3114 = vadd.f32 0.0, %v3113
        %v3115 = vpop.f32.mrb[0].mxu0
        %3116 = vmatprep.mubr.bf16.mxu0 %v601
        %3117 = vmatmul.mubr.bf16.gmra.mrb[0].mxu0 %v598
        %v3118 = vpop.f32.mrb[0].mxu0
        %v3119 = vadd.f32 0.0, %v3118
        %v3120 = vpop.f32.mrb[0].mxu0
        %v3121 = vpop.f32.mrb[0].mxu0
        %v3122 = vadd.f32 0.0, %v3121
        %v3123 = vpop.f32.mrb[0].mxu0
        %3124 = vmatprep.mubr.bf16.mxu0 %v602
        %3125 = vmatmul.mubr.bf16.gmra.mrb[0].mxu0 %v599
        %v3126 = vpop.f32.mrb[0].mxu0
        %v3127 = vadd.f32 0.0, %v3126
        %v3128 = vpop.f32.mrb[0].mxu0
        %v3129 = vpop.f32.mrb[0].mxu0
        %v3130 = vpop.f32.mrb[0].mxu0
        %3131 = vmatprep.mubr.bf16.mxu0 %v603
        %3132 = vmatmul.mubr.bf16.gmra.mrb[0].mxu0 %v600
        %v3133 = vpop.f32.mrb[0].mxu0
        %v3134 = vadd.f32 0.0, %v3133
        %v3135 = vpop.f32.mrb[0].mxu0
        %v3136 = vpop.f32.mrb[0].mxu0
        %v3137 = vadd.f32 0.0, %v3136
        %v3138 = vpop.f32.mrb[0].mxu0
        %3139 = vmatprep.mubr.bf16.mxu0 %v604
        %3140 = vmatmul.mubr.bf16.gmra.mrb[0].mxu0 %v601
        %v3141 = vpop.f32.mrb[0].mxu0
        %v3142 = vadd.f32 0.0, %v3141
        %v3143 = vpop.f32.mrb[0].mxu0
        %v3144 = vpop.f32.mrb[0].mxu0
        %v3145 = vadd.f32 0.0, %v3144
        %v3146 = vpop.f32.mrb[0].mxu0
        %3147 = vmatprep.mubr.bf16.mxu0 %v605
        %3148 = vmatmul.mubr.bf16.gmra.mrb[0].mxu0 %v602
        %v3149 = vpop.f32.mrb[0].mxu0
        %v3150 = vadd.f32 0.0, %v3149
        %v3151 = vpop.f32.mrb[0].mxu0
        %v3152 = vpop.f32.mrb[0].mxu0
        %v3153 = vpop.f32.mrb[0].mxu0
        %3154 = vmatprep.mubr.bf16.mxu0 %v606
        %3155 = vmatmul.mubr.bf16.gmra.mrb[0].mxu0 %v603
        %v3156 = vpop.f32.mrb[0].mxu0
        %v3157 = vadd.f32 0.0, %v3156
        %v3158 = vpop.f32.mrb[0].mxu0
        %v3159 = vpop.f32.mrb[0].mxu0
        %v3160 = vadd.f32 0.0, %v3159
        %v3161 = vpop.f32.mrb[0].mxu0
        %3162 = vmatprep.mubr.bf16.mxu0 %v607
        %3163 = vmatmul.mubr.bf16.gmra.mrb[0].mxu0 %v604
        %v3164 = vpop.f32.mrb[0].mxu0
        %v3165 = vadd.f32 0.0, %v3164
        %v3166 = vpop.f32.mrb[0].mxu0
        %v3167 = vpop.f32.mrb[0].mxu0
        %v3168 = vadd.f32 0.0, %v3167
        %v3169 = vpop.f32.mrb[0].mxu0
        %3170 = vmatprep.mubr.bf16.mxu0 %v608
        %3171 = vmatmul.mubr.bf16.gmra.mrb[0].mxu0 %v605
        %v3172 = vpop.f32.mrb[0].mxu0
        %v3173 = vadd.f32 0.0, %v3172
        %v3174 = vpop.f32.mrb[0].mxu0
        %v3175 = vpop.f32.mrb[0].mxu0
        %v3176 = vpop.f32.mrb[0].mxu0
        %3177 = vmatprep.mubr.bf16.mxu0 %v609
        %3178 = vmatmul.mubr.bf16.gmra.mrb[0].mxu0 %v606
        %v3179 = vpop.f32.mrb[0].mxu0
        %v3180 = vadd.f32 0.0, %v3179
        %v3181 = vpop.f32.mrb[0].mxu0
        %v3182 = vpop.f32.mrb[0].mxu0
        %v3183 = vadd.f32 0.0, %v3182
        %v3184 = vpop.f32.mrb[0].mxu0
        %3185 = vmatprep.mubr.bf16.mxu0 %v610
        %3186 = vmatmul.mubr.bf16.gmra.mrb[0].mxu0 %v607
        %v3187 = vpop.f32.mrb[0].mxu0
        %v3188 = vadd.f32 0.0, %v3187
        %v3189 = vpop.f32.mrb[0].mxu0
        %v3190 = vpop.f32.mrb[0].mxu0
        %v3191 = vadd.f32 0.0, %v3190
        %v3192 = vpop.f32.mrb[0].mxu0
        %3193 = vmatprep.mubr.bf16.mxu0 %v611
        %3194 = vmatmul.mubr.bf16.gmra.mrb[0].mxu0 %v608
        %v3195 = vpop.f32.mrb[0].mxu0
        %v3196 = vadd.f32 0.0, %v3195
        %v3197 = vpop.f32.mrb[0].mxu0
        %v3198 = vpop.f32.mrb[0].mxu0
        %v3199 = vpop.f32.mrb[0].mxu0
        %3200 = vmatprep.mubr.bf16.mxu0 %v612
        %3201 = vmatmul.mubr.bf16.gmra.mrb[0].mxu0 %v609
        %v3202 = vpop.f32.mrb[0].mxu0
        %v3203 = vadd.f32 0.0, %v3202
        %v3204 = vpop.f32.mrb[0].mxu0
        %v3205 = vpop.f32.mrb[0].mxu0
        %v3206 = vadd.f32 0.0, %v3205
        %v3207 = vpop.f32.mrb[0].mxu0
        %3208 = vmatprep.mubr.bf16.mxu0 %v613
        %3209 = vmatmul.mubr.bf16.gmra.mrb[0].mxu0 %v610
        %v3210 = vpop.f32.mrb[0].mxu0
        %v3211 = vadd.f32 0.0, %v3210
        %v3212 = vpop.f32.mrb[0].mxu0
        %v3213 = vpop.f32.mrb[0].mxu0
        %v3214 = vadd.f32 0.0, %v3213
        %v3215 = vpop.f32.mrb[0].mxu0
        %3216 = vmatprep.mubr.bf16.mxu0 %v614
        %3217 = vmatmul.mubr.bf16.gmra.mrb[0].mxu0 %v611
        %v3218 = vpop.f32.mrb[0].mxu0
        %v3219 = vadd.f32 0.0, %v3218
        %v3220 = vpop.f32.mrb[0].mxu0
        %v3221 = vpop.f32.mrb[0].mxu0
        %v3222 = vpop.f32.mrb[0].mxu0
        %3223 = vmatprep.mubr.bf16.mxu0 %v615
        %3224 = vmatmul.mubr.bf16.gmra.mrb[0].mxu0 %v612
        %v3225 = vpop.f32.mrb[0].mxu0
        %v3226 = vadd.f32 0.0, %v3225
        %v3227 = vpop.f32.mrb[0].mxu0
        %v3228 = vpop.f32.mrb[0].mxu0
        %v3229 = vadd.f32 0.0, %v3228
        %v3230 = vpop.f32.mrb[0].mxu0
        %3231 = vmatprep.mubr.bf16.mxu0 %v616
        %3232 = vmatmul.mubr.bf16.gmra.mrb[0].mxu0 %v613
        %v3233 = vpop.f32.mrb[0].mxu0
        %v3234 = vadd.f32 0.0, %v3233
        %v3235 = vpop.f32.mrb[0].mxu0
        %v3236 = vpop.f32.mrb[0].mxu0
        %v3237 = vadd.f32 0.0, %v3236
        %v3238 = vpop.f32.mrb[0].mxu0
        %3239 = vmatprep.mubr.bf16.mxu0 %v617
        %3240 = vmatmul.mubr.bf16.gmra.mrb[0].mxu0 %v614
        %v3241 = vpop.f32.mrb[0].mxu0
        %v3242 = vadd.f32 0.0, %v3241
        %v3243 = vpop.f32.mrb[0].mxu0
        %v3244 = vpop.f32.mrb[0].mxu0
        %v3245 = vpop.f32.mrb[0].mxu0
        %3246 = vmatprep.mubr.bf16.mxu0 %v618
        %3247 = vmatmul.mubr.bf16.gmra.mrb[0].mxu0 %v615
        %v3248 = vpop.f32.mrb[0].mxu0
        %v3249 = vadd.f32 0.0, %v3248
        %v3250 = vpop.f32.mrb[0].mxu0
        %v3251 = vpop.f32.mrb[0].mxu0
        %v3252 = vadd.f32 0.0, %v3251
        %v3253 = vpop.f32.mrb[0].mxu0
        %3254 = vmatprep.mubr.bf16.mxu0 %v619
        %3255 = vmatmul.mubr.bf16.gmra.mrb[0].mxu0 %v616
        %v3256 = vpop.f32.mrb[0].mxu0
        %v3257 = vadd.f32 0.0, %v3256
        %v3258 = vpop.f32.mrb[0].mxu0
        %v3259 = vpop.f32.mrb[0].mxu0
        %v3260 = vadd.f32 0.0, %v3259
        %v3261 = vpop.f32.mrb[0].mxu0
        %3262 = vmatprep.mubr.bf16.mxu0 %v620
        %3263 = vmatmul.mubr.bf16.gmra.mrb[0].mxu0 %v617
        %v3264 = vpop.f32.mrb[0].mxu0
        %v3265 = vadd.f32 0.0, %v3264
        %v3266 = vpop.f32.mrb[0].mxu0
        %v3267 = vpop.f32.mrb[0].mxu0
        %v3268 = vpop.f32.mrb[0].mxu0
        %3269 = vmatprep.mubr.bf16.mxu0 %v621
        %3270 = vmatmul.mubr.bf16.gmra.mrb[0].mxu0 %v618
        %v3271 = vpop.f32.mrb[0].mxu0
        %v3272 = vadd.f32 0.0, %v3271
        %v3273 = vpop.f32.mrb[0].mxu0
        %v3274 = vpop.f32.mrb[0].mxu0
        %v3275 = vadd.f32 0.0, %v3274
        %v3276 = vpop.f32.mrb[0].mxu0
        %3277 = vmatprep.mubr.bf16.mxu0 %v622
        %3278 = vmatmul.mubr.bf16.gmra.mrb[0].mxu0 %v619
        %v3279 = vpop.f32.mrb[0].mxu0
        %v3280 = vadd.f32 0.0, %v3279
        %v3281 = vpop.f32.mrb[0].mxu0
        %v3282 = vpop.f32.mrb[0].mxu0
        %v3283 = vadd.f32 0.0, %v3282
        %v3284 = vpop.f32.mrb[0].mxu0
        %3285 = vmatprep.mubr.bf16.mxu0 %v623
        %3286 = vmatmul.mubr.bf16.gmra.mrb[0].mxu0 %v620
        %v3287 = vpop.f32.mrb[0].mxu0
        %v3288 = vadd.f32 0.0, %v3287
        %v3289 = vpop.f32.mrb[0].mxu0
        %v3290 = vpop.f32.mrb[0].mxu0
        %v3291 = vpop.f32.mrb[0].mxu0
        %3292 = vmatprep.mubr.bf16.mxu0 %v624
        %3293 = vmatmul.mubr.bf16.gmra.mrb[0].mxu0 %v621
        %v3294 = vpop.f32.mrb[0].mxu0
        %v3295 = vadd.f32 0.0, %v3294
        %v3296 = vpop.f32.mrb[0].mxu0
        %v3297 = vpop.f32.mrb[0].mxu0
        %v3298 = vadd.f32 0.0, %v3297
        %v3299 = vpop.f32.mrb[0].mxu0
        %3300 = vmatprep.mubr.bf16.mxu0 %v625
        %3301 = vmatmul.mubr.bf16.gmra.mrb[0].mxu0 %v622
        %v3302 = vpop.f32.mrb[0].mxu0
        %v3303 = vadd.f32 0.0, %v3302
        %v3304 = vpop.f32.mrb[0].mxu0
        %v3305 = vpop.f32.mrb[0].mxu0
        %v3306 = vadd.f32 0.0, %v3305
        %v3307 = vpop.f32.mrb[0].mxu0
        %3308 = vmatprep.mubr.bf16.mxu0 %v626
        %3309 = vmatmul.mubr.bf16.gmra.mrb[0].mxu0 %v623
        %v3310 = vpop.f32.mrb[0].mxu0
        %v3311 = vadd.f32 0.0, %v3310
        %v3312 = vpop.f32.mrb[0].mxu0
        %v3313 = vpop.f32.mrb[0].mxu0
        %v3314 = vpop.f32.mrb[0].mxu0
        %3315 = vmatprep.mubr.bf16.mxu0 %v627
        %3316 = vmatmul.mubr.bf16.gmra.mrb[0].mxu0 %v624
        %v3317 = vpop.f32.mrb[0].mxu0
        %v3318 = vadd.f32 0.0, %v3317
        %v3319 = vpop.f32.mrb[0].mxu0
        %v3320 = vpop.f32.mrb[0].mxu0
        %v3321 = vadd.f32 0.0, %v3320
        %v3322 = vpop.f32.mrb[0].mxu0
        %3323 = vmatprep.mubr.bf16.mxu0 %v628
        %3324 = vmatmul.mubr.bf16.gmra.mrb[0].mxu0 %v625
        %v3325 = vpop.f32.mrb[0].mxu0
        %v3326 = vadd.f32 0.0, %v3325
        %v3327 = vpop.f32.mrb[0].mxu0
        %v3328 = vpop.f32.mrb[0].mxu0
        %v3329 = vadd.f32 0.0, %v3328
        %v3330 = vpop.f32.mrb[0].mxu0
        %3331 = vmatprep.mubr.bf16.mxu0 %v629
        %3332 = vmatmul.mubr.bf16.gmra.mrb[0].mxu0 %v626
        %v3333 = vpop.f32.mrb[0].mxu0
        %v3334 = vadd.f32 0.0, %v3333
        %v3335 = vpop.f32.mrb[0].mxu0
        %v3336 = vpop.f32.mrb[0].mxu0
        %v3337 = vpop.f32.mrb[0].mxu0
        %3338 = vmatprep.mubr.bf16.mxu0 %v630
        %3339 = vmatmul.mubr.bf16.gmra.mrb[0].mxu0 %v627
        %v3340 = vpop.f32.mrb[0].mxu0
        %v3341 = vadd.f32 0.0, %v3340
        %v3342 = vpop.f32.mrb[0].mxu0
        %v3343 = vpop.f32.mrb[0].mxu0
        %v3344 = vadd.f32 0.0, %v3343
        %v3345 = vpop.f32.mrb[0].mxu0
        %3346 = vmatprep.mubr.bf16.mxu0 %v631
        %3347 = vmatmul.mubr.bf16.gmra.mrb[0].mxu0 %v628
        %v3348 = vpop.f32.mrb[0].mxu0
        %v3349 = vadd.f32 0.0, %v3348
        %v3350 = vpop.f32.mrb[0].mxu0
        %v3351 = vpop.f32.mrb[0].mxu0
        %v3352 = vadd.f32 0.0, %v3351
        %v3353 = vpop.f32.mrb[0].mxu0
        %3354 = vmatprep.mubr.bf16.mxu0 %v632
        %3355 = vmatmul.mubr.bf16.gmra.mrb[0].mxu0 %v629
        %v3356 = vpop.f32.mrb[0].mxu0
        %v3357 = vadd.f32 0.0, %v3356
        %v3358 = vpop.f32.mrb[0].mxu0
        %v3359 = vpop.f32.mrb[0].mxu0
        %v3360 = vpop.f32.mrb[0].mxu0
        %3361 = vmatprep.mubr.bf16.mxu0 %v633
        %3362 = vmatmul.mubr.bf16.gmra.mrb[0].mxu0 %v630
        %v3363 = vpop.f32.mrb[0].mxu0
        %v3364 = vadd.f32 0.0, %v3363
        %v3365 = vpop.f32.mrb[0].mxu0
        %v3366 = vpop.f32.mrb[0].mxu0
        %v3367 = vadd.f32 0.0, %v3366
        %v3368 = vpop.f32.mrb[0].mxu0
        %3369 = vmatprep.mubr.bf16.mxu0 %v634
        %3370 = vmatmul.mubr.bf16.gmra.mrb[0].mxu0 %v631
        %v3371 = vpop.f32.mrb[0].mxu0
        %v3372 = vadd.f32 0.0, %v3371
        %v3373 = vpop.f32.mrb[0].mxu0
        %v3374 = vpop.f32.mrb[0].mxu0
        %v3375 = vadd.f32 0.0, %v3374
        %v3376 = vpop.f32.mrb[0].mxu0
        %3377 = vmatprep.mubr.bf16.mxu0 %v635
        %3378 = vmatmul.mubr.bf16.gmra.mrb[0].mxu0 %v632
        %v3379 = vpop.f32.mrb[0].mxu0
        %v3380 = vadd.f32 0.0, %v3379
        %v3381 = vpop.f32.mrb[0].mxu0
        %v3382 = vpop.f32.mrb[0].mxu0
        %v3383 = vpop.f32.mrb[0].mxu0
        %3384 = vmatprep.mubr.bf16.mxu0 %v636
        %3385 = vmatmul.mubr.bf16.gmra.mrb[0].mxu0 %v633
        %v3386 = vpop.f32.mrb[0].mxu0
        %v3387 = vadd.f32 0.0, %v3386
        %v3388 = vpop.f32.mrb[0].mxu0
        %v3389 = vpop.f32.mrb[0].mxu0
        %v3390 = vadd.f32 0.0, %v3389
        %v3391 = vpop.f32.mrb[0].mxu0
        %3392 = vmatprep.mubr.bf16.mxu0 %v637
        %3393 = vmatmul.mubr.bf16.gmra.mrb[0].mxu0 %v634
        %v3394 = vpop.f32.mrb[0].mxu0
        %v3395 = vadd.f32 0.0, %v3394
        %v3396 = vpop.f32.mrb[0].mxu0
        %v3397 = vpop.f32.mrb[0].mxu0
        %v3398 = vadd.f32 0.0, %v3397
        %v3399 = vpop.f32.mrb[0].mxu0
        %3400 = vdwg.mxu0
        %3401 = vmatprep.subr.bf16.mxu0 0
        %3402 = vmatpush1.bf16.msra.mxu0 %v2968
        %3403 = vmatprep.subr.bf16.mxu0 0
        %3404 = vmatpush1.bf16.msra.mxu0 %v2969
        %3405 = vmatprep.subr.bf16.mxu0 0
        %3406 = vmatpush1.bf16.msra.mxu0 %v2970
        %3407 = vmatprep.subr.bf16.mxu0 0
        %3408 = vmatpush1.bf16.msra.mxu0 %v2971
        %3409 = vmatprep.subr.bf16.mxu0 0
        %3410 = vmatpush1.bf16.msra.mxu0 %v2972
        %3411 = vmatprep.subr.bf16.mxu0 0
        %3412 = vmatpush1.bf16.msra.mxu0 %v2973
        %3413 = vmatprep.subr.bf16.mxu0 0
        %3414 = vmatpush1.bf16.msra.mxu0 %v2974
        %3415 = vmatprep.subr.bf16.mxu0 0
        %3416 = vmatpush1.bf16.msra.mxu0 %v2975
        %3417 = vmatprep.subr.bf16.mxu0 0
        %3418 = vmatpush1.bf16.msra.mxu0 0
        %3419 = vmatprep.subr.bf16.mxu0 0
        %3420 = vmatpush1.bf16.msra.mxu0 0
        %3421 = vmatprep.subr.bf16.mxu0 0
        %3422 = vmatpush1.bf16.msra.mxu0 0
        %3423 = vmatprep.subr.bf16.mxu0 0
        %3424 = vmatpush1.bf16.msra.mxu0 0
        %3425 = vmatprep.subr.bf16.mxu0 0
        %3426 = vmatpush1.bf16.msra.mxu0 0
        %3427 = vmatprep.subr.bf16.mxu0 0
        %3428 = vmatpush1.bf16.msra.mxu0 0
        %3429 = vmatprep.subr.bf16.mxu0 0
        %3430 = vmatpush1.bf16.msra.mxu0 0
        %3431 = vmatprep.subr.bf16.mxu0 0
        %3432 = vmatpush1.bf16.msra.mxu0 0
        %3433 = vmatprep.mubr.bf16.mxu0 0
        %3434 = vmatmul.mubr.bf16.gmra.mrb[0].mxu0 %v593
        %v3435 = vpop.f32.mrb[0].mxu0
        %v3436 = vadd.f32 %v3035, %v3435
        %v3437 = vpop.f32.mrb[0].mxu0
        %v3438 = vpop.f32.mrb[0].mxu0
        %v3439 = vpop.f32.mrb[0].mxu0
        %3440 = vmatprep.mubr.bf16.mxu0 0
        %3441 = vmatmul.mubr.bf16.gmra.mrb[0].mxu0 %v594
        %v3442 = vpop.f32.mrb[0].mxu0
        %v3443 = vadd.f32 %v3042, %v3442
        %v3444 = vpop.f32.mrb[0].mxu0
        %v3445 = vpop.f32.mrb[0].mxu0
        %v3446 = vadd.f32 %v3045, %v3445
        %v3447 = vpop.f32.mrb[0].mxu0
        %3448 = vmatprep.mubr.bf16.mxu0 0
        %3449 = vmatmul.mubr.bf16.gmra.mrb[0].mxu0 %v595
        %v3450 = vpop.f32.mrb[0].mxu0
        %v3451 = vadd.f32 %v3050, %v3450
        %v3452 = vpop.f32.mrb[0].mxu0
        %v3453 = vpop.f32.mrb[0].mxu0
        %v3454 = vadd.f32 %v3053, %v3453
        %v3455 = vpop.f32.mrb[0].mxu0
        %3456 = vmatprep.mubr.bf16.mxu0 0
        %3457 = vmatmul.mubr.bf16.gmra.mrb[0].mxu0 %v596
        %v3458 = vpop.f32.mrb[0].mxu0
        %v3459 = vadd.f32 %v3058, %v3458
        %v3460 = vpop.f32.mrb[0].mxu0
        %v3461 = vpop.f32.mrb[0].mxu0
        %v3462 = vpop.f32.mrb[0].mxu0
        %3463 = vmatprep.mubr.bf16.mxu0 0
        %3464 = vmatmul.mubr.bf16.gmra.mrb[0].mxu0 %v597
        %v3465 = vpop.f32.mrb[0].mxu0
        %v3466 = vadd.f32 %v3065, %v3465
        %v3467 = vpop.f32.mrb[0].mxu0
        %v3468 = vpop.f32.mrb[0].mxu0
        %v3469 = vadd.f32 %v3068, %v3468
        %v3470 = vpop.f32.mrb[0].mxu0
        %3471 = vmatprep.mubr.bf16.mxu0 0
        %3472 = vmatmul.mubr.bf16.gmra.mrb[0].mxu0 %v598
        %v3473 = vpop.f32.mrb[0].mxu0
        %v3474 = vadd.f32 %v3073, %v3473
        %v3475 = vpop.f32.mrb[0].mxu0
        %v3476 = vpop.f32.mrb[0].mxu0
        %v3477 = vadd.f32 %v3076, %v3476
        %v3478 = vpop.f32.mrb[0].mxu0
        %3479 = vmatprep.mubr.bf16.mxu0 0
        %3480 = vmatmul.mubr.bf16.gmra.mrb[0].mxu0 %v599
        %v3481 = vpop.f32.mrb[0].mxu0
        %v3482 = vadd.f32 %v3081, %v3481
        %v3483 = vpop.f32.mrb[0].mxu0
        %v3484 = vpop.f32.mrb[0].mxu0
        %v3485 = vpop.f32.mrb[0].mxu0
        %3486 = vmatprep.mubr.bf16.mxu0 0
        %3487 = vmatmul.mubr.bf16.gmra.mrb[0].mxu0 %v600
        %v3488 = vpop.f32.mrb[0].mxu0
        %v3489 = vadd.f32 %v3088, %v3488
        %v3490 = vpop.f32.mrb[0].mxu0
        %v3491 = vpop.f32.mrb[0].mxu0
        %v3492 = vadd.f32 %v3091, %v3491
        %v3493 = vpop.f32.mrb[0].mxu0
        %3494 = vmatprep.mubr.bf16.mxu0 0
        %3495 = vmatmul.mubr.bf16.gmra.mrb[0].mxu0 %v601
        %v3496 = vpop.f32.mrb[0].mxu0
        %v3497 = vadd.f32 %v3096, %v3496
        %v3498 = vpop.f32.mrb[0].mxu0
        %v3499 = vpop.f32.mrb[0].mxu0
        %v3500 = vadd.f32 %v3099, %v3499
        %v3501 = vpop.f32.mrb[0].mxu0
        %3502 = vmatprep.mubr.bf16.mxu0 0
        %3503 = vmatmul.mubr.bf16.gmra.mrb[0].mxu0 %v602
        %v3504 = vpop.f32.mrb[0].mxu0
        %v3505 = vadd.f32 %v3104, %v3504
        %v3506 = vpop.f32.mrb[0].mxu0
        %v3507 = vpop.f32.mrb[0].mxu0
        %v3508 = vpop.f32.mrb[0].mxu0
        %3509 = vmatprep.mubr.bf16.mxu0 0
        %3510 = vmatmul.mubr.bf16.gmra.mrb[0].mxu0 %v603
        %v3511 = vpop.f32.mrb[0].mxu0
        %v3512 = vadd.f32 %v3111, %v3511
        %v3513 = vpop.f32.mrb[0].mxu0
        %v3514 = vpop.f32.mrb[0].mxu0
        %v3515 = vadd.f32 %v3114, %v3514
        %v3516 = vpop.f32.mrb[0].mxu0
        %3517 = vmatprep.mubr.bf16.mxu0 0
        %3518 = vmatmul.mubr.bf16.gmra.mrb[0].mxu0 %v604
        %v3519 = vpop.f32.mrb[0].mxu0
        %v3520 = vadd.f32 %v3119, %v3519
        %v3521 = vpop.f32.mrb[0].mxu0
        %v3522 = vpop.f32.mrb[0].mxu0
        %v3523 = vadd.f32 %v3122, %v3522
        %v3524 = vpop.f32.mrb[0].mxu0
        %3525 = vmatprep.mubr.bf16.mxu0 0
        %3526 = vmatmul.mubr.bf16.gmra.mrb[0].mxu0 %v605
        %v3527 = vpop.f32.mrb[0].mxu0
        %v3528 = vadd.f32 %v3127, %v3527
        %v3529 = vpop.f32.mrb[0].mxu0
        %v3530 = vpop.f32.mrb[0].mxu0
        %v3531 = vpop.f32.mrb[0].mxu0
        %3532 = vmatprep.mubr.bf16.mxu0 0
        %3533 = vmatmul.mubr.bf16.gmra.mrb[0].mxu0 %v606
        %v3534 = vpop.f32.mrb[0].mxu0
        %v3535 = vadd.f32 %v3134, %v3534
        %v3536 = vpop.f32.mrb[0].mxu0
        %v3537 = vpop.f32.mrb[0].mxu0
        %v3538 = vadd.f32 %v3137, %v3537
        %v3539 = vpop.f32.mrb[0].mxu0
        %3540 = vmatprep.mubr.bf16.mxu0 0
        %3541 = vmatmul.mubr.bf16.gmra.mrb[0].mxu0 %v607
        %v3542 = vpop.f32.mrb[0].mxu0
        %v3543 = vadd.f32 %v3142, %v3542
        %v3544 = vpop.f32.mrb[0].mxu0
        %v3545 = vpop.f32.mrb[0].mxu0
        %v3546 = vadd.f32 %v3145, %v3545
        %v3547 = vpop.f32.mrb[0].mxu0
        %3548 = vmatprep.mubr.bf16.mxu0 0
        %3549 = vmatmul.mubr.bf16.gmra.mrb[0].mxu0 %v608
        %v3550 = vpop.f32.mrb[0].mxu0
        %v3551 = vadd.f32 %v3150, %v3550
        %v3552 = vpop.f32.mrb[0].mxu0
        %v3553 = vpop.f32.mrb[0].mxu0
        %v3554 = vpop.f32.mrb[0].mxu0
        %3555 = vmatprep.mubr.bf16.mxu0 0
        %3556 = vmatmul.mubr.bf16.gmra.mrb[0].mxu0 %v609
        %v3557 = vpop.f32.mrb[0].mxu0
        %v3558 = vadd.f32 %v3157, %v3557
        %v3559 = vpop.f32.mrb[0].mxu0
        %v3560 = vpop.f32.mrb[0].mxu0
        %v3561 = vadd.f32 %v3160, %v3560
        %v3562 = vpop.f32.mrb[0].mxu0
        %3563 = vmatprep.mubr.bf16.mxu0 0
        %3564 = vmatmul.mubr.bf16.gmra.mrb[0].mxu0 %v610
        %v3565 = vpop.f32.mrb[0].mxu0
        %v3566 = vadd.f32 %v3165, %v3565
        %v3567 = vpop.f32.mrb[0].mxu0
        %v3568 = vpop.f32.mrb[0].mxu0
        %v3569 = vadd.f32 %v3168, %v3568
        %v3570 = vpop.f32.mrb[0].mxu0
        %3571 = vmatprep.mubr.bf16.mxu0 0
        %3572 = vmatmul.mubr.bf16.gmra.mrb[0].mxu0 %v611
        %v3573 = vpop.f32.mrb[0].mxu0
        %v3574 = vadd.f32 %v3173, %v3573
        %v3575 = vpop.f32.mrb[0].mxu0
        %v3576 = vpop.f32.mrb[0].mxu0
        %v3577 = vpop.f32.mrb[0].mxu0
        %3578 = vmatprep.mubr.bf16.mxu0 0
        %3579 = vmatmul.mubr.bf16.gmra.mrb[0].mxu0 %v612
        %v3580 = vpop.f32.mrb[0].mxu0
        %v3581 = vadd.f32 %v3180, %v3580
        %v3582 = vpop.f32.mrb[0].mxu0
        %v3583 = vpop.f32.mrb[0].mxu0
        %v3584 = vadd.f32 %v3183, %v3583
        %v3585 = vpop.f32.mrb[0].mxu0
        %3586 = vmatprep.mubr.bf16.mxu0 0
        %3587 = vmatmul.mubr.bf16.gmra.mrb[0].mxu0 %v613
        %v3588 = vpop.f32.mrb[0].mxu0
        %v3589 = vadd.f32 %v3188, %v3588
        %v3590 = vpop.f32.mrb[0].mxu0
        %v3591 = vpop.f32.mrb[0].mxu0
        %v3592 = vadd.f32 %v3191, %v3591
        %v3593 = vpop.f32.mrb[0].mxu0
        %3594 = vmatprep.mubr.bf16.mxu0 0
        %3595 = vmatmul.mubr.bf16.gmra.mrb[0].mxu0 %v614
        %v3596 = vpop.f32.mrb[0].mxu0
        %v3597 = vadd.f32 %v3196, %v3596
        %v3598 = vpop.f32.mrb[0].mxu0
        %v3599 = vpop.f32.mrb[0].mxu0
        %v3600 = vpop.f32.mrb[0].mxu0
        %3601 = vmatprep.mubr.bf16.mxu0 0
        %3602 = vmatmul.mubr.bf16.gmra.mrb[0].mxu0 %v615
        %v3603 = vpop.f32.mrb[0].mxu0
        %v3604 = vadd.f32 %v3203, %v3603
        %v3605 = vpop.f32.mrb[0].mxu0
        %v3606 = vpop.f32.mrb[0].mxu0
        %v3607 = vadd.f32 %v3206, %v3606
        %v3608 = vpop.f32.mrb[0].mxu0
        %3609 = vmatprep.mubr.bf16.mxu0 0
        %3610 = vmatmul.mubr.bf16.gmra.mrb[0].mxu0 %v616
        %v3611 = vpop.f32.mrb[0].mxu0
        %v3612 = vadd.f32 %v3211, %v3611
        %v3613 = vpop.f32.mrb[0].mxu0
        %v3614 = vpop.f32.mrb[0].mxu0
        %v3615 = vadd.f32 %v3214, %v3614
        %v3616 = vpop.f32.mrb[0].mxu0
        %3617 = vmatprep.mubr.bf16.mxu0 0
        %3618 = vmatmul.mubr.bf16.gmra.mrb[0].mxu0 %v617
        %v3619 = vpop.f32.mrb[0].mxu0
        %v3620 = vadd.f32 %v3219, %v3619
        %v3621 = vpop.f32.mrb[0].mxu0
        %v3622 = vpop.f32.mrb[0].mxu0
        %v3623 = vpop.f32.mrb[0].mxu0
        %3624 = vmatprep.mubr.bf16.mxu0 0
        %3625 = vmatmul.mubr.bf16.gmra.mrb[0].mxu0 %v618
        %v3626 = vpop.f32.mrb[0].mxu0
        %v3627 = vadd.f32 %v3226, %v3626
        %v3628 = vpop.f32.mrb[0].mxu0
        %v3629 = vpop.f32.mrb[0].mxu0
        %v3630 = vadd.f32 %v3229, %v3629
        %v3631 = vpop.f32.mrb[0].mxu0
        %3632 = vmatprep.mubr.bf16.mxu0 0
        %3633 = vmatmul.mubr.bf16.gmra.mrb[0].mxu0 %v619
        %v3634 = vpop.f32.mrb[0].mxu0
        %v3635 = vadd.f32 %v3234, %v3634
        %v3636 = vpop.f32.mrb[0].mxu0
        %v3637 = vpop.f32.mrb[0].mxu0
        %v3638 = vadd.f32 %v3237, %v3637
        %v3639 = vpop.f32.mrb[0].mxu0
        %3640 = vmatprep.mubr.bf16.mxu0 0
        %3641 = vmatmul.mubr.bf16.gmra.mrb[0].mxu0 %v620
        %v3642 = vpop.f32.mrb[0].mxu0
        %v3643 = vadd.f32 %v3242, %v3642
        %v3644 = vpop.f32.mrb[0].mxu0
        %v3645 = vpop.f32.mrb[0].mxu0
        %v3646 = vpop.f32.mrb[0].mxu0
        %3647 = vmatprep.mubr.bf16.mxu0 0
        %3648 = vmatmul.mubr.bf16.gmra.mrb[0].mxu0 %v621
        %v3649 = vpop.f32.mrb[0].mxu0
        %v3650 = vadd.f32 %v3249, %v3649
        %v3651 = vpop.f32.mrb[0].mxu0
        %v3652 = vpop.f32.mrb[0].mxu0
        %v3653 = vadd.f32 %v3252, %v3652
        %v3654 = vpop.f32.mrb[0].mxu0
        %3655 = vmatprep.mubr.bf16.mxu0 0
        %3656 = vmatmul.mubr.bf16.gmra.mrb[0].mxu0 %v622
        %v3657 = vpop.f32.mrb[0].mxu0
        %v3658 = vadd.f32 %v3257, %v3657
        %v3659 = vpop.f32.mrb[0].mxu0
        %v3660 = vpop.f32.mrb[0].mxu0
        %v3661 = vadd.f32 %v3260, %v3660
        %v3662 = vpop.f32.mrb[0].mxu0
        %3663 = vmatprep.mubr.bf16.mxu0 0
        %3664 = vmatmul.mubr.bf16.gmra.mrb[0].mxu0 %v623
        %v3665 = vpop.f32.mrb[0].mxu0
        %v3666 = vadd.f32 %v3265, %v3665
        %v3667 = vpop.f32.mrb[0].mxu0
        %v3668 = vpop.f32.mrb[0].mxu0
        %v3669 = vpop.f32.mrb[0].mxu0
        %3670 = vmatprep.mubr.bf16.mxu0 0
        %3671 = vmatmul.mubr.bf16.gmra.mrb[0].mxu0 %v624
        %v3672 = vpop.f32.mrb[0].mxu0
        %v3673 = vadd.f32 %v3272, %v3672
        %v3674 = vpop.f32.mrb[0].mxu0
        %v3675 = vpop.f32.mrb[0].mxu0
        %v3676 = vadd.f32 %v3275, %v3675
        %v3677 = vpop.f32.mrb[0].mxu0
        %3678 = vmatprep.mubr.bf16.mxu0 0
        %3679 = vmatmul.mubr.bf16.gmra.mrb[0].mxu0 %v625
        %v3680 = vpop.f32.mrb[0].mxu0
        %v3681 = vadd.f32 %v3280, %v3680
        %v3682 = vpop.f32.mrb[0].mxu0
        %v3683 = vpop.f32.mrb[0].mxu0
        %v3684 = vadd.f32 %v3283, %v3683
        %v3685 = vpop.f32.mrb[0].mxu0
        %3686 = vmatprep.mubr.bf16.mxu0 0
        %3687 = vmatmul.mubr.bf16.gmra.mrb[0].mxu0 %v626
        %v3688 = vpop.f32.mrb[0].mxu0
        %v3689 = vadd.f32 %v3288, %v3688
        %v3690 = vpop.f32.mrb[0].mxu0
        %v3691 = vpop.f32.mrb[0].mxu0
        %v3692 = vpop.f32.mrb[0].mxu0
        %3693 = vmatprep.mubr.bf16.mxu0 0
        %3694 = vmatmul.mubr.bf16.gmra.mrb[0].mxu0 %v627
        %v3695 = vpop.f32.mrb[0].mxu0
        %v3696 = vadd.f32 %v3295, %v3695
        %v3697 = vpop.f32.mrb[0].mxu0
        %v3698 = vpop.f32.mrb[0].mxu0
        %v3699 = vadd.f32 %v3298, %v3698
        %v3700 = vpop.f32.mrb[0].mxu0
        %3701 = vmatprep.mubr.bf16.mxu0 0
        %3702 = vmatmul.mubr.bf16.gmra.mrb[0].mxu0 %v628
        %v3703 = vpop.f32.mrb[0].mxu0
        %v3704 = vadd.f32 %v3303, %v3703
        %v3705 = vpop.f32.mrb[0].mxu0
        %v3706 = vpop.f32.mrb[0].mxu0
        %v3707 = vadd.f32 %v3306, %v3706
        %v3708 = vpop.f32.mrb[0].mxu0
        %3709 = vmatprep.mubr.bf16.mxu0 0
        %3710 = vmatmul.mubr.bf16.gmra.mrb[0].mxu0 %v629
        %v3711 = vpop.f32.mrb[0].mxu0
        %v3712 = vadd.f32 %v3311, %v3711
        %v3713 = vpop.f32.mrb[0].mxu0
        %v3714 = vpop.f32.mrb[0].mxu0
        %v3715 = vpop.f32.mrb[0].mxu0
        %3716 = vmatprep.mubr.bf16.mxu0 0
        %3717 = vmatmul.mubr.bf16.gmra.mrb[0].mxu0 %v630
        %v3718 = vpop.f32.mrb[0].mxu0
        %v3719 = vadd.f32 %v3318, %v3718
        %v3720 = vpop.f32.mrb[0].mxu0
        %v3721 = vpop.f32.mrb[0].mxu0
        %v3722 = vadd.f32 %v3321, %v3721
        %v3723 = vpop.f32.mrb[0].mxu0
        %3724 = vmatprep.mubr.bf16.mxu0 0
        %3725 = vmatmul.mubr.bf16.gmra.mrb[0].mxu0 %v631
        %v3726 = vpop.f32.mrb[0].mxu0
        %v3727 = vadd.f32 %v3326, %v3726
        %v3728 = vpop.f32.mrb[0].mxu0
        %v3729 = vpop.f32.mrb[0].mxu0
        %v3730 = vadd.f32 %v3329, %v3729
        %v3731 = vpop.f32.mrb[0].mxu0
        %3732 = vmatprep.mubr.bf16.mxu0 0
        %3733 = vmatmul.mubr.bf16.gmra.mrb[0].mxu0 %v632
        %v3734 = vpop.f32.mrb[0].mxu0
        %v3735 = vadd.f32 %v3334, %v3734
        %v3736 = vpop.f32.mrb[0].mxu0
        %v3737 = vpop.f32.mrb[0].mxu0
        %v3738 = vpop.f32.mrb[0].mxu0
        %3739 = vmatprep.mubr.bf16.mxu0 0
        %3740 = vmatmul.mubr.bf16.gmra.mrb[0].mxu0 %v633
        %v3741 = vpop.f32.mrb[0].mxu0
        %v3742 = vadd.f32 %v3341, %v3741
        %v3743 = vpop.f32.mrb[0].mxu0
        %v3744 = vpop.f32.mrb[0].mxu0
        %v3745 = vadd.f32 %v3344, %v3744
        %v3746 = vpop.f32.mrb[0].mxu0
        %3747 = vmatprep.mubr.bf16.mxu0 0
        %3748 = vmatmul.mubr.bf16.gmra.mrb[0].mxu0 %v634
        %v3749 = vpop.f32.mrb[0].mxu0
        %v3750 = vadd.f32 %v3349, %v3749
        %v3751 = vpop.f32.mrb[0].mxu0
        %v3752 = vpop.f32.mrb[0].mxu0
        %v3753 = vadd.f32 %v3352, %v3752
        %v3754 = vpop.f32.mrb[0].mxu0
        %3755 = vmatprep.mubr.bf16.mxu0 0
        %3756 = vmatmul.mubr.bf16.gmra.mrb[0].mxu0 %v635
        %v3757 = vpop.f32.mrb[0].mxu0
        %v3758 = vadd.f32 %v3357, %v3757
        %v3759 = vpop.f32.mrb[0].mxu0
        %v3760 = vpop.f32.mrb[0].mxu0
        %v3761 = vpop.f32.mrb[0].mxu0
        %3762 = vmatprep.mubr.bf16.mxu0 0
        %3763 = vmatmul.mubr.bf16.gmra.mrb[0].mxu0 %v636
        %v3764 = vpop.f32.mrb[0].mxu0
        %v3765 = vadd.f32 %v3364, %v3764
        %v3766 = vpop.f32.mrb[0].mxu0
        %v3767 = vpop.f32.mrb[0].mxu0
        %v3768 = vadd.f32 %v3367, %v3767
        %v3769 = vpop.f32.mrb[0].mxu0
        %3770 = vmatprep.mubr.bf16.mxu0 0
        %3771 = vmatmul.mubr.bf16.gmra.mrb[0].mxu0 %v637
        %v3772 = vpop.f32.mrb[0].mxu0
        %v3773 = vadd.f32 %v3372, %v3772
        %v3774 = vpop.f32.mrb[0].mxu0
        %v3775 = vpop.f32.mrb[0].mxu0
        %v3776 = vadd.f32 %v3375, %v3775
        %v3777 = vpop.f32.mrb[0].mxu0
        %3778 = vmatprep.mubr.bf16.mxu0 0
        %3779 = vmatmul.mubr.bf16.gmra.mrb[0].mxu0 %v638
        %v3780 = vpop.f32.mrb[0].mxu0
        %v3781 = vadd.f32 %v3380, %v3780
        %v3782 = vpop.f32.mrb[0].mxu0
        %v3783 = vpop.f32.mrb[0].mxu0
        %v3784 = vpop.f32.mrb[0].mxu0
        %3785 = vmatprep.mubr.bf16.mxu0 0
        %3786 = vmatmul.mubr.bf16.gmra.mrb[0].mxu0 %v639
        %v3787 = vpop.f32.mrb[0].mxu0
        %v3788 = vadd.f32 %v3387, %v3787
        %v3789 = vpop.f32.mrb[0].mxu0
        %v3790 = vpop.f32.mrb[0].mxu0
        %v3791 = vadd.f32 %v3390, %v3790
        %v3792 = vpop.f32.mrb[0].mxu0
        %3793 = vmatprep.mubr.bf16.mxu0 0
        %3794 = vmatmul.mubr.bf16.gmra.mrb[0].mxu0 %v640
        %v3795 = vpop.f32.mrb[0].mxu0
        %v3796 = vadd.f32 %v3395, %v3795
        %v3797 = vpop.f32.mrb[0].mxu0
        %v3798 = vpop.f32.mrb[0].mxu0
        %v3799 = vadd.f32 %v3398, %v3798
        %v3800 = vpop.f32.mrb[0].mxu0
        %3801 = vdwg.mxu0
        %v3802 = vrot.slane %v3436, 1
        %v3803 = vrot.slane %v3443, 1
        %v3804 = vrot.slane %v3446, 1
        %v3805 = vrot.slane %v3451, 1
        %v3806 = vrot.slane %v3454, 1
        %v3807 = vrot.slane %v3459, 1
        %v3808 = vrot.slane %v3466, 1
        %v3809 = vrot.slane %v3469, 1
        %v3810 = vrot.slane %v3474, 1
        %v3811 = vrot.slane %v3477, 1
        %v3812 = vrot.slane %v3482, 1
        %v3813 = vrot.slane %v3489, 1
        %v3814 = vrot.slane %v3492, 1
        %v3815 = vrot.slane %v3497, 1
        %v3816 = vrot.slane %v3500, 1
        %v3817 = vrot.slane %v3505, 1
        %v3818 = vrot.slane %v3512, 1
        %v3819 = vrot.slane %v3515, 1
        %v3820 = vrot.slane %v3520, 1
        %v3821 = vrot.slane %v3523, 1
        %v3822 = vrot.slane %v3528, 1
        %v3823 = vrot.slane %v3535, 1
        %v3824 = vrot.slane %v3538, 1
        %v3825 = vrot.slane %v3543, 1
        %v3826 = vrot.slane %v3546, 1
        %v3827 = vrot.slane %v3551, 1
        %v3828 = vrot.slane %v3558, 1
        %v3829 = vrot.slane %v3561, 1
        %v3830 = vrot.slane %v3566, 1
        %v3831 = vrot.slane %v3569, 1
        %v3832 = vrot.slane %v3574, 1
        %v3833 = vrot.slane %v3581, 1
        %v3834 = vrot.slane %v3584, 1
        %v3835 = vrot.slane %v3589, 1
        %v3836 = vrot.slane %v3592, 1
        %v3837 = vrot.slane %v3597, 1
        %v3838 = vrot.slane %v3604, 1
        %v3839 = vrot.slane %v3607, 1
        %v3840 = vrot.slane %v3612, 1
        %v3841 = vrot.slane %v3615, 1
        %v3842 = vrot.slane %v3620, 1
        %v3843 = vrot.slane %v3627, 1
        %v3844 = vrot.slane %v3630, 1
        %v3845 = vrot.slane %v3635, 1
        %v3846 = vrot.slane %v3638, 1
        %v3847 = vrot.slane %v3643, 1
        %v3848 = vrot.slane %v3650, 1
        %v3849 = vrot.slane %v3653, 1
        %v3850 = vrot.slane %v3658, 1
        %v3851 = vrot.slane %v3661, 1
        %v3852 = vrot.slane %v3666, 1
        %v3853 = vrot.slane %v3673, 1
        %v3854 = vrot.slane %v3676, 1
        %v3855 = vrot.slane %v3681, 1
        %v3856 = vrot.slane %v3684, 1
        %v3857 = vrot.slane %v3689, 1
        %v3858 = vrot.slane %v3696, 1
        %v3859 = vrot.slane %v3699, 1
        %v3860 = vrot.slane %v3704, 1
        %v3861 = vrot.slane %v3707, 1
        %v3862 = vrot.slane %v3712, 1
        %v3863 = vrot.slane %v3719, 1
        %v3864 = vrot.slane %v3722, 1
        %v3865 = vrot.slane %v3727, 1
        %v3866 = vrot.slane %v3730, 1
        %v3867 = vrot.slane %v3735, 1
        %v3868 = vrot.slane %v3742, 1
        %v3869 = vrot.slane %v3745, 1
        %v3870 = vrot.slane %v3750, 1
        %v3871 = vrot.slane %v3753, 1
        %v3872 = vrot.slane %v3758, 1
        %v3873 = vrot.slane %v3765, 1
        %v3874 = vrot.slane %v3768, 1
        %v3875 = vrot.slane %v3773, 1
        %v3876 = vrot.slane %v3776, 1
        %v3877 = vrot.slane %v3781, 1
        %v3878 = vrot.slane %v3788, 1
        %v3879 = vrot.slane %v3791, 1
        %v3880 = vrot.slane %v3796, 1
        %v3881 = vrot.slane %v3799, 1
        %vm3882 = vcmp.lt.s32.totalorder %v579, 7
        %v3883 = vsel %vm3882, %v3880, %v3881
        %v3884 = vsel %vm3882, %v3879, %v3880
        %v3885 = vsel %vm3882, %v3878, %v3879
        %v3886 = vsel %vm3882, %v3876, %v3877
        %v3887 = vsel %vm3882, %v3875, %v3876
        %v3888 = vsel %vm3882, %v3874, %v3875
        %v3889 = vsel %vm3882, %v3873, %v3874
        %v3890 = vsel %vm3882, %v3871, %v3872
        %v3891 = vsel %vm3882, %v3870, %v3871
        %v3892 = vsel %vm3882, %v3869, %v3870
        %v3893 = vsel %vm3882, %v3868, %v3869
        %v3894 = vsel %vm3882, %v3866, %v3867
        %v3895 = vsel %vm3882, %v3865, %v3866
        %v3896 = vsel %vm3882, %v3864, %v3865
        %v3897 = vsel %vm3882, %v3863, %v3864
        %v3898 = vsel %vm3882, %v3861, %v3862
        %v3899 = vsel %vm3882, %v3860, %v3861
        %v3900 = vsel %vm3882, %v3859, %v3860
        %v3901 = vsel %vm3882, %v3858, %v3859
        %v3902 = vsel %vm3882, %v3856, %v3857
        %v3903 = vsel %vm3882, %v3855, %v3856
        %v3904 = vsel %vm3882, %v3854, %v3855
        %v3905 = vsel %vm3882, %v3853, %v3854
        %v3906 = vsel %vm3882, %v3851, %v3852
        %v3907 = vsel %vm3882, %v3850, %v3851
        %v3908 = vsel %vm3882, %v3849, %v3850
        %v3909 = vsel %vm3882, %v3848, %v3849
        %v3910 = vsel %vm3882, %v3846, %v3847
        %v3911 = vsel %vm3882, %v3845, %v3846
        %v3912 = vsel %vm3882, %v3844, %v3845
        %v3913 = vsel %vm3882, %v3843, %v3844
        %v3914 = vsel %vm3882, %v3841, %v3842
        %v3915 = vsel %vm3882, %v3840, %v3841
        %v3916 = vsel %vm3882, %v3839, %v3840
        %v3917 = vsel %vm3882, %v3838, %v3839
        %v3918 = vsel %vm3882, %v3836, %v3837
        %v3919 = vsel %vm3882, %v3835, %v3836
        %v3920 = vsel %vm3882, %v3834, %v3835
        %v3921 = vsel %vm3882, %v3833, %v3834
        %v3922 = vsel %vm3882, %v3831, %v3832
        %v3923 = vsel %vm3882, %v3830, %v3831
        %v3924 = vsel %vm3882, %v3829, %v3830
        %v3925 = vsel %vm3882, %v3828, %v3829
        %v3926 = vsel %vm3882, %v3826, %v3827
        %v3927 = vsel %vm3882, %v3825, %v3826
        %v3928 = vsel %vm3882, %v3824, %v3825
        %v3929 = vsel %vm3882, %v3823, %v3824
        %v3930 = vsel %vm3882, %v3821, %v3822
        %v3931 = vsel %vm3882, %v3820, %v3821
        %v3932 = vsel %vm3882, %v3819, %v3820
        %v3933 = vsel %vm3882, %v3818, %v3819
        %v3934 = vsel %vm3882, %v3816, %v3817
        %v3935 = vsel %vm3882, %v3815, %v3816
        %v3936 = vsel %vm3882, %v3814, %v3815
        %v3937 = vsel %vm3882, %v3813, %v3814
        %v3938 = vsel %vm3882, %v3811, %v3812
        %v3939 = vsel %vm3882, %v3810, %v3811
        %v3940 = vsel %vm3882, %v3809, %v3810
        %v3941 = vsel %vm3882, %v3808, %v3809
        %v3942 = vsel %vm3882, %v3806, %v3807
        %v3943 = vsel %vm3882, %v3805, %v3806
        %v3944 = vsel %vm3882, %v3804, %v3805
        %v3945 = vsel %vm3882, %v3803, %v3804
        %v3946 = vsel %vm3882, %v3881, %v3802
        %v3947 = vadd.f32 %v2743, %v3945
        %v3948 = vadd.f32 %v2744, %v3944
        %v3949 = vadd.f32 %v2745, %v3943
        %v3950 = vadd.f32 %v2746, %v3942
        %v3951 = vadd.f32 %v2747, %v3941
        %v3952 = vadd.f32 %v2748, %v3940
        %v3953 = vadd.f32 %v2749, %v3939
        %v3954 = vadd.f32 %v2750, %v3938
        %v3955 = vadd.f32 %v2751, %v3937
        %v3956 = vadd.f32 %v2752, %v3936
        %v3957 = vadd.f32 %v2753, %v3935
        %v3958 = vadd.f32 %v2754, %v3934
        %v3959 = vadd.f32 %v2755, %v3933
        %v3960 = vadd.f32 %v2756, %v3932
        %v3961 = vadd.f32 %v2757, %v3931
        %v3962 = vadd.f32 %v2758, %v3930
        %v3963 = vadd.f32 %v2759, %v3929
        %v3964 = vadd.f32 %v2760, %v3928
        %v3965 = vadd.f32 %v2761, %v3927
        %v3966 = vadd.f32 %v2762, %v3926
        %v3967 = vadd.f32 %v2763, %v3925
        %v3968 = vadd.f32 %v2764, %v3924
        %v3969 = vadd.f32 %v2765, %v3923
        %v3970 = vadd.f32 %v2766, %v3922
        %v3971 = vadd.f32 %v2767, %v3921
        %v3972 = vadd.f32 %v2768, %v3920
        %v3973 = vadd.f32 %v2769, %v3919
        %v3974 = vadd.f32 %v2770, %v3918
        %v3975 = vadd.f32 %v2771, %v3917
        %v3976 = vadd.f32 %v2772, %v3916
        %v3977 = vadd.f32 %v2773, %v3915
        %v3978 = vadd.f32 %v2774, %v3914
        %v3979 = vadd.f32 %v2775, %v3913
        %v3980 = vadd.f32 %v2776, %v3912
        %v3981 = vadd.f32 %v2777, %v3911
        %v3982 = vadd.f32 %v2778, %v3910
        %v3983 = vadd.f32 %v2779, %v3909
        %v3984 = vadd.f32 %v2780, %v3908
        %v3985 = vadd.f32 %v2781, %v3907
        %v3986 = vadd.f32 %v2782, %v3906
        %v3987 = vadd.f32 %v2783, %v3905
        %v3988 = vadd.f32 %v2784, %v3904
        %v3989 = vadd.f32 %v2785, %v3903
        %v3990 = vadd.f32 %v2786, %v3902
        %v3991 = vadd.f32 %v2787, %v3901
        %v3992 = vadd.f32 %v2788, %v3900
        %v3993 = vadd.f32 %v2789, %v3899
        %v3994 = vadd.f32 %v2790, %v3898
        %v3995 = vadd.f32 %v2791, %v3897
        %v3996 = vadd.f32 %v2792, %v3896
        %v3997 = vadd.f32 %v2793, %v3895
        %v3998 = vadd.f32 %v2794, %v3894
        %v3999 = vadd.f32 %v2795, %v3893
        %v4000 = vadd.f32 %v2796, %v3892
        %v4001 = vadd.f32 %v2797, %v3891
        %v4002 = vadd.f32 %v2798, %v3890
        %v4003 = vadd.f32 %v2799, %v3889
        %v4004 = vadd.f32 %v2800, %v3888
        %v4005 = vadd.f32 %v2801, %v3887
        %v4006 = vadd.f32 %v2802, %v3886
        %v4007 = vadd.f32 %v2803, %v3885
        %v4008 = vadd.f32 %v2804, %v3884
        %v4009 = vadd.f32 %v2805, %v3883
        %v4010 = vadd.f32 %v2806, %v3946
        %v4012 = vlaneseq
        %v4013 = vshrl.u32 %v4012, 7
        %v4014 = vsub.s32 0, %v4013
        %v4015 = vrot.slane %v574, %v4014
        %v4017 = vmul.f32 %v3947, %v4015
        %v4018 = vmul.f32 %v3948, %v4015
        %v4019 = vmul.f32 %v3949, %v4015
        %v4020 = vmul.f32 %v3950, %v4015
        %v4021 = vmul.f32 %v3951, %v4015
        %v4022 = vmul.f32 %v3952, %v4015
        %v4023 = vmul.f32 %v3953, %v4015
        %v4024 = vmul.f32 %v3954, %v4015
        %v4025 = vmul.f32 %v3955, %v4015
        %v4026 = vmul.f32 %v3956, %v4015
        %v4027 = vmul.f32 %v3957, %v4015
        %v4028 = vmul.f32 %v3958, %v4015
        %v4029 = vmul.f32 %v3959, %v4015
        %v4030 = vmul.f32 %v3960, %v4015
        %v4031 = vmul.f32 %v3961, %v4015
        %v4032 = vmul.f32 %v3962, %v4015
        %v4033 = vmul.f32 %v3963, %v4015
        %v4034 = vmul.f32 %v3964, %v4015
        %v4035 = vmul.f32 %v3965, %v4015
        %v4036 = vmul.f32 %v3966, %v4015
        %v4037 = vmul.f32 %v3967, %v4015
        %v4038 = vmul.f32 %v3968, %v4015
        %v4039 = vmul.f32 %v3969, %v4015
        %v4040 = vmul.f32 %v3970, %v4015
        %v4041 = vmul.f32 %v3971, %v4015
        %v4042 = vmul.f32 %v3972, %v4015
        %v4043 = vmul.f32 %v3973, %v4015
        %v4044 = vmul.f32 %v3974, %v4015
        %v4045 = vmul.f32 %v3975, %v4015
        %v4046 = vmul.f32 %v3976, %v4015
        %v4047 = vmul.f32 %v3977, %v4015
        %v4048 = vmul.f32 %v3978, %v4015
        %v4049 = vmul.f32 %v3979, %v4015
        %v4050 = vmul.f32 %v3980, %v4015
        %v4051 = vmul.f32 %v3981, %v4015
        %v4052 = vmul.f32 %v3982, %v4015
        %v4053 = vmul.f32 %v3983, %v4015
        %v4054 = vmul.f32 %v3984, %v4015
        %v4055 = vmul.f32 %v3985, %v4015
        %v4056 = vmul.f32 %v3986, %v4015
        %v4057 = vmul.f32 %v3987, %v4015
        %v4058 = vmul.f32 %v3988, %v4015
        %v4059 = vmul.f32 %v3989, %v4015
        %v4060 = vmul.f32 %v3990, %v4015
        %v4061 = vmul.f32 %v3991, %v4015
        %v4062 = vmul.f32 %v3992, %v4015
        %v4063 = vmul.f32 %v3993, %v4015
        %v4064 = vmul.f32 %v3994, %v4015
        %v4065 = vmul.f32 %v3995, %v4015
        %v4066 = vmul.f32 %v3996, %v4015
        %v4067 = vmul.f32 %v3997, %v4015
        %v4068 = vmul.f32 %v3998, %v4015
        %v4069 = vmul.f32 %v3999, %v4015
        %v4070 = vmul.f32 %v4000, %v4015
        %v4071 = vmul.f32 %v4001, %v4015
        %v4072 = vmul.f32 %v4002, %v4015
        %v4073 = vmul.f32 %v4003, %v4015
        %v4074 = vmul.f32 %v4004, %v4015
        %v4075 = vmul.f32 %v4005, %v4015
        %v4076 = vmul.f32 %v4006, %v4015
        %v4077 = vmul.f32 %v4007, %v4015
        %v4078 = vmul.f32 %v4008, %v4015
        %v4079 = vmul.f32 %v4009, %v4015
        %v4080 = vmul.f32 %v4010, %v4015
        %v4082 = vlaneseq
        %v4083 = vshrl.u32 %v4082, 7
        %v4084 = vsub.s32 0, %v4083
        %v4085 = vrot.slane %v575, %v4084
        %v4087 = vadd.f32 %v4017, %v4085
        %v4088 = vadd.f32 %v4018, %v4085
        %v4089 = vadd.f32 %v4019, %v4085
        %v4090 = vadd.f32 %v4020, %v4085
        %v4091 = vadd.f32 %v4021, %v4085
        %v4092 = vadd.f32 %v4022, %v4085
        %v4093 = vadd.f32 %v4023, %v4085
        %v4094 = vadd.f32 %v4024, %v4085
        %v4095 = vadd.f32 %v4025, %v4085
        %v4096 = vadd.f32 %v4026, %v4085
        %v4097 = vadd.f32 %v4027, %v4085
        %v4098 = vadd.f32 %v4028, %v4085
        %v4099 = vadd.f32 %v4029, %v4085
        %v4100 = vadd.f32 %v4030, %v4085
        %v4101 = vadd.f32 %v4031, %v4085
        %v4102 = vadd.f32 %v4032, %v4085
        %v4103 = vadd.f32 %v4033, %v4085
        %v4104 = vadd.f32 %v4034, %v4085
        %v4105 = vadd.f32 %v4035, %v4085
        %v4106 = vadd.f32 %v4036, %v4085
        %v4107 = vadd.f32 %v4037, %v4085
        %v4108 = vadd.f32 %v4038, %v4085
        %v4109 = vadd.f32 %v4039, %v4085
        %v4110 = vadd.f32 %v4040, %v4085
        %v4111 = vadd.f32 %v4041, %v4085
        %v4112 = vadd.f32 %v4042, %v4085
        %v4113 = vadd.f32 %v4043, %v4085
        %v4114 = vadd.f32 %v4044, %v4085
        %v4115 = vadd.f32 %v4045, %v4085
        %v4116 = vadd.f32 %v4046, %v4085
        %v4117 = vadd.f32 %v4047, %v4085
        %v4118 = vadd.f32 %v4048, %v4085
        %v4119 = vadd.f32 %v4049, %v4085
        %v4120 = vadd.f32 %v4050, %v4085
        %v4121 = vadd.f32 %v4051, %v4085
        %v4122 = vadd.f32 %v4052, %v4085
        %v4123 = vadd.f32 %v4053, %v4085
        %v4124 = vadd.f32 %v4054, %v4085
        %v4125 = vadd.f32 %v4055, %v4085
        %v4126 = vadd.f32 %v4056, %v4085
        %v4127 = vadd.f32 %v4057, %v4085
        %v4128 = vadd.f32 %v4058, %v4085
        %v4129 = vadd.f32 %v4059, %v4085
        %v4130 = vadd.f32 %v4060, %v4085
        %v4131 = vadd.f32 %v4061, %v4085
        %v4132 = vadd.f32 %v4062, %v4085
        %v4133 = vadd.f32 %v4063, %v4085
        %v4134 = vadd.f32 %v4064, %v4085
        %v4135 = vadd.f32 %v4065, %v4085
        %v4136 = vadd.f32 %v4066, %v4085
        %v4137 = vadd.f32 %v4067, %v4085
        %v4138 = vadd.f32 %v4068, %v4085
        %v4139 = vadd.f32 %v4069, %v4085
        %v4140 = vadd.f32 %v4070, %v4085
        %v4141 = vadd.f32 %v4071, %v4085
        %v4142 = vadd.f32 %v4072, %v4085
        %v4143 = vadd.f32 %v4073, %v4085
        %v4144 = vadd.f32 %v4074, %v4085
        %v4145 = vadd.f32 %v4075, %v4085
        %v4146 = vadd.f32 %v4076, %v4085
        %v4147 = vadd.f32 %v4077, %v4085
        %v4148 = vadd.f32 %v4078, %v4085
        %v4149 = vadd.f32 %v4079, %v4085
        %v4150 = vadd.f32 %v4080, %v4085
        %v4151 = vmax.f32 %v4087, 0.0
        %v4152 = vmax.f32 %v4088, 0.0
        %v4153 = vmax.f32 %v4089, 0.0
        %v4154 = vmax.f32 %v4090, 0.0
        %v4155 = vmax.f32 %v4091, 0.0
        %v4156 = vmax.f32 %v4092, 0.0
        %v4157 = vmax.f32 %v4093, 0.0
        %v4158 = vmax.f32 %v4094, 0.0
        %v4159 = vmax.f32 %v4095, 0.0
        %v4160 = vmax.f32 %v4096, 0.0
        %v4161 = vmax.f32 %v4097, 0.0
        %v4162 = vmax.f32 %v4098, 0.0
        %v4163 = vmax.f32 %v4099, 0.0
        %v4164 = vmax.f32 %v4100, 0.0
        %v4165 = vmax.f32 %v4101, 0.0
        %v4166 = vmax.f32 %v4102, 0.0
        %v4167 = vmax.f32 %v4103, 0.0
        %v4168 = vmax.f32 %v4104, 0.0
        %v4169 = vmax.f32 %v4105, 0.0
        %v4170 = vmax.f32 %v4106, 0.0
        %v4171 = vmax.f32 %v4107, 0.0
        %v4172 = vmax.f32 %v4108, 0.0
        %v4173 = vmax.f32 %v4109, 0.0
        %v4174 = vmax.f32 %v4110, 0.0
        %v4175 = vmax.f32 %v4111, 0.0
        %v4176 = vmax.f32 %v4112, 0.0
        %v4177 = vmax.f32 %v4113, 0.0
        %v4178 = vmax.f32 %v4114, 0.0
        %v4179 = vmax.f32 %v4115, 0.0
        %v4180 = vmax.f32 %v4116, 0.0
        %v4181 = vmax.f32 %v4117, 0.0
        %v4182 = vmax.f32 %v4118, 0.0
        %v4183 = vmax.f32 %v4119, 0.0
        %v4184 = vmax.f32 %v4120, 0.0
        %v4185 = vmax.f32 %v4121, 0.0
        %v4186 = vmax.f32 %v4122, 0.0
        %v4187 = vmax.f32 %v4123, 0.0
        %v4188 = vmax.f32 %v4124, 0.0
        %v4189 = vmax.f32 %v4125, 0.0
        %v4190 = vmax.f32 %v4126, 0.0
        %v4191 = vmax.f32 %v4127, 0.0
        %v4192 = vmax.f32 %v4128, 0.0
        %v4193 = vmax.f32 %v4129, 0.0
        %v4194 = vmax.f32 %v4130, 0.0
        %v4195 = vmax.f32 %v4131, 0.0
        %v4196 = vmax.f32 %v4132, 0.0
        %v4197 = vmax.f32 %v4133, 0.0
        %v4198 = vmax.f32 %v4134, 0.0
        %v4199 = vmax.f32 %v4135, 0.0
        %v4200 = vmax.f32 %v4136, 0.0
        %v4201 = vmax.f32 %v4137, 0.0
        %v4202 = vmax.f32 %v4138, 0.0
        %v4203 = vmax.f32 %v4139, 0.0
        %v4204 = vmax.f32 %v4140, 0.0
        %v4205 = vmax.f32 %v4141, 0.0
        %v4206 = vmax.f32 %v4142, 0.0
        %v4207 = vmax.f32 %v4143, 0.0
        %v4208 = vmax.f32 %v4144, 0.0
        %v4209 = vmax.f32 %v4145, 0.0
        %v4210 = vmax.f32 %v4146, 0.0
        %v4211 = vmax.f32 %v4147, 0.0
        %v4212 = vmax.f32 %v4148, 0.0
        %v4213 = vmax.f32 %v4149, 0.0
        %v4214 = vmax.f32 %v4150, 0.0
        %v4215 = vsel %vm583, 1, 0
        %v4216 = vsel %vm584, 1, 0
        %v4217 = vsel %vm585, 1, 0
        %v4218 = vsel %vm586, 1, 0
        %vm4219 = vcmp.eq.s32.totalorder %v4215, 1
        %vm4220 = vcmp.eq.s32.totalorder %v4216, 1
        %vm4221 = vcmp.eq.s32.totalorder %v4217, 1
        %vm4222 = vcmp.eq.s32.totalorder %v4218, 1
        %v4223 = vsel %vm4219, %v4151, 0.0
        %v4224 = vsel %vm4220, %v4152, 0.0
        %v4225 = vsel %vm4221, %v4153, 0.0
        %v4226 = vsel %vm4222, %v4154, 0.0
        %v4227 = vsel %vm4219, %v4155, 0.0
        %v4228 = vsel %vm4220, %v4156, 0.0
        %v4229 = vsel %vm4221, %v4157, 0.0
        %v4230 = vsel %vm4222, %v4158, 0.0
        %v4231 = vsel %vm4219, %v4159, 0.0
        %v4232 = vsel %vm4220, %v4160, 0.0
        %v4233 = vsel %vm4221, %v4161, 0.0
        %v4234 = vsel %vm4222, %v4162, 0.0
        %v4235 = vsel %vm4219, %v4163, 0.0
        %v4236 = vsel %vm4220, %v4164, 0.0
        %v4237 = vsel %vm4221, %v4165, 0.0
        %v4238 = vsel %vm4222, %v4166, 0.0
        %v4239 = vsel %vm4219, %v4167, 0.0
        %v4240 = vsel %vm4220, %v4168, 0.0
        %v4241 = vsel %vm4221, %v4169, 0.0
        %v4242 = vsel %vm4222, %v4170, 0.0
        %v4243 = vsel %vm4219, %v4171, 0.0
        %v4244 = vsel %vm4220, %v4172, 0.0
        %v4245 = vsel %vm4221, %v4173, 0.0
        %v4246 = vsel %vm4222, %v4174, 0.0
        %v4247 = vsel %vm4219, %v4175, 0.0
        %v4248 = vsel %vm4220, %v4176, 0.0
        %v4249 = vsel %vm4221, %v4177, 0.0
        %v4250 = vsel %vm4222, %v4178, 0.0
        %v4251 = vsel %vm4219, %v4179, 0.0
        %v4252 = vsel %vm4220, %v4180, 0.0
        %v4253 = vsel %vm4221, %v4181, 0.0
        %v4254 = vsel %vm4222, %v4182, 0.0
        %v4255 = vsel %vm4219, %v4183, 0.0
        %v4256 = vsel %vm4220, %v4184, 0.0
        %v4257 = vsel %vm4221, %v4185, 0.0
        %v4258 = vsel %vm4222, %v4186, 0.0
        %v4259 = vsel %vm4219, %v4187, 0.0
        %v4260 = vsel %vm4220, %v4188, 0.0
        %v4261 = vsel %vm4221, %v4189, 0.0
        %v4262 = vsel %vm4222, %v4190, 0.0
        %v4263 = vsel %vm4219, %v4191, 0.0
        %v4264 = vsel %vm4220, %v4192, 0.0
        %v4265 = vsel %vm4221, %v4193, 0.0
        %v4266 = vsel %vm4222, %v4194, 0.0
        %v4267 = vsel %vm4219, %v4195, 0.0
        %v4268 = vsel %vm4220, %v4196, 0.0
        %v4269 = vsel %vm4221, %v4197, 0.0
        %v4270 = vsel %vm4222, %v4198, 0.0
        %v4271 = vsel %vm4219, %v4199, 0.0
        %v4272 = vsel %vm4220, %v4200, 0.0
        %v4273 = vsel %vm4221, %v4201, 0.0
        %v4274 = vsel %vm4222, %v4202, 0.0
        %v4275 = vsel %vm4219, %v4203, 0.0
        %v4276 = vsel %vm4220, %v4204, 0.0
        %v4277 = vsel %vm4221, %v4205, 0.0
        %v4278 = vsel %vm4222, %v4206, 0.0
        %v4279 = vsel %vm4219, %v4207, 0.0
        %v4280 = vsel %vm4220, %v4208, 0.0
        %v4281 = vsel %vm4221, %v4209, 0.0
        %v4282 = vsel %vm4222, %v4210, 0.0
        %v4283 = vsel %vm4219, %v4211, 0.0
        %v4284 = vsel %vm4220, %v4212, 0.0
        %v4285 = vsel %vm4221, %v4213, 0.0
        %v4286 = vsel %vm4222, %v4214, 0.0
        %v4287 = vpack.c.bf16 %v4224, %v4223
        %v4288 = vpack.c.bf16 %v4226, %v4225
        %v4289 = vpack.c.bf16 %v4228, %v4227
        %v4290 = vpack.c.bf16 %v4230, %v4229
        %v4291 = vpack.c.bf16 %v4232, %v4231
        %v4292 = vpack.c.bf16 %v4234, %v4233
        %v4293 = vpack.c.bf16 %v4236, %v4235
        %v4294 = vpack.c.bf16 %v4238, %v4237
        %v4295 = vpack.c.bf16 %v4240, %v4239
        %v4296 = vpack.c.bf16 %v4242, %v4241
        %v4297 = vpack.c.bf16 %v4244, %v4243
        %v4298 = vpack.c.bf16 %v4246, %v4245
        %v4299 = vpack.c.bf16 %v4248, %v4247
        %v4300 = vpack.c.bf16 %v4250, %v4249
        %v4301 = vpack.c.bf16 %v4252, %v4251
        %v4302 = vpack.c.bf16 %v4254, %v4253
        %v4303 = vpack.c.bf16 %v4256, %v4255
        %v4304 = vpack.c.bf16 %v4258, %v4257
        %v4305 = vpack.c.bf16 %v4260, %v4259
        %v4306 = vpack.c.bf16 %v4262, %v4261
        %v4307 = vpack.c.bf16 %v4264, %v4263
        %v4308 = vpack.c.bf16 %v4266, %v4265
        %v4309 = vpack.c.bf16 %v4268, %v4267
        %v4310 = vpack.c.bf16 %v4270, %v4269
        %v4311 = vpack.c.bf16 %v4272, %v4271
        %v4312 = vpack.c.bf16 %v4274, %v4273
        %v4313 = vpack.c.bf16 %v4276, %v4275
        %v4314 = vpack.c.bf16 %v4278, %v4277
        %v4315 = vpack.c.bf16 %v4280, %v4279
        %v4316 = vpack.c.bf16 %v4282, %v4281
        %v4317 = vpack.c.bf16 %v4284, %v4283
        %v4318 = vpack.c.bf16 %v4286, %v4285
        %s4319 = scalar_lea.vmem [#allocation3], 48
        %4320 = vst [vmem:[%s4319 + $0x8] sm:$0xff] %v4287
        %4321 = vst [vmem:[%s4319 + $0x10] sm:$0xff] %v4288
        %4322 = vst [vmem:[%s4319 + $0x20] sm:$0xff] %v4289
        %4323 = vst [vmem:[%s4319 + $0x28] sm:$0xff] %v4290
        %4324 = vst [vmem:[%s4319 + $0x38] sm:$0xff] %v4291
        %4325 = vst [vmem:[%s4319 + $0x40] sm:$0xff] %v4292
        %4326 = vst [vmem:[%s4319 + $0x50] sm:$0xff] %v4293
        %4327 = vst [vmem:[%s4319 + $0x58] sm:$0xff] %v4294
        %4328 = vst [vmem:[%s4319 + $0x68] sm:$0xff] %v4295
        %4329 = vst [vmem:[%s4319 + $0x70] sm:$0xff] %v4296
        %4330 = vst [vmem:[%s4319 + $0x80] sm:$0xff] %v4297
        %4331 = vst [vmem:[%s4319 + $0x88] sm:$0xff] %v4298
        %4332 = vst [vmem:[%s4319 + $0x98] sm:$0xff] %v4299
        %4333 = vst [vmem:[%s4319 + $0xa0] sm:$0xff] %v4300
        %4334 = vst [vmem:[%s4319 + $0xb0] sm:$0xff] %v4301
        %4335 = vst [vmem:[%s4319 + $0xb8] sm:$0xff] %v4302
        %4336 = vst [vmem:[%s4319 + $0xc8] sm:$0xff] %v4303
        %4337 = vst [vmem:[%s4319 + $0xd0] sm:$0xff] %v4304
        %4338 = vst [vmem:[%s4319 + $0xe0] sm:$0xff] %v4305
        %4339 = vst [vmem:[%s4319 + $0xe8] sm:$0xff] %v4306
        %4340 = vst [vmem:[%s4319 + $0xf8] sm:$0xff] %v4307
        %4341 = vst [vmem:[%s4319 + $0x100] sm:$0xff] %v4308
        %4342 = vst [vmem:[%s4319 + $0x110] sm:$0xff] %v4309
        %4343 = vst [vmem:[%s4319 + $0x118] sm:$0xff] %v4310
        %4344 = vst [vmem:[%s4319 + $0x128] sm:$0xff] %v4311
        %4345 = vst [vmem:[%s4319 + $0x130] sm:$0xff] %v4312
        %4346 = vst [vmem:[%s4319 + $0x140] sm:$0xff] %v4313
        %4347 = vst [vmem:[%s4319 + $0x148] sm:$0xff] %v4314
        %4348 = vst [vmem:[%s4319 + $0x158] sm:$0xff] %v4315
        %4349 = vst [vmem:[%s4319 + $0x160] sm:$0xff] %v4316
        %4350 = vst [vmem:[%s4319 + $0x170] sm:$0xff] %v4317
        %4351 = vst [vmem:[%s4319 + $0x178] sm:$0xff] %v4318
        %v4352 = vld [vmem:[#allocation3] sm:$0xff]
        %v4353 = vld [vmem:[#allocation3 + $0x8] sm:$0xff]
        %v4354 = vld [vmem:[#allocation3 + $0x10] sm:$0xff]
        %v4355 = vld [vmem:[#allocation3 + $0x18] sm:$0xff]
        %v4356 = vld [vmem:[#allocation3 + $0x20] sm:$0xff]
        %v4357 = vld [vmem:[#allocation3 + $0x28] sm:$0xff]
        %v4358 = vld [vmem:[#allocation3 + $0x30] sm:$0xff]
        %v4359 = vld [vmem:[#allocation3 + $0x38] sm:$0xff]
        %v4360 = vld [vmem:[#allocation3 + $0x40] sm:$0xff]
        %v4361 = vld [vmem:[#allocation3 + $0x48] sm:$0xff]
        %v4362 = vld [vmem:[#allocation3 + $0x50] sm:$0xff]
        %v4363 = vld [vmem:[#allocation3 + $0x58] sm:$0xff]
        %v4364 = vld [vmem:[#allocation3 + $0x60] sm:$0xff]
        %v4365 = vld [vmem:[#allocation3 + $0x68] sm:$0xff]
        %v4366 = vld [vmem:[#allocation3 + $0x70] sm:$0xff]
        %v4367 = vld [vmem:[#allocation3 + $0x78] sm:$0xff]
        %v4368 = vld [vmem:[#allocation3 + $0x80] sm:$0xff]
        %v4369 = vld [vmem:[#allocation3 + $0x88] sm:$0xff]
        %v4370 = vld [vmem:[#allocation3 + $0x90] sm:$0xff]
        %v4371 = vld [vmem:[#allocation3 + $0x98] sm:$0xff]
        %v4372 = vld [vmem:[#allocation3 + $0xa0] sm:$0xff]
        %v4373 = vld [vmem:[#allocation3 + $0xa8] sm:$0xff]
        %v4374 = vld [vmem:[#allocation3 + $0xb0] sm:$0xff]
        %v4375 = vld [vmem:[#allocation3 + $0xb8] sm:$0xff]
        %v4376 = vld [vmem:[#allocation3 + $0xc0] sm:$0xff]
        %v4377 = vld [vmem:[#allocation3 + $0xc8] sm:$0xff]
        %v4378 = vld [vmem:[#allocation3 + $0xd0] sm:$0xff]
        %v4379 = vld [vmem:[#allocation3 + $0xd8] sm:$0xff]
        %v4380 = vld [vmem:[#allocation3 + $0xe0] sm:$0xff]
        %v4381 = vld [vmem:[#allocation3 + $0xe8] sm:$0xff]
        %v4382 = vld [vmem:[#allocation3 + $0xf0] sm:$0xff]
        %v4383 = vld [vmem:[#allocation3 + $0xf8] sm:$0xff]
        %v4384 = vld [vmem:[#allocation3 + $0x100] sm:$0xff]
        %v4385 = vld [vmem:[#allocation3 + $0x108] sm:$0xff]
        %v4386 = vld [vmem:[#allocation3 + $0x110] sm:$0xff]
        %v4387 = vld [vmem:[#allocation3 + $0x118] sm:$0xff]
        %v4388 = vld [vmem:[#allocation3 + $0x120] sm:$0xff]
        %v4389 = vld [vmem:[#allocation3 + $0x128] sm:$0xff]
        %v4390 = vld [vmem:[#allocation3 + $0x130] sm:$0xff]
        %v4391 = vld [vmem:[#allocation3 + $0x138] sm:$0xff]
        %v4392 = vld [vmem:[#allocation3 + $0x140] sm:$0xff]
        %v4393 = vld [vmem:[#allocation3 + $0x148] sm:$0xff]
        %v4394 = vld [vmem:[#allocation3 + $0x150] sm:$0xff]
        %v4395 = vld [vmem:[#allocation3 + $0x158] sm:$0xff]
        %v4396 = vld [vmem:[#allocation3 + $0x160] sm:$0xff]
        %v4397 = vld [vmem:[#allocation3 + $0x168] sm:$0xff]
        %v4398 = vld [vmem:[#allocation3 + $0x170] sm:$0xff]
        %v4399 = vld [vmem:[#allocation3 + $0x178] sm:$0xff]
        %v4400 = vld [vmem:[#allocation3 + $0x180] sm:$0xff]
        %v4401 = vld [vmem:[#allocation3 + $0x188] sm:$0xff]
        %v4402 = vld [vmem:[#allocation3 + $0x190] sm:$0xff]
        %v4403 = vld [vmem:[#allocation3 + $0x198] sm:$0xff]
        %v4404 = vld [vmem:[#allocation3 + $0x1a0] sm:$0xff]
        %v4405 = vld [vmem:[#allocation3 + $0x1a8] sm:$0xff]
        %v4406 = vld [vmem:[#allocation3 + $0x1b0] sm:$0xff]
        %v4407 = vld [vmem:[#allocation3 + $0x1b8] sm:$0xff]
        %v4408 = vld [vmem:[#allocation3 + $0x1c0] sm:$0xff]
        %v4409 = vld [vmem:[#allocation3 + $0x1c8] sm:$0xff]
        %v4410 = vld [vmem:[#allocation3 + $0x1d0] sm:$0xff]
        %v4411 = vld [vmem:[#allocation3 + $0x1d8] sm:$0xff]
        %v4412 = vld [vmem:[#allocation6] sm:$0xf]
        %v4413 = vld [vmem:[#allocation6 + $0x4] sm:$0xf]
        %v4414 = vld [vmem:[#allocation6 + $0x8] sm:$0xf]
        %v4415 = vld [vmem:[#allocation6 + $0xc] sm:$0xf]
        %v4416 = vld [vmem:[#allocation6 + $0x10] sm:$0xf]
        %v4417 = vld [vmem:[#allocation6 + $0x14] sm:$0xf]
        %v4418 = vld [vmem:[#allocation6 + $0x18] sm:$0xf]
        %v4419 = vld [vmem:[#allocation6 + $0x1c] sm:$0xf]
        %v4420 = vld [vmem:[#allocation6 + $0x20] sm:$0xf]
        %v4421 = vld [vmem:[#allocation6 + $0x24] sm:$0xf]
        %v4422 = vld [vmem:[#allocation6 + $0x28] sm:$0xf]
        %v4423 = vld [vmem:[#allocation6 + $0x2c] sm:$0xf]
        %v4424 = vld [vmem:[#allocation6 + $0x30] sm:$0xf]
        %v4425 = vld [vmem:[#allocation6 + $0x34] sm:$0xf]
        %v4426 = vld [vmem:[#allocation6 + $0x38] sm:$0xf]
        %v4427 = vld [vmem:[#allocation6 + $0x3c] sm:$0xf]
        %v4428 = vld [vmem:[#allocation6 + $0x40] sm:$0xf]
        %v4429 = vld [vmem:[#allocation6 + $0x44] sm:$0xf]
        %v4430 = vld [vmem:[#allocation6 + $0x48] sm:$0xf]
        %v4431 = vld [vmem:[#allocation6 + $0x4c] sm:$0xf]
        %v4432 = vld [vmem:[#allocation6 + $0x50] sm:$0xf]
        %v4433 = vld [vmem:[#allocation6 + $0x54] sm:$0xf]
        %v4434 = vld [vmem:[#allocation6 + $0x58] sm:$0xf]
        %v4435 = vld [vmem:[#allocation6 + $0x5c] sm:$0xf]
        %v4436 = vld [vmem:[#allocation6 + $0x60] sm:$0xf]
        %v4437 = vld [vmem:[#allocation6 + $0x64] sm:$0xf]
        %v4438 = vld [vmem:[#allocation6 + $0x68] sm:$0xf]
        %v4439 = vld [vmem:[#allocation6 + $0x6c] sm:$0xf]
        %v4440 = vld [vmem:[#allocation6 + $0x70] sm:$0xf]
        %v4441 = vld [vmem:[#allocation6 + $0x74] sm:$0xf]
        %v4442 = vld [vmem:[#allocation6 + $0x78] sm:$0xf]
        %v4443 = vld [vmem:[#allocation6 + $0x7c] sm:$0xf]
        %v4444 = vld [vmem:[#allocation6 + $0x80] sm:$0xf]
        %v4445 = vld [vmem:[#allocation6 + $0x84] sm:$0xf]
        %v4446 = vld [vmem:[#allocation6 + $0x88] sm:$0xf]
        %v4447 = vld [vmem:[#allocation6 + $0x8c] sm:$0xf]
        %v4448 = vld [vmem:[#allocation6 + $0x90] sm:$0xf]
        %v4449 = vld [vmem:[#allocation6 + $0x94] sm:$0xf]
        %v4450 = vld [vmem:[#allocation6 + $0x98] sm:$0xf]
        %v4451 = vld [vmem:[#allocation6 + $0x9c] sm:$0xf]
        %v4452 = vld [vmem:[#allocation6 + $0xa0] sm:$0xf]
        %v4453 = vld [vmem:[#allocation6 + $0xa4] sm:$0xf]
        %v4454 = vld [vmem:[#allocation6 + $0xa8] sm:$0xf]
        %v4455 = vld [vmem:[#allocation6 + $0xac] sm:$0xf]
        %v4456 = vld [vmem:[#allocation6 + $0xb0] sm:$0xf]
        %v4457 = vld [vmem:[#allocation6 + $0xb4] sm:$0xf]
        %v4458 = vld [vmem:[#allocation6 + $0xb8] sm:$0xf]
        %v4459 = vld [vmem:[#allocation6 + $0xbc] sm:$0xf]
        %v4508 = vunpack.c.l.b16 %v4412
        %v4509 = vunpack.c.l.b16 %v4413
        %v4510 = vunpack.c.l.b16 %v4414
        %v4511 = vunpack.c.l.b16 %v4415
        %v4512 = vunpack.c.l.b16 %v4416
        %v4513 = vunpack.c.l.b16 %v4417
        %v4514 = vunpack.c.l.b16 %v4418
        %v4515 = vunpack.c.l.b16 %v4419
        %v4516 = vunpack.c.l.b16 %v4420
        %v4517 = vunpack.c.l.b16 %v4421
        %v4518 = vunpack.c.l.b16 %v4422
        %v4519 = vunpack.c.l.b16 %v4423
        %v4520 = vunpack.c.l.b16 %v4424
        %v4521 = vunpack.c.l.b16 %v4425
        %v4522 = vunpack.c.l.b16 %v4426
        %v4523 = vunpack.c.l.b16 %v4427
        %v4524 = vunpack.c.l.b16 %v4428
        %v4525 = vunpack.c.l.b16 %v4429
        %v4526 = vunpack.c.l.b16 %v4430
        %v4527 = vunpack.c.l.b16 %v4431
        %v4528 = vunpack.c.l.b16 %v4432
        %v4529 = vunpack.c.l.b16 %v4433
        %v4530 = vunpack.c.l.b16 %v4434
        %v4531 = vunpack.c.l.b16 %v4435
        %v4532 = vunpack.c.l.b16 %v4436
        %v4533 = vunpack.c.l.b16 %v4437
        %v4534 = vunpack.c.l.b16 %v4438
        %v4535 = vunpack.c.l.b16 %v4439
        %v4536 = vunpack.c.l.b16 %v4440
        %v4537 = vunpack.c.l.b16 %v4441
        %v4538 = vunpack.c.l.b16 %v4442
        %v4539 = vunpack.c.l.b16 %v4443
        %v4540 = vunpack.c.l.b16 %v4444
        %v4541 = vunpack.c.l.b16 %v4445
        %v4542 = vunpack.c.l.b16 %v4446
        %v4543 = vunpack.c.l.b16 %v4447
        %v4544 = vunpack.c.l.b16 %v4448
        %v4545 = vunpack.c.l.b16 %v4449
        %v4546 = vunpack.c.l.b16 %v4450
        %v4547 = vunpack.c.l.b16 %v4451
        %v4548 = vunpack.c.l.b16 %v4452
        %v4549 = vunpack.c.l.b16 %v4453
        %v4550 = vunpack.c.l.b16 %v4454
        %v4551 = vunpack.c.l.b16 %v4455
        %v4552 = vunpack.c.l.b16 %v4456
        %v4553 = vunpack.c.l.b16 %v4457
        %v4554 = vunpack.c.l.b16 %v4458
        %v4555 = vunpack.c.l.b16 %v4459
        %v4556 = vpack.c.b16 %v4509, %v4508
        %v4557 = vpack.c.b16 %v4511, %v4510
        %v4558 = vpack.c.b16 %v4513, %v4512
        %v4559 = vpack.c.b16 %v4515, %v4514
        %v4560 = vpack.c.b16 %v4517, %v4516
        %v4561 = vpack.c.b16 %v4519, %v4518
        %v4562 = vpack.c.b16 %v4521, %v4520
        %v4563 = vpack.c.b16 %v4523, %v4522
        %v4564 = vpack.c.b16 %v4525, %v4524
        %v4565 = vpack.c.b16 %v4527, %v4526
        %v4566 = vpack.c.b16 %v4529, %v4528
        %v4567 = vpack.c.b16 %v4531, %v4530
        %v4568 = vpack.c.b16 %v4533, %v4532
        %v4569 = vpack.c.b16 %v4535, %v4534
        %v4570 = vpack.c.b16 %v4537, %v4536
        %v4571 = vpack.c.b16 %v4539, %v4538
        %v4572 = vpack.c.b16 %v4541, %v4540
        %v4573 = vpack.c.b16 %v4543, %v4542
        %v4574 = vpack.c.b16 %v4545, %v4544
        %v4575 = vpack.c.b16 %v4547, %v4546
        %v4576 = vpack.c.b16 %v4549, %v4548
        %v4577 = vpack.c.b16 %v4551, %v4550
        %v4578 = vpack.c.b16 %v4553, %v4552
        %v4579 = vpack.c.b16 %v4555, %v4554
        %4604 = vmatprep.subr.bf16.mxu0 0
        %4605 = vmatpush1.bf16.msra.mxu0 %v4556
        %4606 = vmatprep.subr.bf16.mxu0 0
        %4607 = vmatpush1.bf16.msra.mxu0 %v4557
        %4608 = vmatprep.subr.bf16.mxu0 0
        %4609 = vmatpush1.bf16.msra.mxu0 %v4558
        %4610 = vmatprep.subr.bf16.mxu0 0
        %4611 = vmatpush1.bf16.msra.mxu0 %v4559
        %4612 = vmatprep.subr.bf16.mxu0 0
        %4613 = vmatpush1.bf16.msra.mxu0 %v4560
        %4614 = vmatprep.subr.bf16.mxu0 0
        %4615 = vmatpush1.bf16.msra.mxu0 %v4561
        %4616 = vmatprep.subr.bf16.mxu0 0
        %4617 = vmatpush1.bf16.msra.mxu0 %v4562
        %4618 = vmatprep.subr.bf16.mxu0 0
        %4619 = vmatpush1.bf16.msra.mxu0 %v4563
        %4620 = vmatprep.subr.bf16.mxu0 0
        %4621 = vmatpush1.bf16.msra.mxu0 %v4564
        %4622 = vmatprep.subr.bf16.mxu0 0
        %4623 = vmatpush1.bf16.msra.mxu0 %v4565
        %4624 = vmatprep.subr.bf16.mxu0 0
        %4625 = vmatpush1.bf16.msra.mxu0 %v4566
        %4626 = vmatprep.subr.bf16.mxu0 0
        %4627 = vmatpush1.bf16.msra.mxu0 %v4567
        %4628 = vmatprep.subr.bf16.mxu0 0
        %4629 = vmatpush1.bf16.msra.mxu0 %v4568
        %4630 = vmatprep.subr.bf16.mxu0 0
        %4631 = vmatpush1.bf16.msra.mxu0 %v4569
        %4632 = vmatprep.subr.bf16.mxu0 0
        %4633 = vmatpush1.bf16.msra.mxu0 %v4570
        %4634 = vmatprep.subr.bf16.mxu0 0
        %4635 = vmatpush1.bf16.msra.mxu0 %v4571
        %4636 = vmatprep.mubr.bf16.mxu0 %v4358
        %4637 = vmatmul.mubr.bf16.gmra.mrb[0].mxu0 %v4352
        %v4638 = vpop.f32.mrb[0].mxu0
        %v4639 = vpop.f32.mrb[0].mxu0
        %v4640 = vpop.f32.mrb[0].mxu0
        %v4641 = vadd.f32 0.0, %v4640
        %v4642 = vpop.f32.mrb[0].mxu0
        %4643 = vmatprep.mubr.bf16.mxu0 %v4359
        %4644 = vmatmul.mubr.bf16.gmra.mrb[0].mxu0 %v4353
        %v4645 = vpop.f32.mrb[0].mxu0
        %v4646 = vadd.f32 0.0, %v4645
        %v4647 = vpop.f32.mrb[0].mxu0
        %v4648 = vpop.f32.mrb[0].mxu0
        %v4649 = vadd.f32 0.0, %v4648
        %v4650 = vpop.f32.mrb[0].mxu0
        %4651 = vmatprep.mubr.bf16.mxu0 %v4360
        %4652 = vmatmul.mubr.bf16.gmra.mrb[0].mxu0 %v4354
        %v4653 = vpop.f32.mrb[0].mxu0
        %v4654 = vpop.f32.mrb[0].mxu0
        %v4655 = vpop.f32.mrb[0].mxu0
        %v4656 = vpop.f32.mrb[0].mxu0
        %4657 = vmatprep.mubr.bf16.mxu0 %v4361
        %4658 = vmatmul.mubr.bf16.gmra.mrb[0].mxu0 %v4355
        %v4659 = vpop.f32.mrb[0].mxu0
        %v4660 = vpop.f32.mrb[0].mxu0
        %v4661 = vpop.f32.mrb[0].mxu0
        %v4662 = vadd.f32 0.0, %v4661
        %v4663 = vpop.f32.mrb[0].mxu0
        %4664 = vmatprep.mubr.bf16.mxu0 %v4362
        %4665 = vmatmul.mubr.bf16.gmra.mrb[0].mxu0 %v4356
        %v4666 = vpop.f32.mrb[0].mxu0
        %v4667 = vadd.f32 0.0, %v4666
        %v4668 = vpop.f32.mrb[0].mxu0
        %v4669 = vpop.f32.mrb[0].mxu0
        %v4670 = vadd.f32 0.0, %v4669
        %v4671 = vpop.f32.mrb[0].mxu0
        %4672 = vmatprep.mubr.bf16.mxu0 %v4363
        %4673 = vmatmul.mubr.bf16.gmra.mrb[0].mxu0 %v4357
        %v4674 = vpop.f32.mrb[0].mxu0
        %v4675 = vpop.f32.mrb[0].mxu0
        %v4676 = vpop.f32.mrb[0].mxu0
        %v4677 = vpop.f32.mrb[0].mxu0
        %4678 = vmatprep.mubr.bf16.mxu0 %v4364
        %4679 = vmatmul.mubr.bf16.gmra.mrb[0].mxu0 %v4358
        %v4680 = vpop.f32.mrb[0].mxu0
        %v4681 = vpop.f32.mrb[0].mxu0
        %v4682 = vpop.f32.mrb[0].mxu0
        %v4683 = vadd.f32 0.0, %v4682
        %v4684 = vpop.f32.mrb[0].mxu0
        %4685 = vmatprep.mubr.bf16.mxu0 %v4365
        %4686 = vmatmul.mubr.bf16.gmra.mrb[0].mxu0 %v4359
        %v4687 = vpop.f32.mrb[0].mxu0
        %v4688 = vadd.f32 0.0, %v4687
        %v4689 = vpop.f32.mrb[0].mxu0
        %v4690 = vpop.f32.mrb[0].mxu0
        %v4691 = vadd.f32 0.0, %v4690
        %v4692 = vpop.f32.mrb[0].mxu0
        %4693 = vmatprep.mubr.bf16.mxu0 %v4366
        %4694 = vmatmul.mubr.bf16.gmra.mrb[0].mxu0 %v4360
        %v4695 = vpop.f32.mrb[0].mxu0
        %v4696 = vpop.f32.mrb[0].mxu0
        %v4697 = vpop.f32.mrb[0].mxu0
        %v4698 = vpop.f32.mrb[0].mxu0
        %4699 = vmatprep.mubr.bf16.mxu0 %v4367
        %4700 = vmatmul.mubr.bf16.gmra.mrb[0].mxu0 %v4361
        %v4701 = vpop.f32.mrb[0].mxu0
        %v4702 = vpop.f32.mrb[0].mxu0
        %v4703 = vpop.f32.mrb[0].mxu0
        %v4704 = vadd.f32 0.0, %v4703
        %v4705 = vpop.f32.mrb[0].mxu0
        %4706 = vmatprep.mubr.bf16.mxu0 %v4368
        %4707 = vmatmul.mubr.bf16.gmra.mrb[0].mxu0 %v4362
        %v4708 = vpop.f32.mrb[0].mxu0
        %v4709 = vadd.f32 0.0, %v4708
        %v4710 = vpop.f32.mrb[0].mxu0
        %v4711 = vpop.f32.mrb[0].mxu0
        %v4712 = vadd.f32 0.0, %v4711
        %v4713 = vpop.f32.mrb[0].mxu0
        %4714 = vmatprep.mubr.bf16.mxu0 %v4369
        %4715 = vmatmul.mubr.bf16.gmra.mrb[0].mxu0 %v4363
        %v4716 = vpop.f32.mrb[0].mxu0
        %v4717 = vpop.f32.mrb[0].mxu0
        %v4718 = vpop.f32.mrb[0].mxu0
        %v4719 = vpop.f32.mrb[0].mxu0
        %4720 = vmatprep.mubr.bf16.mxu0 %v4370
        %4721 = vmatmul.mubr.bf16.gmra.mrb[0].mxu0 %v4364
        %v4722 = vpop.f32.mrb[0].mxu0
        %v4723 = vpop.f32.mrb[0].mxu0
        %v4724 = vpop.f32.mrb[0].mxu0
        %v4725 = vadd.f32 0.0, %v4724
        %v4726 = vpop.f32.mrb[0].mxu0
        %4727 = vmatprep.mubr.bf16.mxu0 %v4371
        %4728 = vmatmul.mubr.bf16.gmra.mrb[0].mxu0 %v4365
        %v4729 = vpop.f32.mrb[0].mxu0
        %v4730 = vadd.f32 0.0, %v4729
        %v4731 = vpop.f32.mrb[0].mxu0
        %v4732 = vpop.f32.mrb[0].mxu0
        %v4733 = vadd.f32 0.0, %v4732
        %v4734 = vpop.f32.mrb[0].mxu0
        %4735 = vmatprep.mubr.bf16.mxu0 %v4372
        %4736 = vmatmul.mubr.bf16.gmra.mrb[0].mxu0 %v4366
        %v4737 = vpop.f32.mrb[0].mxu0
        %v4738 = vpop.f32.mrb[0].mxu0
        %v4739 = vpop.f32.mrb[0].mxu0
        %v4740 = vpop.f32.mrb[0].mxu0
        %4741 = vmatprep.mubr.bf16.mxu0 %v4373
        %4742 = vmatmul.mubr.bf16.gmra.mrb[0].mxu0 %v4367
        %v4743 = vpop.f32.mrb[0].mxu0
        %v4744 = vpop.f32.mrb[0].mxu0
        %v4745 = vpop.f32.mrb[0].mxu0
        %v4746 = vadd.f32 0.0, %v4745
        %v4747 = vpop.f32.mrb[0].mxu0
        %4748 = vmatprep.mubr.bf16.mxu0 %v4374
        %4749 = vmatmul.mubr.bf16.gmra.mrb[0].mxu0 %v4368
        %v4750 = vpop.f32.mrb[0].mxu0
        %v4751 = vadd.f32 0.0, %v4750
        %v4752 = vpop.f32.mrb[0].mxu0
        %v4753 = vpop.f32.mrb[0].mxu0
        %v4754 = vadd.f32 0.0, %v4753
        %v4755 = vpop.f32.mrb[0].mxu0
        %4756 = vmatprep.mubr.bf16.mxu0 %v4375
        %4757 = vmatmul.mubr.bf16.gmra.mrb[0].mxu0 %v4369
        %v4758 = vpop.f32.mrb[0].mxu0
        %v4759 = vpop.f32.mrb[0].mxu0
        %v4760 = vpop.f32.mrb[0].mxu0
        %v4761 = vpop.f32.mrb[0].mxu0
        %4762 = vmatprep.mubr.bf16.mxu0 %v4376
        %4763 = vmatmul.mubr.bf16.gmra.mrb[0].mxu0 %v4370
        %v4764 = vpop.f32.mrb[0].mxu0
        %v4765 = vpop.f32.mrb[0].mxu0
        %v4766 = vpop.f32.mrb[0].mxu0
        %v4767 = vadd.f32 0.0, %v4766
        %v4768 = vpop.f32.mrb[0].mxu0
        %4769 = vmatprep.mubr.bf16.mxu0 %v4377
        %4770 = vmatmul.mubr.bf16.gmra.mrb[0].mxu0 %v4371
        %v4771 = vpop.f32.mrb[0].mxu0
        %v4772 = vadd.f32 0.0, %v4771
        %v4773 = vpop.f32.mrb[0].mxu0
        %v4774 = vpop.f32.mrb[0].mxu0
        %v4775 = vadd.f32 0.0, %v4774
        %v4776 = vpop.f32.mrb[0].mxu0
        %4777 = vmatprep.mubr.bf16.mxu0 %v4378
        %4778 = vmatmul.mubr.bf16.gmra.mrb[0].mxu0 %v4372
        %v4779 = vpop.f32.mrb[0].mxu0
        %v4780 = vpop.f32.mrb[0].mxu0
        %v4781 = vpop.f32.mrb[0].mxu0
        %v4782 = vpop.f32.mrb[0].mxu0
        %4783 = vmatprep.mubr.bf16.mxu0 %v4379
        %4784 = vmatmul.mubr.bf16.gmra.mrb[0].mxu0 %v4373
        %v4785 = vpop.f32.mrb[0].mxu0
        %v4786 = vpop.f32.mrb[0].mxu0
        %v4787 = vpop.f32.mrb[0].mxu0
        %v4788 = vadd.f32 0.0, %v4787
        %v4789 = vpop.f32.mrb[0].mxu0
        %4790 = vmatprep.mubr.bf16.mxu0 %v4380
        %4791 = vmatmul.mubr.bf16.gmra.mrb[0].mxu0 %v4374
        %v4792 = vpop.f32.mrb[0].mxu0
        %v4793 = vadd.f32 0.0, %v4792
        %v4794 = vpop.f32.mrb[0].mxu0
        %v4795 = vpop.f32.mrb[0].mxu0
        %v4796 = vadd.f32 0.0, %v4795
        %v4797 = vpop.f32.mrb[0].mxu0
        %4798 = vmatprep.mubr.bf16.mxu0 %v4381
        %4799 = vmatmul.mubr.bf16.gmra.mrb[0].mxu0 %v4375
        %v4800 = vpop.f32.mrb[0].mxu0
        %v4801 = vpop.f32.mrb[0].mxu0
        %v4802 = vpop.f32.mrb[0].mxu0
        %v4803 = vpop.f32.mrb[0].mxu0
        %4804 = vmatprep.mubr.bf16.mxu0 %v4382
        %4805 = vmatmul.mubr.bf16.gmra.mrb[0].mxu0 %v4376
        %v4806 = vpop.f32.mrb[0].mxu0
        %v4807 = vpop.f32.mrb[0].mxu0
        %v4808 = vpop.f32.mrb[0].mxu0
        %v4809 = vadd.f32 0.0, %v4808
        %v4810 = vpop.f32.mrb[0].mxu0
        %4811 = vmatprep.mubr.bf16.mxu0 %v4383
        %4812 = vmatmul.mubr.bf16.gmra.mrb[0].mxu0 %v4377
        %v4813 = vpop.f32.mrb[0].mxu0
        %v4814 = vadd.f32 0.0, %v4813
        %v4815 = vpop.f32.mrb[0].mxu0
        %v4816 = vpop.f32.mrb[0].mxu0
        %v4817 = vadd.f32 0.0, %v4816
        %v4818 = vpop.f32.mrb[0].mxu0
        %4819 = vmatprep.mubr.bf16.mxu0 %v4384
        %4820 = vmatmul.mubr.bf16.gmra.mrb[0].mxu0 %v4378
        %v4821 = vpop.f32.mrb[0].mxu0
        %v4822 = vpop.f32.mrb[0].mxu0
        %v4823 = vpop.f32.mrb[0].mxu0
        %v4824 = vpop.f32.mrb[0].mxu0
        %4825 = vmatprep.mubr.bf16.mxu0 %v4385
        %4826 = vmatmul.mubr.bf16.gmra.mrb[0].mxu0 %v4379
        %v4827 = vpop.f32.mrb[0].mxu0
        %v4828 = vpop.f32.mrb[0].mxu0
        %v4829 = vpop.f32.mrb[0].mxu0
        %v4830 = vadd.f32 0.0, %v4829
        %v4831 = vpop.f32.mrb[0].mxu0
        %4832 = vmatprep.mubr.bf16.mxu0 %v4386
        %4833 = vmatmul.mubr.bf16.gmra.mrb[0].mxu0 %v4380
        %v4834 = vpop.f32.mrb[0].mxu0
        %v4835 = vadd.f32 0.0, %v4834
        %v4836 = vpop.f32.mrb[0].mxu0
        %v4837 = vpop.f32.mrb[0].mxu0
        %v4838 = vadd.f32 0.0, %v4837
        %v4839 = vpop.f32.mrb[0].mxu0
        %4840 = vmatprep.mubr.bf16.mxu0 %v4387
        %4841 = vmatmul.mubr.bf16.gmra.mrb[0].mxu0 %v4381
        %v4842 = vpop.f32.mrb[0].mxu0
        %v4843 = vpop.f32.mrb[0].mxu0
        %v4844 = vpop.f32.mrb[0].mxu0
        %v4845 = vpop.f32.mrb[0].mxu0
        %4846 = vmatprep.mubr.bf16.mxu0 %v4388
        %4847 = vmatmul.mubr.bf16.gmra.mrb[0].mxu0 %v4382
        %v4848 = vpop.f32.mrb[0].mxu0
        %v4849 = vpop.f32.mrb[0].mxu0
        %v4850 = vpop.f32.mrb[0].mxu0
        %v4851 = vadd.f32 0.0, %v4850
        %v4852 = vpop.f32.mrb[0].mxu0
        %4853 = vmatprep.mubr.bf16.mxu0 %v4389
        %4854 = vmatmul.mubr.bf16.gmra.mrb[0].mxu0 %v4383
        %v4855 = vpop.f32.mrb[0].mxu0
        %v4856 = vadd.f32 0.0, %v4855
        %v4857 = vpop.f32.mrb[0].mxu0
        %v4858 = vpop.f32.mrb[0].mxu0
        %v4859 = vadd.f32 0.0, %v4858
        %v4860 = vpop.f32.mrb[0].mxu0
        %4861 = vmatprep.mubr.bf16.mxu0 %v4390
        %4862 = vmatmul.mubr.bf16.gmra.mrb[0].mxu0 %v4384
        %v4863 = vpop.f32.mrb[0].mxu0
        %v4864 = vpop.f32.mrb[0].mxu0
        %v4865 = vpop.f32.mrb[0].mxu0
        %v4866 = vpop.f32.mrb[0].mxu0
        %4867 = vmatprep.mubr.bf16.mxu0 %v4391
        %4868 = vmatmul.mubr.bf16.gmra.mrb[0].mxu0 %v4385
        %v4869 = vpop.f32.mrb[0].mxu0
        %v4870 = vpop.f32.mrb[0].mxu0
        %v4871 = vpop.f32.mrb[0].mxu0
        %v4872 = vadd.f32 0.0, %v4871
        %v4873 = vpop.f32.mrb[0].mxu0
        %4874 = vmatprep.mubr.bf16.mxu0 %v4392
        %4875 = vmatmul.mubr.bf16.gmra.mrb[0].mxu0 %v4386
        %v4876 = vpop.f32.mrb[0].mxu0
        %v4877 = vadd.f32 0.0, %v4876
        %v4878 = vpop.f32.mrb[0].mxu0
        %v4879 = vpop.f32.mrb[0].mxu0
        %v4880 = vadd.f32 0.0, %v4879
        %v4881 = vpop.f32.mrb[0].mxu0
        %4882 = vmatprep.mubr.bf16.mxu0 %v4393
        %4883 = vmatmul.mubr.bf16.gmra.mrb[0].mxu0 %v4387
        %v4884 = vpop.f32.mrb[0].mxu0
        %v4885 = vpop.f32.mrb[0].mxu0
        %v4886 = vpop.f32.mrb[0].mxu0
        %v4887 = vpop.f32.mrb[0].mxu0
        %4888 = vmatprep.mubr.bf16.mxu0 %v4394
        %4889 = vmatmul.mubr.bf16.gmra.mrb[0].mxu0 %v4388
        %v4890 = vpop.f32.mrb[0].mxu0
        %v4891 = vpop.f32.mrb[0].mxu0
        %v4892 = vpop.f32.mrb[0].mxu0
        %v4893 = vadd.f32 0.0, %v4892
        %v4894 = vpop.f32.mrb[0].mxu0
        %4895 = vmatprep.mubr.bf16.mxu0 %v4395
        %4896 = vmatmul.mubr.bf16.gmra.mrb[0].mxu0 %v4389
        %v4897 = vpop.f32.mrb[0].mxu0
        %v4898 = vadd.f32 0.0, %v4897
        %v4899 = vpop.f32.mrb[0].mxu0
        %v4900 = vpop.f32.mrb[0].mxu0
        %v4901 = vadd.f32 0.0, %v4900
        %v4902 = vpop.f32.mrb[0].mxu0
        %4903 = vmatprep.mubr.bf16.mxu0 %v4396
        %4904 = vmatmul.mubr.bf16.gmra.mrb[0].mxu0 %v4390
        %v4905 = vpop.f32.mrb[0].mxu0
        %v4906 = vpop.f32.mrb[0].mxu0
        %v4907 = vpop.f32.mrb[0].mxu0
        %v4908 = vpop.f32.mrb[0].mxu0
        %4909 = vmatprep.mubr.bf16.mxu0 %v4397
        %4910 = vmatmul.mubr.bf16.gmra.mrb[0].mxu0 %v4391
        %v4911 = vpop.f32.mrb[0].mxu0
        %v4912 = vpop.f32.mrb[0].mxu0
        %v4913 = vpop.f32.mrb[0].mxu0
        %v4914 = vadd.f32 0.0, %v4913
        %v4915 = vpop.f32.mrb[0].mxu0
        %4916 = vmatprep.mubr.bf16.mxu0 %v4398
        %4917 = vmatmul.mubr.bf16.gmra.mrb[0].mxu0 %v4392
        %v4918 = vpop.f32.mrb[0].mxu0
        %v4919 = vadd.f32 0.0, %v4918
        %v4920 = vpop.f32.mrb[0].mxu0
        %v4921 = vpop.f32.mrb[0].mxu0
        %v4922 = vadd.f32 0.0, %v4921
        %v4923 = vpop.f32.mrb[0].mxu0
        %4924 = vmatprep.mubr.bf16.mxu0 %v4399
        %4925 = vmatmul.mubr.bf16.gmra.mrb[0].mxu0 %v4393
        %v4926 = vpop.f32.mrb[0].mxu0
        %v4927 = vpop.f32.mrb[0].mxu0
        %v4928 = vpop.f32.mrb[0].mxu0
        %v4929 = vpop.f32.mrb[0].mxu0
        %4930 = vmatprep.mubr.bf16.mxu0 %v4400
        %4931 = vmatmul.mubr.bf16.gmra.mrb[0].mxu0 %v4394
        %v4932 = vpop.f32.mrb[0].mxu0
        %v4933 = vpop.f32.mrb[0].mxu0
        %v4934 = vpop.f32.mrb[0].mxu0
        %v4935 = vadd.f32 0.0, %v4934
        %v4936 = vpop.f32.mrb[0].mxu0
        %4937 = vmatprep.mubr.bf16.mxu0 %v4401
        %4938 = vmatmul.mubr.bf16.gmra.mrb[0].mxu0 %v4395
        %v4939 = vpop.f32.mrb[0].mxu0
        %v4940 = vadd.f32 0.0, %v4939
        %v4941 = vpop.f32.mrb[0].mxu0
        %v4942 = vpop.f32.mrb[0].mxu0
        %v4943 = vadd.f32 0.0, %v4942
        %v4944 = vpop.f32.mrb[0].mxu0
        %4945 = vmatprep.mubr.bf16.mxu0 %v4402
        %4946 = vmatmul.mubr.bf16.gmra.mrb[0].mxu0 %v4396
        %v4947 = vpop.f32.mrb[0].mxu0
        %v4948 = vpop.f32.mrb[0].mxu0
        %v4949 = vpop.f32.mrb[0].mxu0
        %v4950 = vpop.f32.mrb[0].mxu0
        %4951 = vmatprep.mubr.bf16.mxu0 %v4403
        %4952 = vmatmul.mubr.bf16.gmra.mrb[0].mxu0 %v4397
        %v4953 = vpop.f32.mrb[0].mxu0
        %v4954 = vpop.f32.mrb[0].mxu0
        %v4955 = vpop.f32.mrb[0].mxu0
        %v4956 = vadd.f32 0.0, %v4955
        %v4957 = vpop.f32.mrb[0].mxu0
        %4958 = vmatprep.mubr.bf16.mxu0 %v4404
        %4959 = vmatmul.mubr.bf16.gmra.mrb[0].mxu0 %v4398
        %v4960 = vpop.f32.mrb[0].mxu0
        %v4961 = vadd.f32 0.0, %v4960
        %v4962 = vpop.f32.mrb[0].mxu0
        %v4963 = vpop.f32.mrb[0].mxu0
        %v4964 = vadd.f32 0.0, %v4963
        %v4965 = vpop.f32.mrb[0].mxu0
        %4966 = vmatprep.mubr.bf16.mxu0 %v4405
        %4967 = vmatmul.mubr.bf16.gmra.mrb[0].mxu0 %v4399
        %v4968 = vpop.f32.mrb[0].mxu0
        %v4969 = vpop.f32.mrb[0].mxu0
        %v4970 = vpop.f32.mrb[0].mxu0
        %v4971 = vpop.f32.mrb[0].mxu0
        %4972 = vdwg.mxu0
        %4973 = vmatprep.subr.bf16.mxu0 0
        %4974 = vmatpush1.bf16.msra.mxu0 %v4572
        %4975 = vmatprep.subr.bf16.mxu0 0
        %4976 = vmatpush1.bf16.msra.mxu0 %v4573
        %4977 = vmatprep.subr.bf16.mxu0 0
        %4978 = vmatpush1.bf16.msra.mxu0 %v4574
        %4979 = vmatprep.subr.bf16.mxu0 0
        %4980 = vmatpush1.bf16.msra.mxu0 %v4575
        %4981 = vmatprep.subr.bf16.mxu0 0
        %4982 = vmatpush1.bf16.msra.mxu0 %v4576
        %4983 = vmatprep.subr.bf16.mxu0 0
        %4984 = vmatpush1.bf16.msra.mxu0 %v4577
        %4985 = vmatprep.subr.bf16.mxu0 0
        %4986 = vmatpush1.bf16.msra.mxu0 %v4578
        %4987 = vmatprep.subr.bf16.mxu0 0
        %4988 = vmatpush1.bf16.msra.mxu0 %v4579
        %4989 = vmatprep.subr.bf16.mxu0 0
        %4990 = vmatpush1.bf16.msra.mxu0 0
        %4991 = vmatprep.subr.bf16.mxu0 0
        %4992 = vmatpush1.bf16.msra.mxu0 0
        %4993 = vmatprep.subr.bf16.mxu0 0
        %4994 = vmatpush1.bf16.msra.mxu0 0
        %4995 = vmatprep.subr.bf16.mxu0 0
        %4996 = vmatpush1.bf16.msra.mxu0 0
        %4997 = vmatprep.subr.bf16.mxu0 0
        %4998 = vmatpush1.bf16.msra.mxu0 0
        %4999 = vmatprep.subr.bf16.mxu0 0
        %5000 = vmatpush1.bf16.msra.mxu0 0
        %5001 = vmatprep.subr.bf16.mxu0 0
        %5002 = vmatpush1.bf16.msra.mxu0 0
        %5003 = vmatprep.subr.bf16.mxu0 0
        %5004 = vmatpush1.bf16.msra.mxu0 0
        %5005 = vmatprep.mubr.bf16.mxu0 0
        %5006 = vmatmul.mubr.bf16.gmra.mrb[0].mxu0 %v4364
        %v5007 = vpop.f32.mrb[0].mxu0
        %v5008 = vpop.f32.mrb[0].mxu0
        %v5009 = vpop.f32.mrb[0].mxu0
        %v5010 = vadd.f32 %v4641, %v5009
        %v5011 = vpop.f32.mrb[0].mxu0
        %5012 = vmatprep.mubr.bf16.mxu0 0
        %5013 = vmatmul.mubr.bf16.gmra.mrb[0].mxu0 %v4365
        %v5014 = vpop.f32.mrb[0].mxu0
        %v5015 = vadd.f32 %v4646, %v5014
        %v5016 = vpop.f32.mrb[0].mxu0
        %v5017 = vpop.f32.mrb[0].mxu0
        %v5018 = vadd.f32 %v4649, %v5017
        %v5019 = vpop.f32.mrb[0].mxu0
        %5020 = vmatprep.mubr.bf16.mxu0 0
        %5021 = vmatmul.mubr.bf16.gmra.mrb[0].mxu0 %v4366
        %v5022 = vpop.f32.mrb[0].mxu0
        %v5023 = vpop.f32.mrb[0].mxu0
        %v5024 = vpop.f32.mrb[0].mxu0
        %v5025 = vpop.f32.mrb[0].mxu0
        %5026 = vmatprep.mubr.bf16.mxu0 0
        %5027 = vmatmul.mubr.bf16.gmra.mrb[0].mxu0 %v4367
        %v5028 = vpop.f32.mrb[0].mxu0
        %v5029 = vpop.f32.mrb[0].mxu0
        %v5030 = vpop.f32.mrb[0].mxu0
        %v5031 = vadd.f32 %v4662, %v5030
        %v5032 = vpop.f32.mrb[0].mxu0
        %5033 = vmatprep.mubr.bf16.mxu0 0
        %5034 = vmatmul.mubr.bf16.gmra.mrb[0].mxu0 %v4368
        %v5035 = vpop.f32.mrb[0].mxu0
        %v5036 = vadd.f32 %v4667, %v5035
        %v5037 = vpop.f32.mrb[0].mxu0
        %v5038 = vpop.f32.mrb[0].mxu0
        %v5039 = vadd.f32 %v4670, %v5038
        %v5040 = vpop.f32.mrb[0].mxu0
        %5041 = vmatprep.mubr.bf16.mxu0 0
        %5042 = vmatmul.mubr.bf16.gmra.mrb[0].mxu0 %v4369
        %v5043 = vpop.f32.mrb[0].mxu0
        %v5044 = vpop.f32.mrb[0].mxu0
        %v5045 = vpop.f32.mrb[0].mxu0
        %v5046 = vpop.f32.mrb[0].mxu0
        %5047 = vmatprep.mubr.bf16.mxu0 0
        %5048 = vmatmul.mubr.bf16.gmra.mrb[0].mxu0 %v4370
        %v5049 = vpop.f32.mrb[0].mxu0
        %v5050 = vpop.f32.mrb[0].mxu0
        %v5051 = vpop.f32.mrb[0].mxu0
        %v5052 = vadd.f32 %v4683, %v5051
        %v5053 = vpop.f32.mrb[0].mxu0
        %5054 = vmatprep.mubr.bf16.mxu0 0
        %5055 = vmatmul.mubr.bf16.gmra.mrb[0].mxu0 %v4371
        %v5056 = vpop.f32.mrb[0].mxu0
        %v5057 = vadd.f32 %v4688, %v5056
        %v5058 = vpop.f32.mrb[0].mxu0
        %v5059 = vpop.f32.mrb[0].mxu0
        %v5060 = vadd.f32 %v4691, %v5059
        %v5061 = vpop.f32.mrb[0].mxu0
        %5062 = vmatprep.mubr.bf16.mxu0 0
        %5063 = vmatmul.mubr.bf16.gmra.mrb[0].mxu0 %v4372
        %v5064 = vpop.f32.mrb[0].mxu0
        %v5065 = vpop.f32.mrb[0].mxu0
        %v5066 = vpop.f32.mrb[0].mxu0
        %v5067 = vpop.f32.mrb[0].mxu0
        %5068 = vmatprep.mubr.bf16.mxu0 0
        %5069 = vmatmul.mubr.bf16.gmra.mrb[0].mxu0 %v4373
        %v5070 = vpop.f32.mrb[0].mxu0
        %v5071 = vpop.f32.mrb[0].mxu0
        %v5072 = vpop.f32.mrb[0].mxu0
        %v5073 = vadd.f32 %v4704, %v5072
        %v5074 = vpop.f32.mrb[0].mxu0
        %5075 = vmatprep.mubr.bf16.mxu0 0
        %5076 = vmatmul.mubr.bf16.gmra.mrb[0].mxu0 %v4374
        %v5077 = vpop.f32.mrb[0].mxu0
        %v5078 = vadd.f32 %v4709, %v5077
        %v5079 = vpop.f32.mrb[0].mxu0
        %v5080 = vpop.f32.mrb[0].mxu0
        %v5081 = vadd.f32 %v4712, %v5080
        %v5082 = vpop.f32.mrb[0].mxu0
        %5083 = vmatprep.mubr.bf16.mxu0 0
        %5084 = vmatmul.mubr.bf16.gmra.mrb[0].mxu0 %v4375
        %v5085 = vpop.f32.mrb[0].mxu0
        %v5086 = vpop.f32.mrb[0].mxu0
        %v5087 = vpop.f32.mrb[0].mxu0
        %v5088 = vpop.f32.mrb[0].mxu0
        %5089 = vmatprep.mubr.bf16.mxu0 0
        %5090 = vmatmul.mubr.bf16.gmra.mrb[0].mxu0 %v4376
        %v5091 = vpop.f32.mrb[0].mxu0
        %v5092 = vpop.f32.mrb[0].mxu0
        %v5093 = vpop.f32.mrb[0].mxu0
        %v5094 = vadd.f32 %v4725, %v5093
        %v5095 = vpop.f32.mrb[0].mxu0
        %5096 = vmatprep.mubr.bf16.mxu0 0
        %5097 = vmatmul.mubr.bf16.gmra.mrb[0].mxu0 %v4377
        %v5098 = vpop.f32.mrb[0].mxu0
        %v5099 = vadd.f32 %v4730, %v5098
        %v5100 = vpop.f32.mrb[0].mxu0
        %v5101 = vpop.f32.mrb[0].mxu0
        %v5102 = vadd.f32 %v4733, %v5101
        %v5103 = vpop.f32.mrb[0].mxu0
        %5104 = vmatprep.mubr.bf16.mxu0 0
        %5105 = vmatmul.mubr.bf16.gmra.mrb[0].mxu0 %v4378
        %v5106 = vpop.f32.mrb[0].mxu0
        %v5107 = vpop.f32.mrb[0].mxu0
        %v5108 = vpop.f32.mrb[0].mxu0
        %v5109 = vpop.f32.mrb[0].mxu0
        %5110 = vmatprep.mubr.bf16.mxu0 0
        %5111 = vmatmul.mubr.bf16.gmra.mrb[0].mxu0 %v4379
        %v5112 = vpop.f32.mrb[0].mxu0
        %v5113 = vpop.f32.mrb[0].mxu0
        %v5114 = vpop.f32.mrb[0].mxu0
        %v5115 = vadd.f32 %v4746, %v5114
        %v5116 = vpop.f32.mrb[0].mxu0
        %5117 = vmatprep.mubr.bf16.mxu0 0
        %5118 = vmatmul.mubr.bf16.gmra.mrb[0].mxu0 %v4380
        %v5119 = vpop.f32.mrb[0].mxu0
        %v5120 = vadd.f32 %v4751, %v5119
        %v5121 = vpop.f32.mrb[0].mxu0
        %v5122 = vpop.f32.mrb[0].mxu0
        %v5123 = vadd.f32 %v4754, %v5122
        %v5124 = vpop.f32.mrb[0].mxu0
        %5125 = vmatprep.mubr.bf16.mxu0 0
        %5126 = vmatmul.mubr.bf16.gmra.mrb[0].mxu0 %v4381
        %v5127 = vpop.f32.mrb[0].mxu0
        %v5128 = vpop.f32.mrb[0].mxu0
        %v5129 = vpop.f32.mrb[0].mxu0
        %v5130 = vpop.f32.mrb[0].mxu0
        %5131 = vmatprep.mubr.bf16.mxu0 0
        %5132 = vmatmul.mubr.bf16.gmra.mrb[0].mxu0 %v4382
        %v5133 = vpop.f32.mrb[0].mxu0
        %v5134 = vpop.f32.mrb[0].mxu0
        %v5135 = vpop.f32.mrb[0].mxu0
        %v5136 = vadd.f32 %v4767, %v5135
        %v5137 = vpop.f32.mrb[0].mxu0
        %5138 = vmatprep.mubr.bf16.mxu0 0
        %5139 = vmatmul.mubr.bf16.gmra.mrb[0].mxu0 %v4383
        %v5140 = vpop.f32.mrb[0].mxu0
        %v5141 = vadd.f32 %v4772, %v5140
        %v5142 = vpop.f32.mrb[0].mxu0
        %v5143 = vpop.f32.mrb[0].mxu0
        %v5144 = vadd.f32 %v4775, %v5143
        %v5145 = vpop.f32.mrb[0].mxu0
        %5146 = vmatprep.mubr.bf16.mxu0 0
        %5147 = vmatmul.mubr.bf16.gmra.mrb[0].mxu0 %v4384
        %v5148 = vpop.f32.mrb[0].mxu0
        %v5149 = vpop.f32.mrb[0].mxu0
        %v5150 = vpop.f32.mrb[0].mxu0
        %v5151 = vpop.f32.mrb[0].mxu0
        %5152 = vmatprep.mubr.bf16.mxu0 0
        %5153 = vmatmul.mubr.bf16.gmra.mrb[0].mxu0 %v4385
        %v5154 = vpop.f32.mrb[0].mxu0
        %v5155 = vpop.f32.mrb[0].mxu0
        %v5156 = vpop.f32.mrb[0].mxu0
        %v5157 = vadd.f32 %v4788, %v5156
        %v5158 = vpop.f32.mrb[0].mxu0
        %5159 = vmatprep.mubr.bf16.mxu0 0
        %5160 = vmatmul.mubr.bf16.gmra.mrb[0].mxu0 %v4386
        %v5161 = vpop.f32.mrb[0].mxu0
        %v5162 = vadd.f32 %v4793, %v5161
        %v5163 = vpop.f32.mrb[0].mxu0
        %v5164 = vpop.f32.mrb[0].mxu0
        %v5165 = vadd.f32 %v4796, %v5164
        %v5166 = vpop.f32.mrb[0].mxu0
        %5167 = vmatprep.mubr.bf16.mxu0 0
        %5168 = vmatmul.mubr.bf16.gmra.mrb[0].mxu0 %v4387
        %v5169 = vpop.f32.mrb[0].mxu0
        %v5170 = vpop.f32.mrb[0].mxu0
        %v5171 = vpop.f32.mrb[0].mxu0
        %v5172 = vpop.f32.mrb[0].mxu0
        %5173 = vmatprep.mubr.bf16.mxu0 0
        %5174 = vmatmul.mubr.bf16.gmra.mrb[0].mxu0 %v4388
        %v5175 = vpop.f32.mrb[0].mxu0
        %v5176 = vpop.f32.mrb[0].mxu0
        %v5177 = vpop.f32.mrb[0].mxu0
        %v5178 = vadd.f32 %v4809, %v5177
        %v5179 = vpop.f32.mrb[0].mxu0
        %5180 = vmatprep.mubr.bf16.mxu0 0
        %5181 = vmatmul.mubr.bf16.gmra.mrb[0].mxu0 %v4389
        %v5182 = vpop.f32.mrb[0].mxu0
        %v5183 = vadd.f32 %v4814, %v5182
        %v5184 = vpop.f32.mrb[0].mxu0
        %v5185 = vpop.f32.mrb[0].mxu0
        %v5186 = vadd.f32 %v4817, %v5185
        %v5187 = vpop.f32.mrb[0].mxu0
        %5188 = vmatprep.mubr.bf16.mxu0 0
        %5189 = vmatmul.mubr.bf16.gmra.mrb[0].mxu0 %v4390
        %v5190 = vpop.f32.mrb[0].mxu0
        %v5191 = vpop.f32.mrb[0].mxu0
        %v5192 = vpop.f32.mrb[0].mxu0
        %v5193 = vpop.f32.mrb[0].mxu0
        %5194 = vmatprep.mubr.bf16.mxu0 0
        %5195 = vmatmul.mubr.bf16.gmra.mrb[0].mxu0 %v4391
        %v5196 = vpop.f32.mrb[0].mxu0
        %v5197 = vpop.f32.mrb[0].mxu0
        %v5198 = vpop.f32.mrb[0].mxu0
        %v5199 = vadd.f32 %v4830, %v5198
        %v5200 = vpop.f32.mrb[0].mxu0
        %5201 = vmatprep.mubr.bf16.mxu0 0
        %5202 = vmatmul.mubr.bf16.gmra.mrb[0].mxu0 %v4392
        %v5203 = vpop.f32.mrb[0].mxu0
        %v5204 = vadd.f32 %v4835, %v5203
        %v5205 = vpop.f32.mrb[0].mxu0
        %v5206 = vpop.f32.mrb[0].mxu0
        %v5207 = vadd.f32 %v4838, %v5206
        %v5208 = vpop.f32.mrb[0].mxu0
        %5209 = vmatprep.mubr.bf16.mxu0 0
        %5210 = vmatmul.mubr.bf16.gmra.mrb[0].mxu0 %v4393
        %v5211 = vpop.f32.mrb[0].mxu0
        %v5212 = vpop.f32.mrb[0].mxu0
        %v5213 = vpop.f32.mrb[0].mxu0
        %v5214 = vpop.f32.mrb[0].mxu0
        %5215 = vmatprep.mubr.bf16.mxu0 0
        %5216 = vmatmul.mubr.bf16.gmra.mrb[0].mxu0 %v4394
        %v5217 = vpop.f32.mrb[0].mxu0
        %v5218 = vpop.f32.mrb[0].mxu0
        %v5219 = vpop.f32.mrb[0].mxu0
        %v5220 = vadd.f32 %v4851, %v5219
        %v5221 = vpop.f32.mrb[0].mxu0
        %5222 = vmatprep.mubr.bf16.mxu0 0
        %5223 = vmatmul.mubr.bf16.gmra.mrb[0].mxu0 %v4395
        %v5224 = vpop.f32.mrb[0].mxu0
        %v5225 = vadd.f32 %v4856, %v5224
        %v5226 = vpop.f32.mrb[0].mxu0
        %v5227 = vpop.f32.mrb[0].mxu0
        %v5228 = vadd.f32 %v4859, %v5227
        %v5229 = vpop.f32.mrb[0].mxu0
        %5230 = vmatprep.mubr.bf16.mxu0 0
        %5231 = vmatmul.mubr.bf16.gmra.mrb[0].mxu0 %v4396
        %v5232 = vpop.f32.mrb[0].mxu0
        %v5233 = vpop.f32.mrb[0].mxu0
        %v5234 = vpop.f32.mrb[0].mxu0
        %v5235 = vpop.f32.mrb[0].mxu0
        %5236 = vmatprep.mubr.bf16.mxu0 0
        %5237 = vmatmul.mubr.bf16.gmra.mrb[0].mxu0 %v4397
        %v5238 = vpop.f32.mrb[0].mxu0
        %v5239 = vpop.f32.mrb[0].mxu0
        %v5240 = vpop.f32.mrb[0].mxu0
        %v5241 = vadd.f32 %v4872, %v5240
        %v5242 = vpop.f32.mrb[0].mxu0
        %5243 = vmatprep.mubr.bf16.mxu0 0
        %5244 = vmatmul.mubr.bf16.gmra.mrb[0].mxu0 %v4398
        %v5245 = vpop.f32.mrb[0].mxu0
        %v5246 = vadd.f32 %v4877, %v5245
        %v5247 = vpop.f32.mrb[0].mxu0
        %v5248 = vpop.f32.mrb[0].mxu0
        %v5249 = vadd.f32 %v4880, %v5248
        %v5250 = vpop.f32.mrb[0].mxu0
        %5251 = vmatprep.mubr.bf16.mxu0 0
        %5252 = vmatmul.mubr.bf16.gmra.mrb[0].mxu0 %v4399
        %v5253 = vpop.f32.mrb[0].mxu0
        %v5254 = vpop.f32.mrb[0].mxu0
        %v5255 = vpop.f32.mrb[0].mxu0
        %v5256 = vpop.f32.mrb[0].mxu0
        %5257 = vmatprep.mubr.bf16.mxu0 0
        %5258 = vmatmul.mubr.bf16.gmra.mrb[0].mxu0 %v4400
        %v5259 = vpop.f32.mrb[0].mxu0
        %v5260 = vpop.f32.mrb[0].mxu0
        %v5261 = vpop.f32.mrb[0].mxu0
        %v5262 = vadd.f32 %v4893, %v5261
        %v5263 = vpop.f32.mrb[0].mxu0
        %5264 = vmatprep.mubr.bf16.mxu0 0
        %5265 = vmatmul.mubr.bf16.gmra.mrb[0].mxu0 %v4401
        %v5266 = vpop.f32.mrb[0].mxu0
        %v5267 = vadd.f32 %v4898, %v5266
        %v5268 = vpop.f32.mrb[0].mxu0
        %v5269 = vpop.f32.mrb[0].mxu0
        %v5270 = vadd.f32 %v4901, %v5269
        %v5271 = vpop.f32.mrb[0].mxu0
        %5272 = vmatprep.mubr.bf16.mxu0 0
        %5273 = vmatmul.mubr.bf16.gmra.mrb[0].mxu0 %v4402
        %v5274 = vpop.f32.mrb[0].mxu0
        %v5275 = vpop.f32.mrb[0].mxu0
        %v5276 = vpop.f32.mrb[0].mxu0
        %v5277 = vpop.f32.mrb[0].mxu0
        %5278 = vmatprep.mubr.bf16.mxu0 0
        %5279 = vmatmul.mubr.bf16.gmra.mrb[0].mxu0 %v4403
        %v5280 = vpop.f32.mrb[0].mxu0
        %v5281 = vpop.f32.mrb[0].mxu0
        %v5282 = vpop.f32.mrb[0].mxu0
        %v5283 = vadd.f32 %v4914, %v5282
        %v5284 = vpop.f32.mrb[0].mxu0
        %5285 = vmatprep.mubr.bf16.mxu0 0
        %5286 = vmatmul.mubr.bf16.gmra.mrb[0].mxu0 %v4404
        %v5287 = vpop.f32.mrb[0].mxu0
        %v5288 = vadd.f32 %v4919, %v5287
        %v5289 = vpop.f32.mrb[0].mxu0
        %v5290 = vpop.f32.mrb[0].mxu0
        %v5291 = vadd.f32 %v4922, %v5290
        %v5292 = vpop.f32.mrb[0].mxu0
        %5293 = vmatprep.mubr.bf16.mxu0 0
        %5294 = vmatmul.mubr.bf16.gmra.mrb[0].mxu0 %v4405
        %v5295 = vpop.f32.mrb[0].mxu0
        %v5296 = vpop.f32.mrb[0].mxu0
        %v5297 = vpop.f32.mrb[0].mxu0
        %v5298 = vpop.f32.mrb[0].mxu0
        %5299 = vmatprep.mubr.bf16.mxu0 0
        %5300 = vmatmul.mubr.bf16.gmra.mrb[0].mxu0 %v4406
        %v5301 = vpop.f32.mrb[0].mxu0
        %v5302 = vpop.f32.mrb[0].mxu0
        %v5303 = vpop.f32.mrb[0].mxu0
        %v5304 = vadd.f32 %v4935, %v5303
        %v5305 = vpop.f32.mrb[0].mxu0
        %5306 = vmatprep.mubr.bf16.mxu0 0
        %5307 = vmatmul.mubr.bf16.gmra.mrb[0].mxu0 %v4407
        %v5308 = vpop.f32.mrb[0].mxu0
        %v5309 = vadd.f32 %v4940, %v5308
        %v5310 = vpop.f32.mrb[0].mxu0
        %v5311 = vpop.f32.mrb[0].mxu0
        %v5312 = vadd.f32 %v4943, %v5311
        %v5313 = vpop.f32.mrb[0].mxu0
        %5314 = vmatprep.mubr.bf16.mxu0 0
        %5315 = vmatmul.mubr.bf16.gmra.mrb[0].mxu0 %v4408
        %v5316 = vpop.f32.mrb[0].mxu0
        %v5317 = vpop.f32.mrb[0].mxu0
        %v5318 = vpop.f32.mrb[0].mxu0
        %v5319 = vpop.f32.mrb[0].mxu0
        %5320 = vmatprep.mubr.bf16.mxu0 0
        %5321 = vmatmul.mubr.bf16.gmra.mrb[0].mxu0 %v4409
        %v5322 = vpop.f32.mrb[0].mxu0
        %v5323 = vpop.f32.mrb[0].mxu0
        %v5324 = vpop.f32.mrb[0].mxu0
        %v5325 = vadd.f32 %v4956, %v5324
        %v5326 = vpop.f32.mrb[0].mxu0
        %5327 = vmatprep.mubr.bf16.mxu0 0
        %5328 = vmatmul.mubr.bf16.gmra.mrb[0].mxu0 %v4410
        %v5329 = vpop.f32.mrb[0].mxu0
        %v5330 = vadd.f32 %v4961, %v5329
        %v5331 = vpop.f32.mrb[0].mxu0
        %v5332 = vpop.f32.mrb[0].mxu0
        %v5333 = vadd.f32 %v4964, %v5332
        %v5334 = vpop.f32.mrb[0].mxu0
        %5335 = vmatprep.mubr.bf16.mxu0 0
        %5336 = vmatmul.mubr.bf16.gmra.mrb[0].mxu0 %v4411
        %v5337 = vpop.f32.mrb[0].mxu0
        %v5338 = vpop.f32.mrb[0].mxu0
        %v5339 = vpop.f32.mrb[0].mxu0
        %v5340 = vpop.f32.mrb[0].mxu0
        %5341 = vdwg.mxu0
        %v5342 = vrot.slane %v5010, 6
        %v5343 = vrot.slane %v5015, 6
        %v5344 = vrot.slane %v5018, 6
        %v5345 = vrot.slane %v5031, 6
        %v5346 = vrot.slane %v5036, 6
        %v5347 = vrot.slane %v5039, 6
        %v5348 = vrot.slane %v5052, 6
        %v5349 = vrot.slane %v5057, 6
        %v5350 = vrot.slane %v5060, 6
        %v5351 = vrot.slane %v5073, 6
        %v5352 = vrot.slane %v5078, 6
        %v5353 = vrot.slane %v5081, 6
        %v5354 = vrot.slane %v5094, 6
        %v5355 = vrot.slane %v5099, 6
        %v5356 = vrot.slane %v5102, 6
        %v5357 = vrot.slane %v5115, 6
        %v5358 = vrot.slane %v5120, 6
        %v5359 = vrot.slane %v5123, 6
        %v5360 = vrot.slane %v5136, 6
        %v5361 = vrot.slane %v5141, 6
        %v5362 = vrot.slane %v5144, 6
        %v5363 = vrot.slane %v5157, 6
        %v5364 = vrot.slane %v5162, 6
        %v5365 = vrot.slane %v5165, 6
        %v5366 = vrot.slane %v5178, 6
        %v5367 = vrot.slane %v5183, 6
        %v5368 = vrot.slane %v5186, 6
        %v5369 = vrot.slane %v5199, 6
        %v5370 = vrot.slane %v5204, 6
        %v5371 = vrot.slane %v5207, 6
        %v5372 = vrot.slane %v5220, 6
        %v5373 = vrot.slane %v5225, 6
        %v5374 = vrot.slane %v5228, 6
        %v5375 = vrot.slane %v5241, 6
        %v5376 = vrot.slane %v5246, 6
        %v5377 = vrot.slane %v5249, 6
        %v5378 = vrot.slane %v5262, 6
        %v5379 = vrot.slane %v5267, 6
        %v5380 = vrot.slane %v5270, 6
        %v5381 = vrot.slane %v5283, 6
        %v5382 = vrot.slane %v5288, 6
        %v5383 = vrot.slane %v5291, 6
        %v5384 = vrot.slane %v5304, 6
        %v5385 = vrot.slane %v5309, 6
        %v5386 = vrot.slane %v5312, 6
        %v5387 = vrot.slane %v5325, 6
        %v5388 = vrot.slane %v5330, 6
        %v5389 = vrot.slane %v5333, 6
        %vm5390 = vcmp.lt.s32.totalorder %v579, 2
        %v5391 = vsel %vm5390, %v5388, %v5389
        %v5392 = vsel %vm5390, %v5387, %v5388
        %v5393 = vsel %vm5390, %v5385, %v5386
        %v5394 = vsel %vm5390, %v5384, %v5385
        %v5395 = vsel %vm5390, %v5382, %v5383
        %v5396 = vsel %vm5390, %v5381, %v5382
        %v5397 = vsel %vm5390, %v5379, %v5380
        %v5398 = vsel %vm5390, %v5378, %v5379
        %v5399 = vsel %vm5390, %v5376, %v5377
        %v5400 = vsel %vm5390, %v5375, %v5376
        %v5401 = vsel %vm5390, %v5373, %v5374
        %v5402 = vsel %vm5390, %v5372, %v5373
        %v5403 = vsel %vm5390, %v5370, %v5371
        %v5404 = vsel %vm5390, %v5369, %v5370
        %v5405 = vsel %vm5390, %v5367, %v5368
        %v5406 = vsel %vm5390, %v5366, %v5367
        %v5407 = vsel %vm5390, %v5364, %v5365
        %v5408 = vsel %vm5390, %v5363, %v5364
        %v5409 = vsel %vm5390, %v5361, %v5362
        %v5410 = vsel %vm5390, %v5360, %v5361
        %v5411 = vsel %vm5390, %v5358, %v5359
        %v5412 = vsel %vm5390, %v5357, %v5358
        %v5413 = vsel %vm5390, %v5355, %v5356
        %v5414 = vsel %vm5390, %v5354, %v5355
        %v5415 = vsel %vm5390, %v5352, %v5353
        %v5416 = vsel %vm5390, %v5351, %v5352
        %v5417 = vsel %vm5390, %v5349, %v5350
        %v5418 = vsel %vm5390, %v5348, %v5349
        %v5419 = vsel %vm5390, %v5346, %v5347
        %v5420 = vsel %vm5390, %v5345, %v5346
        %v5421 = vsel %vm5390, %v5343, %v5344
        %v5422 = vsel %vm5390, %v5342, %v5343
        %s5423 = scalar_lea.vmem [#allocation6], 192
        %v5424 = vld [vmem:[%s5423] sm:$0xf]
        %v5425 = vld [vmem:[%s5423 + $0x4] sm:$0xf]
        %v5426 = vld [vmem:[%s5423 + $0x8] sm:$0xf]
        %v5427 = vld [vmem:[%s5423 + $0xc] sm:$0xf]
        %v5428 = vld [vmem:[%s5423 + $0x10] sm:$0xf]
        %v5429 = vld [vmem:[%s5423 + $0x14] sm:$0xf]
        %v5430 = vld [vmem:[%s5423 + $0x18] sm:$0xf]
        %v5431 = vld [vmem:[%s5423 + $0x1c] sm:$0xf]
        %v5432 = vld [vmem:[%s5423 + $0x20] sm:$0xf]
        %v5433 = vld [vmem:[%s5423 + $0x24] sm:$0xf]
        %v5434 = vld [vmem:[%s5423 + $0x28] sm:$0xf]
        %v5435 = vld [vmem:[%s5423 + $0x2c] sm:$0xf]
        %v5436 = vld [vmem:[%s5423 + $0x30] sm:$0xf]
        %v5437 = vld [vmem:[%s5423 + $0x34] sm:$0xf]
        %v5438 = vld [vmem:[%s5423 + $0x38] sm:$0xf]
        %v5439 = vld [vmem:[%s5423 + $0x3c] sm:$0xf]
        %v5440 = vld [vmem:[%s5423 + $0x40] sm:$0xf]
        %v5441 = vld [vmem:[%s5423 + $0x44] sm:$0xf]
        %v5442 = vld [vmem:[%s5423 + $0x48] sm:$0xf]
        %v5443 = vld [vmem:[%s5423 + $0x4c] sm:$0xf]
        %v5444 = vld [vmem:[%s5423 + $0x50] sm:$0xf]
        %v5445 = vld [vmem:[%s5423 + $0x54] sm:$0xf]
        %v5446 = vld [vmem:[%s5423 + $0x58] sm:$0xf]
        %v5447 = vld [vmem:[%s5423 + $0x5c] sm:$0xf]
        %v5448 = vld [vmem:[%s5423 + $0x60] sm:$0xf]
        %v5449 = vld [vmem:[%s5423 + $0x64] sm:$0xf]
        %v5450 = vld [vmem:[%s5423 + $0x68] sm:$0xf]
        %v5451 = vld [vmem:[%s5423 + $0x6c] sm:$0xf]
        %v5452 = vld [vmem:[%s5423 + $0x70] sm:$0xf]
        %v5453 = vld [vmem:[%s5423 + $0x74] sm:$0xf]
        %v5454 = vld [vmem:[%s5423 + $0x78] sm:$0xf]
        %v5455 = vld [vmem:[%s5423 + $0x7c] sm:$0xf]
        %v5456 = vld [vmem:[%s5423 + $0x80] sm:$0xf]
        %v5457 = vld [vmem:[%s5423 + $0x84] sm:$0xf]
        %v5458 = vld [vmem:[%s5423 + $0x88] sm:$0xf]
        %v5459 = vld [vmem:[%s5423 + $0x8c] sm:$0xf]
        %v5460 = vld [vmem:[%s5423 + $0x90] sm:$0xf]
        %v5461 = vld [vmem:[%s5423 + $0x94] sm:$0xf]
        %v5462 = vld [vmem:[%s5423 + $0x98] sm:$0xf]
        %v5463 = vld [vmem:[%s5423 + $0x9c] sm:$0xf]
        %v5464 = vld [vmem:[%s5423 + $0xa0] sm:$0xf]
        %v5465 = vld [vmem:[%s5423 + $0xa4] sm:$0xf]
        %v5466 = vld [vmem:[%s5423 + $0xa8] sm:$0xf]
        %v5467 = vld [vmem:[%s5423 + $0xac] sm:$0xf]
        %v5468 = vld [vmem:[%s5423 + $0xb0] sm:$0xf]
        %v5469 = vld [vmem:[%s5423 + $0xb4] sm:$0xf]
        %v5470 = vld [vmem:[%s5423 + $0xb8] sm:$0xf]
        %v5471 = vld [vmem:[%s5423 + $0xbc] sm:$0xf]
        %v5520 = vunpack.c.l.b16 %v5424
        %v5521 = vunpack.c.l.b16 %v5425
        %v5522 = vunpack.c.l.b16 %v5426
        %v5523 = vunpack.c.l.b16 %v5427
        %v5524 = vunpack.c.l.b16 %v5428
        %v5525 = vunpack.c.l.b16 %v5429
        %v5526 = vunpack.c.l.b16 %v5430
        %v5527 = vunpack.c.l.b16 %v5431
        %v5528 = vunpack.c.l.b16 %v5432
        %v5529 = vunpack.c.l.b16 %v5433
        %v5530 = vunpack.c.l.b16 %v5434
        %v5531 = vunpack.c.l.b16 %v5435
        %v5532 = vunpack.c.l.b16 %v5436
        %v5533 = vunpack.c.l.b16 %v5437
        %v5534 = vunpack.c.l.b16 %v5438
        %v5535 = vunpack.c.l.b16 %v5439
        %v5536 = vunpack.c.l.b16 %v5440
        %v5537 = vunpack.c.l.b16 %v5441
        %v5538 = vunpack.c.l.b16 %v5442
        %v5539 = vunpack.c.l.b16 %v5443
        %v5540 = vunpack.c.l.b16 %v5444
        %v5541 = vunpack.c.l.b16 %v5445
        %v5542 = vunpack.c.l.b16 %v5446
        %v5543 = vunpack.c.l.b16 %v5447
        %v5544 = vunpack.c.l.b16 %v5448
        %v5545 = vunpack.c.l.b16 %v5449
        %v5546 = vunpack.c.l.b16 %v5450
        %v5547 = vunpack.c.l.b16 %v5451
        %v5548 = vunpack.c.l.b16 %v5452
        %v5549 = vunpack.c.l.b16 %v5453
        %v5550 = vunpack.c.l.b16 %v5454
        %v5551 = vunpack.c.l.b16 %v5455
        %v5552 = vunpack.c.l.b16 %v5456
        %v5553 = vunpack.c.l.b16 %v5457
        %v5554 = vunpack.c.l.b16 %v5458
        %v5555 = vunpack.c.l.b16 %v5459
        %v5556 = vunpack.c.l.b16 %v5460
        %v5557 = vunpack.c.l.b16 %v5461
        %v5558 = vunpack.c.l.b16 %v5462
        %v5559 = vunpack.c.l.b16 %v5463
        %v5560 = vunpack.c.l.b16 %v5464
        %v5561 = vunpack.c.l.b16 %v5465
        %v5562 = vunpack.c.l.b16 %v5466
        %v5563 = vunpack.c.l.b16 %v5467
        %v5564 = vunpack.c.l.b16 %v5468
        %v5565 = vunpack.c.l.b16 %v5469
        %v5566 = vunpack.c.l.b16 %v5470
        %v5567 = vunpack.c.l.b16 %v5471
        %v5568 = vpack.c.b16 %v5521, %v5520
        %v5569 = vpack.c.b16 %v5523, %v5522
        %v5570 = vpack.c.b16 %v5525, %v5524
        %v5571 = vpack.c.b16 %v5527, %v5526
        %v5572 = vpack.c.b16 %v5529, %v5528
        %v5573 = vpack.c.b16 %v5531, %v5530
        %v5574 = vpack.c.b16 %v5533, %v5532
        %v5575 = vpack.c.b16 %v5535, %v5534
        %v5576 = vpack.c.b16 %v5537, %v5536
        %v5577 = vpack.c.b16 %v5539, %v5538
        %v5578 = vpack.c.b16 %v5541, %v5540
        %v5579 = vpack.c.b16 %v5543, %v5542
        %v5580 = vpack.c.b16 %v5545, %v5544
        %v5581 = vpack.c.b16 %v5547, %v5546
        %v5582 = vpack.c.b16 %v5549, %v5548
        %v5583 = vpack.c.b16 %v5551, %v5550
        %v5584 = vpack.c.b16 %v5553, %v5552
        %v5585 = vpack.c.b16 %v5555, %v5554
        %v5586 = vpack.c.b16 %v5557, %v5556
        %v5587 = vpack.c.b16 %v5559, %v5558
        %v5588 = vpack.c.b16 %v5561, %v5560
        %v5589 = vpack.c.b16 %v5563, %v5562
        %v5590 = vpack.c.b16 %v5565, %v5564
        %v5591 = vpack.c.b16 %v5567, %v5566
        %5616 = vmatprep.subr.bf16.mxu0 0
        %5617 = vmatpush1.bf16.msra.mxu0 %v5568
        %5618 = vmatprep.subr.bf16.mxu0 0
        %5619 = vmatpush1.bf16.msra.mxu0 %v5569
        %5620 = vmatprep.subr.bf16.mxu0 0
        %5621 = vmatpush1.bf16.msra.mxu0 %v5570
        %5622 = vmatprep.subr.bf16.mxu0 0
        %5623 = vmatpush1.bf16.msra.mxu0 %v5571
        %5624 = vmatprep.subr.bf16.mxu0 0
        %5625 = vmatpush1.bf16.msra.mxu0 %v5572
        %5626 = vmatprep.subr.bf16.mxu0 0
        %5627 = vmatpush1.bf16.msra.mxu0 %v5573
        %5628 = vmatprep.subr.bf16.mxu0 0
        %5629 = vmatpush1.bf16.msra.mxu0 %v5574
        %5630 = vmatprep.subr.bf16.mxu0 0
        %5631 = vmatpush1.bf16.msra.mxu0 %v5575
        %5632 = vmatprep.subr.bf16.mxu0 0
        %5633 = vmatpush1.bf16.msra.mxu0 %v5576
        %5634 = vmatprep.subr.bf16.mxu0 0
        %5635 = vmatpush1.bf16.msra.mxu0 %v5577
        %5636 = vmatprep.subr.bf16.mxu0 0
        %5637 = vmatpush1.bf16.msra.mxu0 %v5578
        %5638 = vmatprep.subr.bf16.mxu0 0
        %5639 = vmatpush1.bf16.msra.mxu0 %v5579
        %5640 = vmatprep.subr.bf16.mxu0 0
        %5641 = vmatpush1.bf16.msra.mxu0 %v5580
        %5642 = vmatprep.subr.bf16.mxu0 0
        %5643 = vmatpush1.bf16.msra.mxu0 %v5581
        %5644 = vmatprep.subr.bf16.mxu0 0
        %5645 = vmatpush1.bf16.msra.mxu0 %v5582
        %5646 = vmatprep.subr.bf16.mxu0 0
        %5647 = vmatpush1.bf16.msra.mxu0 %v5583
        %5648 = vmatprep.mubr.bf16.mxu0 %v4358
        %5649 = vmatmul.mubr.bf16.gmra.mrb[0].mxu0 %v4352
        %v5650 = vpop.f32.mrb[0].mxu0
        %v5651 = vpop.f32.mrb[0].mxu0
        %v5652 = vpop.f32.mrb[0].mxu0
        %v5653 = vpop.f32.mrb[0].mxu0
        %5654 = vmatprep.mubr.bf16.mxu0 %v4359
        %5655 = vmatmul.mubr.bf16.gmra.mrb[0].mxu0 %v4353
        %v5656 = vpop.f32.mrb[0].mxu0
        %v5657 = vadd.f32 0.0, %v5656
        %v5658 = vpop.f32.mrb[0].mxu0
        %v5659 = vpop.f32.mrb[0].mxu0
        %v5660 = vadd.f32 0.0, %v5659
        %v5661 = vpop.f32.mrb[0].mxu0
        %5662 = vmatprep.mubr.bf16.mxu0 %v4360
        %5663 = vmatmul.mubr.bf16.gmra.mrb[0].mxu0 %v4354
        %v5664 = vpop.f32.mrb[0].mxu0
        %v5665 = vpop.f32.mrb[0].mxu0
        %v5666 = vpop.f32.mrb[0].mxu0
        %v5667 = vpop.f32.mrb[0].mxu0
        %5668 = vmatprep.mubr.bf16.mxu0 %v4361
        %5669 = vmatmul.mubr.bf16.gmra.mrb[0].mxu0 %v4355
        %v5670 = vpop.f32.mrb[0].mxu0
        %v5671 = vpop.f32.mrb[0].mxu0
        %v5672 = vpop.f32.mrb[0].mxu0
        %v5673 = vpop.f32.mrb[0].mxu0
        %5674 = vmatprep.mubr.bf16.mxu0 %v4362
        %5675 = vmatmul.mubr.bf16.gmra.mrb[0].mxu0 %v4356
        %v5676 = vpop.f32.mrb[0].mxu0
        %v5677 = vadd.f32 0.0, %v5676
        %v5678 = vpop.f32.mrb[0].mxu0
        %v5679 = vpop.f32.mrb[0].mxu0
        %v5680 = vadd.f32 0.0, %v5679
        %v5681 = vpop.f32.mrb[0].mxu0
        %5682 = vmatprep.mubr.bf16.mxu0 %v4363
        %5683 = vmatmul.mubr.bf16.gmra.mrb[0].mxu0 %v4357
        %v5684 = vpop.f32.mrb[0].mxu0
        %v5685 = vpop.f32.mrb[0].mxu0
        %v5686 = vpop.f32.mrb[0].mxu0
        %v5687 = vpop.f32.mrb[0].mxu0
        %5688 = vmatprep.mubr.bf16.mxu0 %v4364
        %5689 = vmatmul.mubr.bf16.gmra.mrb[0].mxu0 %v4358
        %v5690 = vpop.f32.mrb[0].mxu0
        %v5691 = vpop.f32.mrb[0].mxu0
        %v5692 = vpop.f32.mrb[0].mxu0
        %v5693 = vpop.f32.mrb[0].mxu0
        %5694 = vmatprep.mubr.bf16.mxu0 %v4365
        %5695 = vmatmul.mubr.bf16.gmra.mrb[0].mxu0 %v4359
        %v5696 = vpop.f32.mrb[0].mxu0
        %v5697 = vadd.f32 0.0, %v5696
        %v5698 = vpop.f32.mrb[0].mxu0
        %v5699 = vpop.f32.mrb[0].mxu0
        %v5700 = vadd.f32 0.0, %v5699
        %v5701 = vpop.f32.mrb[0].mxu0
        %5702 = vmatprep.mubr.bf16.mxu0 %v4366
        %5703 = vmatmul.mubr.bf16.gmra.mrb[0].mxu0 %v4360
        %v5704 = vpop.f32.mrb[0].mxu0
        %v5705 = vpop.f32.mrb[0].mxu0
        %v5706 = vpop.f32.mrb[0].mxu0
        %v5707 = vpop.f32.mrb[0].mxu0
        %5708 = vmatprep.mubr.bf16.mxu0 %v4367
        %5709 = vmatmul.mubr.bf16.gmra.mrb[0].mxu0 %v4361
        %v5710 = vpop.f32.mrb[0].mxu0
        %v5711 = vpop.f32.mrb[0].mxu0
        %v5712 = vpop.f32.mrb[0].mxu0
        %v5713 = vpop.f32.mrb[0].mxu0
        %5714 = vmatprep.mubr.bf16.mxu0 %v4368
        %5715 = vmatmul.mubr.bf16.gmra.mrb[0].mxu0 %v4362
        %v5716 = vpop.f32.mrb[0].mxu0
        %v5717 = vadd.f32 0.0, %v5716
        %v5718 = vpop.f32.mrb[0].mxu0
        %v5719 = vpop.f32.mrb[0].mxu0
        %v5720 = vadd.f32 0.0, %v5719
        %v5721 = vpop.f32.mrb[0].mxu0
        %5722 = vmatprep.mubr.bf16.mxu0 %v4369
        %5723 = vmatmul.mubr.bf16.gmra.mrb[0].mxu0 %v4363
        %v5724 = vpop.f32.mrb[0].mxu0
        %v5725 = vpop.f32.mrb[0].mxu0
        %v5726 = vpop.f32.mrb[0].mxu0
        %v5727 = vpop.f32.mrb[0].mxu0
        %5728 = vmatprep.mubr.bf16.mxu0 %v4370
        %5729 = vmatmul.mubr.bf16.gmra.mrb[0].mxu0 %v4364
        %v5730 = vpop.f32.mrb[0].mxu0
        %v5731 = vpop.f32.mrb[0].mxu0
        %v5732 = vpop.f32.mrb[0].mxu0
        %v5733 = vpop.f32.mrb[0].mxu0
        %5734 = vmatprep.mubr.bf16.mxu0 %v4371
        %5735 = vmatmul.mubr.bf16.gmra.mrb[0].mxu0 %v4365
        %v5736 = vpop.f32.mrb[0].mxu0
        %v5737 = vadd.f32 0.0, %v5736
        %v5738 = vpop.f32.mrb[0].mxu0
        %v5739 = vpop.f32.mrb[0].mxu0
        %v5740 = vadd.f32 0.0, %v5739
        %v5741 = vpop.f32.mrb[0].mxu0
        %5742 = vmatprep.mubr.bf16.mxu0 %v4372
        %5743 = vmatmul.mubr.bf16.gmra.mrb[0].mxu0 %v4366
        %v5744 = vpop.f32.mrb[0].mxu0
        %v5745 = vpop.f32.mrb[0].mxu0
        %v5746 = vpop.f32.mrb[0].mxu0
        %v5747 = vpop.f32.mrb[0].mxu0
        %5748 = vmatprep.mubr.bf16.mxu0 %v4373
        %5749 = vmatmul.mubr.bf16.gmra.mrb[0].mxu0 %v4367
        %v5750 = vpop.f32.mrb[0].mxu0
        %v5751 = vpop.f32.mrb[0].mxu0
        %v5752 = vpop.f32.mrb[0].mxu0
        %v5753 = vpop.f32.mrb[0].mxu0
        %5754 = vmatprep.mubr.bf16.mxu0 %v4374
        %5755 = vmatmul.mubr.bf16.gmra.mrb[0].mxu0 %v4368
        %v5756 = vpop.f32.mrb[0].mxu0
        %v5757 = vadd.f32 0.0, %v5756
        %v5758 = vpop.f32.mrb[0].mxu0
        %v5759 = vpop.f32.mrb[0].mxu0
        %v5760 = vadd.f32 0.0, %v5759
        %v5761 = vpop.f32.mrb[0].mxu0
        %5762 = vmatprep.mubr.bf16.mxu0 %v4375
        %5763 = vmatmul.mubr.bf16.gmra.mrb[0].mxu0 %v4369
        %v5764 = vpop.f32.mrb[0].mxu0
        %v5765 = vpop.f32.mrb[0].mxu0
        %v5766 = vpop.f32.mrb[0].mxu0
        %v5767 = vpop.f32.mrb[0].mxu0
        %5768 = vmatprep.mubr.bf16.mxu0 %v4376
        %5769 = vmatmul.mubr.bf16.gmra.mrb[0].mxu0 %v4370
        %v5770 = vpop.f32.mrb[0].mxu0
        %v5771 = vpop.f32.mrb[0].mxu0
        %v5772 = vpop.f32.mrb[0].mxu0
        %v5773 = vpop.f32.mrb[0].mxu0
        %5774 = vmatprep.mubr.bf16.mxu0 %v4377
        %5775 = vmatmul.mubr.bf16.gmra.mrb[0].mxu0 %v4371
        %v5776 = vpop.f32.mrb[0].mxu0
        %v5777 = vadd.f32 0.0, %v5776
        %v5778 = vpop.f32.mrb[0].mxu0
        %v5779 = vpop.f32.mrb[0].mxu0
        %v5780 = vadd.f32 0.0, %v5779
        %v5781 = vpop.f32.mrb[0].mxu0
        %5782 = vmatprep.mubr.bf16.mxu0 %v4378
        %5783 = vmatmul.mubr.bf16.gmra.mrb[0].mxu0 %v4372
        %v5784 = vpop.f32.mrb[0].mxu0
        %v5785 = vpop.f32.mrb[0].mxu0
        %v5786 = vpop.f32.mrb[0].mxu0
        %v5787 = vpop.f32.mrb[0].mxu0
        %5788 = vmatprep.mubr.bf16.mxu0 %v4379
        %5789 = vmatmul.mubr.bf16.gmra.mrb[0].mxu0 %v4373
        %v5790 = vpop.f32.mrb[0].mxu0
        %v5791 = vpop.f32.mrb[0].mxu0
        %v5792 = vpop.f32.mrb[0].mxu0
        %v5793 = vpop.f32.mrb[0].mxu0
        %5794 = vmatprep.mubr.bf16.mxu0 %v4380
        %5795 = vmatmul.mubr.bf16.gmra.mrb[0].mxu0 %v4374
        %v5796 = vpop.f32.mrb[0].mxu0
        %v5797 = vadd.f32 0.0, %v5796
        %v5798 = vpop.f32.mrb[0].mxu0
        %v5799 = vpop.f32.mrb[0].mxu0
        %v5800 = vadd.f32 0.0, %v5799
        %v5801 = vpop.f32.mrb[0].mxu0
        %5802 = vmatprep.mubr.bf16.mxu0 %v4381
        %5803 = vmatmul.mubr.bf16.gmra.mrb[0].mxu0 %v4375
        %v5804 = vpop.f32.mrb[0].mxu0
        %v5805 = vpop.f32.mrb[0].mxu0
        %v5806 = vpop.f32.mrb[0].mxu0
        %v5807 = vpop.f32.mrb[0].mxu0
        %5808 = vmatprep.mubr.bf16.mxu0 %v4382
        %5809 = vmatmul.mubr.bf16.gmra.mrb[0].mxu0 %v4376
        %v5810 = vpop.f32.mrb[0].mxu0
        %v5811 = vpop.f32.mrb[0].mxu0
        %v5812 = vpop.f32.mrb[0].mxu0
        %v5813 = vpop.f32.mrb[0].mxu0
        %5814 = vmatprep.mubr.bf16.mxu0 %v4383
        %5815 = vmatmul.mubr.bf16.gmra.mrb[0].mxu0 %v4377
        %v5816 = vpop.f32.mrb[0].mxu0
        %v5817 = vadd.f32 0.0, %v5816
        %v5818 = vpop.f32.mrb[0].mxu0
        %v5819 = vpop.f32.mrb[0].mxu0
        %v5820 = vadd.f32 0.0, %v5819
        %v5821 = vpop.f32.mrb[0].mxu0
        %5822 = vmatprep.mubr.bf16.mxu0 %v4384
        %5823 = vmatmul.mubr.bf16.gmra.mrb[0].mxu0 %v4378
        %v5824 = vpop.f32.mrb[0].mxu0
        %v5825 = vpop.f32.mrb[0].mxu0
        %v5826 = vpop.f32.mrb[0].mxu0
        %v5827 = vpop.f32.mrb[0].mxu0
        %5828 = vmatprep.mubr.bf16.mxu0 %v4385
        %5829 = vmatmul.mubr.bf16.gmra.mrb[0].mxu0 %v4379
        %v5830 = vpop.f32.mrb[0].mxu0
        %v5831 = vpop.f32.mrb[0].mxu0
        %v5832 = vpop.f32.mrb[0].mxu0
        %v5833 = vpop.f32.mrb[0].mxu0
        %5834 = vmatprep.mubr.bf16.mxu0 %v4386
        %5835 = vmatmul.mubr.bf16.gmra.mrb[0].mxu0 %v4380
        %v5836 = vpop.f32.mrb[0].mxu0
        %v5837 = vadd.f32 0.0, %v5836
        %v5838 = vpop.f32.mrb[0].mxu0
        %v5839 = vpop.f32.mrb[0].mxu0
        %v5840 = vadd.f32 0.0, %v5839
        %v5841 = vpop.f32.mrb[0].mxu0
        %5842 = vmatprep.mubr.bf16.mxu0 %v4387
        %5843 = vmatmul.mubr.bf16.gmra.mrb[0].mxu0 %v4381
        %v5844 = vpop.f32.mrb[0].mxu0
        %v5845 = vpop.f32.mrb[0].mxu0
        %v5846 = vpop.f32.mrb[0].mxu0
        %v5847 = vpop.f32.mrb[0].mxu0
        %5848 = vmatprep.mubr.bf16.mxu0 %v4388
        %5849 = vmatmul.mubr.bf16.gmra.mrb[0].mxu0 %v4382
        %v5850 = vpop.f32.mrb[0].mxu0
        %v5851 = vpop.f32.mrb[0].mxu0
        %v5852 = vpop.f32.mrb[0].mxu0
        %v5853 = vpop.f32.mrb[0].mxu0
        %5854 = vmatprep.mubr.bf16.mxu0 %v4389
        %5855 = vmatmul.mubr.bf16.gmra.mrb[0].mxu0 %v4383
        %v5856 = vpop.f32.mrb[0].mxu0
        %v5857 = vadd.f32 0.0, %v5856
        %v5858 = vpop.f32.mrb[0].mxu0
        %v5859 = vpop.f32.mrb[0].mxu0
        %v5860 = vadd.f32 0.0, %v5859
        %v5861 = vpop.f32.mrb[0].mxu0
        %5862 = vmatprep.mubr.bf16.mxu0 %v4390
        %5863 = vmatmul.mubr.bf16.gmra.mrb[0].mxu0 %v4384
        %v5864 = vpop.f32.mrb[0].mxu0
        %v5865 = vpop.f32.mrb[0].mxu0
        %v5866 = vpop.f32.mrb[0].mxu0
        %v5867 = vpop.f32.mrb[0].mxu0
        %5868 = vmatprep.mubr.bf16.mxu0 %v4391
        %5869 = vmatmul.mubr.bf16.gmra.mrb[0].mxu0 %v4385
        %v5870 = vpop.f32.mrb[0].mxu0
        %v5871 = vpop.f32.mrb[0].mxu0
        %v5872 = vpop.f32.mrb[0].mxu0
        %v5873 = vpop.f32.mrb[0].mxu0
        %5874 = vmatprep.mubr.bf16.mxu0 %v4392
        %5875 = vmatmul.mubr.bf16.gmra.mrb[0].mxu0 %v4386
        %v5876 = vpop.f32.mrb[0].mxu0
        %v5877 = vadd.f32 0.0, %v5876
        %v5878 = vpop.f32.mrb[0].mxu0
        %v5879 = vpop.f32.mrb[0].mxu0
        %v5880 = vadd.f32 0.0, %v5879
        %v5881 = vpop.f32.mrb[0].mxu0
        %5882 = vmatprep.mubr.bf16.mxu0 %v4393
        %5883 = vmatmul.mubr.bf16.gmra.mrb[0].mxu0 %v4387
        %v5884 = vpop.f32.mrb[0].mxu0
        %v5885 = vpop.f32.mrb[0].mxu0
        %v5886 = vpop.f32.mrb[0].mxu0
        %v5887 = vpop.f32.mrb[0].mxu0
        %5888 = vmatprep.mubr.bf16.mxu0 %v4394
        %5889 = vmatmul.mubr.bf16.gmra.mrb[0].mxu0 %v4388
        %v5890 = vpop.f32.mrb[0].mxu0
        %v5891 = vpop.f32.mrb[0].mxu0
        %v5892 = vpop.f32.mrb[0].mxu0
        %v5893 = vpop.f32.mrb[0].mxu0
        %5894 = vmatprep.mubr.bf16.mxu0 %v4395
        %5895 = vmatmul.mubr.bf16.gmra.mrb[0].mxu0 %v4389
        %v5896 = vpop.f32.mrb[0].mxu0
        %v5897 = vadd.f32 0.0, %v5896
        %v5898 = vpop.f32.mrb[0].mxu0
        %v5899 = vpop.f32.mrb[0].mxu0
        %v5900 = vadd.f32 0.0, %v5899
        %v5901 = vpop.f32.mrb[0].mxu0
        %5902 = vmatprep.mubr.bf16.mxu0 %v4396
        %5903 = vmatmul.mubr.bf16.gmra.mrb[0].mxu0 %v4390
        %v5904 = vpop.f32.mrb[0].mxu0
        %v5905 = vpop.f32.mrb[0].mxu0
        %v5906 = vpop.f32.mrb[0].mxu0
        %v5907 = vpop.f32.mrb[0].mxu0
        %5908 = vmatprep.mubr.bf16.mxu0 %v4397
        %5909 = vmatmul.mubr.bf16.gmra.mrb[0].mxu0 %v4391
        %v5910 = vpop.f32.mrb[0].mxu0
        %v5911 = vpop.f32.mrb[0].mxu0
        %v5912 = vpop.f32.mrb[0].mxu0
        %v5913 = vpop.f32.mrb[0].mxu0
        %5914 = vmatprep.mubr.bf16.mxu0 %v4398
        %5915 = vmatmul.mubr.bf16.gmra.mrb[0].mxu0 %v4392
        %v5916 = vpop.f32.mrb[0].mxu0
        %v5917 = vadd.f32 0.0, %v5916
        %v5918 = vpop.f32.mrb[0].mxu0
        %v5919 = vpop.f32.mrb[0].mxu0
        %v5920 = vadd.f32 0.0, %v5919
        %v5921 = vpop.f32.mrb[0].mxu0
        %5922 = vmatprep.mubr.bf16.mxu0 %v4399
        %5923 = vmatmul.mubr.bf16.gmra.mrb[0].mxu0 %v4393
        %v5924 = vpop.f32.mrb[0].mxu0
        %v5925 = vpop.f32.mrb[0].mxu0
        %v5926 = vpop.f32.mrb[0].mxu0
        %v5927 = vpop.f32.mrb[0].mxu0
        %5928 = vmatprep.mubr.bf16.mxu0 %v4400
        %5929 = vmatmul.mubr.bf16.gmra.mrb[0].mxu0 %v4394
        %v5930 = vpop.f32.mrb[0].mxu0
        %v5931 = vpop.f32.mrb[0].mxu0
        %v5932 = vpop.f32.mrb[0].mxu0
        %v5933 = vpop.f32.mrb[0].mxu0
        %5934 = vmatprep.mubr.bf16.mxu0 %v4401
        %5935 = vmatmul.mubr.bf16.gmra.mrb[0].mxu0 %v4395
        %v5936 = vpop.f32.mrb[0].mxu0
        %v5937 = vadd.f32 0.0, %v5936
        %v5938 = vpop.f32.mrb[0].mxu0
        %v5939 = vpop.f32.mrb[0].mxu0
        %v5940 = vadd.f32 0.0, %v5939
        %v5941 = vpop.f32.mrb[0].mxu0
        %5942 = vmatprep.mubr.bf16.mxu0 %v4402
        %5943 = vmatmul.mubr.bf16.gmra.mrb[0].mxu0 %v4396
        %v5944 = vpop.f32.mrb[0].mxu0
        %v5945 = vpop.f32.mrb[0].mxu0
        %v5946 = vpop.f32.mrb[0].mxu0
        %v5947 = vpop.f32.mrb[0].mxu0
        %5948 = vmatprep.mubr.bf16.mxu0 %v4403
        %5949 = vmatmul.mubr.bf16.gmra.mrb[0].mxu0 %v4397
        %v5950 = vpop.f32.mrb[0].mxu0
        %v5951 = vpop.f32.mrb[0].mxu0
        %v5952 = vpop.f32.mrb[0].mxu0
        %v5953 = vpop.f32.mrb[0].mxu0
        %5954 = vmatprep.mubr.bf16.mxu0 %v4404
        %5955 = vmatmul.mubr.bf16.gmra.mrb[0].mxu0 %v4398
        %v5956 = vpop.f32.mrb[0].mxu0
        %v5957 = vadd.f32 0.0, %v5956
        %v5958 = vpop.f32.mrb[0].mxu0
        %v5959 = vpop.f32.mrb[0].mxu0
        %v5960 = vadd.f32 0.0, %v5959
        %v5961 = vpop.f32.mrb[0].mxu0
        %5962 = vmatprep.mubr.bf16.mxu0 %v4405
        %5963 = vmatmul.mubr.bf16.gmra.mrb[0].mxu0 %v4399
        %v5964 = vpop.f32.mrb[0].mxu0
        %v5965 = vpop.f32.mrb[0].mxu0
        %v5966 = vpop.f32.mrb[0].mxu0
        %v5967 = vpop.f32.mrb[0].mxu0
        %5968 = vdwg.mxu0
        %5969 = vmatprep.subr.bf16.mxu0 0
        %5970 = vmatpush1.bf16.msra.mxu0 %v5584
        %5971 = vmatprep.subr.bf16.mxu0 0
        %5972 = vmatpush1.bf16.msra.mxu0 %v5585
        %5973 = vmatprep.subr.bf16.mxu0 0
        %5974 = vmatpush1.bf16.msra.mxu0 %v5586
        %5975 = vmatprep.subr.bf16.mxu0 0
        %5976 = vmatpush1.bf16.msra.mxu0 %v5587
        %5977 = vmatprep.subr.bf16.mxu0 0
        %5978 = vmatpush1.bf16.msra.mxu0 %v5588
        %5979 = vmatprep.subr.bf16.mxu0 0
        %5980 = vmatpush1.bf16.msra.mxu0 %v5589
        %5981 = vmatprep.subr.bf16.mxu0 0
        %5982 = vmatpush1.bf16.msra.mxu0 %v5590
        %5983 = vmatprep.subr.bf16.mxu0 0
        %5984 = vmatpush1.bf16.msra.mxu0 %v5591
        %5985 = vmatprep.subr.bf16.mxu0 0
        %5986 = vmatpush1.bf16.msra.mxu0 0
        %5987 = vmatprep.subr.bf16.mxu0 0
        %5988 = vmatpush1.bf16.msra.mxu0 0
        %5989 = vmatprep.subr.bf16.mxu0 0
        %5990 = vmatpush1.bf16.msra.mxu0 0
        %5991 = vmatprep.subr.bf16.mxu0 0
        %5992 = vmatpush1.bf16.msra.mxu0 0
        %5993 = vmatprep.subr.bf16.mxu0 0
        %5994 = vmatpush1.bf16.msra.mxu0 0
        %5995 = vmatprep.subr.bf16.mxu0 0
        %5996 = vmatpush1.bf16.msra.mxu0 0
        %5997 = vmatprep.subr.bf16.mxu0 0
        %5998 = vmatpush1.bf16.msra.mxu0 0
        %5999 = vmatprep.subr.bf16.mxu0 0
        %6000 = vmatpush1.bf16.msra.mxu0 0
        %6001 = vmatprep.mubr.bf16.mxu0 0
        %6002 = vmatmul.mubr.bf16.gmra.mrb[0].mxu0 %v4364
        %v6003 = vpop.f32.mrb[0].mxu0
        %v6004 = vpop.f32.mrb[0].mxu0
        %v6005 = vpop.f32.mrb[0].mxu0
        %v6006 = vpop.f32.mrb[0].mxu0
        %6007 = vmatprep.mubr.bf16.mxu0 0
        %6008 = vmatmul.mubr.bf16.gmra.mrb[0].mxu0 %v4365
        %v6009 = vpop.f32.mrb[0].mxu0
        %v6010 = vadd.f32 %v5657, %v6009
        %v6011 = vpop.f32.mrb[0].mxu0
        %v6012 = vpop.f32.mrb[0].mxu0
        %v6013 = vadd.f32 %v5660, %v6012
        %v6014 = vpop.f32.mrb[0].mxu0
        %6015 = vmatprep.mubr.bf16.mxu0 0
        %6016 = vmatmul.mubr.bf16.gmra.mrb[0].mxu0 %v4366
        %v6017 = vpop.f32.mrb[0].mxu0
        %v6018 = vpop.f32.mrb[0].mxu0
        %v6019 = vpop.f32.mrb[0].mxu0
        %v6020 = vpop.f32.mrb[0].mxu0
        %6021 = vmatprep.mubr.bf16.mxu0 0
        %6022 = vmatmul.mubr.bf16.gmra.mrb[0].mxu0 %v4367
        %v6023 = vpop.f32.mrb[0].mxu0
        %v6024 = vpop.f32.mrb[0].mxu0
        %v6025 = vpop.f32.mrb[0].mxu0
        %v6026 = vpop.f32.mrb[0].mxu0
        %6027 = vmatprep.mubr.bf16.mxu0 0
        %6028 = vmatmul.mubr.bf16.gmra.mrb[0].mxu0 %v4368
        %v6029 = vpop.f32.mrb[0].mxu0
        %v6030 = vadd.f32 %v5677, %v6029
        %v6031 = vpop.f32.mrb[0].mxu0
        %v6032 = vpop.f32.mrb[0].mxu0
        %v6033 = vadd.f32 %v5680, %v6032
        %v6034 = vpop.f32.mrb[0].mxu0
        %6035 = vmatprep.mubr.bf16.mxu0 0
        %6036 = vmatmul.mubr.bf16.gmra.mrb[0].mxu0 %v4369
        %v6037 = vpop.f32.mrb[0].mxu0
        %v6038 = vpop.f32.mrb[0].mxu0
        %v6039 = vpop.f32.mrb[0].mxu0
        %v6040 = vpop.f32.mrb[0].mxu0
        %6041 = vmatprep.mubr.bf16.mxu0 0
        %6042 = vmatmul.mubr.bf16.gmra.mrb[0].mxu0 %v4370
        %v6043 = vpop.f32.mrb[0].mxu0
        %v6044 = vpop.f32.mrb[0].mxu0
        %v6045 = vpop.f32.mrb[0].mxu0
        %v6046 = vpop.f32.mrb[0].mxu0
        %6047 = vmatprep.mubr.bf16.mxu0 0
        %6048 = vmatmul.mubr.bf16.gmra.mrb[0].mxu0 %v4371
        %v6049 = vpop.f32.mrb[0].mxu0
        %v6050 = vadd.f32 %v5697, %v6049
        %v6051 = vpop.f32.mrb[0].mxu0
        %v6052 = vpop.f32.mrb[0].mxu0
        %v6053 = vadd.f32 %v5700, %v6052
        %v6054 = vpop.f32.mrb[0].mxu0
        %6055 = vmatprep.mubr.bf16.mxu0 0
        %6056 = vmatmul.mubr.bf16.gmra.mrb[0].mxu0 %v4372
        %v6057 = vpop.f32.mrb[0].mxu0
        %v6058 = vpop.f32.mrb[0].mxu0
        %v6059 = vpop.f32.mrb[0].mxu0
        %v6060 = vpop.f32.mrb[0].mxu0
        %6061 = vmatprep.mubr.bf16.mxu0 0
        %6062 = vmatmul.mubr.bf16.gmra.mrb[0].mxu0 %v4373
        %v6063 = vpop.f32.mrb[0].mxu0
        %v6064 = vpop.f32.mrb[0].mxu0
        %v6065 = vpop.f32.mrb[0].mxu0
        %v6066 = vpop.f32.mrb[0].mxu0
        %6067 = vmatprep.mubr.bf16.mxu0 0
        %6068 = vmatmul.mubr.bf16.gmra.mrb[0].mxu0 %v4374
        %v6069 = vpop.f32.mrb[0].mxu0
        %v6070 = vadd.f32 %v5717, %v6069
        %v6071 = vpop.f32.mrb[0].mxu0
        %v6072 = vpop.f32.mrb[0].mxu0
        %v6073 = vadd.f32 %v5720, %v6072
        %v6074 = vpop.f32.mrb[0].mxu0
        %6075 = vmatprep.mubr.bf16.mxu0 0
        %6076 = vmatmul.mubr.bf16.gmra.mrb[0].mxu0 %v4375
        %v6077 = vpop.f32.mrb[0].mxu0
        %v6078 = vpop.f32.mrb[0].mxu0
        %v6079 = vpop.f32.mrb[0].mxu0
        %v6080 = vpop.f32.mrb[0].mxu0
        %6081 = vmatprep.mubr.bf16.mxu0 0
        %6082 = vmatmul.mubr.bf16.gmra.mrb[0].mxu0 %v4376
        %v6083 = vpop.f32.mrb[0].mxu0
        %v6084 = vpop.f32.mrb[0].mxu0
        %v6085 = vpop.f32.mrb[0].mxu0
        %v6086 = vpop.f32.mrb[0].mxu0
        %6087 = vmatprep.mubr.bf16.mxu0 0
        %6088 = vmatmul.mubr.bf16.gmra.mrb[0].mxu0 %v4377
        %v6089 = vpop.f32.mrb[0].mxu0
        %v6090 = vadd.f32 %v5737, %v6089
        %v6091 = vpop.f32.mrb[0].mxu0
        %v6092 = vpop.f32.mrb[0].mxu0
        %v6093 = vadd.f32 %v5740, %v6092
        %v6094 = vpop.f32.mrb[0].mxu0
        %6095 = vmatprep.mubr.bf16.mxu0 0
        %6096 = vmatmul.mubr.bf16.gmra.mrb[0].mxu0 %v4378
        %v6097 = vpop.f32.mrb[0].mxu0
        %v6098 = vpop.f32.mrb[0].mxu0
        %v6099 = vpop.f32.mrb[0].mxu0
        %v6100 = vpop.f32.mrb[0].mxu0
        %6101 = vmatprep.mubr.bf16.mxu0 0
        %6102 = vmatmul.mubr.bf16.gmra.mrb[0].mxu0 %v4379
        %v6103 = vpop.f32.mrb[0].mxu0
        %v6104 = vpop.f32.mrb[0].mxu0
        %v6105 = vpop.f32.mrb[0].mxu0
        %v6106 = vpop.f32.mrb[0].mxu0
        %6107 = vmatprep.mubr.bf16.mxu0 0
        %6108 = vmatmul.mubr.bf16.gmra.mrb[0].mxu0 %v4380
        %v6109 = vpop.f32.mrb[0].mxu0
        %v6110 = vadd.f32 %v5757, %v6109
        %v6111 = vpop.f32.mrb[0].mxu0
        %v6112 = vpop.f32.mrb[0].mxu0
        %v6113 = vadd.f32 %v5760, %v6112
        %v6114 = vpop.f32.mrb[0].mxu0
        %6115 = vmatprep.mubr.bf16.mxu0 0
        %6116 = vmatmul.mubr.bf16.gmra.mrb[0].mxu0 %v4381
        %v6117 = vpop.f32.mrb[0].mxu0
        %v6118 = vpop.f32.mrb[0].mxu0
        %v6119 = vpop.f32.mrb[0].mxu0
        %v6120 = vpop.f32.mrb[0].mxu0
        %6121 = vmatprep.mubr.bf16.mxu0 0
        %6122 = vmatmul.mubr.bf16.gmra.mrb[0].mxu0 %v4382
        %v6123 = vpop.f32.mrb[0].mxu0
        %v6124 = vpop.f32.mrb[0].mxu0
        %v6125 = vpop.f32.mrb[0].mxu0
        %v6126 = vpop.f32.mrb[0].mxu0
        %6127 = vmatprep.mubr.bf16.mxu0 0
        %6128 = vmatmul.mubr.bf16.gmra.mrb[0].mxu0 %v4383
        %v6129 = vpop.f32.mrb[0].mxu0
        %v6130 = vadd.f32 %v5777, %v6129
        %v6131 = vpop.f32.mrb[0].mxu0
        %v6132 = vpop.f32.mrb[0].mxu0
        %v6133 = vadd.f32 %v5780, %v6132
        %v6134 = vpop.f32.mrb[0].mxu0
        %6135 = vmatprep.mubr.bf16.mxu0 0
        %6136 = vmatmul.mubr.bf16.gmra.mrb[0].mxu0 %v4384
        %v6137 = vpop.f32.mrb[0].mxu0
        %v6138 = vpop.f32.mrb[0].mxu0
        %v6139 = vpop.f32.mrb[0].mxu0
        %v6140 = vpop.f32.mrb[0].mxu0
        %6141 = vmatprep.mubr.bf16.mxu0 0
        %6142 = vmatmul.mubr.bf16.gmra.mrb[0].mxu0 %v4385
        %v6143 = vpop.f32.mrb[0].mxu0
        %v6144 = vpop.f32.mrb[0].mxu0
        %v6145 = vpop.f32.mrb[0].mxu0
        %v6146 = vpop.f32.mrb[0].mxu0
        %6147 = vmatprep.mubr.bf16.mxu0 0
        %6148 = vmatmul.mubr.bf16.gmra.mrb[0].mxu0 %v4386
        %v6149 = vpop.f32.mrb[0].mxu0
        %v6150 = vadd.f32 %v5797, %v6149
        %v6151 = vpop.f32.mrb[0].mxu0
        %v6152 = vpop.f32.mrb[0].mxu0
        %v6153 = vadd.f32 %v5800, %v6152
        %v6154 = vpop.f32.mrb[0].mxu0
        %6155 = vmatprep.mubr.bf16.mxu0 0
        %6156 = vmatmul.mubr.bf16.gmra.mrb[0].mxu0 %v4387
        %v6157 = vpop.f32.mrb[0].mxu0
        %v6158 = vpop.f32.mrb[0].mxu0
        %v6159 = vpop.f32.mrb[0].mxu0
        %v6160 = vpop.f32.mrb[0].mxu0
        %6161 = vmatprep.mubr.bf16.mxu0 0
        %6162 = vmatmul.mubr.bf16.gmra.mrb[0].mxu0 %v4388
        %v6163 = vpop.f32.mrb[0].mxu0
        %v6164 = vpop.f32.mrb[0].mxu0
        %v6165 = vpop.f32.mrb[0].mxu0
        %v6166 = vpop.f32.mrb[0].mxu0
        %6167 = vmatprep.mubr.bf16.mxu0 0
        %6168 = vmatmul.mubr.bf16.gmra.mrb[0].mxu0 %v4389
        %v6169 = vpop.f32.mrb[0].mxu0
        %v6170 = vadd.f32 %v5817, %v6169
        %v6171 = vpop.f32.mrb[0].mxu0
        %v6172 = vpop.f32.mrb[0].mxu0
        %v6173 = vadd.f32 %v5820, %v6172
        %v6174 = vpop.f32.mrb[0].mxu0
        %6175 = vmatprep.mubr.bf16.mxu0 0
        %6176 = vmatmul.mubr.bf16.gmra.mrb[0].mxu0 %v4390
        %v6177 = vpop.f32.mrb[0].mxu0
        %v6178 = vpop.f32.mrb[0].mxu0
        %v6179 = vpop.f32.mrb[0].mxu0
        %v6180 = vpop.f32.mrb[0].mxu0
        %6181 = vmatprep.mubr.bf16.mxu0 0
        %6182 = vmatmul.mubr.bf16.gmra.mrb[0].mxu0 %v4391
        %v6183 = vpop.f32.mrb[0].mxu0
        %v6184 = vpop.f32.mrb[0].mxu0
        %v6185 = vpop.f32.mrb[0].mxu0
        %v6186 = vpop.f32.mrb[0].mxu0
        %6187 = vmatprep.mubr.bf16.mxu0 0
        %6188 = vmatmul.mubr.bf16.gmra.mrb[0].mxu0 %v4392
        %v6189 = vpop.f32.mrb[0].mxu0
        %v6190 = vadd.f32 %v5837, %v6189
        %v6191 = vpop.f32.mrb[0].mxu0
        %v6192 = vpop.f32.mrb[0].mxu0
        %v6193 = vadd.f32 %v5840, %v6192
        %v6194 = vpop.f32.mrb[0].mxu0
        %6195 = vmatprep.mubr.bf16.mxu0 0
        %6196 = vmatmul.mubr.bf16.gmra.mrb[0].mxu0 %v4393
        %v6197 = vpop.f32.mrb[0].mxu0
        %v6198 = vpop.f32.mrb[0].mxu0
        %v6199 = vpop.f32.mrb[0].mxu0
        %v6200 = vpop.f32.mrb[0].mxu0
        %6201 = vmatprep.mubr.bf16.mxu0 0
        %6202 = vmatmul.mubr.bf16.gmra.mrb[0].mxu0 %v4394
        %v6203 = vpop.f32.mrb[0].mxu0
        %v6204 = vpop.f32.mrb[0].mxu0
        %v6205 = vpop.f32.mrb[0].mxu0
        %v6206 = vpop.f32.mrb[0].mxu0
        %6207 = vmatprep.mubr.bf16.mxu0 0
        %6208 = vmatmul.mubr.bf16.gmra.mrb[0].mxu0 %v4395
        %v6209 = vpop.f32.mrb[0].mxu0
        %v6210 = vadd.f32 %v5857, %v6209
        %v6211 = vpop.f32.mrb[0].mxu0
        %v6212 = vpop.f32.mrb[0].mxu0
        %v6213 = vadd.f32 %v5860, %v6212
        %v6214 = vpop.f32.mrb[0].mxu0
        %6215 = vmatprep.mubr.bf16.mxu0 0
        %6216 = vmatmul.mubr.bf16.gmra.mrb[0].mxu0 %v4396
        %v6217 = vpop.f32.mrb[0].mxu0
        %v6218 = vpop.f32.mrb[0].mxu0
        %v6219 = vpop.f32.mrb[0].mxu0
        %v6220 = vpop.f32.mrb[0].mxu0
        %6221 = vmatprep.mubr.bf16.mxu0 0
        %6222 = vmatmul.mubr.bf16.gmra.mrb[0].mxu0 %v4397
        %v6223 = vpop.f32.mrb[0].mxu0
        %v6224 = vpop.f32.mrb[0].mxu0
        %v6225 = vpop.f32.mrb[0].mxu0
        %v6226 = vpop.f32.mrb[0].mxu0
        %6227 = vmatprep.mubr.bf16.mxu0 0
        %6228 = vmatmul.mubr.bf16.gmra.mrb[0].mxu0 %v4398
        %v6229 = vpop.f32.mrb[0].mxu0
        %v6230 = vadd.f32 %v5877, %v6229
        %v6231 = vpop.f32.mrb[0].mxu0
        %v6232 = vpop.f32.mrb[0].mxu0
        %v6233 = vadd.f32 %v5880, %v6232
        %v6234 = vpop.f32.mrb[0].mxu0
        %6235 = vmatprep.mubr.bf16.mxu0 0
        %6236 = vmatmul.mubr.bf16.gmra.mrb[0].mxu0 %v4399
        %v6237 = vpop.f32.mrb[0].mxu0
        %v6238 = vpop.f32.mrb[0].mxu0
        %v6239 = vpop.f32.mrb[0].mxu0
        %v6240 = vpop.f32.mrb[0].mxu0
        %6241 = vmatprep.mubr.bf16.mxu0 0
        %6242 = vmatmul.mubr.bf16.gmra.mrb[0].mxu0 %v4400
        %v6243 = vpop.f32.mrb[0].mxu0
        %v6244 = vpop.f32.mrb[0].mxu0
        %v6245 = vpop.f32.mrb[0].mxu0
        %v6246 = vpop.f32.mrb[0].mxu0
        %6247 = vmatprep.mubr.bf16.mxu0 0
        %6248 = vmatmul.mubr.bf16.gmra.mrb[0].mxu0 %v4401
        %v6249 = vpop.f32.mrb[0].mxu0
        %v6250 = vadd.f32 %v5897, %v6249
        %v6251 = vpop.f32.mrb[0].mxu0
        %v6252 = vpop.f32.mrb[0].mxu0
        %v6253 = vadd.f32 %v5900, %v6252
        %v6254 = vpop.f32.mrb[0].mxu0
        %6255 = vmatprep.mubr.bf16.mxu0 0
        %6256 = vmatmul.mubr.bf16.gmra.mrb[0].mxu0 %v4402
        %v6257 = vpop.f32.mrb[0].mxu0
        %v6258 = vpop.f32.mrb[0].mxu0
        %v6259 = vpop.f32.mrb[0].mxu0
        %v6260 = vpop.f32.mrb[0].mxu0
        %6261 = vmatprep.mubr.bf16.mxu0 0
        %6262 = vmatmul.mubr.bf16.gmra.mrb[0].mxu0 %v4403
        %v6263 = vpop.f32.mrb[0].mxu0
        %v6264 = vpop.f32.mrb[0].mxu0
        %v6265 = vpop.f32.mrb[0].mxu0
        %v6266 = vpop.f32.mrb[0].mxu0
        %6267 = vmatprep.mubr.bf16.mxu0 0
        %6268 = vmatmul.mubr.bf16.gmra.mrb[0].mxu0 %v4404
        %v6269 = vpop.f32.mrb[0].mxu0
        %v6270 = vadd.f32 %v5917, %v6269
        %v6271 = vpop.f32.mrb[0].mxu0
        %v6272 = vpop.f32.mrb[0].mxu0
        %v6273 = vadd.f32 %v5920, %v6272
        %v6274 = vpop.f32.mrb[0].mxu0
        %6275 = vmatprep.mubr.bf16.mxu0 0
        %6276 = vmatmul.mubr.bf16.gmra.mrb[0].mxu0 %v4405
        %v6277 = vpop.f32.mrb[0].mxu0
        %v6278 = vpop.f32.mrb[0].mxu0
        %v6279 = vpop.f32.mrb[0].mxu0
        %v6280 = vpop.f32.mrb[0].mxu0
        %6281 = vmatprep.mubr.bf16.mxu0 0
        %6282 = vmatmul.mubr.bf16.gmra.mrb[0].mxu0 %v4406
        %v6283 = vpop.f32.mrb[0].mxu0
        %v6284 = vpop.f32.mrb[0].mxu0
        %v6285 = vpop.f32.mrb[0].mxu0
        %v6286 = vpop.f32.mrb[0].mxu0
        %6287 = vmatprep.mubr.bf16.mxu0 0
        %6288 = vmatmul.mubr.bf16.gmra.mrb[0].mxu0 %v4407
        %v6289 = vpop.f32.mrb[0].mxu0
        %v6290 = vadd.f32 %v5937, %v6289
        %v6291 = vpop.f32.mrb[0].mxu0
        %v6292 = vpop.f32.mrb[0].mxu0
        %v6293 = vadd.f32 %v5940, %v6292
        %v6294 = vpop.f32.mrb[0].mxu0
        %6295 = vmatprep.mubr.bf16.mxu0 0
        %6296 = vmatmul.mubr.bf16.gmra.mrb[0].mxu0 %v4408
        %v6297 = vpop.f32.mrb[0].mxu0
        %v6298 = vpop.f32.mrb[0].mxu0
        %v6299 = vpop.f32.mrb[0].mxu0
        %v6300 = vpop.f32.mrb[0].mxu0
        %6301 = vmatprep.mubr.bf16.mxu0 0
        %6302 = vmatmul.mubr.bf16.gmra.mrb[0].mxu0 %v4409
        %v6303 = vpop.f32.mrb[0].mxu0
        %v6304 = vpop.f32.mrb[0].mxu0
        %v6305 = vpop.f32.mrb[0].mxu0
        %v6306 = vpop.f32.mrb[0].mxu0
        %6307 = vmatprep.mubr.bf16.mxu0 0
        %6308 = vmatmul.mubr.bf16.gmra.mrb[0].mxu0 %v4410
        %v6309 = vpop.f32.mrb[0].mxu0
        %v6310 = vadd.f32 %v5957, %v6309
        %v6311 = vpop.f32.mrb[0].mxu0
        %v6312 = vpop.f32.mrb[0].mxu0
        %v6313 = vadd.f32 %v5960, %v6312
        %v6314 = vpop.f32.mrb[0].mxu0
        %6315 = vmatprep.mubr.bf16.mxu0 0
        %6316 = vmatmul.mubr.bf16.gmra.mrb[0].mxu0 %v4411
        %v6317 = vpop.f32.mrb[0].mxu0
        %v6318 = vpop.f32.mrb[0].mxu0
        %v6319 = vpop.f32.mrb[0].mxu0
        %v6320 = vpop.f32.mrb[0].mxu0
        %6321 = vdwg.mxu0
        %v6322 = vadd.f32 %v5422, %v6010
        %v6323 = vadd.f32 %v5421, %v6013
        %v6324 = vadd.f32 %v5420, %v6030
        %v6325 = vadd.f32 %v5419, %v6033
        %v6326 = vadd.f32 %v5418, %v6050
        %v6327 = vadd.f32 %v5417, %v6053
        %v6328 = vadd.f32 %v5416, %v6070
        %v6329 = vadd.f32 %v5415, %v6073
        %v6330 = vadd.f32 %v5414, %v6090
        %v6331 = vadd.f32 %v5413, %v6093
        %v6332 = vadd.f32 %v5412, %v6110
        %v6333 = vadd.f32 %v5411, %v6113
        %v6334 = vadd.f32 %v5410, %v6130
        %v6335 = vadd.f32 %v5409, %v6133
        %v6336 = vadd.f32 %v5408, %v6150
        %v6337 = vadd.f32 %v5407, %v6153
        %v6338 = vadd.f32 %v5406, %v6170
        %v6339 = vadd.f32 %v5405, %v6173
        %v6340 = vadd.f32 %v5404, %v6190
        %v6341 = vadd.f32 %v5403, %v6193
        %v6342 = vadd.f32 %v5402, %v6210
        %v6343 = vadd.f32 %v5401, %v6213
        %v6344 = vadd.f32 %v5400, %v6230
        %v6345 = vadd.f32 %v5399, %v6233
        %v6346 = vadd.f32 %v5398, %v6250
        %v6347 = vadd.f32 %v5397, %v6253
        %v6348 = vadd.f32 %v5396, %v6270
        %v6349 = vadd.f32 %v5395, %v6273
        %v6350 = vadd.f32 %v5394, %v6290
        %v6351 = vadd.f32 %v5393, %v6293
        %v6352 = vadd.f32 %v5392, %v6310
        %v6353 = vadd.f32 %v5391, %v6313
        %s6354 = scalar_lea.vmem [#allocation6], 384
        %v6355 = vld [vmem:[%s6354] sm:$0xf]
        %v6356 = vld [vmem:[%s6354 + $0x4] sm:$0xf]
        %v6357 = vld [vmem:[%s6354 + $0x8] sm:$0xf]
        %v6358 = vld [vmem:[%s6354 + $0xc] sm:$0xf]
        %v6359 = vld [vmem:[%s6354 + $0x10] sm:$0xf]
        %v6360 = vld [vmem:[%s6354 + $0x14] sm:$0xf]
        %v6361 = vld [vmem:[%s6354 + $0x18] sm:$0xf]
        %v6362 = vld [vmem:[%s6354 + $0x1c] sm:$0xf]
        %v6363 = vld [vmem:[%s6354 + $0x20] sm:$0xf]
        %v6364 = vld [vmem:[%s6354 + $0x24] sm:$0xf]
        %v6365 = vld [vmem:[%s6354 + $0x28] sm:$0xf]
        %v6366 = vld [vmem:[%s6354 + $0x2c] sm:$0xf]
        %v6367 = vld [vmem:[%s6354 + $0x30] sm:$0xf]
        %v6368 = vld [vmem:[%s6354 + $0x34] sm:$0xf]
        %v6369 = vld [vmem:[%s6354 + $0x38] sm:$0xf]
        %v6370 = vld [vmem:[%s6354 + $0x3c] sm:$0xf]
        %v6371 = vld [vmem:[%s6354 + $0x40] sm:$0xf]
        %v6372 = vld [vmem:[%s6354 + $0x44] sm:$0xf]
        %v6373 = vld [vmem:[%s6354 + $0x48] sm:$0xf]
        %v6374 = vld [vmem:[%s6354 + $0x4c] sm:$0xf]
        %v6375 = vld [vmem:[%s6354 + $0x50] sm:$0xf]
        %v6376 = vld [vmem:[%s6354 + $0x54] sm:$0xf]
        %v6377 = vld [vmem:[%s6354 + $0x58] sm:$0xf]
        %v6378 = vld [vmem:[%s6354 + $0x5c] sm:$0xf]
        %v6379 = vld [vmem:[%s6354 + $0x60] sm:$0xf]
        %v6380 = vld [vmem:[%s6354 + $0x64] sm:$0xf]
        %v6381 = vld [vmem:[%s6354 + $0x68] sm:$0xf]
        %v6382 = vld [vmem:[%s6354 + $0x6c] sm:$0xf]
        %v6383 = vld [vmem:[%s6354 + $0x70] sm:$0xf]
        %v6384 = vld [vmem:[%s6354 + $0x74] sm:$0xf]
        %v6385 = vld [vmem:[%s6354 + $0x78] sm:$0xf]
        %v6386 = vld [vmem:[%s6354 + $0x7c] sm:$0xf]
        %v6387 = vld [vmem:[%s6354 + $0x80] sm:$0xf]
        %v6388 = vld [vmem:[%s6354 + $0x84] sm:$0xf]
        %v6389 = vld [vmem:[%s6354 + $0x88] sm:$0xf]
        %v6390 = vld [vmem:[%s6354 + $0x8c] sm:$0xf]
        %v6391 = vld [vmem:[%s6354 + $0x90] sm:$0xf]
        %v6392 = vld [vmem:[%s6354 + $0x94] sm:$0xf]
        %v6393 = vld [vmem:[%s6354 + $0x98] sm:$0xf]
        %v6394 = vld [vmem:[%s6354 + $0x9c] sm:$0xf]
        %v6395 = vld [vmem:[%s6354 + $0xa0] sm:$0xf]
        %v6396 = vld [vmem:[%s6354 + $0xa4] sm:$0xf]
        %v6397 = vld [vmem:[%s6354 + $0xa8] sm:$0xf]
        %v6398 = vld [vmem:[%s6354 + $0xac] sm:$0xf]
        %v6399 = vld [vmem:[%s6354 + $0xb0] sm:$0xf]
        %v6400 = vld [vmem:[%s6354 + $0xb4] sm:$0xf]
        %v6401 = vld [vmem:[%s6354 + $0xb8] sm:$0xf]
        %v6402 = vld [vmem:[%s6354 + $0xbc] sm:$0xf]
        %v6451 = vunpack.c.l.b16 %v6355
        %v6452 = vunpack.c.l.b16 %v6356
        %v6453 = vunpack.c.l.b16 %v6357
        %v6454 = vunpack.c.l.b16 %v6358
        %v6455 = vunpack.c.l.b16 %v6359
        %v6456 = vunpack.c.l.b16 %v6360
        %v6457 = vunpack.c.l.b16 %v6361
        %v6458 = vunpack.c.l.b16 %v6362
        %v6459 = vunpack.c.l.b16 %v6363
        %v6460 = vunpack.c.l.b16 %v6364
        %v6461 = vunpack.c.l.b16 %v6365
        %v6462 = vunpack.c.l.b16 %v6366
        %v6463 = vunpack.c.l.b16 %v6367
        %v6464 = vunpack.c.l.b16 %v6368
        %v6465 = vunpack.c.l.b16 %v6369
        %v6466 = vunpack.c.l.b16 %v6370
        %v6467 = vunpack.c.l.b16 %v6371
        %v6468 = vunpack.c.l.b16 %v6372
        %v6469 = vunpack.c.l.b16 %v6373
        %v6470 = vunpack.c.l.b16 %v6374
        %v6471 = vunpack.c.l.b16 %v6375
        %v6472 = vunpack.c.l.b16 %v6376
        %v6473 = vunpack.c.l.b16 %v6377
        %v6474 = vunpack.c.l.b16 %v6378
        %v6475 = vunpack.c.l.b16 %v6379
        %v6476 = vunpack.c.l.b16 %v6380
        %v6477 = vunpack.c.l.b16 %v6381
        %v6478 = vunpack.c.l.b16 %v6382
        %v6479 = vunpack.c.l.b16 %v6383
        %v6480 = vunpack.c.l.b16 %v6384
        %v6481 = vunpack.c.l.b16 %v6385
        %v6482 = vunpack.c.l.b16 %v6386
        %v6483 = vunpack.c.l.b16 %v6387
        %v6484 = vunpack.c.l.b16 %v6388
        %v6485 = vunpack.c.l.b16 %v6389
        %v6486 = vunpack.c.l.b16 %v6390
        %v6487 = vunpack.c.l.b16 %v6391
        %v6488 = vunpack.c.l.b16 %v6392
        %v6489 = vunpack.c.l.b16 %v6393
        %v6490 = vunpack.c.l.b16 %v6394
        %v6491 = vunpack.c.l.b16 %v6395
        %v6492 = vunpack.c.l.b16 %v6396
        %v6493 = vunpack.c.l.b16 %v6397
        %v6494 = vunpack.c.l.b16 %v6398
        %v6495 = vunpack.c.l.b16 %v6399
        %v6496 = vunpack.c.l.b16 %v6400
        %v6497 = vunpack.c.l.b16 %v6401
        %v6498 = vunpack.c.l.b16 %v6402
        %v6499 = vpack.c.b16 %v6452, %v6451
        %v6500 = vpack.c.b16 %v6454, %v6453
        %v6501 = vpack.c.b16 %v6456, %v6455
        %v6502 = vpack.c.b16 %v6458, %v6457
        %v6503 = vpack.c.b16 %v6460, %v6459
        %v6504 = vpack.c.b16 %v6462, %v6461
        %v6505 = vpack.c.b16 %v6464, %v6463
        %v6506 = vpack.c.b16 %v6466, %v6465
        %v6507 = vpack.c.b16 %v6468, %v6467
        %v6508 = vpack.c.b16 %v6470, %v6469
        %v6509 = vpack.c.b16 %v6472, %v6471
        %v6510 = vpack.c.b16 %v6474, %v6473
        %v6511 = vpack.c.b16 %v6476, %v6475
        %v6512 = vpack.c.b16 %v6478, %v6477
        %v6513 = vpack.c.b16 %v6480, %v6479
        %v6514 = vpack.c.b16 %v6482, %v6481
        %v6515 = vpack.c.b16 %v6484, %v6483
        %v6516 = vpack.c.b16 %v6486, %v6485
        %v6517 = vpack.c.b16 %v6488, %v6487
        %v6518 = vpack.c.b16 %v6490, %v6489
        %v6519 = vpack.c.b16 %v6492, %v6491
        %v6520 = vpack.c.b16 %v6494, %v6493
        %v6521 = vpack.c.b16 %v6496, %v6495
        %v6522 = vpack.c.b16 %v6498, %v6497
        %6547 = vmatprep.subr.bf16.mxu0 0
        %6548 = vmatpush1.bf16.msra.mxu0 %v6499
        %6549 = vmatprep.subr.bf16.mxu0 0
        %6550 = vmatpush1.bf16.msra.mxu0 %v6500
        %6551 = vmatprep.subr.bf16.mxu0 0
        %6552 = vmatpush1.bf16.msra.mxu0 %v6501
        %6553 = vmatprep.subr.bf16.mxu0 0
        %6554 = vmatpush1.bf16.msra.mxu0 %v6502
        %6555 = vmatprep.subr.bf16.mxu0 0
        %6556 = vmatpush1.bf16.msra.mxu0 %v6503
        %6557 = vmatprep.subr.bf16.mxu0 0
        %6558 = vmatpush1.bf16.msra.mxu0 %v6504
        %6559 = vmatprep.subr.bf16.mxu0 0
        %6560 = vmatpush1.bf16.msra.mxu0 %v6505
        %6561 = vmatprep.subr.bf16.mxu0 0
        %6562 = vmatpush1.bf16.msra.mxu0 %v6506
        %6563 = vmatprep.subr.bf16.mxu0 0
        %6564 = vmatpush1.bf16.msra.mxu0 %v6507
        %6565 = vmatprep.subr.bf16.mxu0 0
        %6566 = vmatpush1.bf16.msra.mxu0 %v6508
        %6567 = vmatprep.subr.bf16.mxu0 0
        %6568 = vmatpush1.bf16.msra.mxu0 %v6509
        %6569 = vmatprep.subr.bf16.mxu0 0
        %6570 = vmatpush1.bf16.msra.mxu0 %v6510
        %6571 = vmatprep.subr.bf16.mxu0 0
        %6572 = vmatpush1.bf16.msra.mxu0 %v6511
        %6573 = vmatprep.subr.bf16.mxu0 0
        %6574 = vmatpush1.bf16.msra.mxu0 %v6512
        %6575 = vmatprep.subr.bf16.mxu0 0
        %6576 = vmatpush1.bf16.msra.mxu0 %v6513
        %6577 = vmatprep.subr.bf16.mxu0 0
        %6578 = vmatpush1.bf16.msra.mxu0 %v6514
        %6579 = vmatprep.mubr.bf16.mxu0 %v4358
        %6580 = vmatmul.mubr.bf16.gmra.mrb[0].mxu0 %v4352
        %v6581 = vpop.f32.mrb[0].mxu0
        %v6582 = vpop.f32.mrb[0].mxu0
        %v6583 = vpop.f32.mrb[0].mxu0
        %v6584 = vpop.f32.mrb[0].mxu0
        %6585 = vmatprep.mubr.bf16.mxu0 %v4359
        %6586 = vmatmul.mubr.bf16.gmra.mrb[0].mxu0 %v4353
        %v6587 = vpop.f32.mrb[0].mxu0
        %v6588 = vadd.f32 0.0, %v6587
        %v6589 = vpop.f32.mrb[0].mxu0
        %v6590 = vpop.f32.mrb[0].mxu0
        %v6591 = vadd.f32 0.0, %v6590
        %v6592 = vpop.f32.mrb[0].mxu0
        %6593 = vmatprep.mubr.bf16.mxu0 %v4360
        %6594 = vmatmul.mubr.bf16.gmra.mrb[0].mxu0 %v4354
        %v6595 = vpop.f32.mrb[0].mxu0
        %v6596 = vadd.f32 0.0, %v6595
        %v6597 = vpop.f32.mrb[0].mxu0
        %v6598 = vpop.f32.mrb[0].mxu0
        %v6599 = vpop.f32.mrb[0].mxu0
        %6600 = vmatprep.mubr.bf16.mxu0 %v4361
        %6601 = vmatmul.mubr.bf16.gmra.mrb[0].mxu0 %v4355
        %v6602 = vpop.f32.mrb[0].mxu0
        %v6603 = vpop.f32.mrb[0].mxu0
        %v6604 = vpop.f32.mrb[0].mxu0
        %v6605 = vpop.f32.mrb[0].mxu0
        %6606 = vmatprep.mubr.bf16.mxu0 %v4362
        %6607 = vmatmul.mubr.bf16.gmra.mrb[0].mxu0 %v4356
        %v6608 = vpop.f32.mrb[0].mxu0
        %v6609 = vadd.f32 0.0, %v6608
        %v6610 = vpop.f32.mrb[0].mxu0
        %v6611 = vpop.f32.mrb[0].mxu0
        %v6612 = vadd.f32 0.0, %v6611
        %v6613 = vpop.f32.mrb[0].mxu0
        %6614 = vmatprep.mubr.bf16.mxu0 %v4363
        %6615 = vmatmul.mubr.bf16.gmra.mrb[0].mxu0 %v4357
        %v6616 = vpop.f32.mrb[0].mxu0
        %v6617 = vadd.f32 0.0, %v6616
        %v6618 = vpop.f32.mrb[0].mxu0
        %v6619 = vpop.f32.mrb[0].mxu0
        %v6620 = vpop.f32.mrb[0].mxu0
        %6621 = vmatprep.mubr.bf16.mxu0 %v4364
        %6622 = vmatmul.mubr.bf16.gmra.mrb[0].mxu0 %v4358
        %v6623 = vpop.f32.mrb[0].mxu0
        %v6624 = vpop.f32.mrb[0].mxu0
        %v6625 = vpop.f32.mrb[0].mxu0
        %v6626 = vpop.f32.mrb[0].mxu0
        %6627 = vmatprep.mubr.bf16.mxu0 %v4365
        %6628 = vmatmul.mubr.bf16.gmra.mrb[0].mxu0 %v4359
        %v6629 = vpop.f32.mrb[0].mxu0
        %v6630 = vadd.f32 0.0, %v6629
        %v6631 = vpop.f32.mrb[0].mxu0
        %v6632 = vpop.f32.mrb[0].mxu0
        %v6633 = vadd.f32 0.0, %v6632
        %v6634 = vpop.f32.mrb[0].mxu0
        %6635 = vmatprep.mubr.bf16.mxu0 %v4366
        %6636 = vmatmul.mubr.bf16.gmra.mrb[0].mxu0 %v4360
        %v6637 = vpop.f32.mrb[0].mxu0
        %v6638 = vadd.f32 0.0, %v6637
        %v6639 = vpop.f32.mrb[0].mxu0
        %v6640 = vpop.f32.mrb[0].mxu0
        %v6641 = vpop.f32.mrb[0].mxu0
        %6642 = vmatprep.mubr.bf16.mxu0 %v4367
        %6643 = vmatmul.mubr.bf16.gmra.mrb[0].mxu0 %v4361
        %v6644 = vpop.f32.mrb[0].mxu0
        %v6645 = vpop.f32.mrb[0].mxu0
        %v6646 = vpop.f32.mrb[0].mxu0
        %v6647 = vpop.f32.mrb[0].mxu0
        %6648 = vmatprep.mubr.bf16.mxu0 %v4368
        %6649 = vmatmul.mubr.bf16.gmra.mrb[0].mxu0 %v4362
        %v6650 = vpop.f32.mrb[0].mxu0
        %v6651 = vadd.f32 0.0, %v6650
        %v6652 = vpop.f32.mrb[0].mxu0
        %v6653 = vpop.f32.mrb[0].mxu0
        %v6654 = vadd.f32 0.0, %v6653
        %v6655 = vpop.f32.mrb[0].mxu0
        %6656 = vmatprep.mubr.bf16.mxu0 %v4369
        %6657 = vmatmul.mubr.bf16.gmra.mrb[0].mxu0 %v4363
        %v6658 = vpop.f32.mrb[0].mxu0
        %v6659 = vadd.f32 0.0, %v6658
        %v6660 = vpop.f32.mrb[0].mxu0
        %v6661 = vpop.f32.mrb[0].mxu0
        %v6662 = vpop.f32.mrb[0].mxu0
        %6663 = vmatprep.mubr.bf16.mxu0 %v4370
        %6664 = vmatmul.mubr.bf16.gmra.mrb[0].mxu0 %v4364
        %v6665 = vpop.f32.mrb[0].mxu0
        %v6666 = vpop.f32.mrb[0].mxu0
        %v6667 = vpop.f32.mrb[0].mxu0
        %v6668 = vpop.f32.mrb[0].mxu0
        %6669 = vmatprep.mubr.bf16.mxu0 %v4371
        %6670 = vmatmul.mubr.bf16.gmra.mrb[0].mxu0 %v4365
        %v6671 = vpop.f32.mrb[0].mxu0
        %v6672 = vadd.f32 0.0, %v6671
        %v6673 = vpop.f32.mrb[0].mxu0
        %v6674 = vpop.f32.mrb[0].mxu0
        %v6675 = vadd.f32 0.0, %v6674
        %v6676 = vpop.f32.mrb[0].mxu0
        %6677 = vmatprep.mubr.bf16.mxu0 %v4372
        %6678 = vmatmul.mubr.bf16.gmra.mrb[0].mxu0 %v4366
        %v6679 = vpop.f32.mrb[0].mxu0
        %v6680 = vadd.f32 0.0, %v6679
        %v6681 = vpop.f32.mrb[0].mxu0
        %v6682 = vpop.f32.mrb[0].mxu0
        %v6683 = vpop.f32.mrb[0].mxu0
        %6684 = vmatprep.mubr.bf16.mxu0 %v4373
        %6685 = vmatmul.mubr.bf16.gmra.mrb[0].mxu0 %v4367
        %v6686 = vpop.f32.mrb[0].mxu0
        %v6687 = vpop.f32.mrb[0].mxu0
        %v6688 = vpop.f32.mrb[0].mxu0
        %v6689 = vpop.f32.mrb[0].mxu0
        %6690 = vmatprep.mubr.bf16.mxu0 %v4374
        %6691 = vmatmul.mubr.bf16.gmra.mrb[0].mxu0 %v4368
        %v6692 = vpop.f32.mrb[0].mxu0
        %v6693 = vadd.f32 0.0, %v6692
        %v6694 = vpop.f32.mrb[0].mxu0
        %v6695 = vpop.f32.mrb[0].mxu0
        %v6696 = vadd.f32 0.0, %v6695
        %v6697 = vpop.f32.mrb[0].mxu0
        %6698 = vmatprep.mubr.bf16.mxu0 %v4375
        %6699 = vmatmul.mubr.bf16.gmra.mrb[0].mxu0 %v4369
        %v6700 = vpop.f32.mrb[0].mxu0
        %v6701 = vadd.f32 0.0, %v6700
        %v6702 = vpop.f32.mrb[0].mxu0
        %v6703 = vpop.f32.mrb[0].mxu0
        %v6704 = vpop.f32.mrb[0].mxu0
        %6705 = vmatprep.mubr.bf16.mxu0 %v4376
        %6706 = vmatmul.mubr.bf16.gmra.mrb[0].mxu0 %v4370
        %v6707 = vpop.f32.mrb[0].mxu0
        %v6708 = vpop.f32.mrb[0].mxu0
        %v6709 = vpop.f32.mrb[0].mxu0
        %v6710 = vpop.f32.mrb[0].mxu0
        %6711 = vmatprep.mubr.bf16.mxu0 %v4377
        %6712 = vmatmul.mubr.bf16.gmra.mrb[0].mxu0 %v4371
        %v6713 = vpop.f32.mrb[0].mxu0
        %v6714 = vadd.f32 0.0, %v6713
        %v6715 = vpop.f32.mrb[0].mxu0
        %v6716 = vpop.f32.mrb[0].mxu0
        %v6717 = vadd.f32 0.0, %v6716
        %v6718 = vpop.f32.mrb[0].mxu0
        %6719 = vmatprep.mubr.bf16.mxu0 %v4378
        %6720 = vmatmul.mubr.bf16.gmra.mrb[0].mxu0 %v4372
        %v6721 = vpop.f32.mrb[0].mxu0
        %v6722 = vadd.f32 0.0, %v6721
        %v6723 = vpop.f32.mrb[0].mxu0
        %v6724 = vpop.f32.mrb[0].mxu0
        %v6725 = vpop.f32.mrb[0].mxu0
        %6726 = vmatprep.mubr.bf16.mxu0 %v4379
        %6727 = vmatmul.mubr.bf16.gmra.mrb[0].mxu0 %v4373
        %v6728 = vpop.f32.mrb[0].mxu0
        %v6729 = vpop.f32.mrb[0].mxu0
        %v6730 = vpop.f32.mrb[0].mxu0
        %v6731 = vpop.f32.mrb[0].mxu0
        %6732 = vmatprep.mubr.bf16.mxu0 %v4380
        %6733 = vmatmul.mubr.bf16.gmra.mrb[0].mxu0 %v4374
        %v6734 = vpop.f32.mrb[0].mxu0
        %v6735 = vadd.f32 0.0, %v6734
        %v6736 = vpop.f32.mrb[0].mxu0
        %v6737 = vpop.f32.mrb[0].mxu0
        %v6738 = vadd.f32 0.0, %v6737
        %v6739 = vpop.f32.mrb[0].mxu0
        %6740 = vmatprep.mubr.bf16.mxu0 %v4381
        %6741 = vmatmul.mubr.bf16.gmra.mrb[0].mxu0 %v4375
        %v6742 = vpop.f32.mrb[0].mxu0
        %v6743 = vadd.f32 0.0, %v6742
        %v6744 = vpop.f32.mrb[0].mxu0
        %v6745 = vpop.f32.mrb[0].mxu0
        %v6746 = vpop.f32.mrb[0].mxu0
        %6747 = vmatprep.mubr.bf16.mxu0 %v4382
        %6748 = vmatmul.mubr.bf16.gmra.mrb[0].mxu0 %v4376
        %v6749 = vpop.f32.mrb[0].mxu0
        %v6750 = vpop.f32.mrb[0].mxu0
        %v6751 = vpop.f32.mrb[0].mxu0
        %v6752 = vpop.f32.mrb[0].mxu0
        %6753 = vmatprep.mubr.bf16.mxu0 %v4383
        %6754 = vmatmul.mubr.bf16.gmra.mrb[0].mxu0 %v4377
        %v6755 = vpop.f32.mrb[0].mxu0
        %v6756 = vadd.f32 0.0, %v6755
        %v6757 = vpop.f32.mrb[0].mxu0
        %v6758 = vpop.f32.mrb[0].mxu0
        %v6759 = vadd.f32 0.0, %v6758
        %v6760 = vpop.f32.mrb[0].mxu0
        %6761 = vmatprep.mubr.bf16.mxu0 %v4384
        %6762 = vmatmul.mubr.bf16.gmra.mrb[0].mxu0 %v4378
        %v6763 = vpop.f32.mrb[0].mxu0
        %v6764 = vadd.f32 0.0, %v6763
        %v6765 = vpop.f32.mrb[0].mxu0
        %v6766 = vpop.f32.mrb[0].mxu0
        %v6767 = vpop.f32.mrb[0].mxu0
        %6768 = vmatprep.mubr.bf16.mxu0 %v4385
        %6769 = vmatmul.mubr.bf16.gmra.mrb[0].mxu0 %v4379
        %v6770 = vpop.f32.mrb[0].mxu0
        %v6771 = vpop.f32.mrb[0].mxu0
        %v6772 = vpop.f32.mrb[0].mxu0
        %v6773 = vpop.f32.mrb[0].mxu0
        %6774 = vmatprep.mubr.bf16.mxu0 %v4386
        %6775 = vmatmul.mubr.bf16.gmra.mrb[0].mxu0 %v4380
        %v6776 = vpop.f32.mrb[0].mxu0
        %v6777 = vadd.f32 0.0, %v6776
        %v6778 = vpop.f32.mrb[0].mxu0
        %v6779 = vpop.f32.mrb[0].mxu0
        %v6780 = vadd.f32 0.0, %v6779
        %v6781 = vpop.f32.mrb[0].mxu0
        %6782 = vmatprep.mubr.bf16.mxu0 %v4387
        %6783 = vmatmul.mubr.bf16.gmra.mrb[0].mxu0 %v4381
        %v6784 = vpop.f32.mrb[0].mxu0
        %v6785 = vadd.f32 0.0, %v6784
        %v6786 = vpop.f32.mrb[0].mxu0
        %v6787 = vpop.f32.mrb[0].mxu0
        %v6788 = vpop.f32.mrb[0].mxu0
        %6789 = vmatprep.mubr.bf16.mxu0 %v4388
        %6790 = vmatmul.mubr.bf16.gmra.mrb[0].mxu0 %v4382
        %v6791 = vpop.f32.mrb[0].mxu0
        %v6792 = vpop.f32.mrb[0].mxu0
        %v6793 = vpop.f32.mrb[0].mxu0
        %v6794 = vpop.f32.mrb[0].mxu0
        %6795 = vmatprep.mubr.bf16.mxu0 %v4389
        %6796 = vmatmul.mubr.bf16.gmra.mrb[0].mxu0 %v4383
        %v6797 = vpop.f32.mrb[0].mxu0
        %v6798 = vadd.f32 0.0, %v6797
        %v6799 = vpop.f32.mrb[0].mxu0
        %v6800 = vpop.f32.mrb[0].mxu0
        %v6801 = vadd.f32 0.0, %v6800
        %v6802 = vpop.f32.mrb[0].mxu0
        %6803 = vmatprep.mubr.bf16.mxu0 %v4390
        %6804 = vmatmul.mubr.bf16.gmra.mrb[0].mxu0 %v4384
        %v6805 = vpop.f32.mrb[0].mxu0
        %v6806 = vadd.f32 0.0, %v6805
        %v6807 = vpop.f32.mrb[0].mxu0
        %v6808 = vpop.f32.mrb[0].mxu0
        %v6809 = vpop.f32.mrb[0].mxu0
        %6810 = vmatprep.mubr.bf16.mxu0 %v4391
        %6811 = vmatmul.mubr.bf16.gmra.mrb[0].mxu0 %v4385
        %v6812 = vpop.f32.mrb[0].mxu0
        %v6813 = vpop.f32.mrb[0].mxu0
        %v6814 = vpop.f32.mrb[0].mxu0
        %v6815 = vpop.f32.mrb[0].mxu0
        %6816 = vmatprep.mubr.bf16.mxu0 %v4392
        %6817 = vmatmul.mubr.bf16.gmra.mrb[0].mxu0 %v4386
        %v6818 = vpop.f32.mrb[0].mxu0
        %v6819 = vadd.f32 0.0, %v6818
        %v6820 = vpop.f32.mrb[0].mxu0
        %v6821 = vpop.f32.mrb[0].mxu0
        %v6822 = vadd.f32 0.0, %v6821
        %v6823 = vpop.f32.mrb[0].mxu0
        %6824 = vmatprep.mubr.bf16.mxu0 %v4393
        %6825 = vmatmul.mubr.bf16.gmra.mrb[0].mxu0 %v4387
        %v6826 = vpop.f32.mrb[0].mxu0
        %v6827 = vadd.f32 0.0, %v6826
        %v6828 = vpop.f32.mrb[0].mxu0
        %v6829 = vpop.f32.mrb[0].mxu0
        %v6830 = vpop.f32.mrb[0].mxu0
        %6831 = vmatprep.mubr.bf16.mxu0 %v4394
        %6832 = vmatmul.mubr.bf16.gmra.mrb[0].mxu0 %v4388
        %v6833 = vpop.f32.mrb[0].mxu0
        %v6834 = vpop.f32.mrb[0].mxu0
        %v6835 = vpop.f32.mrb[0].mxu0
        %v6836 = vpop.f32.mrb[0].mxu0
        %6837 = vmatprep.mubr.bf16.mxu0 %v4395
        %6838 = vmatmul.mubr.bf16.gmra.mrb[0].mxu0 %v4389
        %v6839 = vpop.f32.mrb[0].mxu0
        %v6840 = vadd.f32 0.0, %v6839
        %v6841 = vpop.f32.mrb[0].mxu0
        %v6842 = vpop.f32.mrb[0].mxu0
        %v6843 = vadd.f32 0.0, %v6842
        %v6844 = vpop.f32.mrb[0].mxu0
        %6845 = vmatprep.mubr.bf16.mxu0 %v4396
        %6846 = vmatmul.mubr.bf16.gmra.mrb[0].mxu0 %v4390
        %v6847 = vpop.f32.mrb[0].mxu0
        %v6848 = vadd.f32 0.0, %v6847
        %v6849 = vpop.f32.mrb[0].mxu0
        %v6850 = vpop.f32.mrb[0].mxu0
        %v6851 = vpop.f32.mrb[0].mxu0
        %6852 = vmatprep.mubr.bf16.mxu0 %v4397
        %6853 = vmatmul.mubr.bf16.gmra.mrb[0].mxu0 %v4391
        %v6854 = vpop.f32.mrb[0].mxu0
        %v6855 = vpop.f32.mrb[0].mxu0
        %v6856 = vpop.f32.mrb[0].mxu0
        %v6857 = vpop.f32.mrb[0].mxu0
        %6858 = vmatprep.mubr.bf16.mxu0 %v4398
        %6859 = vmatmul.mubr.bf16.gmra.mrb[0].mxu0 %v4392
        %v6860 = vpop.f32.mrb[0].mxu0
        %v6861 = vadd.f32 0.0, %v6860
        %v6862 = vpop.f32.mrb[0].mxu0
        %v6863 = vpop.f32.mrb[0].mxu0
        %v6864 = vadd.f32 0.0, %v6863
        %v6865 = vpop.f32.mrb[0].mxu0
        %6866 = vmatprep.mubr.bf16.mxu0 %v4399
        %6867 = vmatmul.mubr.bf16.gmra.mrb[0].mxu0 %v4393
        %v6868 = vpop.f32.mrb[0].mxu0
        %v6869 = vadd.f32 0.0, %v6868
        %v6870 = vpop.f32.mrb[0].mxu0
        %v6871 = vpop.f32.mrb[0].mxu0
        %v6872 = vpop.f32.mrb[0].mxu0
        %6873 = vmatprep.mubr.bf16.mxu0 %v4400
        %6874 = vmatmul.mubr.bf16.gmra.mrb[0].mxu0 %v4394
        %v6875 = vpop.f32.mrb[0].mxu0
        %v6876 = vpop.f32.mrb[0].mxu0
        %v6877 = vpop.f32.mrb[0].mxu0
        %v6878 = vpop.f32.mrb[0].mxu0
        %6879 = vmatprep.mubr.bf16.mxu0 %v4401
        %6880 = vmatmul.mubr.bf16.gmra.mrb[0].mxu0 %v4395
        %v6881 = vpop.f32.mrb[0].mxu0
        %v6882 = vadd.f32 0.0, %v6881
        %v6883 = vpop.f32.mrb[0].mxu0
        %v6884 = vpop.f32.mrb[0].mxu0
        %v6885 = vadd.f32 0.0, %v6884
        %v6886 = vpop.f32.mrb[0].mxu0
        %6887 = vmatprep.mubr.bf16.mxu0 %v4402
        %6888 = vmatmul.mubr.bf16.gmra.mrb[0].mxu0 %v4396
        %v6889 = vpop.f32.mrb[0].mxu0
        %v6890 = vadd.f32 0.0, %v6889
        %v6891 = vpop.f32.mrb[0].mxu0
        %v6892 = vpop.f32.mrb[0].mxu0
        %v6893 = vpop.f32.mrb[0].mxu0
        %6894 = vmatprep.mubr.bf16.mxu0 %v4403
        %6895 = vmatmul.mubr.bf16.gmra.mrb[0].mxu0 %v4397
        %v6896 = vpop.f32.mrb[0].mxu0
        %v6897 = vpop.f32.mrb[0].mxu0
        %v6898 = vpop.f32.mrb[0].mxu0
        %v6899 = vpop.f32.mrb[0].mxu0
        %6900 = vmatprep.mubr.bf16.mxu0 %v4404
        %6901 = vmatmul.mubr.bf16.gmra.mrb[0].mxu0 %v4398
        %v6902 = vpop.f32.mrb[0].mxu0
        %v6903 = vadd.f32 0.0, %v6902
        %v6904 = vpop.f32.mrb[0].mxu0
        %v6905 = vpop.f32.mrb[0].mxu0
        %v6906 = vadd.f32 0.0, %v6905
        %v6907 = vpop.f32.mrb[0].mxu0
        %6908 = vmatprep.mubr.bf16.mxu0 %v4405
        %6909 = vmatmul.mubr.bf16.gmra.mrb[0].mxu0 %v4399
        %v6910 = vpop.f32.mrb[0].mxu0
        %v6911 = vadd.f32 0.0, %v6910
        %v6912 = vpop.f32.mrb[0].mxu0
        %v6913 = vpop.f32.mrb[0].mxu0
        %v6914 = vpop.f32.mrb[0].mxu0
        %6915 = vdwg.mxu0
        %6916 = vmatprep.subr.bf16.mxu0 0
        %6917 = vmatpush1.bf16.msra.mxu0 %v6515
        %6918 = vmatprep.subr.bf16.mxu0 0
        %6919 = vmatpush1.bf16.msra.mxu0 %v6516
        %6920 = vmatprep.subr.bf16.mxu0 0
        %6921 = vmatpush1.bf16.msra.mxu0 %v6517
        %6922 = vmatprep.subr.bf16.mxu0 0
        %6923 = vmatpush1.bf16.msra.mxu0 %v6518
        %6924 = vmatprep.subr.bf16.mxu0 0
        %6925 = vmatpush1.bf16.msra.mxu0 %v6519
        %6926 = vmatprep.subr.bf16.mxu0 0
        %6927 = vmatpush1.bf16.msra.mxu0 %v6520
        %6928 = vmatprep.subr.bf16.mxu0 0
        %6929 = vmatpush1.bf16.msra.mxu0 %v6521
        %6930 = vmatprep.subr.bf16.mxu0 0
        %6931 = vmatpush1.bf16.msra.mxu0 %v6522
        %6932 = vmatprep.subr.bf16.mxu0 0
        %6933 = vmatpush1.bf16.msra.mxu0 0
        %6934 = vmatprep.subr.bf16.mxu0 0
        %6935 = vmatpush1.bf16.msra.mxu0 0
        %6936 = vmatprep.subr.bf16.mxu0 0
        %6937 = vmatpush1.bf16.msra.mxu0 0
        %6938 = vmatprep.subr.bf16.mxu0 0
        %6939 = vmatpush1.bf16.msra.mxu0 0
        %6940 = vmatprep.subr.bf16.mxu0 0
        %6941 = vmatpush1.bf16.msra.mxu0 0
        %6942 = vmatprep.subr.bf16.mxu0 0
        %6943 = vmatpush1.bf16.msra.mxu0 0
        %6944 = vmatprep.subr.bf16.mxu0 0
        %6945 = vmatpush1.bf16.msra.mxu0 0
        %6946 = vmatprep.subr.bf16.mxu0 0
        %6947 = vmatpush1.bf16.msra.mxu0 0
        %6948 = vmatprep.mubr.bf16.mxu0 0
        %6949 = vmatmul.mubr.bf16.gmra.mrb[0].mxu0 %v4364
        %v6950 = vpop.f32.mrb[0].mxu0
        %v6951 = vpop.f32.mrb[0].mxu0
        %v6952 = vpop.f32.mrb[0].mxu0
        %v6953 = vpop.f32.mrb[0].mxu0
        %6954 = vmatprep.mubr.bf16.mxu0 0
        %6955 = vmatmul.mubr.bf16.gmra.mrb[0].mxu0 %v4365
        %v6956 = vpop.f32.mrb[0].mxu0
        %v6957 = vadd.f32 %v6588, %v6956
        %v6958 = vpop.f32.mrb[0].mxu0
        %v6959 = vpop.f32.mrb[0].mxu0
        %v6960 = vadd.f32 %v6591, %v6959
        %v6961 = vpop.f32.mrb[0].mxu0
        %6962 = vmatprep.mubr.bf16.mxu0 0
        %6963 = vmatmul.mubr.bf16.gmra.mrb[0].mxu0 %v4366
        %v6964 = vpop.f32.mrb[0].mxu0
        %v6965 = vadd.f32 %v6596, %v6964
        %v6966 = vpop.f32.mrb[0].mxu0
        %v6967 = vpop.f32.mrb[0].mxu0
        %v6968 = vpop.f32.mrb[0].mxu0
        %6969 = vmatprep.mubr.bf16.mxu0 0
        %6970 = vmatmul.mubr.bf16.gmra.mrb[0].mxu0 %v4367
        %v6971 = vpop.f32.mrb[0].mxu0
        %v6972 = vpop.f32.mrb[0].mxu0
        %v6973 = vpop.f32.mrb[0].mxu0
        %v6974 = vpop.f32.mrb[0].mxu0
        %6975 = vmatprep.mubr.bf16.mxu0 0
        %6976 = vmatmul.mubr.bf16.gmra.mrb[0].mxu0 %v4368
        %v6977 = vpop.f32.mrb[0].mxu0
        %v6978 = vadd.f32 %v6609, %v6977
        %v6979 = vpop.f32.mrb[0].mxu0
        %v6980 = vpop.f32.mrb[0].mxu0
        %v6981 = vadd.f32 %v6612, %v6980
        %v6982 = vpop.f32.mrb[0].mxu0
        %6983 = vmatprep.mubr.bf16.mxu0 0
        %6984 = vmatmul.mubr.bf16.gmra.mrb[0].mxu0 %v4369
        %v6985 = vpop.f32.mrb[0].mxu0
        %v6986 = vadd.f32 %v6617, %v6985
        %v6987 = vpop.f32.mrb[0].mxu0
        %v6988 = vpop.f32.mrb[0].mxu0
        %v6989 = vpop.f32.mrb[0].mxu0
        %6990 = vmatprep.mubr.bf16.mxu0 0
        %6991 = vmatmul.mubr.bf16.gmra.mrb[0].mxu0 %v4370
        %v6992 = vpop.f32.mrb[0].mxu0
        %v6993 = vpop.f32.mrb[0].mxu0
        %v6994 = vpop.f32.mrb[0].mxu0
        %v6995 = vpop.f32.mrb[0].mxu0
        %6996 = vmatprep.mubr.bf16.mxu0 0
        %6997 = vmatmul.mubr.bf16.gmra.mrb[0].mxu0 %v4371
        %v6998 = vpop.f32.mrb[0].mxu0
        %v6999 = vadd.f32 %v6630, %v6998
        %v7000 = vpop.f32.mrb[0].mxu0
        %v7001 = vpop.f32.mrb[0].mxu0
        %v7002 = vadd.f32 %v6633, %v7001
        %v7003 = vpop.f32.mrb[0].mxu0
        %7004 = vmatprep.mubr.bf16.mxu0 0
        %7005 = vmatmul.mubr.bf16.gmra.mrb[0].mxu0 %v4372
        %v7006 = vpop.f32.mrb[0].mxu0
        %v7007 = vadd.f32 %v6638, %v7006
        %v7008 = vpop.f32.mrb[0].mxu0
        %v7009 = vpop.f32.mrb[0].mxu0
        %v7010 = vpop.f32.mrb[0].mxu0
        %7011 = vmatprep.mubr.bf16.mxu0 0
        %7012 = vmatmul.mubr.bf16.gmra.mrb[0].mxu0 %v4373
        %v7013 = vpop.f32.mrb[0].mxu0
        %v7014 = vpop.f32.mrb[0].mxu0
        %v7015 = vpop.f32.mrb[0].mxu0
        %v7016 = vpop.f32.mrb[0].mxu0
        %7017 = vmatprep.mubr.bf16.mxu0 0
        %7018 = vmatmul.mubr.bf16.gmra.mrb[0].mxu0 %v4374
        %v7019 = vpop.f32.mrb[0].mxu0
        %v7020 = vadd.f32 %v6651, %v7019
        %v7021 = vpop.f32.mrb[0].mxu0
        %v7022 = vpop.f32.mrb[0].mxu0
        %v7023 = vadd.f32 %v6654, %v7022
        %v7024 = vpop.f32.mrb[0].mxu0
        %7025 = vmatprep.mubr.bf16.mxu0 0
        %7026 = vmatmul.mubr.bf16.gmra.mrb[0].mxu0 %v4375
        %v7027 = vpop.f32.mrb[0].mxu0
        %v7028 = vadd.f32 %v6659, %v7027
        %v7029 = vpop.f32.mrb[0].mxu0
        %v7030 = vpop.f32.mrb[0].mxu0
        %v7031 = vpop.f32.mrb[0].mxu0
        %7032 = vmatprep.mubr.bf16.mxu0 0
        %7033 = vmatmul.mubr.bf16.gmra.mrb[0].mxu0 %v4376
        %v7034 = vpop.f32.mrb[0].mxu0
        %v7035 = vpop.f32.mrb[0].mxu0
        %v7036 = vpop.f32.mrb[0].mxu0
        %v7037 = vpop.f32.mrb[0].mxu0
        %7038 = vmatprep.mubr.bf16.mxu0 0
        %7039 = vmatmul.mubr.bf16.gmra.mrb[0].mxu0 %v4377
        %v7040 = vpop.f32.mrb[0].mxu0
        %v7041 = vadd.f32 %v6672, %v7040
        %v7042 = vpop.f32.mrb[0].mxu0
        %v7043 = vpop.f32.mrb[0].mxu0
        %v7044 = vadd.f32 %v6675, %v7043
        %v7045 = vpop.f32.mrb[0].mxu0
        %7046 = vmatprep.mubr.bf16.mxu0 0
        %7047 = vmatmul.mubr.bf16.gmra.mrb[0].mxu0 %v4378
        %v7048 = vpop.f32.mrb[0].mxu0
        %v7049 = vadd.f32 %v6680, %v7048
        %v7050 = vpop.f32.mrb[0].mxu0
        %v7051 = vpop.f32.mrb[0].mxu0
        %v7052 = vpop.f32.mrb[0].mxu0
        %7053 = vmatprep.mubr.bf16.mxu0 0
        %7054 = vmatmul.mubr.bf16.gmra.mrb[0].mxu0 %v4379
        %v7055 = vpop.f32.mrb[0].mxu0
        %v7056 = vpop.f32.mrb[0].mxu0
        %v7057 = vpop.f32.mrb[0].mxu0
        %v7058 = vpop.f32.mrb[0].mxu0
        %7059 = vmatprep.mubr.bf16.mxu0 0
        %7060 = vmatmul.mubr.bf16.gmra.mrb[0].mxu0 %v4380
        %v7061 = vpop.f32.mrb[0].mxu0
        %v7062 = vadd.f32 %v6693, %v7061
        %v7063 = vpop.f32.mrb[0].mxu0
        %v7064 = vpop.f32.mrb[0].mxu0
        %v7065 = vadd.f32 %v6696, %v7064
        %v7066 = vpop.f32.mrb[0].mxu0
        %7067 = vmatprep.mubr.bf16.mxu0 0
        %7068 = vmatmul.mubr.bf16.gmra.mrb[0].mxu0 %v4381
        %v7069 = vpop.f32.mrb[0].mxu0
        %v7070 = vadd.f32 %v6701, %v7069
        %v7071 = vpop.f32.mrb[0].mxu0
        %v7072 = vpop.f32.mrb[0].mxu0
        %v7073 = vpop.f32.mrb[0].mxu0
        %7074 = vmatprep.mubr.bf16.mxu0 0
        %7075 = vmatmul.mubr.bf16.gmra.mrb[0].mxu0 %v4382
        %v7076 = vpop.f32.mrb[0].mxu0
        %v7077 = vpop.f32.mrb[0].mxu0
        %v7078 = vpop.f32.mrb[0].mxu0
        %v7079 = vpop.f32.mrb[0].mxu0
        %7080 = vmatprep.mubr.bf16.mxu0 0
        %7081 = vmatmul.mubr.bf16.gmra.mrb[0].mxu0 %v4383
        %v7082 = vpop.f32.mrb[0].mxu0
        %v7083 = vadd.f32 %v6714, %v7082
        %v7084 = vpop.f32.mrb[0].mxu0
        %v7085 = vpop.f32.mrb[0].mxu0
        %v7086 = vadd.f32 %v6717, %v7085
        %v7087 = vpop.f32.mrb[0].mxu0
        %7088 = vmatprep.mubr.bf16.mxu0 0
        %7089 = vmatmul.mubr.bf16.gmra.mrb[0].mxu0 %v4384
        %v7090 = vpop.f32.mrb[0].mxu0
        %v7091 = vadd.f32 %v6722, %v7090
        %v7092 = vpop.f32.mrb[0].mxu0
        %v7093 = vpop.f32.mrb[0].mxu0
        %v7094 = vpop.f32.mrb[0].mxu0
        %7095 = vmatprep.mubr.bf16.mxu0 0
        %7096 = vmatmul.mubr.bf16.gmra.mrb[0].mxu0 %v4385
        %v7097 = vpop.f32.mrb[0].mxu0
        %v7098 = vpop.f32.mrb[0].mxu0
        %v7099 = vpop.f32.mrb[0].mxu0
        %v7100 = vpop.f32.mrb[0].mxu0
        %7101 = vmatprep.mubr.bf16.mxu0 0
        %7102 = vmatmul.mubr.bf16.gmra.mrb[0].mxu0 %v4386
        %v7103 = vpop.f32.mrb[0].mxu0
        %v7104 = vadd.f32 %v6735, %v7103
        %v7105 = vpop.f32.mrb[0].mxu0
        %v7106 = vpop.f32.mrb[0].mxu0
        %v7107 = vadd.f32 %v6738, %v7106
        %v7108 = vpop.f32.mrb[0].mxu0
        %7109 = vmatprep.mubr.bf16.mxu0 0
        %7110 = vmatmul.mubr.bf16.gmra.mrb[0].mxu0 %v4387
        %v7111 = vpop.f32.mrb[0].mxu0
        %v7112 = vadd.f32 %v6743, %v7111
        %v7113 = vpop.f32.mrb[0].mxu0
        %v7114 = vpop.f32.mrb[0].mxu0
        %v7115 = vpop.f32.mrb[0].mxu0
        %7116 = vmatprep.mubr.bf16.mxu0 0
        %7117 = vmatmul.mubr.bf16.gmra.mrb[0].mxu0 %v4388
        %v7118 = vpop.f32.mrb[0].mxu0
        %v7119 = vpop.f32.mrb[0].mxu0
        %v7120 = vpop.f32.mrb[0].mxu0
        %v7121 = vpop.f32.mrb[0].mxu0
        %7122 = vmatprep.mubr.bf16.mxu0 0
        %7123 = vmatmul.mubr.bf16.gmra.mrb[0].mxu0 %v4389
        %v7124 = vpop.f32.mrb[0].mxu0
        %v7125 = vadd.f32 %v6756, %v7124
        %v7126 = vpop.f32.mrb[0].mxu0
        %v7127 = vpop.f32.mrb[0].mxu0
        %v7128 = vadd.f32 %v6759, %v7127
        %v7129 = vpop.f32.mrb[0].mxu0
        %7130 = vmatprep.mubr.bf16.mxu0 0
        %7131 = vmatmul.mubr.bf16.gmra.mrb[0].mxu0 %v4390
        %v7132 = vpop.f32.mrb[0].mxu0
        %v7133 = vadd.f32 %v6764, %v7132
        %v7134 = vpop.f32.mrb[0].mxu0
        %v7135 = vpop.f32.mrb[0].mxu0
        %v7136 = vpop.f32.mrb[0].mxu0
        %7137 = vmatprep.mubr.bf16.mxu0 0
        %7138 = vmatmul.mubr.bf16.gmra.mrb[0].mxu0 %v4391
        %v7139 = vpop.f32.mrb[0].mxu0
        %v7140 = vpop.f32.mrb[0].mxu0
        %v7141 = vpop.f32.mrb[0].mxu0
        %v7142 = vpop.f32.mrb[0].mxu0
        %7143 = vmatprep.mubr.bf16.mxu0 0
        %7144 = vmatmul.mubr.bf16.gmra.mrb[0].mxu0 %v4392
        %v7145 = vpop.f32.mrb[0].mxu0
        %v7146 = vadd.f32 %v6777, %v7145
        %v7147 = vpop.f32.mrb[0].mxu0
        %v7148 = vpop.f32.mrb[0].mxu0
        %v7149 = vadd.f32 %v6780, %v7148
        %v7150 = vpop.f32.mrb[0].mxu0
        %7151 = vmatprep.mubr.bf16.mxu0 0
        %7152 = vmatmul.mubr.bf16.gmra.mrb[0].mxu0 %v4393
        %v7153 = vpop.f32.mrb[0].mxu0
        %v7154 = vadd.f32 %v6785, %v7153
        %v7155 = vpop.f32.mrb[0].mxu0
        %v7156 = vpop.f32.mrb[0].mxu0
        %v7157 = vpop.f32.mrb[0].mxu0
        %7158 = vmatprep.mubr.bf16.mxu0 0
        %7159 = vmatmul.mubr.bf16.gmra.mrb[0].mxu0 %v4394
        %v7160 = vpop.f32.mrb[0].mxu0
        %v7161 = vpop.f32.mrb[0].mxu0
        %v7162 = vpop.f32.mrb[0].mxu0
        %v7163 = vpop.f32.mrb[0].mxu0
        %7164 = vmatprep.mubr.bf16.mxu0 0
        %7165 = vmatmul.mubr.bf16.gmra.mrb[0].mxu0 %v4395
        %v7166 = vpop.f32.mrb[0].mxu0
        %v7167 = vadd.f32 %v6798, %v7166
        %v7168 = vpop.f32.mrb[0].mxu0
        %v7169 = vpop.f32.mrb[0].mxu0
        %v7170 = vadd.f32 %v6801, %v7169
        %v7171 = vpop.f32.mrb[0].mxu0
        %7172 = vmatprep.mubr.bf16.mxu0 0
        %7173 = vmatmul.mubr.bf16.gmra.mrb[0].mxu0 %v4396
        %v7174 = vpop.f32.mrb[0].mxu0
        %v7175 = vadd.f32 %v6806, %v7174
        %v7176 = vpop.f32.mrb[0].mxu0
        %v7177 = vpop.f32.mrb[0].mxu0
        %v7178 = vpop.f32.mrb[0].mxu0
        %7179 = vmatprep.mubr.bf16.mxu0 0
        %7180 = vmatmul.mubr.bf16.gmra.mrb[0].mxu0 %v4397
        %v7181 = vpop.f32.mrb[0].mxu0
        %v7182 = vpop.f32.mrb[0].mxu0
        %v7183 = vpop.f32.mrb[0].mxu0
        %v7184 = vpop.f32.mrb[0].mxu0
        %7185 = vmatprep.mubr.bf16.mxu0 0
        %7186 = vmatmul.mubr.bf16.gmra.mrb[0].mxu0 %v4398
        %v7187 = vpop.f32.mrb[0].mxu0
        %v7188 = vadd.f32 %v6819, %v7187
        %v7189 = vpop.f32.mrb[0].mxu0
        %v7190 = vpop.f32.mrb[0].mxu0
        %v7191 = vadd.f32 %v6822, %v7190
        %v7192 = vpop.f32.mrb[0].mxu0
        %7193 = vmatprep.mubr.bf16.mxu0 0
        %7194 = vmatmul.mubr.bf16.gmra.mrb[0].mxu0 %v4399
        %v7195 = vpop.f32.mrb[0].mxu0
        %v7196 = vadd.f32 %v6827, %v7195
        %v7197 = vpop.f32.mrb[0].mxu0
        %v7198 = vpop.f32.mrb[0].mxu0
        %v7199 = vpop.f32.mrb[0].mxu0
        %7200 = vmatprep.mubr.bf16.mxu0 0
        %7201 = vmatmul.mubr.bf16.gmra.mrb[0].mxu0 %v4400
        %v7202 = vpop.f32.mrb[0].mxu0
        %v7203 = vpop.f32.mrb[0].mxu0
        %v7204 = vpop.f32.mrb[0].mxu0
        %v7205 = vpop.f32.mrb[0].mxu0
        %7206 = vmatprep.mubr.bf16.mxu0 0
        %7207 = vmatmul.mubr.bf16.gmra.mrb[0].mxu0 %v4401
        %v7208 = vpop.f32.mrb[0].mxu0
        %v7209 = vadd.f32 %v6840, %v7208
        %v7210 = vpop.f32.mrb[0].mxu0
        %v7211 = vpop.f32.mrb[0].mxu0
        %v7212 = vadd.f32 %v6843, %v7211
        %v7213 = vpop.f32.mrb[0].mxu0
        %7214 = vmatprep.mubr.bf16.mxu0 0
        %7215 = vmatmul.mubr.bf16.gmra.mrb[0].mxu0 %v4402
        %v7216 = vpop.f32.mrb[0].mxu0
        %v7217 = vadd.f32 %v6848, %v7216
        %v7218 = vpop.f32.mrb[0].mxu0
        %v7219 = vpop.f32.mrb[0].mxu0
        %v7220 = vpop.f32.mrb[0].mxu0
        %7221 = vmatprep.mubr.bf16.mxu0 0
        %7222 = vmatmul.mubr.bf16.gmra.mrb[0].mxu0 %v4403
        %v7223 = vpop.f32.mrb[0].mxu0
        %v7224 = vpop.f32.mrb[0].mxu0
        %v7225 = vpop.f32.mrb[0].mxu0
        %v7226 = vpop.f32.mrb[0].mxu0
        %7227 = vmatprep.mubr.bf16.mxu0 0
        %7228 = vmatmul.mubr.bf16.gmra.mrb[0].mxu0 %v4404
        %v7229 = vpop.f32.mrb[0].mxu0
        %v7230 = vadd.f32 %v6861, %v7229
        %v7231 = vpop.f32.mrb[0].mxu0
        %v7232 = vpop.f32.mrb[0].mxu0
        %v7233 = vadd.f32 %v6864, %v7232
        %v7234 = vpop.f32.mrb[0].mxu0
        %7235 = vmatprep.mubr.bf16.mxu0 0
        %7236 = vmatmul.mubr.bf16.gmra.mrb[0].mxu0 %v4405
        %v7237 = vpop.f32.mrb[0].mxu0
        %v7238 = vadd.f32 %v6869, %v7237
        %v7239 = vpop.f32.mrb[0].mxu0
        %v7240 = vpop.f32.mrb[0].mxu0
        %v7241 = vpop.f32.mrb[0].mxu0
        %7242 = vmatprep.mubr.bf16.mxu0 0
        %7243 = vmatmul.mubr.bf16.gmra.mrb[0].mxu0 %v4406
        %v7244 = vpop.f32.mrb[0].mxu0
        %v7245 = vpop.f32.mrb[0].mxu0
        %v7246 = vpop.f32.mrb[0].mxu0
        %v7247 = vpop.f32.mrb[0].mxu0
        %7248 = vmatprep.mubr.bf16.mxu0 0
        %7249 = vmatmul.mubr.bf16.gmra.mrb[0].mxu0 %v4407
        %v7250 = vpop.f32.mrb[0].mxu0
        %v7251 = vadd.f32 %v6882, %v7250
        %v7252 = vpop.f32.mrb[0].mxu0
        %v7253 = vpop.f32.mrb[0].mxu0
        %v7254 = vadd.f32 %v6885, %v7253
        %v7255 = vpop.f32.mrb[0].mxu0
        %7256 = vmatprep.mubr.bf16.mxu0 0
        %7257 = vmatmul.mubr.bf16.gmra.mrb[0].mxu0 %v4408
        %v7258 = vpop.f32.mrb[0].mxu0
        %v7259 = vadd.f32 %v6890, %v7258
        %v7260 = vpop.f32.mrb[0].mxu0
        %v7261 = vpop.f32.mrb[0].mxu0
        %v7262 = vpop.f32.mrb[0].mxu0
        %7263 = vmatprep.mubr.bf16.mxu0 0
        %7264 = vmatmul.mubr.bf16.gmra.mrb[0].mxu0 %v4409
        %v7265 = vpop.f32.mrb[0].mxu0
        %v7266 = vpop.f32.mrb[0].mxu0
        %v7267 = vpop.f32.mrb[0].mxu0
        %v7268 = vpop.f32.mrb[0].mxu0
        %7269 = vmatprep.mubr.bf16.mxu0 0
        %7270 = vmatmul.mubr.bf16.gmra.mrb[0].mxu0 %v4410
        %v7271 = vpop.f32.mrb[0].mxu0
        %v7272 = vadd.f32 %v6903, %v7271
        %v7273 = vpop.f32.mrb[0].mxu0
        %v7274 = vpop.f32.mrb[0].mxu0
        %v7275 = vadd.f32 %v6906, %v7274
        %v7276 = vpop.f32.mrb[0].mxu0
        %7277 = vmatprep.mubr.bf16.mxu0 0
        %7278 = vmatmul.mubr.bf16.gmra.mrb[0].mxu0 %v4411
        %v7279 = vpop.f32.mrb[0].mxu0
        %v7280 = vadd.f32 %v6911, %v7279
        %v7281 = vpop.f32.mrb[0].mxu0
        %v7282 = vpop.f32.mrb[0].mxu0
        %v7283 = vpop.f32.mrb[0].mxu0
        %7284 = vdwg.mxu0
        %v7285 = vrot.slane %v6957, 2
        %v7286 = vrot.slane %v6960, 2
        %v7287 = vrot.slane %v6965, 2
        %v7288 = vrot.slane %v6978, 2
        %v7289 = vrot.slane %v6981, 2
        %v7290 = vrot.slane %v6986, 2
        %v7291 = vrot.slane %v6999, 2
        %v7292 = vrot.slane %v7002, 2
        %v7293 = vrot.slane %v7007, 2
        %v7294 = vrot.slane %v7020, 2
        %v7295 = vrot.slane %v7023, 2
        %v7296 = vrot.slane %v7028, 2
        %v7297 = vrot.slane %v7041, 2
        %v7298 = vrot.slane %v7044, 2
        %v7299 = vrot.slane %v7049, 2
        %v7300 = vrot.slane %v7062, 2
        %v7301 = vrot.slane %v7065, 2
        %v7302 = vrot.slane %v7070, 2
        %v7303 = vrot.slane %v7083, 2
        %v7304 = vrot.slane %v7086, 2
        %v7305 = vrot.slane %v7091, 2
        %v7306 = vrot.slane %v7104, 2
        %v7307 = vrot.slane %v7107, 2
        %v7308 = vrot.slane %v7112, 2
        %v7309 = vrot.slane %v7125, 2
        %v7310 = vrot.slane %v7128, 2
        %v7311 = vrot.slane %v7133, 2
        %v7312 = vrot.slane %v7146, 2
        %v7313 = vrot.slane %v7149, 2
        %v7314 = vrot.slane %v7154, 2
        %v7315 = vrot.slane %v7167, 2
        %v7316 = vrot.slane %v7170, 2
        %v7317 = vrot.slane %v7175, 2
        %v7318 = vrot.slane %v7188, 2
        %v7319 = vrot.slane %v7191, 2
        %v7320 = vrot.slane %v7196, 2
        %v7321 = vrot.slane %v7209, 2
        %v7322 = vrot.slane %v7212, 2
        %v7323 = vrot.slane %v7217, 2
        %v7324 = vrot.slane %v7230, 2
        %v7325 = vrot.slane %v7233, 2
        %v7326 = vrot.slane %v7238, 2
        %v7327 = vrot.slane %v7251, 2
        %v7328 = vrot.slane %v7254, 2
        %v7329 = vrot.slane %v7259, 2
        %v7330 = vrot.slane %v7272, 2
        %v7331 = vrot.slane %v7275, 2
        %v7332 = vrot.slane %v7280, 2
        %vm7333 = vcmp.lt.s32.totalorder %v579, 6
        %v7334 = vsel %vm7333, %v7331, %v7332
        %v7335 = vsel %vm7333, %v7330, %v7331
        %v7336 = vsel %vm7333, %v7328, %v7329
        %v7337 = vsel %vm7333, %v7327, %v7328
        %v7338 = vsel %vm7333, %v7325, %v7326
        %v7339 = vsel %vm7333, %v7324, %v7325
        %v7340 = vsel %vm7333, %v7322, %v7323
        %v7341 = vsel %vm7333, %v7321, %v7322
        %v7342 = vsel %vm7333, %v7319, %v7320
        %v7343 = vsel %vm7333, %v7318, %v7319
        %v7344 = vsel %vm7333, %v7316, %v7317
        %v7345 = vsel %vm7333, %v7315, %v7316
        %v7346 = vsel %vm7333, %v7313, %v7314
        %v7347 = vsel %vm7333, %v7312, %v7313
        %v7348 = vsel %vm7333, %v7310, %v7311
        %v7349 = vsel %vm7333, %v7309, %v7310
        %v7350 = vsel %vm7333, %v7307, %v7308
        %v7351 = vsel %vm7333, %v7306, %v7307
        %v7352 = vsel %vm7333, %v7304, %v7305
        %v7353 = vsel %vm7333, %v7303, %v7304
        %v7354 = vsel %vm7333, %v7301, %v7302
        %v7355 = vsel %vm7333, %v7300, %v7301
        %v7356 = vsel %vm7333, %v7298, %v7299
        %v7357 = vsel %vm7333, %v7297, %v7298
        %v7358 = vsel %vm7333, %v7295, %v7296
        %v7359 = vsel %vm7333, %v7294, %v7295
        %v7360 = vsel %vm7333, %v7292, %v7293
        %v7361 = vsel %vm7333, %v7291, %v7292
        %v7362 = vsel %vm7333, %v7289, %v7290
        %v7363 = vsel %vm7333, %v7288, %v7289
        %v7364 = vsel %vm7333, %v7286, %v7287
        %v7365 = vsel %vm7333, %v7285, %v7286
        %v7366 = vadd.f32 %v6322, %v7365
        %v7367 = vadd.f32 %v6323, %v7364
        %v7368 = vadd.f32 %v6324, %v7363
        %v7369 = vadd.f32 %v6325, %v7362
        %v7370 = vadd.f32 %v6326, %v7361
        %v7371 = vadd.f32 %v6327, %v7360
        %v7372 = vadd.f32 %v6328, %v7359
        %v7373 = vadd.f32 %v6329, %v7358
        %v7374 = vadd.f32 %v6330, %v7357
        %v7375 = vadd.f32 %v6331, %v7356
        %v7376 = vadd.f32 %v6332, %v7355
        %v7377 = vadd.f32 %v6333, %v7354
        %v7378 = vadd.f32 %v6334, %v7353
        %v7379 = vadd.f32 %v6335, %v7352
        %v7380 = vadd.f32 %v6336, %v7351
        %v7381 = vadd.f32 %v6337, %v7350
        %v7382 = vadd.f32 %v6338, %v7349
        %v7383 = vadd.f32 %v6339, %v7348
        %v7384 = vadd.f32 %v6340, %v7347
        %v7385 = vadd.f32 %v6341, %v7346
        %v7386 = vadd.f32 %v6342, %v7345
        %v7387 = vadd.f32 %v6343, %v7344
        %v7388 = vadd.f32 %v6344, %v7343
        %v7389 = vadd.f32 %v6345, %v7342
        %v7390 = vadd.f32 %v6346, %v7341
        %v7391 = vadd.f32 %v6347, %v7340
        %v7392 = vadd.f32 %v6348, %v7339
        %v7393 = vadd.f32 %v6349, %v7338
        %v7394 = vadd.f32 %v6350, %v7337
        %v7395 = vadd.f32 %v6351, %v7336
        %v7396 = vadd.f32 %v6352, %v7335
        %v7397 = vadd.f32 %v6353, %v7334
        %v7399 = vlaneseq
        %v7400 = vshrl.u32 %v7399, 7
        %v7401 = vsub.s32 0, %v7400
        %v7402 = vrot.slane %v576, %v7401
        %v7404 = vmul.f32 %v7366, %v7402
        %v7405 = vmul.f32 %v7367, %v7402
        %v7406 = vmul.f32 %v7368, %v7402
        %v7407 = vmul.f32 %v7369, %v7402
        %v7408 = vmul.f32 %v7370, %v7402
        %v7409 = vmul.f32 %v7371, %v7402
        %v7410 = vmul.f32 %v7372, %v7402
        %v7411 = vmul.f32 %v7373, %v7402
        %v7412 = vmul.f32 %v7374, %v7402
        %v7413 = vmul.f32 %v7375, %v7402
        %v7414 = vmul.f32 %v7376, %v7402
        %v7415 = vmul.f32 %v7377, %v7402
        %v7416 = vmul.f32 %v7378, %v7402
        %v7417 = vmul.f32 %v7379, %v7402
        %v7418 = vmul.f32 %v7380, %v7402
        %v7419 = vmul.f32 %v7381, %v7402
        %v7420 = vmul.f32 %v7382, %v7402
        %v7421 = vmul.f32 %v7383, %v7402
        %v7422 = vmul.f32 %v7384, %v7402
        %v7423 = vmul.f32 %v7385, %v7402
        %v7424 = vmul.f32 %v7386, %v7402
        %v7425 = vmul.f32 %v7387, %v7402
        %v7426 = vmul.f32 %v7388, %v7402
        %v7427 = vmul.f32 %v7389, %v7402
        %v7428 = vmul.f32 %v7390, %v7402
        %v7429 = vmul.f32 %v7391, %v7402
        %v7430 = vmul.f32 %v7392, %v7402
        %v7431 = vmul.f32 %v7393, %v7402
        %v7432 = vmul.f32 %v7394, %v7402
        %v7433 = vmul.f32 %v7395, %v7402
        %v7434 = vmul.f32 %v7396, %v7402
        %v7435 = vmul.f32 %v7397, %v7402
        %v7437 = vlaneseq
        %v7438 = vshrl.u32 %v7437, 7
        %v7439 = vsub.s32 0, %v7438
        %v7440 = vrot.slane %v577, %v7439
        %v7442 = vadd.f32 %v7404, %v7440
        %v7443 = vadd.f32 %v7405, %v7440
        %v7444 = vadd.f32 %v7406, %v7440
        %v7445 = vadd.f32 %v7407, %v7440
        %v7446 = vadd.f32 %v7408, %v7440
        %v7447 = vadd.f32 %v7409, %v7440
        %v7448 = vadd.f32 %v7410, %v7440
        %v7449 = vadd.f32 %v7411, %v7440
        %v7450 = vadd.f32 %v7412, %v7440
        %v7451 = vadd.f32 %v7413, %v7440
        %v7452 = vadd.f32 %v7414, %v7440
        %v7453 = vadd.f32 %v7415, %v7440
        %v7454 = vadd.f32 %v7416, %v7440
        %v7455 = vadd.f32 %v7417, %v7440
        %v7456 = vadd.f32 %v7418, %v7440
        %v7457 = vadd.f32 %v7419, %v7440
        %v7458 = vadd.f32 %v7420, %v7440
        %v7459 = vadd.f32 %v7421, %v7440
        %v7460 = vadd.f32 %v7422, %v7440
        %v7461 = vadd.f32 %v7423, %v7440
        %v7462 = vadd.f32 %v7424, %v7440
        %v7463 = vadd.f32 %v7425, %v7440
        %v7464 = vadd.f32 %v7426, %v7440
        %v7465 = vadd.f32 %v7427, %v7440
        %v7466 = vadd.f32 %v7428, %v7440
        %v7467 = vadd.f32 %v7429, %v7440
        %v7468 = vadd.f32 %v7430, %v7440
        %v7469 = vadd.f32 %v7431, %v7440
        %v7470 = vadd.f32 %v7432, %v7440
        %v7471 = vadd.f32 %v7433, %v7440
        %v7472 = vadd.f32 %v7434, %v7440
        %v7473 = vadd.f32 %v7435, %v7440
        %v7474 = vld [vmem:[%s303] sm:$0xf]
        %v7475 = vld [vmem:[%s303 + $0x4] sm:$0xf]
        %v7476 = vld [vmem:[%s303 + $0x8] sm:$0xf]
        %v7477 = vld [vmem:[%s303 + $0xc] sm:$0xf]
        %v7478 = vld [vmem:[%s303 + $0x10] sm:$0xf]
        %v7479 = vld [vmem:[%s303 + $0x14] sm:$0xf]
        %v7480 = vld [vmem:[%s303 + $0x18] sm:$0xf]
        %v7481 = vld [vmem:[%s303 + $0x1c] sm:$0xf]
        %v7482 = vld [vmem:[%s303 + $0x20] sm:$0xf]
        %v7483 = vld [vmem:[%s303 + $0x24] sm:$0xf]
        %v7484 = vld [vmem:[%s303 + $0x28] sm:$0xf]
        %v7485 = vld [vmem:[%s303 + $0x2c] sm:$0xf]
        %v7486 = vld [vmem:[%s303 + $0x30] sm:$0xf]
        %v7487 = vld [vmem:[%s303 + $0x34] sm:$0xf]
        %v7488 = vld [vmem:[%s303 + $0x38] sm:$0xf]
        %v7489 = vld [vmem:[%s303 + $0x3c] sm:$0xf]
        %v7490 = vld [vmem:[%s303 + $0x40] sm:$0xf]
        %v7491 = vld [vmem:[%s303 + $0x44] sm:$0xf]
        %v7492 = vld [vmem:[%s303 + $0x48] sm:$0xf]
        %v7493 = vld [vmem:[%s303 + $0x4c] sm:$0xf]
        %v7494 = vld [vmem:[%s303 + $0x50] sm:$0xf]
        %v7495 = vld [vmem:[%s303 + $0x54] sm:$0xf]
        %v7496 = vld [vmem:[%s303 + $0x58] sm:$0xf]
        %v7497 = vld [vmem:[%s303 + $0x5c] sm:$0xf]
        %v7498 = vld [vmem:[%s303 + $0x60] sm:$0xf]
        %v7499 = vld [vmem:[%s303 + $0x64] sm:$0xf]
        %v7500 = vld [vmem:[%s303 + $0x68] sm:$0xf]
        %v7501 = vld [vmem:[%s303 + $0x6c] sm:$0xf]
        %v7502 = vld [vmem:[%s303 + $0x70] sm:$0xf]
        %v7503 = vld [vmem:[%s303 + $0x74] sm:$0xf]
        %v7504 = vld [vmem:[%s303 + $0x78] sm:$0xf]
        %v7505 = vld [vmem:[%s303 + $0x7c] sm:$0xf]
        %v7506 = vunpack.c.l.bf16 %v7474
        %v7507 = vunpack.c.l.bf16 %v7475
        %v7508 = vunpack.c.l.bf16 %v7476
        %v7509 = vunpack.c.l.bf16 %v7477
        %v7510 = vunpack.c.l.bf16 %v7478
        %v7511 = vunpack.c.l.bf16 %v7479
        %v7512 = vunpack.c.l.bf16 %v7480
        %v7513 = vunpack.c.l.bf16 %v7481
        %v7514 = vunpack.c.l.bf16 %v7482
        %v7515 = vunpack.c.l.bf16 %v7483
        %v7516 = vunpack.c.l.bf16 %v7484
        %v7517 = vunpack.c.l.bf16 %v7485
        %v7518 = vunpack.c.l.bf16 %v7486
        %v7519 = vunpack.c.l.bf16 %v7487
        %v7520 = vunpack.c.l.bf16 %v7488
        %v7521 = vunpack.c.l.bf16 %v7489
        %v7522 = vunpack.c.l.bf16 %v7490
        %v7523 = vunpack.c.l.bf16 %v7491
        %v7524 = vunpack.c.l.bf16 %v7492
        %v7525 = vunpack.c.l.bf16 %v7493
        %v7526 = vunpack.c.l.bf16 %v7494
        %v7527 = vunpack.c.l.bf16 %v7495
        %v7528 = vunpack.c.l.bf16 %v7496
        %v7529 = vunpack.c.l.bf16 %v7497
        %v7530 = vunpack.c.l.bf16 %v7498
        %v7531 = vunpack.c.l.bf16 %v7499
        %v7532 = vunpack.c.l.bf16 %v7500
        %v7533 = vunpack.c.l.bf16 %v7501
        %v7534 = vunpack.c.l.bf16 %v7502
        %v7535 = vunpack.c.l.bf16 %v7503
        %v7536 = vunpack.c.l.bf16 %v7504
        %v7537 = vunpack.c.l.bf16 %v7505
        %v7538 = vadd.f32 %v7442, %v7506
        %v7539 = vadd.f32 %v7443, %v7507
        %v7540 = vadd.f32 %v7444, %v7508
        %v7541 = vadd.f32 %v7445, %v7509
        %v7542 = vadd.f32 %v7446, %v7510
        %v7543 = vadd.f32 %v7447, %v7511
        %v7544 = vadd.f32 %v7448, %v7512
        %v7545 = vadd.f32 %v7449, %v7513
        %v7546 = vadd.f32 %v7450, %v7514
        %v7547 = vadd.f32 %v7451, %v7515
        %v7548 = vadd.f32 %v7452, %v7516
        %v7549 = vadd.f32 %v7453, %v7517
        %v7550 = vadd.f32 %v7454, %v7518
        %v7551 = vadd.f32 %v7455, %v7519
        %v7552 = vadd.f32 %v7456, %v7520
        %v7553 = vadd.f32 %v7457, %v7521
        %v7554 = vadd.f32 %v7458, %v7522
        %v7555 = vadd.f32 %v7459, %v7523
        %v7556 = vadd.f32 %v7460, %v7524
        %v7557 = vadd.f32 %v7461, %v7525
        %v7558 = vadd.f32 %v7462, %v7526
        %v7559 = vadd.f32 %v7463, %v7527
        %v7560 = vadd.f32 %v7464, %v7528
        %v7561 = vadd.f32 %v7465, %v7529
        %v7562 = vadd.f32 %v7466, %v7530
        %v7563 = vadd.f32 %v7467, %v7531
        %v7564 = vadd.f32 %v7468, %v7532
        %v7565 = vadd.f32 %v7469, %v7533
        %v7566 = vadd.f32 %v7470, %v7534
        %v7567 = vadd.f32 %v7471, %v7535
        %v7568 = vadd.f32 %v7472, %v7536
        %v7569 = vadd.f32 %v7473, %v7537
        %v7570 = vmax.f32 %v7538, 0.0
        %v7571 = vmax.f32 %v7539, 0.0
        %v7572 = vmax.f32 %v7540, 0.0
        %v7573 = vmax.f32 %v7541, 0.0
        %v7574 = vmax.f32 %v7542, 0.0
        %v7575 = vmax.f32 %v7543, 0.0
        %v7576 = vmax.f32 %v7544, 0.0
        %v7577 = vmax.f32 %v7545, 0.0
        %v7578 = vmax.f32 %v7546, 0.0
        %v7579 = vmax.f32 %v7547, 0.0
        %v7580 = vmax.f32 %v7548, 0.0
        %v7581 = vmax.f32 %v7549, 0.0
        %v7582 = vmax.f32 %v7550, 0.0
        %v7583 = vmax.f32 %v7551, 0.0
        %v7584 = vmax.f32 %v7552, 0.0
        %v7585 = vmax.f32 %v7553, 0.0
        %v7586 = vmax.f32 %v7554, 0.0
        %v7587 = vmax.f32 %v7555, 0.0
        %v7588 = vmax.f32 %v7556, 0.0
        %v7589 = vmax.f32 %v7557, 0.0
        %v7590 = vmax.f32 %v7558, 0.0
        %v7591 = vmax.f32 %v7559, 0.0
        %v7592 = vmax.f32 %v7560, 0.0
        %v7593 = vmax.f32 %v7561, 0.0
        %v7594 = vmax.f32 %v7562, 0.0
        %v7595 = vmax.f32 %v7563, 0.0
        %v7596 = vmax.f32 %v7564, 0.0
        %v7597 = vmax.f32 %v7565, 0.0
        %v7598 = vmax.f32 %v7566, 0.0
        %v7599 = vmax.f32 %v7567, 0.0
        %v7600 = vmax.f32 %v7568, 0.0
        %v7601 = vmax.f32 %v7569, 0.0
        %7602 = vst.msk [vmem:[%s308] sm:$0xff] %vm557, %v7570
        %7603 = vst.msk [vmem:[%s308 + $0x8] sm:$0xff] %vm557, %v7571
        %7604 = vst.msk [vmem:[%s308 + $0x10] sm:$0xff] %vm557, %v7572
        %7605 = vst.msk [vmem:[%s308 + $0x18] sm:$0xff] %vm557, %v7573
        %7606 = vst.msk [vmem:[%s308 + $0x20] sm:$0xff] %vm557, %v7574
        %7607 = vst.msk [vmem:[%s308 + $0x28] sm:$0xff] %vm557, %v7575
        %7608 = vst.msk [vmem:[%s308 + $0x30] sm:$0xff] %vm557, %v7576
        %7609 = vst.msk [vmem:[%s308 + $0x38] sm:$0xff] %vm557, %v7577
        %7610 = vst.msk [vmem:[%s308 + $0x40] sm:$0xff] %vm557, %v7578
        %7611 = vst.msk [vmem:[%s308 + $0x48] sm:$0xff] %vm557, %v7579
        %7612 = vst.msk [vmem:[%s308 + $0x50] sm:$0xff] %vm557, %v7580
        %7613 = vst.msk [vmem:[%s308 + $0x58] sm:$0xff] %vm557, %v7581
        %7614 = vst.msk [vmem:[%s308 + $0x60] sm:$0xff] %vm557, %v7582
        %7615 = vst.msk [vmem:[%s308 + $0x68] sm:$0xff] %vm557, %v7583
        %7616 = vst.msk [vmem:[%s308 + $0x70] sm:$0xff] %vm557, %v7584
        %7617 = vst.msk [vmem:[%s308 + $0x78] sm:$0xff] %vm557, %v7585
        %7618 = vst.msk [vmem:[%s308 + $0x80] sm:$0xff] %vm557, %v7586
        %7619 = vst.msk [vmem:[%s308 + $0x88] sm:$0xff] %vm557, %v7587
        %7620 = vst.msk [vmem:[%s308 + $0x90] sm:$0xff] %vm557, %v7588
        %7621 = vst.msk [vmem:[%s308 + $0x98] sm:$0xff] %vm557, %v7589
        %7622 = vst.msk [vmem:[%s308 + $0xa0] sm:$0xff] %vm557, %v7590
        %7623 = vst.msk [vmem:[%s308 + $0xa8] sm:$0xff] %vm557, %v7591
        %7624 = vst.msk [vmem:[%s308 + $0xb0] sm:$0xff] %vm557, %v7592
        %7625 = vst.msk [vmem:[%s308 + $0xb8] sm:$0xff] %vm557, %v7593
        %7626 = vst.msk [vmem:[%s308 + $0xc0] sm:$0xff] %vm557, %v7594
        %7627 = vst.msk [vmem:[%s308 + $0xc8] sm:$0xff] %vm557, %v7595
        %7628 = vst.msk [vmem:[%s308 + $0xd0] sm:$0xff] %vm557, %v7596
        %7629 = vst.msk [vmem:[%s308 + $0xd8] sm:$0xff] %vm557, %v7597
        %7630 = vst.msk [vmem:[%s308 + $0xe0] sm:$0xff] %vm557, %v7598
        %7631 = vst.msk [vmem:[%s308 + $0xe8] sm:$0xff] %vm557, %v7599
        %7632 = vst.msk [vmem:[%s308 + $0xf0] sm:$0xff] %vm557, %v7600
        %7633 = vst.msk [vmem:[%s308 + $0xf8] sm:$0xff] %vm557, %v7601
        %p7634 = scmp.lt.s32.totalorder %s20, 1
        %s7635 = scalar_select %p7634, %s20, 1
        %s7636 = smul.addr %s7635, 32
        %s7637 = smul.addr %s7636, 8
        %s7638 = scalar_lea.vmem %s7, %s7637
        // Predicated region
        $region61: #{tpu_custom_call.1} parent=47 // pred_check
          %p7639 = pneg %p190
        $region62: #{tpu_custom_call.1} parent=47 // pred_check_branch
          %7641 = sbr.rel (%p7639) target = $region64
        $region63: #{tpu_custom_call.1} parent=47 // pred_region
          _
        $region64: #{tpu_custom_call.1} parent=47 // pred_fallthru
          _
      $region48: #{tpu_custom_call.1} parent=5 // pred_fallthru
        _
      %p7642 = scmp.le.s32.totalorder 2, %s15
      // Predicated region
      $region65: #{tpu_custom_call.1} parent=5 // pred_check
        %p7643 = pneg %p7642
      $region66: #{tpu_custom_call.1} parent=5 // pred_check_branch
        %7645 = sbr.rel (%p7643) target = $region68
      $region67: #{tpu_custom_call.1} parent=5 // pred_region
        %s7646 = ssub.s32 %s15, 2
        // Predicated region
        $region69: #{tpu_custom_call.1} parent=67 // pred_check
          %p7647 = pneg %p196
        $region70: #{tpu_custom_call.1} parent=67 // pred_check_branch
          %7649 = sbr.rel (%p7647) target = $region72
        $region71: #{tpu_custom_call.1} parent=67 // pred_region
          %p7650 = scmp.lt.s32.totalorder %s21, 1
          %s7651 = scalar_select %p7650, %s21, 1
          %s7652 = smul.addr %s7651, 32
          %s7653 = smul.addr %s7652, 8
          %s7654 = scalar_lea.vmem %s7, %s7653
        $region72: #{tpu_custom_call.1} parent=67 // pred_fallthru
          _
      $region68: #{tpu_custom_call.1} parent=5 // pred_fallthru
        _
    $region6: #{tpu_custom_call.1} parent=1 // loop_footer
      %s19 = sadd.s32 1, %s15
    $region7: #{tpu_custom_call.1} parent=1 // loop_footer_branch
      %14 = sbr.rel target = $region3
    $region8: #{tpu_custom_call.1} parent=1 // loop_exit
      _
    %7655 = vsyncpa [#allocation5], 1
    %s7656 = scalar_lea.sflag [#allocation5], 1
    %7657 = vsyncpa %s7656, 1
    %7658 = vsyncpa [#allocation7], 1

</llo_original>
